<compile_context>
chip_gen: v7x
topology: tpu7x:2x2x1
jax: 0.10.0
libtpu: 0.0.40
codegen_flags: <defaults>
</compile_context>

<pallas_src>
import functools

import jax
import jax.numpy as jnp
from jax import lax
from jax.experimental import pallas as pl
from jax.experimental.pallas import tpu as pltpu


# ----------------------------------------------------------------------------
# Fused window-attention kernel: one grid step = BW windows.
#
# self-attention refs:
#   xq_ref (BW,N,C), bm_ref (nw,H,N,N), wqkv (C,3C), bqkv (1,3C),
#   wp (C,C), bp (1,C), o_ref (BW,N,C), ctx_ref scratch (BW*N, C) f32
# cross-attention refs:
#   xq_ref, xkv_ref, bm_ref, wq (C,C), bq (1,C), wkv (C,2C), bkv (1,2C),
#   wp, bp, o_ref, ctx_ref
# ----------------------------------------------------------------------------
def _window_attention_kernel(*refs, num_heads, nw, self_attention):
    if self_attention:
        (xq_ref, bm_ref, wqkv_ref, bqkv_ref,
         wp_ref, bp_ref, o_ref, ctx_ref) = refs
    else:
        (xq_ref, xkv_ref, bm_ref, wq_ref, bq_ref, wkv_ref, bkv_ref,
         wp_ref, bp_ref, o_ref, ctx_ref) = refs

    BW, N, C = xq_ref.shape
    H = num_heads
    d = C // H
    M = BW * N

    # Projections as single big matmuls over all BW windows (f32 accumulate).
    xq = xq_ref[...].reshape(M, C)
    if self_attention:
        qkv = jnp.dot(xq, wqkv_ref[...],
                      preferred_element_type=jnp.float32) + bqkv_ref[...]
        q, k, v = qkv[:, :C], qkv[:, C:2 * C], qkv[:, 2 * C:]
    else:
        xkv = xkv_ref[...].reshape(M, C)
        q = jnp.dot(xq, wq_ref[...],
                    preferred_element_type=jnp.float32) + bq_ref[...]
        kv = jnp.dot(xkv, wkv_ref[...],
                     preferred_element_type=jnp.float32) + bkv_ref[...]
        k, v = kv[:, :C], kv[:, C:]

    # Per-head / per-window attention; scale already folded into wq/bq, and
    # relative-position bias + shifted-window mask pre-combined into bm_ref.
    for h in range(H):                       # static unroll (H is small)
        lo, hi = h * d, (h + 1) * d
        qh, kh, vh = q[:, lo:hi], k[:, lo:hi], v[:, lo:hi]   # (M, d)
        for w in range(BW):                  # static unroll over windows
            r0 = w * N
            s = lax.dot_general(qh[r0:r0 + N], kh[r0:r0 + N],
                                (((1,), (1,)), ((), ())),
                                preferred_element_type=jnp.float32)   # (N, N)
            s = s + bm_ref[w % nw, h]        # bias (+ mask) in one add
            # numerically-stable softmax; normalize AFTER the PV matmul so the
            # divide is a (N,1) EUP reciprocal + (N,d) multiply, not (N,N).
            s = s - jnp.max(s, axis=-1, keepdims=True)
            p = jnp.exp(s)
            l = jnp.sum(p, axis=-1, keepdims=True)
            oh = jnp.dot(p, vh[r0:r0 + N],
                         preferred_element_type=jnp.float32)          # (N, d)
            ctx_ref[r0:r0 + N, lo:hi] = oh * pl.reciprocal(l, approx=True)

    # Single output-projection matmul for the whole block of windows.
    y = jnp.dot(ctx_ref[...], wp_ref[...],
                preferred_element_type=jnp.float32) + bp_ref[...]
    o_ref[...] = y.reshape(BW, N, C).astype(o_ref.dtype)


def _choose_windows_per_block(B_, nw, bytes_per_window):
    """Pick BW: multiple of nw, divides B_, fits a modest VMEM budget,
    prefers grid length >= 2 so both TensorCores get work (megacore/v7x)."""
    budget = 6 * 1024 * 1024                      # per pipelined block stream
    max_bw = max(nw, min(16, budget // max(1, 2 * bytes_per_window)))
    reps = B_ // nw
    divisors = [t for t in range(1, reps + 1) if reps % t == 0]
    feasible = [t for t in divisors if nw * t <= max_bw] or [1]
    pref = [t for t in feasible if reps // t >= 2]
    t = max(pref) if pref else max(feasible)
    return nw * t


class WindowAttention:
    """JAX/Pallas port of the PyTorch WindowAttention module (inference)."""

    def __init__(self, dim, window_size, num_heads, qkv_bias=True, qk_scale=None,
                 attn_drop=0.0, proj_drop=0.0, key=None):
        self.dim = dim
        self.window_size = tuple(window_size)
        self.num_heads = num_heads
        head_dim = dim // num_heads
        self.scale = float(qk_scale) if qk_scale is not None else head_dim ** (-0.5)

        if key is None:
            key = jax.random.PRNGKey(0)
        kq, kqb, kkv, kkvb, kp, kpb, kt = jax.random.split(key, 7)

        def _linear_init(kw, kb, fan_in, fan_out, with_bias):
            bound = 1.0 / (fan_in ** 0.5)
            w = jax.random.uniform(kw, (fan_in, fan_out), jnp.float32, -bound, bound)
            if with_bias:
                b = jax.random.uniform(kb, (1, fan_out), jnp.float32, -bound, bound)
            else:
                b = jnp.zeros((1, fan_out), jnp.float32)
            return w, b

        # Weights in (in, out) layout (transposed vs. torch's (out, in)).
        self.wq, self.bq = _linear_init(kq, kqb, dim, dim, qkv_bias)
        self.wkv, self.bkv = _linear_init(kkv, kkvb, dim, 2 * dim, qkv_bias)
        self.wp, self.bp = _linear_init(kp, kpb, dim, dim, True)

        # scale folded into the query projection (exact), fused qkv for the
        # self-attention fast path.
        self.wq_s = self.wq * self.scale
        self.bq_s = self.bq * self.scale
        self.wqkv = jnp.concatenate([self.wq_s, self.wkv], axis=1)   # (C, 3C)
        self.bqkv = jnp.concatenate([self.bq_s, self.bkv], axis=1)   # (1, 3C)

        Wh, Ww = self.window_size
        N = Wh * Ww
        self.relative_position_bias_table = 0.02 * jax.random.truncated_normal(
            kt, -2.0, 2.0, ((2 * Wh - 1) * (2 * Ww - 1), num_heads), jnp.float32)

        coords = jnp.stack(jnp.meshgrid(jnp.arange(Wh), jnp.arange(Ww), indexing="ij"))
        coords_flatten = coords.reshape(2, -1)                           # (2, N)
        rel = coords_flatten[:, :, None] - coords_flatten[:, None, :]    # (2, N, N)
        rel = rel.transpose(1, 2, 0)                                     # (N, N, 2)
        idx = (rel[..., 0] + Wh - 1) * (2 * Ww - 1) + (rel[..., 1] + Ww - 1)
        self.relative_position_index = idx.astype(jnp.int32)             # (N, N)

        # Gather the (H, N, N) relative position bias once, at init.
        rb = self.relative_position_bias_table[
            self.relative_position_index.reshape(-1)].reshape(N, N, num_heads)
        self.relative_position_bias = jnp.transpose(rb, (2, 0, 1)).astype(jnp.float32)

        self.attn_drop = attn_drop    # identity at p=0.0 (inference)
        self.proj_drop = proj_drop

    def __call__(self, xq, xkv=None, mask=None):
        self_attention = xkv is None
        B_, N, C = xq.shape
        H = self.num_heads
        assert C == self.dim
        assert N == self.window_size[0] * self.window_size[1]

        # Combine rel-pos bias with the per-window mask: (nw, H, N, N).
        if mask is not None:
            nw = mask.shape[0]
            assert B_ % nw == 0, "num_windows*batch must be divisible by nw"
            bm = self.relative_position_bias[None] + mask[:, None].astype(jnp.float32)
        else:
            nw = 1
            bm = self.relative_position_bias[None]                     # (1, H, N, N)

        n_streams = (1 if self_attention else 2) + 1                    # inputs + out
        bytes_per_window = n_streams * N * C * xq.dtype.itemsize
        BW = _choose_windows_per_block(B_, nw, bytes_per_window)
        grid = (B_ // BW,)

        kernel = functools.partial(_window_attention_kernel,
                                   num_heads=H, nw=nw,
                                   self_attention=self_attention)

        x_spec = pl.BlockSpec((BW, N, C), lambda b: (b, 0, 0))
        c2 = lambda b: (0, 0)
        c4 = lambda b: (0, 0, 0, 0)
        bm_spec = pl.BlockSpec((nw, H, N, N), c4)

        if self_attention:
            in_specs = [
                x_spec,                                   # xq
                bm_spec,                                  # bias (+ mask), resident
                pl.BlockSpec((C, 3 * C), c2),             # fused wqkv (scale folded)
                pl.BlockSpec((1, 3 * C), c2),             # fused bqkv
                pl.BlockSpec((C, C), c2),                 # wproj
                pl.BlockSpec((1, C), c2),                 # bproj
            ]
            args = (xq, bm, self.wqkv, self.bqkv, self.wp, self.bp)
        else:
            assert xkv.shape == (B_, N, C)
            in_specs = [
                x_spec,                                   # xq
                pl.BlockSpec((BW, N, C), lambda b: (b, 0, 0)),   # xkv
                bm_spec,                                  # bias (+ mask)
                pl.BlockSpec((C, C), c2),                 # wq (scale folded)
                pl.BlockSpec((1, C), c2),                 # bq (scale folded)
                pl.BlockSpec((C, 2 * C), c2),             # wkv
                pl.BlockSpec((1, 2 * C), c2),             # bkv
                pl.BlockSpec((C, C), c2),                 # wproj
                pl.BlockSpec((1, C), c2),                 # bproj
            ]
            args = (xq, xkv, bm, self.wq_s, self.bq_s, self.wkv, self.bkv,
                    self.wp, self.bp)

        return pl.pallas_call(
            kernel,
            out_shape=jax.ShapeDtypeStruct((B_, N, C), xq.dtype),
            grid_spec=pltpu.PrefetchScalarGridSpec(
                num_scalar_prefetch=0,
                grid=grid,
                in_specs=in_specs,
                out_specs=pl.BlockSpec((BW, N, C), lambda b: (b, 0, 0)),
                scratch_shapes=[pltpu.VMEM((BW * N, C), jnp.float32)],
            ),
            compiler_params=pltpu.CompilerParams(
                dimension_semantics=("parallel",)),
        )(*args)


# ----------------------------------------------------------------------------
# Pure-JAX reference for verification
# ----------------------------------------------------------------------------
def _ref_forward(m, xq, xkv=None, mask=None):
    if xkv is None:
        xkv = xq
    B_, N, C = xq.shape
    H = m.num_heads
    d = C // H
    with jax.default_matmul_precision("highest"):
        q = xq @ m.wq + m.bq
        kv = xkv @ m.wkv + m.bkv
        k, v = kv[..., :C], kv[..., C:]
        q = q.reshape(B_, N, H, d).transpose(0, 2, 1, 3) * m.scale
        k = k.reshape(B_, N, H, d).transpose(0, 2, 1, 3)
        v = v.reshape(B_, N, H, d).transpose(0, 2, 1, 3)
        attn = jnp.einsum("bhnd,bhmd->bhnm", q, k)
        bias = m.relative_position_bias_table[
            m.relative_position_index.reshape(-1)].reshape(N, N, H)
        attn = attn + jnp.transpose(bias, (2, 0, 1))[None]
        if mask is not None:
            nw = mask.shape[0]
            attn = attn.reshape(B_ // nw, nw, H, N, N) + mask[None, :, None]
            attn = attn.reshape(B_, H, N, N)
        attn = jax.nn.softmax(attn, axis=-1)
        x = jnp.einsum("bhnm,bhmd->bhnd", attn, v)
        x = x.transpose(0, 2, 1, 3).reshape(B_, N, C)
        x = x @ m.wp + m.bp
    return x


if __name__ == "__main__":
    key = jax.random.PRNGKey(0)
    kx, kkv, kparam = jax.random.split(key, 3)

    # Small shapes consistent with the module: C=32, 4 heads, 8x8 window
    # (N=64), B_ = num_windows(4) * batch(2) = 8 windows total.
    dim, num_heads, window_size = 32, 4, (8, 8)
    N = window_size[0] * window_size[1]
    nw, batch = 4, 2
    B_ = nw * batch

    attn = WindowAttention(dim, window_size, num_heads, key=kparam)
    xq = jax.random.normal(kx, (B_, N, dim), jnp.float32)

    # 1) self-attention, no mask (fused qkv fast path)
    y0 = jax.block_until_ready(attn(xq))
    y0_ref = _ref_forward(attn, xq)
    assert y0.shape == (B_, N, dim), y0.shape
    assert jnp.allclose(y0, y0_ref, atol=2e-3, rtol=2e-3), \
        float(jnp.max(jnp.abs(y0 - y0_ref)))

    # 2) shifted-window style mask: nw=4 distinct (N, N) masks
    idx = jnp.arange(N)
    masks = []
    for j in range(nw):
        seg = (idx + 7 * j) // 16
        masks.append(jnp.where(seg[:, None] != seg[None, :], -100.0, 0.0))
    mask = jnp.stack(masks).astype(jnp.float32)          # (nw, N, N)
    y1 = jax.block_until_ready(attn(xq, mask=mask))
    y1_ref = _ref_forward(attn, xq, mask=mask)
    assert jnp.allclose(y1, y1_ref, atol=2e-3, rtol=2e-3), \
        float(jnp.max(jnp.abs(y1 - y1_ref)))

    # 3) cross-attention (xkv != xq)
    xkv = jax.random.normal(kkv, (B_, N, dim), jnp.float32)
    y2 = jax.block_until_ready(attn(xq, xkv=xkv))
    y2_ref = _ref_forward(attn, xq, xkv=xkv)
    assert jnp.allclose(y2, y2_ref, atol=2e-3, rtol=2e-3), \
        float(jnp.max(jnp.abs(y2 - y2_ref)))

    print("KERNEL_OK")
</pallas_src>

<mosaic_0001>
module attributes {stable_mosaic.version = 11 : i64} {
  func.func @_window_attention_kernel(%arg0: i32, %arg1: memref<4x64x32xf32, #tpu.memory_space<vmem>>, %arg2: memref<1x4x64x64xf32, #tpu.memory_space<vmem>>, %arg3: memref<32x96xf32, #tpu.memory_space<vmem>>, %arg4: memref<1x96xf32, #tpu.memory_space<vmem>>, %arg5: memref<32x32xf32, #tpu.memory_space<vmem>>, %arg6: memref<1x32xf32, #tpu.memory_space<vmem>>, %arg7: memref<4x64x32xf32, #tpu.memory_space<vmem>>, %arg8: memref<256x32xf32, #tpu.memory_space<vmem>>) attributes {dimension_semantics = [#tpu.dimension_semantics<parallel>], iteration_bounds = array<i64: 2>, scalar_prefetch = 0 : i64, scratch_operands = 1 : i64, tpu.core_type = #tpu.core_type<tc>, window_params = [{transform_indices = @transform_0, window_bounds = array<i64: 4, 64, 32>}, {pipeline_mode = #tpu.pipeline_mode<synchronous>, transform_indices = @transform_1, window_bounds = array<i64: 1, 4, 64, 64>}, {pipeline_mode = #tpu.pipeline_mode<synchronous>, transform_indices = @transform_2, window_bounds = array<i64: 32, 96>}, {pipeline_mode = #tpu.pipeline_mode<synchronous>, transform_indices = @transform_3, window_bounds = array<i64: 1, 96>}, {pipeline_mode = #tpu.pipeline_mode<synchronous>, transform_indices = @transform_4, window_bounds = array<i64: 32, 32>}, {pipeline_mode = #tpu.pipeline_mode<synchronous>, transform_indices = @transform_5, window_bounds = array<i64: 1, 32>}, {transform_indices = @transform_6, window_bounds = array<i64: 4, 64, 32>}]} {
    %c0 = arith.constant 0 : index
    %c0_0 = arith.constant 0 : index
    %c0_1 = arith.constant 0 : index
    %0 = vector.load %arg1[%c0, %c0_0, %c0_1] : memref<4x64x32xf32, #tpu.memory_space<vmem>>, vector<4x64x32xf32>
    %1 = vector.shape_cast %0 : vector<4x64x32xf32> to vector<256x32xf32>
    %c0_2 = arith.constant 0 : index
    %c0_3 = arith.constant 0 : index
    %2 = vector.load %arg3[%c0_2, %c0_3] : memref<32x96xf32, #tpu.memory_space<vmem>>, vector<32x96xf32>
    %cst = arith.constant dense<0.000000e+00> : vector<256x96xf32>
    %3 = tpu.matmul %1, %2, %cst {dimension_numbers = #tpu.dot_dimension_numbers<[1], [0], [0], [1], [0, 0, 1, 1], [], []>} : vector<256x32xf32>, vector<32x96xf32>, vector<256x96xf32> -> vector<256x96xf32>
    %c0_4 = arith.constant 0 : index
    %c0_5 = arith.constant 0 : index
    %4 = vector.load %arg4[%c0_4, %c0_5] : memref<1x96xf32, #tpu.memory_space<vmem>>, vector<1x96xf32>
    %5 = vector.broadcast %4 : vector<1x96xf32> to vector<256x96xf32>
    %6 = arith.addf %3, %5 : vector<256x96xf32>
    %7 = vector.extract_strided_slice %6 {offsets = [0, 0], sizes = [256, 32], strides = [1, 1]} : vector<256x96xf32> to vector<256x32xf32>
    %8 = vector.extract_strided_slice %6 {offsets = [0, 32], sizes = [256, 32], strides = [1, 1]} : vector<256x96xf32> to vector<256x32xf32>
    %9 = vector.extract_strided_slice %6 {offsets = [0, 64], sizes = [256, 32], strides = [1, 1]} : vector<256x96xf32> to vector<256x32xf32>
    %10 = vector.extract_strided_slice %7 {offsets = [0, 0], sizes = [256, 8], strides = [1, 1]} : vector<256x32xf32> to vector<256x8xf32>
    %11 = vector.extract_strided_slice %8 {offsets = [0, 0], sizes = [256, 8], strides = [1, 1]} : vector<256x32xf32> to vector<256x8xf32>
    %12 = vector.extract_strided_slice %9 {offsets = [0, 0], sizes = [256, 8], strides = [1, 1]} : vector<256x32xf32> to vector<256x8xf32>
    %13 = vector.extract_strided_slice %10 {offsets = [0, 0], sizes = [64, 8], strides = [1, 1]} : vector<256x8xf32> to vector<64x8xf32>
    %14 = vector.extract_strided_slice %11 {offsets = [0, 0], sizes = [64, 8], strides = [1, 1]} : vector<256x8xf32> to vector<64x8xf32>
    %cst_6 = arith.constant dense<0.000000e+00> : vector<64x64xf32>
    %15 = tpu.matmul %13, %14, %cst_6 {dimension_numbers = #tpu.dot_dimension_numbers<[1], [1], [0], [0], [0, 0, 1, 0], [], []>} : vector<64x8xf32>, vector<64x8xf32>, vector<64x64xf32> -> vector<64x64xf32>
    %c0_7 = arith.constant 0 : index
    %c0_8 = arith.constant 0 : index
    %c0_9 = arith.constant 0 : index
    %c0_10 = arith.constant 0 : index
    %16 = vector.load %arg2[%c0_7, %c0_8, %c0_9, %c0_10] : memref<1x4x64x64xf32, #tpu.memory_space<vmem>>, vector<1x1x64x64xf32>
    %17 = vector.shape_cast %16 : vector<1x1x64x64xf32> to vector<64x64xf32>
    %18 = arith.addf %15, %17 : vector<64x64xf32>
    %cst_11 = arith.constant dense<0xFF800000> : vector<64xf32>
    %19 = vector.multi_reduction <maximumf>, %18, %cst_11 [1] : vector<64x64xf32> to vector<64xf32>
    %20 = vector.shape_cast %19 : vector<64xf32> to vector<64x1xf32>
    %21 = vector.broadcast %20 : vector<64x1xf32> to vector<64x64xf32>
    %22 = arith.subf %18, %21 : vector<64x64xf32>
    %23 = math.exp %22 : vector<64x64xf32>
    %cst_12 = arith.constant dense<0.000000e+00> : vector<64xf32>
    %24 = vector.multi_reduction <add>, %23, %cst_12 [1] : vector<64x64xf32> to vector<64xf32>
    %25 = vector.shape_cast %24 : vector<64xf32> to vector<64x1xf32>
    %26 = vector.extract_strided_slice %12 {offsets = [0, 0], sizes = [64, 8], strides = [1, 1]} : vector<256x8xf32> to vector<64x8xf32>
    %cst_13 = arith.constant dense<0.000000e+00> : vector<64x8xf32>
    %27 = tpu.matmul %23, %26, %cst_13 {dimension_numbers = #tpu.dot_dimension_numbers<[1], [0], [0], [1], [0, 0, 1, 1], [], []>} : vector<64x64xf32>, vector<64x8xf32>, vector<64x8xf32> -> vector<64x8xf32>
    %28 = tpu.reciprocal %25 {approx = true} : vector<64x1xf32> -> vector<64x1xf32>
    %29 = vector.broadcast %28 : vector<64x1xf32> to vector<64x8xf32>
    %30 = arith.mulf %27, %29 : vector<64x8xf32>
    %c0_14 = arith.constant 0 : index
    %c0_15 = arith.constant 0 : index
    %31 = vector.load %arg8[%c0_14, %c0_15] : memref<256x32xf32, #tpu.memory_space<vmem>>, vector<64x8xf32>
    tpu.vector_store %arg8[%c0_14, %c0_15], %30 {strides = array<i32>} : memref<256x32xf32, #tpu.memory_space<vmem>>, vector<64x8xf32>,
    %32 = vector.extract_strided_slice %10 {offsets = [64, 0], sizes = [64, 8], strides = [1, 1]} : vector<256x8xf32> to vector<64x8xf32>
    %33 = vector.extract_strided_slice %11 {offsets = [64, 0], sizes = [64, 8], strides = [1, 1]} : vector<256x8xf32> to vector<64x8xf32>
    %cst_16 = arith.constant dense<0.000000e+00> : vector<64x64xf32>
    %34 = tpu.matmul %32, %33, %cst_16 {dimension_numbers = #tpu.dot_dimension_numbers<[1], [1], [0], [0], [0, 0, 1, 0], [], []>} : vector<64x8xf32>, vector<64x8xf32>, vector<64x64xf32> -> vector<64x64xf32>
    %c0_17 = arith.constant 0 : index
    %c0_18 = arith.constant 0 : index
    %c0_19 = arith.constant 0 : index
    %c0_20 = arith.constant 0 : index
    %35 = vector.load %arg2[%c0_17, %c0_18, %c0_19, %c0_20] : memref<1x4x64x64xf32, #tpu.memory_space<vmem>>, vector<1x1x64x64xf32>
    %36 = vector.shape_cast %35 : vector<1x1x64x64xf32> to vector<64x64xf32>
    %37 = arith.addf %34, %36 : vector<64x64xf32>
    %cst_21 = arith.constant dense<0xFF800000> : vector<64xf32>
    %38 = vector.multi_reduction <maximumf>, %37, %cst_21 [1] : vector<64x64xf32> to vector<64xf32>
    %39 = vector.shape_cast %38 : vector<64xf32> to vector<64x1xf32>
    %40 = vector.broadcast %39 : vector<64x1xf32> to vector<64x64xf32>
    %41 = arith.subf %37, %40 : vector<64x64xf32>
    %42 = math.exp %41 : vector<64x64xf32>
    %cst_22 = arith.constant dense<0.000000e+00> : vector<64xf32>
    %43 = vector.multi_reduction <add>, %42, %cst_22 [1] : vector<64x64xf32> to vector<64xf32>
    %44 = vector.shape_cast %43 : vector<64xf32> to vector<64x1xf32>
    %45 = vector.extract_strided_slice %12 {offsets = [64, 0], sizes = [64, 8], strides = [1, 1]} : vector<256x8xf32> to vector<64x8xf32>
    %cst_23 = arith.constant dense<0.000000e+00> : vector<64x8xf32>
    %46 = tpu.matmul %42, %45, %cst_23 {dimension_numbers = #tpu.dot_dimension_numbers<[1], [0], [0], [1], [0, 0, 1, 1], [], []>} : vector<64x64xf32>, vector<64x8xf32>, vector<64x8xf32> -> vector<64x8xf32>
    %47 = tpu.reciprocal %44 {approx = true} : vector<64x1xf32> -> vector<64x1xf32>
    %48 = vector.broadcast %47 : vector<64x1xf32> to vector<64x8xf32>
    %49 = arith.mulf %46, %48 : vector<64x8xf32>
    %c64 = arith.constant 64 : index
    %c0_24 = arith.constant 0 : index
    %50 = vector.load %arg8[%c64, %c0_24] : memref<256x32xf32, #tpu.memory_space<vmem>>, vector<64x8xf32>
    tpu.vector_store %arg8[%c64, %c0_24], %49 {strides = array<i32>} : memref<256x32xf32, #tpu.memory_space<vmem>>, vector<64x8xf32>,
    %51 = vector.extract_strided_slice %10 {offsets = [128, 0], sizes = [64, 8], strides = [1, 1]} : vector<256x8xf32> to vector<64x8xf32>
    %52 = vector.extract_strided_slice %11 {offsets = [128, 0], sizes = [64, 8], strides = [1, 1]} : vector<256x8xf32> to vector<64x8xf32>
    %cst_25 = arith.constant dense<0.000000e+00> : vector<64x64xf32>
    %53 = tpu.matmul %51, %52, %cst_25 {dimension_numbers = #tpu.dot_dimension_numbers<[1], [1], [0], [0], [0, 0, 1, 0], [], []>} : vector<64x8xf32>, vector<64x8xf32>, vector<64x64xf32> -> vector<64x64xf32>
    %c0_26 = arith.constant 0 : index
    %c0_27 = arith.constant 0 : index
    %c0_28 = arith.constant 0 : index
    %c0_29 = arith.constant 0 : index
    %54 = vector.load %arg2[%c0_26, %c0_27, %c0_28, %c0_29] : memref<1x4x64x64xf32, #tpu.memory_space<vmem>>, vector<1x1x64x64xf32>
    %55 = vector.shape_cast %54 : vector<1x1x64x64xf32> to vector<64x64xf32>
    %56 = arith.addf %53, %55 : vector<64x64xf32>
    %cst_30 = arith.constant dense<0xFF800000> : vector<64xf32>
    %57 = vector.multi_reduction <maximumf>, %56, %cst_30 [1] : vector<64x64xf32> to vector<64xf32>
    %58 = vector.shape_cast %57 : vector<64xf32> to vector<64x1xf32>
    %59 = vector.broadcast %58 : vector<64x1xf32> to vector<64x64xf32>
    %60 = arith.subf %56, %59 : vector<64x64xf32>
    %61 = math.exp %60 : vector<64x64xf32>
    %cst_31 = arith.constant dense<0.000000e+00> : vector<64xf32>
    %62 = vector.multi_reduction <add>, %61, %cst_31 [1] : vector<64x64xf32> to vector<64xf32>
    %63 = vector.shape_cast %62 : vector<64xf32> to vector<64x1xf32>
    %64 = vector.extract_strided_slice %12 {offsets = [128, 0], sizes = [64, 8], strides = [1, 1]} : vector<256x8xf32> to vector<64x8xf32>
    %cst_32 = arith.constant dense<0.000000e+00> : vector<64x8xf32>
    %65 = tpu.matmul %61, %64, %cst_32 {dimension_numbers = #tpu.dot_dimension_numbers<[1], [0], [0], [1], [0, 0, 1, 1], [], []>} : vector<64x64xf32>, vector<64x8xf32>, vector<64x8xf32> -> vector<64x8xf32>
    %66 = tpu.reciprocal %63 {approx = true} : vector<64x1xf32> -> vector<64x1xf32>
    %67 = vector.broadcast %66 : vector<64x1xf32> to vector<64x8xf32>
    %68 = arith.mulf %65, %67 : vector<64x8xf32>
    %c128 = arith.constant 128 : index
    %c0_33 = arith.constant 0 : index
    %69 = vector.load %arg8[%c128, %c0_33] : memref<256x32xf32, #tpu.memory_space<vmem>>, vector<64x8xf32>
    tpu.vector_store %arg8[%c128, %c0_33], %68 {strides = array<i32>} : memref<256x32xf32, #tpu.memory_space<vmem>>, vector<64x8xf32>,
    %70 = vector.extract_strided_slice %10 {offsets = [192, 0], sizes = [64, 8], strides = [1, 1]} : vector<256x8xf32> to vector<64x8xf32>
    %71 = vector.extract_strided_slice %11 {offsets = [192, 0], sizes = [64, 8], strides = [1, 1]} : vector<256x8xf32> to vector<64x8xf32>
    %cst_34 = arith.constant dense<0.000000e+00> : vector<64x64xf32>
    %72 = tpu.matmul %70, %71, %cst_34 {dimension_numbers = #tpu.dot_dimension_numbers<[1], [1], [0], [0], [0, 0, 1, 0], [], []>} : vector<64x8xf32>, vector<64x8xf32>, vector<64x64xf32> -> vector<64x64xf32>
    %c0_35 = arith.constant 0 : index
    %c0_36 = arith.constant 0 : index
    %c0_37 = arith.constant 0 : index
    %c0_38 = arith.constant 0 : index
    %73 = vector.load %arg2[%c0_35, %c0_36, %c0_37, %c0_38] : memref<1x4x64x64xf32, #tpu.memory_space<vmem>>, vector<1x1x64x64xf32>
    %74 = vector.shape_cast %73 : vector<1x1x64x64xf32> to vector<64x64xf32>
    %75 = arith.addf %72, %74 : vector<64x64xf32>
    %cst_39 = arith.constant dense<0xFF800000> : vector<64xf32>
    %76 = vector.multi_reduction <maximumf>, %75, %cst_39 [1] : vector<64x64xf32> to vector<64xf32>
    %77 = vector.shape_cast %76 : vector<64xf32> to vector<64x1xf32>
    %78 = vector.broadcast %77 : vector<64x1xf32> to vector<64x64xf32>
    %79 = arith.subf %75, %78 : vector<64x64xf32>
    %80 = math.exp %79 : vector<64x64xf32>
    %cst_40 = arith.constant dense<0.000000e+00> : vector<64xf32>
    %81 = vector.multi_reduction <add>, %80, %cst_40 [1] : vector<64x64xf32> to vector<64xf32>
    %82 = vector.shape_cast %81 : vector<64xf32> to vector<64x1xf32>
    %83 = vector.extract_strided_slice %12 {offsets = [192, 0], sizes = [64, 8], strides = [1, 1]} : vector<256x8xf32> to vector<64x8xf32>
    %cst_41 = arith.constant dense<0.000000e+00> : vector<64x8xf32>
    %84 = tpu.matmul %80, %83, %cst_41 {dimension_numbers = #tpu.dot_dimension_numbers<[1], [0], [0], [1], [0, 0, 1, 1], [], []>} : vector<64x64xf32>, vector<64x8xf32>, vector<64x8xf32> -> vector<64x8xf32>
    %85 = tpu.reciprocal %82 {approx = true} : vector<64x1xf32> -> vector<64x1xf32>
    %86 = vector.broadcast %85 : vector<64x1xf32> to vector<64x8xf32>
    %87 = arith.mulf %84, %86 : vector<64x8xf32>
    %c192 = arith.constant 192 : index
    %c0_42 = arith.constant 0 : index
    %88 = vector.load %arg8[%c192, %c0_42] : memref<256x32xf32, #tpu.memory_space<vmem>>, vector<64x8xf32>
    tpu.vector_store %arg8[%c192, %c0_42], %87 {strides = array<i32>} : memref<256x32xf32, #tpu.memory_space<vmem>>, vector<64x8xf32>,
    %89 = vector.extract_strided_slice %7 {offsets = [0, 8], sizes = [256, 8], strides = [1, 1]} : vector<256x32xf32> to vector<256x8xf32>
    %90 = vector.extract_strided_slice %8 {offsets = [0, 8], sizes = [256, 8], strides = [1, 1]} : vector<256x32xf32> to vector<256x8xf32>
    %91 = vector.extract_strided_slice %9 {offsets = [0, 8], sizes = [256, 8], strides = [1, 1]} : vector<256x32xf32> to vector<256x8xf32>
    %92 = vector.extract_strided_slice %89 {offsets = [0, 0], sizes = [64, 8], strides = [1, 1]} : vector<256x8xf32> to vector<64x8xf32>
    %93 = vector.extract_strided_slice %90 {offsets = [0, 0], sizes = [64, 8], strides = [1, 1]} : vector<256x8xf32> to vector<64x8xf32>
    %cst_43 = arith.constant dense<0.000000e+00> : vector<64x64xf32>
    %94 = tpu.matmul %92, %93, %cst_43 {dimension_numbers = #tpu.dot_dimension_numbers<[1], [1], [0], [0], [0, 0, 1, 0], [], []>} : vector<64x8xf32>, vector<64x8xf32>, vector<64x64xf32> -> vector<64x64xf32>
    %c0_44 = arith.constant 0 : index
    %c1 = arith.constant 1 : index
    %c0_45 = arith.constant 0 : index
    %c0_46 = arith.constant 0 : index
    %95 = vector.load %arg2[%c0_44, %c1, %c0_45, %c0_46] : memref<1x4x64x64xf32, #tpu.memory_space<vmem>>, vector<1x1x64x64xf32>
    %96 = vector.shape_cast %95 : vector<1x1x64x64xf32> to vector<64x64xf32>
    %97 = arith.addf %94, %96 : vector<64x64xf32>
    %cst_47 = arith.constant dense<0xFF800000> : vector<64xf32>
    %98 = vector.multi_reduction <maximumf>, %97, %cst_47 [1] : vector<64x64xf32> to vector<64xf32>
    %99 = vector.shape_cast %98 : vector<64xf32> to vector<64x1xf32>
    %100 = vector.broadcast %99 : vector<64x1xf32> to vector<64x64xf32>
    %101 = arith.subf %97, %100 : vector<64x64xf32>
    %102 = math.exp %101 : vector<64x64xf32>
    %cst_48 = arith.constant dense<0.000000e+00> : vector<64xf32>
    %103 = vector.multi_reduction <add>, %102, %cst_48 [1] : vector<64x64xf32> to vector<64xf32>
    %104 = vector.shape_cast %103 : vector<64xf32> to vector<64x1xf32>
    %105 = vector.extract_strided_slice %91 {offsets = [0, 0], sizes = [64, 8], strides = [1, 1]} : vector<256x8xf32> to vector<64x8xf32>
    %cst_49 = arith.constant dense<0.000000e+00> : vector<64x8xf32>
    %106 = tpu.matmul %102, %105, %cst_49 {dimension_numbers = #tpu.dot_dimension_numbers<[1], [0], [0], [1], [0, 0, 1, 1], [], []>} : vector<64x64xf32>, vector<64x8xf32>, vector<64x8xf32> -> vector<64x8xf32>
    %107 = tpu.reciprocal %104 {approx = true} : vector<64x1xf32> -> vector<64x1xf32>
    %108 = vector.broadcast %107 : vector<64x1xf32> to vector<64x8xf32>
    %109 = arith.mulf %106, %108 : vector<64x8xf32>
    %c0_50 = arith.constant 0 : index
    %c8 = arith.constant 8 : index
    %110 = vector.load %arg8[%c0_50, %c8] : memref<256x32xf32, #tpu.memory_space<vmem>>, vector<64x8xf32>
    tpu.vector_store %arg8[%c0_50, %c8], %109 {strides = array<i32>} : memref<256x32xf32, #tpu.memory_space<vmem>>, vector<64x8xf32>,
    %111 = vector.extract_strided_slice %89 {offsets = [64, 0], sizes = [64, 8], strides = [1, 1]} : vector<256x8xf32> to vector<64x8xf32>
    %112 = vector.extract_strided_slice %90 {offsets = [64, 0], sizes = [64, 8], strides = [1, 1]} : vector<256x8xf32> to vector<64x8xf32>
    %cst_51 = arith.constant dense<0.000000e+00> : vector<64x64xf32>
    %113 = tpu.matmul %111, %112, %cst_51 {dimension_numbers = #tpu.dot_dimension_numbers<[1], [1], [0], [0], [0, 0, 1, 0], [], []>} : vector<64x8xf32>, vector<64x8xf32>, vector<64x64xf32> -> vector<64x64xf32>
    %c0_52 = arith.constant 0 : index
    %c1_53 = arith.constant 1 : index
    %c0_54 = arith.constant 0 : index
    %c0_55 = arith.constant 0 : index
    %114 = vector.load %arg2[%c0_52, %c1_53, %c0_54, %c0_55] : memref<1x4x64x64xf32, #tpu.memory_space<vmem>>, vector<1x1x64x64xf32>
    %115 = vector.shape_cast %114 : vector<1x1x64x64xf32> to vector<64x64xf32>
    %116 = arith.addf %113, %115 : vector<64x64xf32>
    %cst_56 = arith.constant dense<0xFF800000> : vector<64xf32>
    %117 = vector.multi_reduction <maximumf>, %116, %cst_56 [1] : vector<64x64xf32> to vector<64xf32>
    %118 = vector.shape_cast %117 : vector<64xf32> to vector<64x1xf32>
    %119 = vector.broadcast %118 : vector<64x1xf32> to vector<64x64xf32>
    %120 = arith.subf %116, %119 : vector<64x64xf32>
    %121 = math.exp %120 : vector<64x64xf32>
    %cst_57 = arith.constant dense<0.000000e+00> : vector<64xf32>
    %122 = vector.multi_reduction <add>, %121, %cst_57 [1] : vector<64x64xf32> to vector<64xf32>
    %123 = vector.shape_cast %122 : vector<64xf32> to vector<64x1xf32>
    %124 = vector.extract_strided_slice %91 {offsets = [64, 0], sizes = [64, 8], strides = [1, 1]} : vector<256x8xf32> to vector<64x8xf32>
    %cst_58 = arith.constant dense<0.000000e+00> : vector<64x8xf32>
    %125 = tpu.matmul %121, %124, %cst_58 {dimension_numbers = #tpu.dot_dimension_numbers<[1], [0], [0], [1], [0, 0, 1, 1], [], []>} : vector<64x64xf32>, vector<64x8xf32>, vector<64x8xf32> -> vector<64x8xf32>
    %126 = tpu.reciprocal %123 {approx = true} : vector<64x1xf32> -> vector<64x1xf32>
    %127 = vector.broadcast %126 : vector<64x1xf32> to vector<64x8xf32>
    %128 = arith.mulf %125, %127 : vector<64x8xf32>
    %c64_59 = arith.constant 64 : index
    %c8_60 = arith.constant 8 : index
    %129 = vector.load %arg8[%c64_59, %c8_60] : memref<256x32xf32, #tpu.memory_space<vmem>>, vector<64x8xf32>
    tpu.vector_store %arg8[%c64_59, %c8_60], %128 {strides = array<i32>} : memref<256x32xf32, #tpu.memory_space<vmem>>, vector<64x8xf32>,
    %130 = vector.extract_strided_slice %89 {offsets = [128, 0], sizes = [64, 8], strides = [1, 1]} : vector<256x8xf32> to vector<64x8xf32>
    %131 = vector.extract_strided_slice %90 {offsets = [128, 0], sizes = [64, 8], strides = [1, 1]} : vector<256x8xf32> to vector<64x8xf32>
    %cst_61 = arith.constant dense<0.000000e+00> : vector<64x64xf32>
    %132 = tpu.matmul %130, %131, %cst_61 {dimension_numbers = #tpu.dot_dimension_numbers<[1], [1], [0], [0], [0, 0, 1, 0], [], []>} : vector<64x8xf32>, vector<64x8xf32>, vector<64x64xf32> -> vector<64x64xf32>
    %c0_62 = arith.constant 0 : index
    %c1_63 = arith.constant 1 : index
    %c0_64 = arith.constant 0 : index
    %c0_65 = arith.constant 0 : index
    %133 = vector.load %arg2[%c0_62, %c1_63, %c0_64, %c0_65] : memref<1x4x64x64xf32, #tpu.memory_space<vmem>>, vector<1x1x64x64xf32>
    %134 = vector.shape_cast %133 : vector<1x1x64x64xf32> to vector<64x64xf32>
    %135 = arith.addf %132, %134 : vector<64x64xf32>
    %cst_66 = arith.constant dense<0xFF800000> : vector<64xf32>
    %136 = vector.multi_reduction <maximumf>, %135, %cst_66 [1] : vector<64x64xf32> to vector<64xf32>
    %137 = vector.shape_cast %136 : vector<64xf32> to vector<64x1xf32>
    %138 = vector.broadcast %137 : vector<64x1xf32> to vector<64x64xf32>
    %139 = arith.subf %135, %138 : vector<64x64xf32>
    %140 = math.exp %139 : vector<64x64xf32>
    %cst_67 = arith.constant dense<0.000000e+00> : vector<64xf32>
    %141 = vector.multi_reduction <add>, %140, %cst_67 [1] : vector<64x64xf32> to vector<64xf32>
    %142 = vector.shape_cast %141 : vector<64xf32> to vector<64x1xf32>
    %143 = vector.extract_strided_slice %91 {offsets = [128, 0], sizes = [64, 8], strides = [1, 1]} : vector<256x8xf32> to vector<64x8xf32>
    %cst_68 = arith.constant dense<0.000000e+00> : vector<64x8xf32>
    %144 = tpu.matmul %140, %143, %cst_68 {dimension_numbers = #tpu.dot_dimension_numbers<[1], [0], [0], [1], [0, 0, 1, 1], [], []>} : vector<64x64xf32>, vector<64x8xf32>, vector<64x8xf32> -> vector<64x8xf32>
    %145 = tpu.reciprocal %142 {approx = true} : vector<64x1xf32> -> vector<64x1xf32>
    %146 = vector.broadcast %145 : vector<64x1xf32> to vector<64x8xf32>
    %147 = arith.mulf %144, %146 : vector<64x8xf32>
    %c128_69 = arith.constant 128 : index
    %c8_70 = arith.constant 8 : index
    %148 = vector.load %arg8[%c128_69, %c8_70] : memref<256x32xf32, #tpu.memory_space<vmem>>, vector<64x8xf32>
    tpu.vector_store %arg8[%c128_69, %c8_70], %147 {strides = array<i32>} : memref<256x32xf32, #tpu.memory_space<vmem>>, vector<64x8xf32>,
    %149 = vector.extract_strided_slice %89 {offsets = [192, 0], sizes = [64, 8], strides = [1, 1]} : vector<256x8xf32> to vector<64x8xf32>
    %150 = vector.extract_strided_slice %90 {offsets = [192, 0], sizes = [64, 8], strides = [1, 1]} : vector<256x8xf32> to vector<64x8xf32>
    %cst_71 = arith.constant dense<0.000000e+00> : vector<64x64xf32>
    %151 = tpu.matmul %149, %150, %cst_71 {dimension_numbers = #tpu.dot_dimension_numbers<[1], [1], [0], [0], [0, 0, 1, 0], [], []>} : vector<64x8xf32>, vector<64x8xf32>, vector<64x64xf32> -> vector<64x64xf32>
    %c0_72 = arith.constant 0 : index
    %c1_73 = arith.constant 1 : index
    %c0_74 = arith.constant 0 : index
    %c0_75 = arith.constant 0 : index
    %152 = vector.load %arg2[%c0_72, %c1_73, %c0_74, %c0_75] : memref<1x4x64x64xf32, #tpu.memory_space<vmem>>, vector<1x1x64x64xf32>
    %153 = vector.shape_cast %152 : vector<1x1x64x64xf32> to vector<64x64xf32>
    %154 = arith.addf %151, %153 : vector<64x64xf32>
    %cst_76 = arith.constant dense<0xFF800000> : vector<64xf32>
    %155 = vector.multi_reduction <maximumf>, %154, %cst_76 [1] : vector<64x64xf32> to vector<64xf32>
    %156 = vector.shape_cast %155 : vector<64xf32> to vector<64x1xf32>
    %157 = vector.broadcast %156 : vector<64x1xf32> to vector<64x64xf32>
    %158 = arith.subf %154, %157 : vector<64x64xf32>
    %159 = math.exp %158 : vector<64x64xf32>
    %cst_77 = arith.constant dense<0.000000e+00> : vector<64xf32>
    %160 = vector.multi_reduction <add>, %159, %cst_77 [1] : vector<64x64xf32> to vector<64xf32>
    %161 = vector.shape_cast %160 : vector<64xf32> to vector<64x1xf32>
    %162 = vector.extract_strided_slice %91 {offsets = [192, 0], sizes = [64, 8], strides = [1, 1]} : vector<256x8xf32> to vector<64x8xf32>
    %cst_78 = arith.constant dense<0.000000e+00> : vector<64x8xf32>
    %163 = tpu.matmul %159, %162, %cst_78 {dimension_numbers = #tpu.dot_dimension_numbers<[1], [0], [0], [1], [0, 0, 1, 1], [], []>} : vector<64x64xf32>, vector<64x8xf32>, vector<64x8xf32> -> vector<64x8xf32>
    %164 = tpu.reciprocal %161 {approx = true} : vector<64x1xf32> -> vector<64x1xf32>
    %165 = vector.broadcast %164 : vector<64x1xf32> to vector<64x8xf32>
    %166 = arith.mulf %163, %165 : vector<64x8xf32>
    %c192_79 = arith.constant 192 : index
    %c8_80 = arith.constant 8 : index
    %167 = vector.load %arg8[%c192_79, %c8_80] : memref<256x32xf32, #tpu.memory_space<vmem>>, vector<64x8xf32>
    tpu.vector_store %arg8[%c192_79, %c8_80], %166 {strides = array<i32>} : memref<256x32xf32, #tpu.memory_space<vmem>>, vector<64x8xf32>,
    %168 = vector.extract_strided_slice %7 {offsets = [0, 16], sizes = [256, 8], strides = [1, 1]} : vector<256x32xf32> to vector<256x8xf32>
    %169 = vector.extract_strided_slice %8 {offsets = [0, 16], sizes = [256, 8], strides = [1, 1]} : vector<256x32xf32> to vector<256x8xf32>
    %170 = vector.extract_strided_slice %9 {offsets = [0, 16], sizes = [256, 8], strides = [1, 1]} : vector<256x32xf32> to vector<256x8xf32>
    %171 = vector.extract_strided_slice %168 {offsets = [0, 0], sizes = [64, 8], strides = [1, 1]} : vector<256x8xf32> to vector<64x8xf32>
    %172 = vector.extract_strided_slice %169 {offsets = [0, 0], sizes = [64, 8], strides = [1, 1]} : vector<256x8xf32> to vector<64x8xf32>
    %cst_81 = arith.constant dense<0.000000e+00> : vector<64x64xf32>
    %173 = tpu.matmul %171, %172, %cst_81 {dimension_numbers = #tpu.dot_dimension_numbers<[1], [1], [0], [0], [0, 0, 1, 0], [], []>} : vector<64x8xf32>, vector<64x8xf32>, vector<64x64xf32> -> vector<64x64xf32>
    %c0_82 = arith.constant 0 : index
    %c2 = arith.constant 2 : index
    %c0_83 = arith.constant 0 : index
    %c0_84 = arith.constant 0 : index
    %174 = vector.load %arg2[%c0_82, %c2, %c0_83, %c0_84] : memref<1x4x64x64xf32, #tpu.memory_space<vmem>>, vector<1x1x64x64xf32>
    %175 = vector.shape_cast %174 : vector<1x1x64x64xf32> to vector<64x64xf32>
    %176 = arith.addf %173, %175 : vector<64x64xf32>
    %cst_85 = arith.constant dense<0xFF800000> : vector<64xf32>
    %177 = vector.multi_reduction <maximumf>, %176, %cst_85 [1] : vector<64x64xf32> to vector<64xf32>
    %178 = vector.shape_cast %177 : vector<64xf32> to vector<64x1xf32>
    %179 = vector.broadcast %178 : vector<64x1xf32> to vector<64x64xf32>
    %180 = arith.subf %176, %179 : vector<64x64xf32>
    %181 = math.exp %180 : vector<64x64xf32>
    %cst_86 = arith.constant dense<0.000000e+00> : vector<64xf32>
    %182 = vector.multi_reduction <add>, %181, %cst_86 [1] : vector<64x64xf32> to vector<64xf32>
    %183 = vector.shape_cast %182 : vector<64xf32> to vector<64x1xf32>
    %184 = vector.extract_strided_slice %170 {offsets = [0, 0], sizes = [64, 8], strides = [1, 1]} : vector<256x8xf32> to vector<64x8xf32>
    %cst_87 = arith.constant dense<0.000000e+00> : vector<64x8xf32>
    %185 = tpu.matmul %181, %184, %cst_87 {dimension_numbers = #tpu.dot_dimension_numbers<[1], [0], [0], [1], [0, 0, 1, 1], [], []>} : vector<64x64xf32>, vector<64x8xf32>, vector<64x8xf32> -> vector<64x8xf32>
    %186 = tpu.reciprocal %183 {approx = true} : vector<64x1xf32> -> vector<64x1xf32>
    %187 = vector.broadcast %186 : vector<64x1xf32> to vector<64x8xf32>
    %188 = arith.mulf %185, %187 : vector<64x8xf32>
    %c0_88 = arith.constant 0 : index
    %c16 = arith.constant 16 : index
    %189 = vector.load %arg8[%c0_88, %c16] : memref<256x32xf32, #tpu.memory_space<vmem>>, vector<64x8xf32>
    tpu.vector_store %arg8[%c0_88, %c16], %188 {strides = array<i32>} : memref<256x32xf32, #tpu.memory_space<vmem>>, vector<64x8xf32>,
    %190 = vector.extract_strided_slice %168 {offsets = [64, 0], sizes = [64, 8], strides = [1, 1]} : vector<256x8xf32> to vector<64x8xf32>
    %191 = vector.extract_strided_slice %169 {offsets = [64, 0], sizes = [64, 8], strides = [1, 1]} : vector<256x8xf32> to vector<64x8xf32>
    %cst_89 = arith.constant dense<0.000000e+00> : vector<64x64xf32>
    %192 = tpu.matmul %190, %191, %cst_89 {dimension_numbers = #tpu.dot_dimension_numbers<[1], [1], [0], [0], [0, 0, 1, 0], [], []>} : vector<64x8xf32>, vector<64x8xf32>, vector<64x64xf32> -> vector<64x64xf32>
    %c0_90 = arith.constant 0 : index
    %c2_91 = arith.constant 2 : index
    %c0_92 = arith.constant 0 : index
    %c0_93 = arith.constant 0 : index
    %193 = vector.load %arg2[%c0_90, %c2_91, %c0_92, %c0_93] : memref<1x4x64x64xf32, #tpu.memory_space<vmem>>, vector<1x1x64x64xf32>
    %194 = vector.shape_cast %193 : vector<1x1x64x64xf32> to vector<64x64xf32>
    %195 = arith.addf %192, %194 : vector<64x64xf32>
    %cst_94 = arith.constant dense<0xFF800000> : vector<64xf32>
    %196 = vector.multi_reduction <maximumf>, %195, %cst_94 [1] : vector<64x64xf32> to vector<64xf32>
    %197 = vector.shape_cast %196 : vector<64xf32> to vector<64x1xf32>
    %198 = vector.broadcast %197 : vector<64x1xf32> to vector<64x64xf32>
    %199 = arith.subf %195, %198 : vector<64x64xf32>
    %200 = math.exp %199 : vector<64x64xf32>
    %cst_95 = arith.constant dense<0.000000e+00> : vector<64xf32>
    %201 = vector.multi_reduction <add>, %200, %cst_95 [1] : vector<64x64xf32> to vector<64xf32>
    %202 = vector.shape_cast %201 : vector<64xf32> to vector<64x1xf32>
    %203 = vector.extract_strided_slice %170 {offsets = [64, 0], sizes = [64, 8], strides = [1, 1]} : vector<256x8xf32> to vector<64x8xf32>
    %cst_96 = arith.constant dense<0.000000e+00> : vector<64x8xf32>
    %204 = tpu.matmul %200, %203, %cst_96 {dimension_numbers = #tpu.dot_dimension_numbers<[1], [0], [0], [1], [0, 0, 1, 1], [], []>} : vector<64x64xf32>, vector<64x8xf32>, vector<64x8xf32> -> vector<64x8xf32>
    %205 = tpu.reciprocal %202 {approx = true} : vector<64x1xf32> -> vector<64x1xf32>
    %206 = vector.broadcast %205 : vector<64x1xf32> to vector<64x8xf32>
    %207 = arith.mulf %204, %206 : vector<64x8xf32>
    %c64_97 = arith.constant 64 : index
    %c16_98 = arith.constant 16 : index
    %208 = vector.load %arg8[%c64_97, %c16_98] : memref<256x32xf32, #tpu.memory_space<vmem>>, vector<64x8xf32>
    tpu.vector_store %arg8[%c64_97, %c16_98], %207 {strides = array<i32>} : memref<256x32xf32, #tpu.memory_space<vmem>>, vector<64x8xf32>,
    %209 = vector.extract_strided_slice %168 {offsets = [128, 0], sizes = [64, 8], strides = [1, 1]} : vector<256x8xf32> to vector<64x8xf32>
    %210 = vector.extract_strided_slice %169 {offsets = [128, 0], sizes = [64, 8], strides = [1, 1]} : vector<256x8xf32> to vector<64x8xf32>
    %cst_99 = arith.constant dense<0.000000e+00> : vector<64x64xf32>
    %211 = tpu.matmul %209, %210, %cst_99 {dimension_numbers = #tpu.dot_dimension_numbers<[1], [1], [0], [0], [0, 0, 1, 0], [], []>} : vector<64x8xf32>, vector<64x8xf32>, vector<64x64xf32> -> vector<64x64xf32>
    %c0_100 = arith.constant 0 : index
    %c2_101 = arith.constant 2 : index
    %c0_102 = arith.constant 0 : index
    %c0_103 = arith.constant 0 : index
    %212 = vector.load %arg2[%c0_100, %c2_101, %c0_102, %c0_103] : memref<1x4x64x64xf32, #tpu.memory_space<vmem>>, vector<1x1x64x64xf32>
    %213 = vector.shape_cast %212 : vector<1x1x64x64xf32> to vector<64x64xf32>
    %214 = arith.addf %211, %213 : vector<64x64xf32>
    %cst_104 = arith.constant dense<0xFF800000> : vector<64xf32>
    %215 = vector.multi_reduction <maximumf>, %214, %cst_104 [1] : vector<64x64xf32> to vector<64xf32>
    %216 = vector.shape_cast %215 : vector<64xf32> to vector<64x1xf32>
    %217 = vector.broadcast %216 : vector<64x1xf32> to vector<64x64xf32>
    %218 = arith.subf %214, %217 : vector<64x64xf32>
    %219 = math.exp %218 : vector<64x64xf32>
    %cst_105 = arith.constant dense<0.000000e+00> : vector<64xf32>
    %220 = vector.multi_reduction <add>, %219, %cst_105 [1] : vector<64x64xf32> to vector<64xf32>
    %221 = vector.shape_cast %220 : vector<64xf32> to vector<64x1xf32>
    %222 = vector.extract_strided_slice %170 {offsets = [128, 0], sizes = [64, 8], strides = [1, 1]} : vector<256x8xf32> to vector<64x8xf32>
    %cst_106 = arith.constant dense<0.000000e+00> : vector<64x8xf32>
    %223 = tpu.matmul %219, %222, %cst_106 {dimension_numbers = #tpu.dot_dimension_numbers<[1], [0], [0], [1], [0, 0, 1, 1], [], []>} : vector<64x64xf32>, vector<64x8xf32>, vector<64x8xf32> -> vector<64x8xf32>
    %224 = tpu.reciprocal %221 {approx = true} : vector<64x1xf32> -> vector<64x1xf32>
    %225 = vector.broadcast %224 : vector<64x1xf32> to vector<64x8xf32>
    %226 = arith.mulf %223, %225 : vector<64x8xf32>
    %c128_107 = arith.constant 128 : index
    %c16_108 = arith.constant 16 : index
    %227 = vector.load %arg8[%c128_107, %c16_108] : memref<256x32xf32, #tpu.memory_space<vmem>>, vector<64x8xf32>
    tpu.vector_store %arg8[%c128_107, %c16_108], %226 {strides = array<i32>} : memref<256x32xf32, #tpu.memory_space<vmem>>, vector<64x8xf32>,
    %228 = vector.extract_strided_slice %168 {offsets = [192, 0], sizes = [64, 8], strides = [1, 1]} : vector<256x8xf32> to vector<64x8xf32>
    %229 = vector.extract_strided_slice %169 {offsets = [192, 0], sizes = [64, 8], strides = [1, 1]} : vector<256x8xf32> to vector<64x8xf32>
    %cst_109 = arith.constant dense<0.000000e+00> : vector<64x64xf32>
    %230 = tpu.matmul %228, %229, %cst_109 {dimension_numbers = #tpu.dot_dimension_numbers<[1], [1], [0], [0], [0, 0, 1, 0], [], []>} : vector<64x8xf32>, vector<64x8xf32>, vector<64x64xf32> -> vector<64x64xf32>
    %c0_110 = arith.constant 0 : index
    %c2_111 = arith.constant 2 : index
    %c0_112 = arith.constant 0 : index
    %c0_113 = arith.constant 0 : index
    %231 = vector.load %arg2[%c0_110, %c2_111, %c0_112, %c0_113] : memref<1x4x64x64xf32, #tpu.memory_space<vmem>>, vector<1x1x64x64xf32>
    %232 = vector.shape_cast %231 : vector<1x1x64x64xf32> to vector<64x64xf32>
    %233 = arith.addf %230, %232 : vector<64x64xf32>
    %cst_114 = arith.constant dense<0xFF800000> : vector<64xf32>
    %234 = vector.multi_reduction <maximumf>, %233, %cst_114 [1] : vector<64x64xf32> to vector<64xf32>
    %235 = vector.shape_cast %234 : vector<64xf32> to vector<64x1xf32>
    %236 = vector.broadcast %235 : vector<64x1xf32> to vector<64x64xf32>
    %237 = arith.subf %233, %236 : vector<64x64xf32>
    %238 = math.exp %237 : vector<64x64xf32>
    %cst_115 = arith.constant dense<0.000000e+00> : vector<64xf32>
    %239 = vector.multi_reduction <add>, %238, %cst_115 [1] : vector<64x64xf32> to vector<64xf32>
    %240 = vector.shape_cast %239 : vector<64xf32> to vector<64x1xf32>
    %241 = vector.extract_strided_slice %170 {offsets = [192, 0], sizes = [64, 8], strides = [1, 1]} : vector<256x8xf32> to vector<64x8xf32>
    %cst_116 = arith.constant dense<0.000000e+00> : vector<64x8xf32>
    %242 = tpu.matmul %238, %241, %cst_116 {dimension_numbers = #tpu.dot_dimension_numbers<[1], [0], [0], [1], [0, 0, 1, 1], [], []>} : vector<64x64xf32>, vector<64x8xf32>, vector<64x8xf32> -> vector<64x8xf32>
    %243 = tpu.reciprocal %240 {approx = true} : vector<64x1xf32> -> vector<64x1xf32>
    %244 = vector.broadcast %243 : vector<64x1xf32> to vector<64x8xf32>
    %245 = arith.mulf %242, %244 : vector<64x8xf32>
    %c192_117 = arith.constant 192 : index
    %c16_118 = arith.constant 16 : index
    %246 = vector.load %arg8[%c192_117, %c16_118] : memref<256x32xf32, #tpu.memory_space<vmem>>, vector<64x8xf32>
    tpu.vector_store %arg8[%c192_117, %c16_118], %245 {strides = array<i32>} : memref<256x32xf32, #tpu.memory_space<vmem>>, vector<64x8xf32>,
    %247 = vector.extract_strided_slice %7 {offsets = [0, 24], sizes = [256, 8], strides = [1, 1]} : vector<256x32xf32> to vector<256x8xf32>
    %248 = vector.extract_strided_slice %8 {offsets = [0, 24], sizes = [256, 8], strides = [1, 1]} : vector<256x32xf32> to vector<256x8xf32>
    %249 = vector.extract_strided_slice %9 {offsets = [0, 24], sizes = [256, 8], strides = [1, 1]} : vector<256x32xf32> to vector<256x8xf32>
    %250 = vector.extract_strided_slice %247 {offsets = [0, 0], sizes = [64, 8], strides = [1, 1]} : vector<256x8xf32> to vector<64x8xf32>
    %251 = vector.extract_strided_slice %248 {offsets = [0, 0], sizes = [64, 8], strides = [1, 1]} : vector<256x8xf32> to vector<64x8xf32>
    %cst_119 = arith.constant dense<0.000000e+00> : vector<64x64xf32>
    %252 = tpu.matmul %250, %251, %cst_119 {dimension_numbers = #tpu.dot_dimension_numbers<[1], [1], [0], [0], [0, 0, 1, 0], [], []>} : vector<64x8xf32>, vector<64x8xf32>, vector<64x64xf32> -> vector<64x64xf32>
    %c0_120 = arith.constant 0 : index
    %c3 = arith.constant 3 : index
    %c0_121 = arith.constant 0 : index
    %c0_122 = arith.constant 0 : index
    %253 = vector.load %arg2[%c0_120, %c3, %c0_121, %c0_122] : memref<1x4x64x64xf32, #tpu.memory_space<vmem>>, vector<1x1x64x64xf32>
    %254 = vector.shape_cast %253 : vector<1x1x64x64xf32> to vector<64x64xf32>
    %255 = arith.addf %252, %254 : vector<64x64xf32>
    %cst_123 = arith.constant dense<0xFF800000> : vector<64xf32>
    %256 = vector.multi_reduction <maximumf>, %255, %cst_123 [1] : vector<64x64xf32> to vector<64xf32>
    %257 = vector.shape_cast %256 : vector<64xf32> to vector<64x1xf32>
    %258 = vector.broadcast %257 : vector<64x1xf32> to vector<64x64xf32>
    %259 = arith.subf %255, %258 : vector<64x64xf32>
    %260 = math.exp %259 : vector<64x64xf32>
    %cst_124 = arith.constant dense<0.000000e+00> : vector<64xf32>
    %261 = vector.multi_reduction <add>, %260, %cst_124 [1] : vector<64x64xf32> to vector<64xf32>
    %262 = vector.shape_cast %261 : vector<64xf32> to vector<64x1xf32>
    %263 = vector.extract_strided_slice %249 {offsets = [0, 0], sizes = [64, 8], strides = [1, 1]} : vector<256x8xf32> to vector<64x8xf32>
    %cst_125 = arith.constant dense<0.000000e+00> : vector<64x8xf32>
    %264 = tpu.matmul %260, %263, %cst_125 {dimension_numbers = #tpu.dot_dimension_numbers<[1], [0], [0], [1], [0, 0, 1, 1], [], []>} : vector<64x64xf32>, vector<64x8xf32>, vector<64x8xf32> -> vector<64x8xf32>
    %265 = tpu.reciprocal %262 {approx = true} : vector<64x1xf32> -> vector<64x1xf32>
    %266 = vector.broadcast %265 : vector<64x1xf32> to vector<64x8xf32>
    %267 = arith.mulf %264, %266 : vector<64x8xf32>
    %c0_126 = arith.constant 0 : index
    %c24 = arith.constant 24 : index
    %268 = vector.load %arg8[%c0_126, %c24] : memref<256x32xf32, #tpu.memory_space<vmem>>, vector<64x8xf32>
    tpu.vector_store %arg8[%c0_126, %c24], %267 {strides = array<i32>} : memref<256x32xf32, #tpu.memory_space<vmem>>, vector<64x8xf32>,
    %269 = vector.extract_strided_slice %247 {offsets = [64, 0], sizes = [64, 8], strides = [1, 1]} : vector<256x8xf32> to vector<64x8xf32>
    %270 = vector.extract_strided_slice %248 {offsets = [64, 0], sizes = [64, 8], strides = [1, 1]} : vector<256x8xf32> to vector<64x8xf32>
    %cst_127 = arith.constant dense<0.000000e+00> : vector<64x64xf32>
    %271 = tpu.matmul %269, %270, %cst_127 {dimension_numbers = #tpu.dot_dimension_numbers<[1], [1], [0], [0], [0, 0, 1, 0], [], []>} : vector<64x8xf32>, vector<64x8xf32>, vector<64x64xf32> -> vector<64x64xf32>
    %c0_128 = arith.constant 0 : index
    %c3_129 = arith.constant 3 : index
    %c0_130 = arith.constant 0 : index
    %c0_131 = arith.constant 0 : index
    %272 = vector.load %arg2[%c0_128, %c3_129, %c0_130, %c0_131] : memref<1x4x64x64xf32, #tpu.memory_space<vmem>>, vector<1x1x64x64xf32>
    %273 = vector.shape_cast %272 : vector<1x1x64x64xf32> to vector<64x64xf32>
    %274 = arith.addf %271, %273 : vector<64x64xf32>
    %cst_132 = arith.constant dense<0xFF800000> : vector<64xf32>
    %275 = vector.multi_reduction <maximumf>, %274, %cst_132 [1] : vector<64x64xf32> to vector<64xf32>
    %276 = vector.shape_cast %275 : vector<64xf32> to vector<64x1xf32>
    %277 = vector.broadcast %276 : vector<64x1xf32> to vector<64x64xf32>
    %278 = arith.subf %274, %277 : vector<64x64xf32>
    %279 = math.exp %278 : vector<64x64xf32>
    %cst_133 = arith.constant dense<0.000000e+00> : vector<64xf32>
    %280 = vector.multi_reduction <add>, %279, %cst_133 [1] : vector<64x64xf32> to vector<64xf32>
    %281 = vector.shape_cast %280 : vector<64xf32> to vector<64x1xf32>
    %282 = vector.extract_strided_slice %249 {offsets = [64, 0], sizes = [64, 8], strides = [1, 1]} : vector<256x8xf32> to vector<64x8xf32>
    %cst_134 = arith.constant dense<0.000000e+00> : vector<64x8xf32>
    %283 = tpu.matmul %279, %282, %cst_134 {dimension_numbers = #tpu.dot_dimension_numbers<[1], [0], [0], [1], [0, 0, 1, 1], [], []>} : vector<64x64xf32>, vector<64x8xf32>, vector<64x8xf32> -> vector<64x8xf32>
    %284 = tpu.reciprocal %281 {approx = true} : vector<64x1xf32> -> vector<64x1xf32>
    %285 = vector.broadcast %284 : vector<64x1xf32> to vector<64x8xf32>
    %286 = arith.mulf %283, %285 : vector<64x8xf32>
    %c64_135 = arith.constant 64 : index
    %c24_136 = arith.constant 24 : index
    %287 = vector.load %arg8[%c64_135, %c24_136] : memref<256x32xf32, #tpu.memory_space<vmem>>, vector<64x8xf32>
    tpu.vector_store %arg8[%c64_135, %c24_136], %286 {strides = array<i32>} : memref<256x32xf32, #tpu.memory_space<vmem>>, vector<64x8xf32>,
    %288 = vector.extract_strided_slice %247 {offsets = [128, 0], sizes = [64, 8], strides = [1, 1]} : vector<256x8xf32> to vector<64x8xf32>
    %289 = vector.extract_strided_slice %248 {offsets = [128, 0], sizes = [64, 8], strides = [1, 1]} : vector<256x8xf32> to vector<64x8xf32>
    %cst_137 = arith.constant dense<0.000000e+00> : vector<64x64xf32>
    %290 = tpu.matmul %288, %289, %cst_137 {dimension_numbers = #tpu.dot_dimension_numbers<[1], [1], [0], [0], [0, 0, 1, 0], [], []>} : vector<64x8xf32>, vector<64x8xf32>, vector<64x64xf32> -> vector<64x64xf32>
    %c0_138 = arith.constant 0 : index
    %c3_139 = arith.constant 3 : index
    %c0_140 = arith.constant 0 : index
    %c0_141 = arith.constant 0 : index
    %291 = vector.load %arg2[%c0_138, %c3_139, %c0_140, %c0_141] : memref<1x4x64x64xf32, #tpu.memory_space<vmem>>, vector<1x1x64x64xf32>
    %292 = vector.shape_cast %291 : vector<1x1x64x64xf32> to vector<64x64xf32>
    %293 = arith.addf %290, %292 : vector<64x64xf32>
    %cst_142 = arith.constant dense<0xFF800000> : vector<64xf32>
    %294 = vector.multi_reduction <maximumf>, %293, %cst_142 [1] : vector<64x64xf32> to vector<64xf32>
    %295 = vector.shape_cast %294 : vector<64xf32> to vector<64x1xf32>
    %296 = vector.broadcast %295 : vector<64x1xf32> to vector<64x64xf32>
    %297 = arith.subf %293, %296 : vector<64x64xf32>
    %298 = math.exp %297 : vector<64x64xf32>
    %cst_143 = arith.constant dense<0.000000e+00> : vector<64xf32>
    %299 = vector.multi_reduction <add>, %298, %cst_143 [1] : vector<64x64xf32> to vector<64xf32>
    %300 = vector.shape_cast %299 : vector<64xf32> to vector<64x1xf32>
    %301 = vector.extract_strided_slice %249 {offsets = [128, 0], sizes = [64, 8], strides = [1, 1]} : vector<256x8xf32> to vector<64x8xf32>
    %cst_144 = arith.constant dense<0.000000e+00> : vector<64x8xf32>
    %302 = tpu.matmul %298, %301, %cst_144 {dimension_numbers = #tpu.dot_dimension_numbers<[1], [0], [0], [1], [0, 0, 1, 1], [], []>} : vector<64x64xf32>, vector<64x8xf32>, vector<64x8xf32> -> vector<64x8xf32>
    %303 = tpu.reciprocal %300 {approx = true} : vector<64x1xf32> -> vector<64x1xf32>
    %304 = vector.broadcast %303 : vector<64x1xf32> to vector<64x8xf32>
    %305 = arith.mulf %302, %304 : vector<64x8xf32>
    %c128_145 = arith.constant 128 : index
    %c24_146 = arith.constant 24 : index
    %306 = vector.load %arg8[%c128_145, %c24_146] : memref<256x32xf32, #tpu.memory_space<vmem>>, vector<64x8xf32>
    tpu.vector_store %arg8[%c128_145, %c24_146], %305 {strides = array<i32>} : memref<256x32xf32, #tpu.memory_space<vmem>>, vector<64x8xf32>,
    %307 = vector.extract_strided_slice %247 {offsets = [192, 0], sizes = [64, 8], strides = [1, 1]} : vector<256x8xf32> to vector<64x8xf32>
    %308 = vector.extract_strided_slice %248 {offsets = [192, 0], sizes = [64, 8], strides = [1, 1]} : vector<256x8xf32> to vector<64x8xf32>
    %cst_147 = arith.constant dense<0.000000e+00> : vector<64x64xf32>
    %309 = tpu.matmul %307, %308, %cst_147 {dimension_numbers = #tpu.dot_dimension_numbers<[1], [1], [0], [0], [0, 0, 1, 0], [], []>} : vector<64x8xf32>, vector<64x8xf32>, vector<64x64xf32> -> vector<64x64xf32>
    %c0_148 = arith.constant 0 : index
    %c3_149 = arith.constant 3 : index
    %c0_150 = arith.constant 0 : index
    %c0_151 = arith.constant 0 : index
    %310 = vector.load %arg2[%c0_148, %c3_149, %c0_150, %c0_151] : memref<1x4x64x64xf32, #tpu.memory_space<vmem>>, vector<1x1x64x64xf32>
    %311 = vector.shape_cast %310 : vector<1x1x64x64xf32> to vector<64x64xf32>
    %312 = arith.addf %309, %311 : vector<64x64xf32>
    %cst_152 = arith.constant dense<0xFF800000> : vector<64xf32>
    %313 = vector.multi_reduction <maximumf>, %312, %cst_152 [1] : vector<64x64xf32> to vector<64xf32>
    %314 = vector.shape_cast %313 : vector<64xf32> to vector<64x1xf32>
    %315 = vector.broadcast %314 : vector<64x1xf32> to vector<64x64xf32>
    %316 = arith.subf %312, %315 : vector<64x64xf32>
    %317 = math.exp %316 : vector<64x64xf32>
    %cst_153 = arith.constant dense<0.000000e+00> : vector<64xf32>
    %318 = vector.multi_reduction <add>, %317, %cst_153 [1] : vector<64x64xf32> to vector<64xf32>
    %319 = vector.shape_cast %318 : vector<64xf32> to vector<64x1xf32>
    %320 = vector.extract_strided_slice %249 {offsets = [192, 0], sizes = [64, 8], strides = [1, 1]} : vector<256x8xf32> to vector<64x8xf32>
    %cst_154 = arith.constant dense<0.000000e+00> : vector<64x8xf32>
    %321 = tpu.matmul %317, %320, %cst_154 {dimension_numbers = #tpu.dot_dimension_numbers<[1], [0], [0], [1], [0, 0, 1, 1], [], []>} : vector<64x64xf32>, vector<64x8xf32>, vector<64x8xf32> -> vector<64x8xf32>
    %322 = tpu.reciprocal %319 {approx = true} : vector<64x1xf32> -> vector<64x1xf32>
    %323 = vector.broadcast %322 : vector<64x1xf32> to vector<64x8xf32>
    %324 = arith.mulf %321, %323 : vector<64x8xf32>
    %c192_155 = arith.constant 192 : index
    %c24_156 = arith.constant 24 : index
    %325 = vector.load %arg8[%c192_155, %c24_156] : memref<256x32xf32, #tpu.memory_space<vmem>>, vector<64x8xf32>
    tpu.vector_store %arg8[%c192_155, %c24_156], %324 {strides = array<i32>} : memref<256x32xf32, #tpu.memory_space<vmem>>, vector<64x8xf32>,
    %c0_157 = arith.constant 0 : index
    %c0_158 = arith.constant 0 : index
    %326 = vector.load %arg8[%c0_157, %c0_158] : memref<256x32xf32, #tpu.memory_space<vmem>>, vector<256x32xf32>
    %c0_159 = arith.constant 0 : index
    %c0_160 = arith.constant 0 : index
    %327 = vector.load %arg5[%c0_159, %c0_160] : memref<32x32xf32, #tpu.memory_space<vmem>>, vector<32x32xf32>
    %cst_161 = arith.constant dense<0.000000e+00> : vector<256x32xf32>
    %328 = tpu.matmul %326, %327, %cst_161 {dimension_numbers = #tpu.dot_dimension_numbers<[1], [0], [0], [1], [0, 0, 1, 1], [], []>} : vector<256x32xf32>, vector<32x32xf32>, vector<256x32xf32> -> vector<256x32xf32>
    %c0_162 = arith.constant 0 : index
    %c0_163 = arith.constant 0 : index
    %329 = vector.load %arg6[%c0_162, %c0_163] : memref<1x32xf32, #tpu.memory_space<vmem>>, vector<1x32xf32>
    %330 = vector.broadcast %329 : vector<1x32xf32> to vector<256x32xf32>
    %331 = arith.addf %328, %330 : vector<256x32xf32>
    %332 = vector.shape_cast %331 : vector<256x32xf32> to vector<4x64x32xf32>
    %c0_164 = arith.constant 0 : index
    %c0_165 = arith.constant 0 : index
    %c0_166 = arith.constant 0 : index
    %333 = vector.load %arg7[%c0_164, %c0_165, %c0_166] : memref<4x64x32xf32, #tpu.memory_space<vmem>>, vector<4x64x32xf32>
    tpu.vector_store %arg7[%c0_164, %c0_165, %c0_166], %332 {strides = array<i32>} : memref<4x64x32xf32, #tpu.memory_space<vmem>>, vector<4x64x32xf32>,
    return
  }
  func.func @transform_0(%arg0: i32) -> (i32, i32, i32) {
    %c0_i32 = arith.constant 0 : i32
    %c0_i32_0 = arith.constant 0 : i32
    %c0_i32_1 = arith.constant 0 : i32
    return %arg0, %c0_i32, %c0_i32_0 : i32, i32, i32
  }
  func.func @transform_1(%arg0: i32) -> (i32, i32, i32, i32) {
    %c0_i32 = arith.constant 0 : i32
    %c0_i32_0 = arith.constant 0 : i32
    %c0_i32_1 = arith.constant 0 : i32
    %c0_i32_2 = arith.constant 0 : i32
    %c0_i32_3 = arith.constant 0 : i32
    return %c0_i32, %c0_i32_0, %c0_i32_1, %c0_i32_2 : i32, i32, i32, i32
  }
  func.func @transform_2(%arg0: i32) -> (i32, i32) {
    %c0_i32 = arith.constant 0 : i32
    %c0_i32_0 = arith.constant 0 : i32
    %c0_i32_1 = arith.constant 0 : i32
    return %c0_i32, %c0_i32_0 : i32, i32
  }
  func.func @transform_3(%arg0: i32) -> (i32, i32) {
    %c0_i32 = arith.constant 0 : i32
    %c0_i32_0 = arith.constant 0 : i32
    %c0_i32_1 = arith.constant 0 : i32
    return %c0_i32, %c0_i32_0 : i32, i32
  }
  func.func @transform_4(%arg0: i32) -> (i32, i32) {
    %c0_i32 = arith.constant 0 : i32
    %c0_i32_0 = arith.constant 0 : i32
    %c0_i32_1 = arith.constant 0 : i32
    return %c0_i32, %c0_i32_0 : i32, i32
  }
  func.func @transform_5(%arg0: i32) -> (i32, i32) {
    %c0_i32 = arith.constant 0 : i32
    %c0_i32_0 = arith.constant 0 : i32
    %c0_i32_1 = arith.constant 0 : i32
    return %c0_i32, %c0_i32_0 : i32, i32
  }
  func.func @transform_6(%arg0: i32) -> (i32, i32, i32) {
    %c0_i32 = arith.constant 0 : i32
    %c0_i32_0 = arith.constant 0 : i32
    %c0_i32_1 = arith.constant 0 : i32
    return %arg0, %c0_i32, %c0_i32_0 : i32, i32, i32
  }
}

</mosaic_0001>

<llo_original>
// kernel: tpu_custom_call.1
$region0: #{tpu_custom_call.1}
  #allocation0 [shape = 'u32[]', space=smem, size = 0x4, offset = 0x4, fixed_abs, tag = 'smem constant byte address 0x4 - core index']
  #allocation1 [shape = 'u32[144,128]{1,0:T(1,128)}', space=vmem, size = 0x12000, scoped, tag = 'internal scratch']
  #allocation2 [shape = 'f32[256,32]{1,0:T(8,128)}', space=vmem, size = 0x20000, scoped, tag = 'scratch operand']
  %s0 = inlined_call_operand.vmem [shape: f32[8,64,32], index: 0, kind: input, shape index: {}]
  %s1 = inlined_call_operand.vmem [shape: f32[1,4,64,64], index: 1, kind: input, shape index: {}]
  %s2 = inlined_call_operand.vmem [shape: f32[32,96], index: 2, kind: input, shape index: {}]
  %s3 = inlined_call_operand.vmem [shape: f32[1,96], index: 3, kind: input, shape index: {}]
  %s4 = inlined_call_operand.vmem [shape: f32[32,32], index: 4, kind: input, shape index: {}]
  %s5 = inlined_call_operand.vmem [shape: f32[1,32], index: 5, kind: input, shape index: {}]
  %s6 = inlined_call_operand.vmem [shape: f32[8,64,32], index: 6, kind: output, shape index: {}]
  %s7 = sld [smem:[#allocation0]]
  $region57: #{tpu_custom_call.1} parent=0
    _
  %s9 = ssub.s32 1, %s7
  %s10 = scalar_select 0, %s9, %s7
  loop: start=0, step=1, limit=4
  $region2: #{tpu_custom_call.1} parent=0 // loop_pre_header
    _
  $region3: #{tpu_custom_call.1} parent=0 // loop_header
    %s12 = sphi 0, %s16
    %p13 = scmp.ge.s32.totalorder %s12, 4
    %s22 = sphi 0, %s24
    %s25 = sphi 0, %s22
    %s26 = sphi 0, %s25
    %s42 = sphi 0, %s26
    %s46 = sphi 0, %s46
    %s48 = sphi 0, %s46
    %s49 = sphi 0, %s48
    %s63 = sphi 0, %s49
    %s67 = sphi 0, %s67
    %s69 = sphi 0, %s67
    %s70 = sphi 0, %s69
    %s84 = sphi 0, %s70
    %s88 = sphi 0, %s88
    %s90 = sphi 0, %s88
    %s91 = sphi 0, %s90
    %s105 = sphi 0, %s91
    %s109 = sphi 0, %s109
    %s111 = sphi 0, %s109
    %s112 = sphi 0, %s111
    %s126 = sphi 0, %s112
    %s130 = sphi 0, %s130
    %s132 = sphi 0, %s130
    %s133 = sphi 0, %s132
    %s147 = sphi 0, %s133
    %s153 = sphi 0, %s155
    %s156 = sphi 0, %s153
    %s157 = sphi 0, %s156
    %s173 = sphi 0, %s157
  $region4: #{tpu_custom_call.1} parent=0 // loop_header_branch
    %15 = sbr.rel (%p13) target = $region8
  $region5: #{tpu_custom_call.1} parent=0 // loop_body
    %s17 = ssub.s32 %s12, 1
    %s18 = ssub.s32 %s12, 2
    %s19 = sadd.s32 %s12, 1
    %s20 = ssub.s32 %s12, %s19
    %p21 = scmp.eq.s32.totalorder %s20, 0
    %s23 = sadd.s32 %s22, 1
    %s24 = scalar_select %p21, %s22, %s23
    %p27 = pneg %p21
    %p28 = scmp.eq.s32.totalorder %s12, 1
    %p29 = por %p27, %p28
    %p30 = scmp.ne.s32.totalorder %s22, %s25
    %p31 = scmp.eq.s32.totalorder %s12, 0
    %p32 = por %p30, %p31
    %p33 = scmp.ne.s32.totalorder %s22, %s25
    %p34 = scmp.eq.s32.totalorder %s17, 1
    %p35 = por %p33, %p34
    %p36 = scmp.ne.s32.totalorder %s25, %s26
    %p37 = scmp.eq.s32.totalorder %s17, 0
    %p38 = por %p36, %p37
    %p39 = scmp.ne.s32.totalorder %s25, %s26
    %p40 = scmp.eq.s32.totalorder %s18, 1
    %p41 = por %p39, %p40
    %p43 = scmp.ne.s32.totalorder %s26, %s42
    %p44 = scmp.eq.s32.totalorder %s18, 0
    %p45 = por %p43, %p44
    %s47 = sadd.s32 %s46, 1
    %p50 = scmp.eq.s32.totalorder %s12, 1
    %p51 = scmp.ne.s32.totalorder %s46, %s48
    %p52 = scmp.eq.s32.totalorder %s12, 0
    %p53 = por %p51, %p52
    %p54 = scmp.ne.s32.totalorder %s46, %s48
    %p55 = scmp.eq.s32.totalorder %s17, 1
    %p56 = por %p54, %p55
    %p57 = scmp.ne.s32.totalorder %s48, %s49
    %p58 = scmp.eq.s32.totalorder %s17, 0
    %p59 = por %p57, %p58
    %p60 = scmp.ne.s32.totalorder %s48, %s49
    %p61 = scmp.eq.s32.totalorder %s18, 1
    %p62 = por %p60, %p61
    %p64 = scmp.ne.s32.totalorder %s49, %s63
    %p65 = scmp.eq.s32.totalorder %s18, 0
    %p66 = por %p64, %p65
    %s68 = sadd.s32 %s67, 1
    %p71 = scmp.eq.s32.totalorder %s12, 1
    %p72 = scmp.ne.s32.totalorder %s67, %s69
    %p73 = scmp.eq.s32.totalorder %s12, 0
    %p74 = por %p72, %p73
    %p75 = scmp.ne.s32.totalorder %s67, %s69
    %p76 = scmp.eq.s32.totalorder %s17, 1
    %p77 = por %p75, %p76
    %p78 = scmp.ne.s32.totalorder %s69, %s70
    %p79 = scmp.eq.s32.totalorder %s17, 0
    %p80 = por %p78, %p79
    %p81 = scmp.ne.s32.totalorder %s69, %s70
    %p82 = scmp.eq.s32.totalorder %s18, 1
    %p83 = por %p81, %p82
    %p85 = scmp.ne.s32.totalorder %s70, %s84
    %p86 = scmp.eq.s32.totalorder %s18, 0
    %p87 = por %p85, %p86
    %s89 = sadd.s32 %s88, 1
    %p92 = scmp.eq.s32.totalorder %s12, 1
    %p93 = scmp.ne.s32.totalorder %s88, %s90
    %p94 = scmp.eq.s32.totalorder %s12, 0
    %p95 = por %p93, %p94
    %p96 = scmp.ne.s32.totalorder %s88, %s90
    %p97 = scmp.eq.s32.totalorder %s17, 1
    %p98 = por %p96, %p97
    %p99 = scmp.ne.s32.totalorder %s90, %s91
    %p100 = scmp.eq.s32.totalorder %s17, 0
    %p101 = por %p99, %p100
    %p102 = scmp.ne.s32.totalorder %s90, %s91
    %p103 = scmp.eq.s32.totalorder %s18, 1
    %p104 = por %p102, %p103
    %p106 = scmp.ne.s32.totalorder %s91, %s105
    %p107 = scmp.eq.s32.totalorder %s18, 0
    %p108 = por %p106, %p107
    %s110 = sadd.s32 %s109, 1
    %p113 = scmp.eq.s32.totalorder %s12, 1
    %p114 = scmp.ne.s32.totalorder %s109, %s111
    %p115 = scmp.eq.s32.totalorder %s12, 0
    %p116 = por %p114, %p115
    %p117 = scmp.ne.s32.totalorder %s109, %s111
    %p118 = scmp.eq.s32.totalorder %s17, 1
    %p119 = por %p117, %p118
    %p120 = scmp.ne.s32.totalorder %s111, %s112
    %p121 = scmp.eq.s32.totalorder %s17, 0
    %p122 = por %p120, %p121
    %p123 = scmp.ne.s32.totalorder %s111, %s112
    %p124 = scmp.eq.s32.totalorder %s18, 1
    %p125 = por %p123, %p124
    %p127 = scmp.ne.s32.totalorder %s112, %s126
    %p128 = scmp.eq.s32.totalorder %s18, 0
    %p129 = por %p127, %p128
    %s131 = sadd.s32 %s130, 1
    %p134 = scmp.eq.s32.totalorder %s12, 1
    %p135 = scmp.ne.s32.totalorder %s130, %s132
    %p136 = scmp.eq.s32.totalorder %s12, 0
    %p137 = por %p135, %p136
    %p138 = scmp.ne.s32.totalorder %s130, %s132
    %p139 = scmp.eq.s32.totalorder %s17, 1
    %p140 = por %p138, %p139
    %p141 = scmp.ne.s32.totalorder %s132, %s133
    %p142 = scmp.eq.s32.totalorder %s17, 0
    %p143 = por %p141, %p142
    %p144 = scmp.ne.s32.totalorder %s132, %s133
    %p145 = scmp.eq.s32.totalorder %s18, 1
    %p146 = por %p144, %p145
    %p148 = scmp.ne.s32.totalorder %s133, %s147
    %p149 = scmp.eq.s32.totalorder %s18, 0
    %p150 = por %p148, %p149
    %s151 = ssub.s32 %s12, %s19
    %p152 = scmp.eq.s32.totalorder %s151, 0
    %s154 = sadd.s32 %s153, 1
    %s155 = scalar_select %p152, %s153, %s154
    %p158 = pneg %p152
    %p159 = scmp.eq.s32.totalorder %s12, 1
    %p160 = por %p158, %p159
    %p161 = scmp.ne.s32.totalorder %s153, %s156
    %p162 = scmp.eq.s32.totalorder %s12, 0
    %p163 = por %p161, %p162
    %p164 = scmp.ne.s32.totalorder %s153, %s156
    %p165 = scmp.eq.s32.totalorder %s17, 1
    %p166 = por %p164, %p165
    %p167 = scmp.ne.s32.totalorder %s156, %s157
    %p168 = scmp.eq.s32.totalorder %s17, 0
    %p169 = por %p167, %p168
    %p170 = scmp.ne.s32.totalorder %s156, %s157
    %p171 = scmp.eq.s32.totalorder %s18, 1
    %p172 = por %p170, %p171
    %p174 = scmp.ne.s32.totalorder %s157, %s173
    %p175 = scmp.eq.s32.totalorder %s18, 0
    %p176 = por %p174, %p175
    %p177 = scmp.le.s32.totalorder 1, %s12
    %p178 = scmp.lt.s32.totalorder %s12, 3
    %p179 = pnand %p177, %p178
    %p180 = pneg %p179
    // Predicated region
    $region9: #{tpu_custom_call.1} parent=5 // pred_check
      _
    $region10: #{tpu_custom_call.1} parent=5 // pred_check_branch
      %182 = sbr.rel (%p179) target = $region12
    $region11: #{tpu_custom_call.1} parent=5 // pred_region
      %s183 = ssub.s32 %s12, 1
      // Predicated region
      $region13: #{tpu_custom_call.1} parent=11 // pred_check
        %p184 = pneg %p59
      $region14: #{tpu_custom_call.1} parent=11 // pred_check_branch
        %186 = sbr.rel (%p184) target = $region16
      $region15: #{tpu_custom_call.1} parent=11 // pred_region
        _
      $region16: #{tpu_custom_call.1} parent=11 // pred_fallthru
        _
      // Predicated region
      $region17: #{tpu_custom_call.1} parent=11 // pred_check
        %p187 = pneg %p80
      $region18: #{tpu_custom_call.1} parent=11 // pred_check_branch
        %189 = sbr.rel (%p187) target = $region20
      $region19: #{tpu_custom_call.1} parent=11 // pred_region
        _
      $region20: #{tpu_custom_call.1} parent=11 // pred_fallthru
        _
      // Predicated region
      $region21: #{tpu_custom_call.1} parent=11 // pred_check
        %p190 = pneg %p101
      $region22: #{tpu_custom_call.1} parent=11 // pred_check_branch
        %192 = sbr.rel (%p190) target = $region24
      $region23: #{tpu_custom_call.1} parent=11 // pred_region
        _
      $region24: #{tpu_custom_call.1} parent=11 // pred_fallthru
        _
      // Predicated region
      $region25: #{tpu_custom_call.1} parent=11 // pred_check
        %p193 = pneg %p122
      $region26: #{tpu_custom_call.1} parent=11 // pred_check_branch
        %195 = sbr.rel (%p193) target = $region28
      $region27: #{tpu_custom_call.1} parent=11 // pred_region
        _
      $region28: #{tpu_custom_call.1} parent=11 // pred_fallthru
        _
      // Predicated region
      $region29: #{tpu_custom_call.1} parent=11 // pred_check
        %p196 = pneg %p143
      $region30: #{tpu_custom_call.1} parent=11 // pred_check_branch
        %198 = sbr.rel (%p196) target = $region32
      $region31: #{tpu_custom_call.1} parent=11 // pred_region
        _
      $region32: #{tpu_custom_call.1} parent=11 // pred_fallthru
        _
    $region12: #{tpu_custom_call.1} parent=5 // pred_fallthru
      _
    %p199 = scmp.lt.s32.totalorder %s12, 2
    // Predicated region
    $region33: #{tpu_custom_call.1} parent=5 // pred_check
      %p200 = pneg %p199
    $region34: #{tpu_custom_call.1} parent=5 // pred_check_branch
      %202 = sbr.rel (%p200) target = $region36
    $region35: #{tpu_custom_call.1} parent=5 // pred_region
      // Predicated region
      $region37: #{tpu_custom_call.1} parent=35 // pred_check
        %p203 = pneg %p32
      $region38: #{tpu_custom_call.1} parent=35 // pred_check_branch
        %205 = sbr.rel (%p203) target = $region40
      $region39: #{tpu_custom_call.1} parent=35 // pred_region
        %s206 = smul.u32 4, %s12
        %p207 = scmp.lt.s32.totalorder %s206, 7
        %s208 = scalar_select %p207, %s206, 7
        %s209 = smul.addr %s208, 8
        %s210 = smul.addr %s209, 8
        %s211 = scalar_lea.vmem %s0, %s210
        %s212 = smul.u32 4, %s12
      $region40: #{tpu_custom_call.1} parent=35 // pred_fallthru
        _
    $region36: #{tpu_custom_call.1} parent=5 // pred_fallthru
      _
    %p213 = scmp.le.s32.totalorder 1, %s12
    %p214 = scmp.lt.s32.totalorder %s12, 3
    %p215 = pnand %p213, %p214
    %p216 = pneg %p215
    // Predicated region
    $region41: #{tpu_custom_call.1} parent=5 // pred_check
      _
    $region42: #{tpu_custom_call.1} parent=5 // pred_check_branch
      %218 = sbr.rel (%p215) target = $region44
    $region43: #{tpu_custom_call.1} parent=5 // pred_region
      %s219 = ssub.s32 %s12, 1
      %s220 = smul.u32 4, %s17
      %p221 = scmp.lt.s32.totalorder %s220, 7
      %s222 = scalar_select %p221, %s220, 7
      %s223 = smul.addr %s222, 8
      %s224 = smul.addr %s223, 8
      %s225 = scalar_lea.vmem %s0, %s224
      %p226 = pneg %p38
      %p227 = pneg %p35
      %p228 = pneg %p59
      %p229 = pneg %p56
      %p230 = pneg %p80
      %p231 = pneg %p77
      %p232 = pneg %p101
      %p233 = pneg %p98
      %p234 = pneg %p122
      %p235 = pneg %p119
      %p236 = pneg %p143
      %p237 = pneg %p140
      %p238 = pneg %p169
      %p239 = pneg %p166
      %s240 = smul.u32 4, %s17
      %p241 = scmp.lt.s32.totalorder %s240, 7
      %s242 = scalar_select %p241, %s240, 7
      %s243 = smul.addr %s242, 8
      %s244 = smul.addr %s243, 8
      %s245 = scalar_lea.vmem %s6, %s244
      %s246 = smul.u32 4, %s17
      %p247 = scmp.lt.s32.totalorder %s246, 7
      %s248 = scalar_select %p247, %s246, 7
      %s249 = smul.addr %s248, 8
      %s250 = smul.addr %s249, 8
      %s251 = scalar_lea.vmem %s0, %s250
      %s252 = smul.u32 4, %s17
      %s253 = smul.u32 4, %s17
      %p254 = scmp.lt.s32.totalorder %s253, 7
      %s255 = scalar_select %p254, %s253, 7
      %s256 = smul.addr %s255, 8
      %s257 = smul.addr %s256, 8
      %s258 = scalar_lea.vmem %s6, %s257
      %s259 = smul.u32 4, %s17
      %v260 = vld [vmem:[%s251] sm:$0xff]
      %v261 = vld [vmem:[%s251 + $0x8] sm:$0xff]
      %v262 = vld [vmem:[%s251 + $0x10] sm:$0xff]
      %v263 = vld [vmem:[%s251 + $0x18] sm:$0xff]
      %v264 = vld [vmem:[%s251 + $0x20] sm:$0xff]
      %v265 = vld [vmem:[%s251 + $0x28] sm:$0xff]
      %v266 = vld [vmem:[%s251 + $0x30] sm:$0xff]
      %v267 = vld [vmem:[%s251 + $0x38] sm:$0xff]
      %v268 = vld [vmem:[%s251 + $0x40] sm:$0xff]
      %v269 = vld [vmem:[%s251 + $0x48] sm:$0xff]
      %v270 = vld [vmem:[%s251 + $0x50] sm:$0xff]
      %v271 = vld [vmem:[%s251 + $0x58] sm:$0xff]
      %v272 = vld [vmem:[%s251 + $0x60] sm:$0xff]
      %v273 = vld [vmem:[%s251 + $0x68] sm:$0xff]
      %v274 = vld [vmem:[%s251 + $0x70] sm:$0xff]
      %v275 = vld [vmem:[%s251 + $0x78] sm:$0xff]
      %v276 = vld [vmem:[%s251 + $0x80] sm:$0xff]
      %v277 = vld [vmem:[%s251 + $0x88] sm:$0xff]
      %v278 = vld [vmem:[%s251 + $0x90] sm:$0xff]
      %v279 = vld [vmem:[%s251 + $0x98] sm:$0xff]
      %v280 = vld [vmem:[%s251 + $0xa0] sm:$0xff]
      %v281 = vld [vmem:[%s251 + $0xa8] sm:$0xff]
      %v282 = vld [vmem:[%s251 + $0xb0] sm:$0xff]
      %v283 = vld [vmem:[%s251 + $0xb8] sm:$0xff]
      %v284 = vld [vmem:[%s251 + $0xc0] sm:$0xff]
      %v285 = vld [vmem:[%s251 + $0xc8] sm:$0xff]
      %v286 = vld [vmem:[%s251 + $0xd0] sm:$0xff]
      %v287 = vld [vmem:[%s251 + $0xd8] sm:$0xff]
      %v288 = vld [vmem:[%s251 + $0xe0] sm:$0xff]
      %v289 = vld [vmem:[%s251 + $0xe8] sm:$0xff]
      %v290 = vld [vmem:[%s251 + $0xf0] sm:$0xff]
      %v291 = vld [vmem:[%s251 + $0xf8] sm:$0xff]
      %v292 = vld [vmem:[%s2] sm:$0xff]
      %v293 = vld [vmem:[%s2 + $0x8] sm:$0xff]
      %v294 = vld [vmem:[%s2 + $0x10] sm:$0xff]
      %v295 = vld [vmem:[%s2 + $0x18] sm:$0xff]
      %v296 = vld [vmem:[%s3] sm:$0x1]
      %v298 = vlaneseq
      %v299 = vshrl.u32 %v298, 7
      %v300 = vsub.s32 0, %v299
      %v301 = vrot.slane %v296, %v300
      %vm303 = vcmask 261120
      %v305 = vsel %vm303, %v260, 0
      %v308 = vsel %vm303, %v261, 0
      %v311 = vsel %vm303, %v262, 0
      %v314 = vsel %vm303, %v263, 0
      %v317 = vsel %vm303, %v264, 0
      %v320 = vsel %vm303, %v265, 0
      %v323 = vsel %vm303, %v266, 0
      %v326 = vsel %vm303, %v267, 0
      %v329 = vsel %vm303, %v268, 0
      %v332 = vsel %vm303, %v269, 0
      %v335 = vsel %vm303, %v270, 0
      %v338 = vsel %vm303, %v271, 0
      %v341 = vsel %vm303, %v272, 0
      %v344 = vsel %vm303, %v273, 0
      %v347 = vsel %vm303, %v274, 0
      %v350 = vsel %vm303, %v275, 0
      %v353 = vsel %vm303, %v276, 0
      %v356 = vsel %vm303, %v277, 0
      %v359 = vsel %vm303, %v278, 0
      %v362 = vsel %vm303, %v279, 0
      %v365 = vsel %vm303, %v280, 0
      %v368 = vsel %vm303, %v281, 0
      %v371 = vsel %vm303, %v282, 0
      %v374 = vsel %vm303, %v283, 0
      %v377 = vsel %vm303, %v284, 0
      %v380 = vsel %vm303, %v285, 0
      %v383 = vsel %vm303, %v286, 0
      %v386 = vsel %vm303, %v287, 0
      %v389 = vsel %vm303, %v288, 0
      %v392 = vsel %vm303, %v289, 0
      %v395 = vsel %vm303, %v290, 0
      %v398 = vsel %vm303, %v291, 0
      %400 = vmatprep.subr.mxu0 0.0
      %401 = vmatpush1.msra.mxu0 %v292
      %402 = vmatprep.subr.mxu0 0.0
      %403 = vmatpush1.msra.mxu0 %v293
      %404 = vmatprep.subr.mxu0 0.0
      %405 = vmatpush1.msra.mxu0 %v294
      %406 = vmatprep.subr.mxu0 0.0
      %407 = vmatpush1.msra.mxu0 %v295
      %408 = vmatprep.subr.mxu0 0.0
      %409 = vmatpush1.msra.mxu0 0.0
      %410 = vmatprep.subr.mxu0 0.0
      %411 = vmatpush1.msra.mxu0 0.0
      %412 = vmatprep.subr.mxu0 0.0
      %413 = vmatpush1.msra.mxu0 0.0
      %414 = vmatprep.subr.mxu0 0.0
      %415 = vmatpush1.msra.mxu0 0.0
      %416 = vmatprep.subr.mxu0 0.0
      %417 = vmatpush1.msra.mxu0 0.0
      %418 = vmatprep.subr.mxu0 0.0
      %419 = vmatpush1.msra.mxu0 0.0
      %420 = vmatprep.subr.mxu0 0.0
      %421 = vmatpush1.msra.mxu0 0.0
      %422 = vmatprep.subr.mxu0 0.0
      %423 = vmatpush1.msra.mxu0 0.0
      %424 = vmatprep.subr.mxu0 0.0
      %425 = vmatpush1.msra.mxu0 0.0
      %426 = vmatprep.subr.mxu0 0.0
      %427 = vmatpush1.msra.mxu0 0.0
      %428 = vmatprep.subr.mxu0 0.0
      %429 = vmatpush1.msra.mxu0 0.0
      %430 = vmatprep.subr.mxu0 0.0
      %431 = vmatpush1.msra.mxu0 0.0
      %432 = vmatprep.subr.mxu0 0.0
      %433 = vmatpush1.msra.mxu0 0.0
      %434 = vmatprep.subr.mxu0 0.0
      %435 = vmatpush1.msra.mxu0 0.0
      %436 = vmatprep.subr.mxu0 0.0
      %437 = vmatpush1.msra.mxu0 0.0
      %438 = vmatprep.subr.mxu0 0.0
      %439 = vmatpush1.msra.mxu0 0.0
      %440 = vmatprep.subr.mxu0 0.0
      %441 = vmatpush1.msra.mxu0 0.0
      %442 = vmatprep.subr.mxu0 0.0
      %443 = vmatpush1.msra.mxu0 0.0
      %444 = vmatprep.subr.mxu0 0.0
      %445 = vmatpush1.msra.mxu0 0.0
      %446 = vmatprep.subr.mxu0 0.0
      %447 = vmatpush1.msra.mxu0 0.0
      %448 = vmatprep.subr.mxu0 0.0
      %449 = vmatpush1.msra.mxu0 0.0
      %450 = vmatprep.subr.mxu0 0.0
      %451 = vmatpush1.msra.mxu0 0.0
      %452 = vmatprep.subr.mxu0 0.0
      %453 = vmatpush1.msra.mxu0 0.0
      %454 = vmatprep.subr.mxu0 0.0
      %455 = vmatpush1.msra.mxu0 0.0
      %456 = vmatprep.subr.mxu0 0.0
      %457 = vmatpush1.msra.mxu0 0.0
      %458 = vmatprep.subr.mxu0 0.0
      %459 = vmatpush1.msra.mxu0 0.0
      %460 = vmatprep.subr.mxu0 0.0
      %461 = vmatpush1.msra.mxu0 0.0
      %462 = vmatprep.subr.mxu0 0.0
      %463 = vmatpush1.msra.mxu0 0.0
      %464 = vmatprep.mubr.f32.mxu0 0.0
      %465 = vmatmul.mubr.f32.gmra.mrb[0].mxu0 %v305
      %v466 = vpop.f32.mrb[0].mxu0
      %v467 = vadd.f32 %v301, %v466
      %v468 = vpop.f32.mrb[0].mxu0
      %469 = vmatprep.mubr.f32.mxu0 0.0
      %470 = vmatmul.mubr.f32.gmra.mrb[0].mxu0 %v308
      %v471 = vpop.f32.mrb[0].mxu0
      %v472 = vadd.f32 %v301, %v471
      %v473 = vpop.f32.mrb[0].mxu0
      %474 = vmatprep.mubr.f32.mxu0 0.0
      %475 = vmatmul.mubr.f32.gmra.mrb[0].mxu0 %v311
      %v476 = vpop.f32.mrb[0].mxu0
      %v477 = vadd.f32 %v301, %v476
      %v478 = vpop.f32.mrb[0].mxu0
      %479 = vmatprep.mubr.f32.mxu0 0.0
      %480 = vmatmul.mubr.f32.gmra.mrb[0].mxu0 %v314
      %v481 = vpop.f32.mrb[0].mxu0
      %v482 = vadd.f32 %v301, %v481
      %v483 = vpop.f32.mrb[0].mxu0
      %484 = vmatprep.mubr.f32.mxu0 0.0
      %485 = vmatmul.mubr.f32.gmra.mrb[0].mxu0 %v317
      %v486 = vpop.f32.mrb[0].mxu0
      %v487 = vadd.f32 %v301, %v486
      %v488 = vpop.f32.mrb[0].mxu0
      %489 = vmatprep.mubr.f32.mxu0 0.0
      %490 = vmatmul.mubr.f32.gmra.mrb[0].mxu0 %v320
      %v491 = vpop.f32.mrb[0].mxu0
      %v492 = vadd.f32 %v301, %v491
      %v493 = vpop.f32.mrb[0].mxu0
      %494 = vmatprep.mubr.f32.mxu0 0.0
      %495 = vmatmul.mubr.f32.gmra.mrb[0].mxu0 %v323
      %v496 = vpop.f32.mrb[0].mxu0
      %v497 = vadd.f32 %v301, %v496
      %v498 = vpop.f32.mrb[0].mxu0
      %499 = vmatprep.mubr.f32.mxu0 0.0
      %500 = vmatmul.mubr.f32.gmra.mrb[0].mxu0 %v326
      %v501 = vpop.f32.mrb[0].mxu0
      %v502 = vadd.f32 %v301, %v501
      %v503 = vpop.f32.mrb[0].mxu0
      %504 = vmatprep.mubr.f32.mxu0 0.0
      %505 = vmatmul.mubr.f32.gmra.mrb[0].mxu0 %v329
      %v506 = vpop.f32.mrb[0].mxu0
      %v507 = vadd.f32 %v301, %v506
      %v508 = vpop.f32.mrb[0].mxu0
      %509 = vmatprep.mubr.f32.mxu0 0.0
      %510 = vmatmul.mubr.f32.gmra.mrb[0].mxu0 %v332
      %v511 = vpop.f32.mrb[0].mxu0
      %v512 = vadd.f32 %v301, %v511
      %v513 = vpop.f32.mrb[0].mxu0
      %514 = vmatprep.mubr.f32.mxu0 0.0
      %515 = vmatmul.mubr.f32.gmra.mrb[0].mxu0 %v335
      %v516 = vpop.f32.mrb[0].mxu0
      %v517 = vadd.f32 %v301, %v516
      %v518 = vpop.f32.mrb[0].mxu0
      %519 = vmatprep.mubr.f32.mxu0 0.0
      %520 = vmatmul.mubr.f32.gmra.mrb[0].mxu0 %v338
      %v521 = vpop.f32.mrb[0].mxu0
      %v522 = vadd.f32 %v301, %v521
      %v523 = vpop.f32.mrb[0].mxu0
      %524 = vmatprep.mubr.f32.mxu0 0.0
      %525 = vmatmul.mubr.f32.gmra.mrb[0].mxu0 %v341
      %v526 = vpop.f32.mrb[0].mxu0
      %v527 = vadd.f32 %v301, %v526
      %v528 = vpop.f32.mrb[0].mxu0
      %529 = vmatprep.mubr.f32.mxu0 0.0
      %530 = vmatmul.mubr.f32.gmra.mrb[0].mxu0 %v344
      %v531 = vpop.f32.mrb[0].mxu0
      %v532 = vadd.f32 %v301, %v531
      %v533 = vpop.f32.mrb[0].mxu0
      %534 = vmatprep.mubr.f32.mxu0 0.0
      %535 = vmatmul.mubr.f32.gmra.mrb[0].mxu0 %v347
      %v536 = vpop.f32.mrb[0].mxu0
      %v537 = vadd.f32 %v301, %v536
      %v538 = vpop.f32.mrb[0].mxu0
      %539 = vmatprep.mubr.f32.mxu0 0.0
      %540 = vmatmul.mubr.f32.gmra.mrb[0].mxu0 %v350
      %v541 = vpop.f32.mrb[0].mxu0
      %v542 = vadd.f32 %v301, %v541
      %v543 = vpop.f32.mrb[0].mxu0
      %544 = vmatprep.mubr.f32.mxu0 0.0
      %545 = vmatmul.mubr.f32.gmra.mrb[0].mxu0 %v353
      %v546 = vpop.f32.mrb[0].mxu0
      %v547 = vadd.f32 %v301, %v546
      %v548 = vpop.f32.mrb[0].mxu0
      %549 = vmatprep.mubr.f32.mxu0 0.0
      %550 = vmatmul.mubr.f32.gmra.mrb[0].mxu0 %v356
      %v551 = vpop.f32.mrb[0].mxu0
      %v552 = vadd.f32 %v301, %v551
      %v553 = vpop.f32.mrb[0].mxu0
      %554 = vmatprep.mubr.f32.mxu0 0.0
      %555 = vmatmul.mubr.f32.gmra.mrb[0].mxu0 %v359
      %v556 = vpop.f32.mrb[0].mxu0
      %v557 = vadd.f32 %v301, %v556
      %v558 = vpop.f32.mrb[0].mxu0
      %559 = vmatprep.mubr.f32.mxu0 0.0
      %560 = vmatmul.mubr.f32.gmra.mrb[0].mxu0 %v362
      %v561 = vpop.f32.mrb[0].mxu0
      %v562 = vadd.f32 %v301, %v561
      %v563 = vpop.f32.mrb[0].mxu0
      %564 = vmatprep.mubr.f32.mxu0 0.0
      %565 = vmatmul.mubr.f32.gmra.mrb[0].mxu0 %v365
      %v566 = vpop.f32.mrb[0].mxu0
      %v567 = vadd.f32 %v301, %v566
      %v568 = vpop.f32.mrb[0].mxu0
      %569 = vmatprep.mubr.f32.mxu0 0.0
      %570 = vmatmul.mubr.f32.gmra.mrb[0].mxu0 %v368
      %v571 = vpop.f32.mrb[0].mxu0
      %v572 = vadd.f32 %v301, %v571
      %v573 = vpop.f32.mrb[0].mxu0
      %574 = vmatprep.mubr.f32.mxu0 0.0
      %575 = vmatmul.mubr.f32.gmra.mrb[0].mxu0 %v371
      %v576 = vpop.f32.mrb[0].mxu0
      %v577 = vadd.f32 %v301, %v576
      %v578 = vpop.f32.mrb[0].mxu0
      %579 = vmatprep.mubr.f32.mxu0 0.0
      %580 = vmatmul.mubr.f32.gmra.mrb[0].mxu0 %v374
      %v581 = vpop.f32.mrb[0].mxu0
      %v582 = vadd.f32 %v301, %v581
      %v583 = vpop.f32.mrb[0].mxu0
      %584 = vmatprep.mubr.f32.mxu0 0.0
      %585 = vmatmul.mubr.f32.gmra.mrb[0].mxu0 %v377
      %v586 = vpop.f32.mrb[0].mxu0
      %v587 = vadd.f32 %v301, %v586
      %v588 = vpop.f32.mrb[0].mxu0
      %589 = vmatprep.mubr.f32.mxu0 0.0
      %590 = vmatmul.mubr.f32.gmra.mrb[0].mxu0 %v380
      %v591 = vpop.f32.mrb[0].mxu0
      %v592 = vadd.f32 %v301, %v591
      %v593 = vpop.f32.mrb[0].mxu0
      %594 = vmatprep.mubr.f32.mxu0 0.0
      %595 = vmatmul.mubr.f32.gmra.mrb[0].mxu0 %v383
      %v596 = vpop.f32.mrb[0].mxu0
      %v597 = vadd.f32 %v301, %v596
      %v598 = vpop.f32.mrb[0].mxu0
      %599 = vmatprep.mubr.f32.mxu0 0.0
      %600 = vmatmul.mubr.f32.gmra.mrb[0].mxu0 %v386
      %v601 = vpop.f32.mrb[0].mxu0
      %v602 = vadd.f32 %v301, %v601
      %v603 = vpop.f32.mrb[0].mxu0
      %604 = vmatprep.mubr.f32.mxu0 0.0
      %605 = vmatmul.mubr.f32.gmra.mrb[0].mxu0 %v389
      %v606 = vpop.f32.mrb[0].mxu0
      %v607 = vadd.f32 %v301, %v606
      %v608 = vpop.f32.mrb[0].mxu0
      %609 = vmatprep.mubr.f32.mxu0 0.0
      %610 = vmatmul.mubr.f32.gmra.mrb[0].mxu0 %v392
      %v611 = vpop.f32.mrb[0].mxu0
      %v612 = vadd.f32 %v301, %v611
      %v613 = vpop.f32.mrb[0].mxu0
      %614 = vmatprep.mubr.f32.mxu0 0.0
      %615 = vmatmul.mubr.f32.gmra.mrb[0].mxu0 %v395
      %v616 = vpop.f32.mrb[0].mxu0
      %v617 = vadd.f32 %v301, %v616
      %v618 = vpop.f32.mrb[0].mxu0
      %619 = vmatprep.mubr.f32.mxu0 0.0
      %620 = vmatmul.mubr.f32.gmra.mrb[0].mxu0 %v398
      %v621 = vpop.f32.mrb[0].mxu0
      %v622 = vadd.f32 %v301, %v621
      %v623 = vpop.f32.mrb[0].mxu0
      %624 = vdwg.mxu0
      %v625 = vld [vmem:[%s1] sm:$0xff]
      %v626 = vld [vmem:[%s1 + $0x8] sm:$0xff]
      %v627 = vld [vmem:[%s1 + $0x10] sm:$0xff]
      %v628 = vld [vmem:[%s1 + $0x18] sm:$0xff]
      %v629 = vld [vmem:[%s1 + $0x20] sm:$0xff]
      %v630 = vld [vmem:[%s1 + $0x28] sm:$0xff]
      %v631 = vld [vmem:[%s1 + $0x30] sm:$0xff]
      %v632 = vld [vmem:[%s1 + $0x38] sm:$0xff]
      %641 = vrot.lane.b32.xlu0 %v467, 96
      %v642 = vpop.permute.xlu0 %641
      %643 = vrot.lane.b32.xlu0 %v472, 96
      %v644 = vpop.permute.xlu0 %643
      %645 = vrot.lane.b32.xlu0 %v477, 96
      %v646 = vpop.permute.xlu0 %645
      %647 = vrot.lane.b32.xlu0 %v482, 96
      %v648 = vpop.permute.xlu0 %647
      %649 = vrot.lane.b32.xlu0 %v487, 96
      %v650 = vpop.permute.xlu0 %649
      %651 = vrot.lane.b32.xlu0 %v492, 96
      %v652 = vpop.permute.xlu0 %651
      %653 = vrot.lane.b32.xlu0 %v497, 96
      %v654 = vpop.permute.xlu0 %653
      %655 = vrot.lane.b32.xlu0 %v502, 96
      %v656 = vpop.permute.xlu0 %655
      %vm657 = vcmask 64512
      %v658 = vsel %vm657, %v467, 0
      %v660 = vsel %vm657, %v472, 0
      %v662 = vsel %vm657, %v477, 0
      %v664 = vsel %vm657, %v482, 0
      %v666 = vsel %vm657, %v487, 0
      %v668 = vsel %vm657, %v492, 0
      %v670 = vsel %vm657, %v497, 0
      %v672 = vsel %vm657, %v502, 0
      %v674 = vsel %vm657, %v642, 0
      %v676 = vsel %vm657, %v644, 0
      %v678 = vsel %vm657, %v646, 0
      %v680 = vsel %vm657, %v648, 0
      %v682 = vsel %vm657, %v650, 0
      %v684 = vsel %vm657, %v652, 0
      %v686 = vsel %vm657, %v654, 0
      %v688 = vsel %vm657, %v656, 0
      %690 = vmatprep.subr.mxu0 0.0
      %691 = vmatpush1.xpose.msra.mxu0 %v674
      %692 = vmatprep.subr.mxu0 0.0
      %693 = vmatpush1.xpose.msra.mxu0 %v676
      %694 = vmatprep.subr.mxu0 0.0
      %695 = vmatpush1.xpose.msra.mxu0 %v678
      %696 = vmatprep.subr.mxu0 0.0
      %697 = vmatpush1.xpose.msra.mxu0 %v680
      %698 = vmatprep.subr.mxu0 0.0
      %699 = vmatpush1.xpose.msra.mxu0 %v682
      %700 = vmatprep.subr.mxu0 0.0
      %701 = vmatpush1.xpose.msra.mxu0 %v684
      %702 = vmatprep.subr.mxu0 0.0
      %703 = vmatpush1.xpose.msra.mxu0 %v686
      %704 = vmatprep.subr.mxu0 0.0
      %705 = vmatpush1.xpose.msra.mxu0 %v688
      %706 = vmatprep.subr.mxu0 0.0
      %707 = vmatpush1.xpose.msra.mxu0 0.0
      %708 = vmatprep.subr.mxu0 0.0
      %709 = vmatpush1.xpose.msra.mxu0 0.0
      %710 = vmatprep.subr.mxu0 0.0
      %711 = vmatpush1.xpose.msra.mxu0 0.0
      %712 = vmatprep.subr.mxu0 0.0
      %713 = vmatpush1.xpose.msra.mxu0 0.0
      %714 = vmatprep.subr.mxu0 0.0
      %715 = vmatpush1.xpose.msra.mxu0 0.0
      %716 = vmatprep.subr.mxu0 0.0
      %717 = vmatpush1.xpose.msra.mxu0 0.0
      %718 = vmatprep.subr.mxu0 0.0
      %719 = vmatpush1.xpose.msra.mxu0 0.0
      %720 = vmatprep.subr.mxu0 0.0
      %721 = vmatpush1.xpose.msra.mxu0 0.0
      %722 = vmatprep.subr.mxu0 0.0
      %723 = vmatpush1.xpose.msra.mxu0 0.0
      %724 = vmatprep.subr.mxu0 0.0
      %725 = vmatpush1.xpose.msra.mxu0 0.0
      %726 = vmatprep.subr.mxu0 0.0
      %727 = vmatpush1.xpose.msra.mxu0 0.0
      %728 = vmatprep.subr.mxu0 0.0
      %729 = vmatpush1.xpose.msra.mxu0 0.0
      %730 = vmatprep.subr.mxu0 0.0
      %731 = vmatpush1.xpose.msra.mxu0 0.0
      %732 = vmatprep.subr.mxu0 0.0
      %733 = vmatpush1.xpose.msra.mxu0 0.0
      %734 = vmatprep.subr.mxu0 0.0
      %735 = vmatpush1.xpose.msra.mxu0 0.0
      %736 = vmatprep.subr.mxu0 0.0
      %737 = vmatpush1.xpose.msra.mxu0 0.0
      %738 = vmatprep.subr.mxu0 0.0
      %739 = vmatpush1.xpose.msra.mxu0 0.0
      %740 = vmatprep.subr.mxu0 0.0
      %741 = vmatpush1.xpose.msra.mxu0 0.0
      %742 = vmatprep.subr.mxu0 0.0
      %743 = vmatpush1.xpose.msra.mxu0 0.0
      %744 = vmatprep.subr.mxu0 0.0
      %745 = vmatpush1.xpose.msra.mxu0 0.0
      %746 = vmatprep.subr.mxu0 0.0
      %747 = vmatpush1.xpose.msra.mxu0 0.0
      %748 = vmatprep.subr.mxu0 0.0
      %749 = vmatpush1.xpose.msra.mxu0 0.0
      %750 = vmatprep.subr.mxu0 0.0
      %751 = vmatpush1.xpose.msra.mxu0 0.0
      %752 = vmatprep.subr.mxu0 0.0
      %753 = vmatpush1.xpose.msra.mxu0 0.0
      %754 = vmatprep.mubr.f32.mxu0 0.0
      %755 = vmatmul.mubr.f32.gmra.mrb[0].mxu0 %v658
      %v756 = vpop.f32.mrb[0].mxu0
      %v757 = vadd.f32 %v625, %v756
      %v758 = vpop.f32.mrb[0].mxu0
      %759 = vmatprep.mubr.f32.mxu0 0.0
      %760 = vmatmul.mubr.f32.gmra.mrb[0].mxu0 %v660
      %v761 = vpop.f32.mrb[0].mxu0
      %v762 = vadd.f32 %v626, %v761
      %v763 = vpop.f32.mrb[0].mxu0
      %764 = vmatprep.mubr.f32.mxu0 0.0
      %765 = vmatmul.mubr.f32.gmra.mrb[0].mxu0 %v662
      %v766 = vpop.f32.mrb[0].mxu0
      %v767 = vadd.f32 %v627, %v766
      %v768 = vpop.f32.mrb[0].mxu0
      %769 = vmatprep.mubr.f32.mxu0 0.0
      %770 = vmatmul.mubr.f32.gmra.mrb[0].mxu0 %v664
      %v771 = vpop.f32.mrb[0].mxu0
      %v772 = vadd.f32 %v628, %v771
      %v773 = vpop.f32.mrb[0].mxu0
      %774 = vmatprep.mubr.f32.mxu0 0.0
      %775 = vmatmul.mubr.f32.gmra.mrb[0].mxu0 %v666
      %v776 = vpop.f32.mrb[0].mxu0
      %v777 = vadd.f32 %v629, %v776
      %v778 = vpop.f32.mrb[0].mxu0
      %779 = vmatprep.mubr.f32.mxu0 0.0
      %780 = vmatmul.mubr.f32.gmra.mrb[0].mxu0 %v668
      %v781 = vpop.f32.mrb[0].mxu0
      %v782 = vadd.f32 %v630, %v781
      %v783 = vpop.f32.mrb[0].mxu0
      %784 = vmatprep.mubr.f32.mxu0 0.0
      %785 = vmatmul.mubr.f32.gmra.mrb[0].mxu0 %v670
      %v786 = vpop.f32.mrb[0].mxu0
      %v787 = vadd.f32 %v631, %v786
      %v788 = vpop.f32.mrb[0].mxu0
      %789 = vmatprep.mubr.f32.mxu0 0.0
      %790 = vmatmul.mubr.f32.gmra.mrb[0].mxu0 %v672
      %v791 = vpop.f32.mrb[0].mxu0
      %v792 = vadd.f32 %v632, %v791
      %v793 = vpop.f32.mrb[0].mxu0
      %794 = vdwg.mxu0
      %vm795 = vcmask 523264
      %v796 = vsel %vm795, %v757, -inf
      %797 = vmax.xlane.f32.xlu0 %v796
      %v798 = vpop.xlane.xlu0 %797
      %v799 = vsel %vm795, %v762, -inf
      %800 = vmax.xlane.f32.xlu0 %v799
      %v801 = vpop.xlane.xlu0 %800
      %v802 = vsel %vm795, %v767, -inf
      %803 = vmax.xlane.f32.xlu0 %v802
      %v804 = vpop.xlane.xlu0 %803
      %v805 = vsel %vm795, %v772, -inf
      %806 = vmax.xlane.f32.xlu0 %v805
      %v807 = vpop.xlane.xlu0 %806
      %v808 = vsel %vm795, %v777, -inf
      %809 = vmax.xlane.f32.xlu0 %v808
      %v810 = vpop.xlane.xlu0 %809
      %v811 = vsel %vm795, %v782, -inf
      %812 = vmax.xlane.f32.xlu0 %v811
      %v813 = vpop.xlane.xlu0 %812
      %v814 = vsel %vm795, %v787, -inf
      %815 = vmax.xlane.f32.xlu0 %v814
      %v816 = vpop.xlane.xlu0 %815
      %v817 = vsel %vm795, %v792, -inf
      %818 = vmax.xlane.f32.xlu0 %v817
      %v819 = vpop.xlane.xlu0 %818
      %v820 = vsub.f32 %v757, %v798
      %v821 = vsub.f32 %v762, %v801
      %v822 = vsub.f32 %v767, %v804
      %v823 = vsub.f32 %v772, %v807
      %v824 = vsub.f32 %v777, %v810
      %v825 = vsub.f32 %v782, %v813
      %v826 = vsub.f32 %v787, %v816
      %v827 = vsub.f32 %v792, %v819
      %v828 = vmul.f32 %v820, 1.442695
      %v829 = vpow.pop %v828
      %v830 = vmul.f32 %v821, 1.442695
      %v831 = vpow.pop %v830
      %v832 = vmul.f32 %v822, 1.442695
      %v833 = vpow.pop %v832
      %v834 = vmul.f32 %v823, 1.442695
      %v835 = vpow.pop %v834
      %v836 = vmul.f32 %v824, 1.442695
      %v837 = vpow.pop %v836
      %v838 = vmul.f32 %v825, 1.442695
      %v839 = vpow.pop %v838
      %v840 = vmul.f32 %v826, 1.442695
      %v841 = vpow.pop %v840
      %v842 = vmul.f32 %v827, 1.442695
      %v843 = vpow.pop %v842
      %v844 = vsel %vm795, %v829, 0.0
      %845 = vadd.xlane.f32.xlu0 %v844
      %v846 = vpop.xlane.xlu0 %845
      %v847 = vsel %vm795, %v831, 0.0
      %848 = vadd.xlane.f32.xlu0 %v847
      %v849 = vpop.xlane.xlu0 %848
      %v850 = vsel %vm795, %v833, 0.0
      %851 = vadd.xlane.f32.xlu0 %v850
      %v852 = vpop.xlane.xlu0 %851
      %v853 = vsel %vm795, %v835, 0.0
      %854 = vadd.xlane.f32.xlu0 %v853
      %v855 = vpop.xlane.xlu0 %854
      %v856 = vsel %vm795, %v837, 0.0
      %857 = vadd.xlane.f32.xlu0 %v856
      %v858 = vpop.xlane.xlu0 %857
      %v859 = vsel %vm795, %v839, 0.0
      %860 = vadd.xlane.f32.xlu0 %v859
      %v861 = vpop.xlane.xlu0 %860
      %v862 = vsel %vm795, %v841, 0.0
      %863 = vadd.xlane.f32.xlu0 %v862
      %v864 = vpop.xlane.xlu0 %863
      %v865 = vsel %vm795, %v843, 0.0
      %866 = vadd.xlane.f32.xlu0 %v865
      %v867 = vpop.xlane.xlu0 %866
      %868 = vrot.lane.b32.xlu0 %v467, 64
      %v869 = vpop.permute.xlu0 %868
      %870 = vrot.lane.b32.xlu0 %v472, 64
      %v871 = vpop.permute.xlu0 %870
      %872 = vrot.lane.b32.xlu0 %v477, 64
      %v873 = vpop.permute.xlu0 %872
      %874 = vrot.lane.b32.xlu0 %v482, 64
      %v875 = vpop.permute.xlu0 %874
      %876 = vrot.lane.b32.xlu0 %v487, 64
      %v877 = vpop.permute.xlu0 %876
      %878 = vrot.lane.b32.xlu0 %v492, 64
      %v879 = vpop.permute.xlu0 %878
      %880 = vrot.lane.b32.xlu0 %v497, 64
      %v881 = vpop.permute.xlu0 %880
      %882 = vrot.lane.b32.xlu0 %v502, 64
      %v883 = vpop.permute.xlu0 %882
      %v893 = vsel %vm795, %v829, 0
      %v896 = vsel %vm795, %v831, 0
      %v899 = vsel %vm795, %v833, 0
      %v902 = vsel %vm795, %v835, 0
      %v905 = vsel %vm795, %v837, 0
      %v908 = vsel %vm795, %v839, 0
      %v911 = vsel %vm795, %v841, 0
      %v914 = vsel %vm795, %v843, 0
      %916 = vmatprep.subr.mxu0 0.0
      %917 = vmatpush1.msra.mxu0 %v869
      %918 = vmatprep.subr.mxu0 0.0
      %919 = vmatpush1.msra.mxu0 %v871
      %920 = vmatprep.subr.mxu0 0.0
      %921 = vmatpush1.msra.mxu0 %v873
      %922 = vmatprep.subr.mxu0 0.0
      %923 = vmatpush1.msra.mxu0 %v875
      %924 = vmatprep.subr.mxu0 0.0
      %925 = vmatpush1.msra.mxu0 %v877
      %926 = vmatprep.subr.mxu0 0.0
      %927 = vmatpush1.msra.mxu0 %v879
      %928 = vmatprep.subr.mxu0 0.0
      %929 = vmatpush1.msra.mxu0 %v881
      %930 = vmatprep.subr.mxu0 0.0
      %931 = vmatpush1.msra.mxu0 %v883
      %932 = vmatprep.subr.mxu0 0.0
      %933 = vmatpush1.msra.mxu0 0.0
      %934 = vmatprep.subr.mxu0 0.0
      %935 = vmatpush1.msra.mxu0 0.0
      %936 = vmatprep.subr.mxu0 0.0
      %937 = vmatpush1.msra.mxu0 0.0
      %938 = vmatprep.subr.mxu0 0.0
      %939 = vmatpush1.msra.mxu0 0.0
      %940 = vmatprep.subr.mxu0 0.0
      %941 = vmatpush1.msra.mxu0 0.0
      %942 = vmatprep.subr.mxu0 0.0
      %943 = vmatpush1.msra.mxu0 0.0
      %944 = vmatprep.subr.mxu0 0.0
      %945 = vmatpush1.msra.mxu0 0.0
      %946 = vmatprep.subr.mxu0 0.0
      %947 = vmatpush1.msra.mxu0 0.0
      %948 = vmatprep.subr.mxu0 0.0
      %949 = vmatpush1.msra.mxu0 0.0
      %950 = vmatprep.subr.mxu0 0.0
      %951 = vmatpush1.msra.mxu0 0.0
      %952 = vmatprep.subr.mxu0 0.0
      %953 = vmatpush1.msra.mxu0 0.0
      %954 = vmatprep.subr.mxu0 0.0
      %955 = vmatpush1.msra.mxu0 0.0
      %956 = vmatprep.subr.mxu0 0.0
      %957 = vmatpush1.msra.mxu0 0.0
      %958 = vmatprep.subr.mxu0 0.0
      %959 = vmatpush1.msra.mxu0 0.0
      %960 = vmatprep.subr.mxu0 0.0
      %961 = vmatpush1.msra.mxu0 0.0
      %962 = vmatprep.subr.mxu0 0.0
      %963 = vmatpush1.msra.mxu0 0.0
      %964 = vmatprep.subr.mxu0 0.0
      %965 = vmatpush1.msra.mxu0 0.0
      %966 = vmatprep.subr.mxu0 0.0
      %967 = vmatpush1.msra.mxu0 0.0
      %968 = vmatprep.subr.mxu0 0.0
      %969 = vmatpush1.msra.mxu0 0.0
      %970 = vmatprep.subr.mxu0 0.0
      %971 = vmatpush1.msra.mxu0 0.0
      %972 = vmatprep.subr.mxu0 0.0
      %973 = vmatpush1.msra.mxu0 0.0
      %974 = vmatprep.subr.mxu0 0.0
      %975 = vmatpush1.msra.mxu0 0.0
      %976 = vmatprep.subr.mxu0 0.0
      %977 = vmatpush1.msra.mxu0 0.0
      %978 = vmatprep.subr.mxu0 0.0
      %979 = vmatpush1.msra.mxu0 0.0
      %980 = vmatprep.mubr.f32.mxu0 0.0
      %981 = vmatmul.mubr.f32.gmra.mrb[0].mxu0 %v893
      %v982 = vpop.f32.mrb[0].mxu0
      %v983 = vadd.f32 0.0, %v982
      %v984 = vpop.f32.mrb[0].mxu0
      %985 = vmatprep.mubr.f32.mxu0 0.0
      %986 = vmatmul.mubr.f32.gmra.mrb[0].mxu0 %v896
      %v987 = vpop.f32.mrb[0].mxu0
      %v988 = vadd.f32 0.0, %v987
      %v989 = vpop.f32.mrb[0].mxu0
      %990 = vmatprep.mubr.f32.mxu0 0.0
      %991 = vmatmul.mubr.f32.gmra.mrb[0].mxu0 %v899
      %v992 = vpop.f32.mrb[0].mxu0
      %v993 = vadd.f32 0.0, %v992
      %v994 = vpop.f32.mrb[0].mxu0
      %995 = vmatprep.mubr.f32.mxu0 0.0
      %996 = vmatmul.mubr.f32.gmra.mrb[0].mxu0 %v902
      %v997 = vpop.f32.mrb[0].mxu0
      %v998 = vadd.f32 0.0, %v997
      %v999 = vpop.f32.mrb[0].mxu0
      %1000 = vmatprep.mubr.f32.mxu0 0.0
      %1001 = vmatmul.mubr.f32.gmra.mrb[0].mxu0 %v905
      %v1002 = vpop.f32.mrb[0].mxu0
      %v1003 = vadd.f32 0.0, %v1002
      %v1004 = vpop.f32.mrb[0].mxu0
      %1005 = vmatprep.mubr.f32.mxu0 0.0
      %1006 = vmatmul.mubr.f32.gmra.mrb[0].mxu0 %v908
      %v1007 = vpop.f32.mrb[0].mxu0
      %v1008 = vadd.f32 0.0, %v1007
      %v1009 = vpop.f32.mrb[0].mxu0
      %1010 = vmatprep.mubr.f32.mxu0 0.0
      %1011 = vmatmul.mubr.f32.gmra.mrb[0].mxu0 %v911
      %v1012 = vpop.f32.mrb[0].mxu0
      %v1013 = vadd.f32 0.0, %v1012
      %v1014 = vpop.f32.mrb[0].mxu0
      %1015 = vmatprep.mubr.f32.mxu0 0.0
      %1016 = vmatmul.mubr.f32.gmra.mrb[0].mxu0 %v914
      %v1017 = vpop.f32.mrb[0].mxu0
      %v1018 = vadd.f32 0.0, %v1017
      %v1019 = vpop.f32.mrb[0].mxu0
      %1020 = vdwg.mxu0
      %v1021 = vrcp.pop %v846
      %v1022 = vrcp.pop %v849
      %v1023 = vrcp.pop %v852
      %v1024 = vrcp.pop %v855
      %v1025 = vrcp.pop %v858
      %v1026 = vrcp.pop %v861
      %v1027 = vrcp.pop %v864
      %v1028 = vrcp.pop %v867
      %v1029 = vmul.f32 %v983, %v1021
      %v1030 = vmul.f32 %v988, %v1022
      %v1031 = vmul.f32 %v993, %v1023
      %v1032 = vmul.f32 %v998, %v1024
      %v1033 = vmul.f32 %v1003, %v1025
      %v1034 = vmul.f32 %v1008, %v1026
      %v1035 = vmul.f32 %v1013, %v1027
      %v1036 = vmul.f32 %v1018, %v1028
      %1037 = vst.msk [vmem:[#allocation2] sm:$0xff] %vm657, %v1029
      %1038 = vst.msk [vmem:[#allocation2 + $0x8] sm:$0xff] %vm657, %v1030
      %1039 = vst.msk [vmem:[#allocation2 + $0x10] sm:$0xff] %vm657, %v1031
      %1040 = vst.msk [vmem:[#allocation2 + $0x18] sm:$0xff] %vm657, %v1032
      %1041 = vst.msk [vmem:[#allocation2 + $0x20] sm:$0xff] %vm657, %v1033
      %1042 = vst.msk [vmem:[#allocation2 + $0x28] sm:$0xff] %vm657, %v1034
      %1043 = vst.msk [vmem:[#allocation2 + $0x30] sm:$0xff] %vm657, %v1035
      %1044 = vst.msk [vmem:[#allocation2 + $0x38] sm:$0xff] %vm657, %v1036
      %v1045 = vld [vmem:[%s1] sm:$0xff]
      %v1046 = vld [vmem:[%s1 + $0x8] sm:$0xff]
      %v1047 = vld [vmem:[%s1 + $0x10] sm:$0xff]
      %v1048 = vld [vmem:[%s1 + $0x18] sm:$0xff]
      %v1049 = vld [vmem:[%s1 + $0x20] sm:$0xff]
      %v1050 = vld [vmem:[%s1 + $0x28] sm:$0xff]
      %v1051 = vld [vmem:[%s1 + $0x30] sm:$0xff]
      %v1052 = vld [vmem:[%s1 + $0x38] sm:$0xff]
      %1061 = vrot.lane.b32.xlu0 %v507, 96
      %v1062 = vpop.permute.xlu0 %1061
      %1063 = vrot.lane.b32.xlu0 %v512, 96
      %v1064 = vpop.permute.xlu0 %1063
      %1065 = vrot.lane.b32.xlu0 %v517, 96
      %v1066 = vpop.permute.xlu0 %1065
      %1067 = vrot.lane.b32.xlu0 %v522, 96
      %v1068 = vpop.permute.xlu0 %1067
      %1069 = vrot.lane.b32.xlu0 %v527, 96
      %v1070 = vpop.permute.xlu0 %1069
      %1071 = vrot.lane.b32.xlu0 %v532, 96
      %v1072 = vpop.permute.xlu0 %1071
      %1073 = vrot.lane.b32.xlu0 %v537, 96
      %v1074 = vpop.permute.xlu0 %1073
      %1075 = vrot.lane.b32.xlu0 %v542, 96
      %v1076 = vpop.permute.xlu0 %1075
      %v1077 = vsel %vm657, %v507, 0
      %v1079 = vsel %vm657, %v512, 0
      %v1081 = vsel %vm657, %v517, 0
      %v1083 = vsel %vm657, %v522, 0
      %v1085 = vsel %vm657, %v527, 0
      %v1087 = vsel %vm657, %v532, 0
      %v1089 = vsel %vm657, %v537, 0
      %v1091 = vsel %vm657, %v542, 0
      %v1093 = vsel %vm657, %v1062, 0
      %v1095 = vsel %vm657, %v1064, 0
      %v1097 = vsel %vm657, %v1066, 0
      %v1099 = vsel %vm657, %v1068, 0
      %v1101 = vsel %vm657, %v1070, 0
      %v1103 = vsel %vm657, %v1072, 0
      %v1105 = vsel %vm657, %v1074, 0
      %v1107 = vsel %vm657, %v1076, 0
      %1109 = vmatprep.subr.mxu0 0.0
      %1110 = vmatpush1.xpose.msra.mxu0 %v1093
      %1111 = vmatprep.subr.mxu0 0.0
      %1112 = vmatpush1.xpose.msra.mxu0 %v1095
      %1113 = vmatprep.subr.mxu0 0.0
      %1114 = vmatpush1.xpose.msra.mxu0 %v1097
      %1115 = vmatprep.subr.mxu0 0.0
      %1116 = vmatpush1.xpose.msra.mxu0 %v1099
      %1117 = vmatprep.subr.mxu0 0.0
      %1118 = vmatpush1.xpose.msra.mxu0 %v1101
      %1119 = vmatprep.subr.mxu0 0.0
      %1120 = vmatpush1.xpose.msra.mxu0 %v1103
      %1121 = vmatprep.subr.mxu0 0.0
      %1122 = vmatpush1.xpose.msra.mxu0 %v1105
      %1123 = vmatprep.subr.mxu0 0.0
      %1124 = vmatpush1.xpose.msra.mxu0 %v1107
      %1125 = vmatprep.subr.mxu0 0.0
      %1126 = vmatpush1.xpose.msra.mxu0 0.0
      %1127 = vmatprep.subr.mxu0 0.0
      %1128 = vmatpush1.xpose.msra.mxu0 0.0
      %1129 = vmatprep.subr.mxu0 0.0
      %1130 = vmatpush1.xpose.msra.mxu0 0.0
      %1131 = vmatprep.subr.mxu0 0.0
      %1132 = vmatpush1.xpose.msra.mxu0 0.0
      %1133 = vmatprep.subr.mxu0 0.0
      %1134 = vmatpush1.xpose.msra.mxu0 0.0
      %1135 = vmatprep.subr.mxu0 0.0
      %1136 = vmatpush1.xpose.msra.mxu0 0.0
      %1137 = vmatprep.subr.mxu0 0.0
      %1138 = vmatpush1.xpose.msra.mxu0 0.0
      %1139 = vmatprep.subr.mxu0 0.0
      %1140 = vmatpush1.xpose.msra.mxu0 0.0
      %1141 = vmatprep.subr.mxu0 0.0
      %1142 = vmatpush1.xpose.msra.mxu0 0.0
      %1143 = vmatprep.subr.mxu0 0.0
      %1144 = vmatpush1.xpose.msra.mxu0 0.0
      %1145 = vmatprep.subr.mxu0 0.0
      %1146 = vmatpush1.xpose.msra.mxu0 0.0
      %1147 = vmatprep.subr.mxu0 0.0
      %1148 = vmatpush1.xpose.msra.mxu0 0.0
      %1149 = vmatprep.subr.mxu0 0.0
      %1150 = vmatpush1.xpose.msra.mxu0 0.0
      %1151 = vmatprep.subr.mxu0 0.0
      %1152 = vmatpush1.xpose.msra.mxu0 0.0
      %1153 = vmatprep.subr.mxu0 0.0
      %1154 = vmatpush1.xpose.msra.mxu0 0.0
      %1155 = vmatprep.subr.mxu0 0.0
      %1156 = vmatpush1.xpose.msra.mxu0 0.0
      %1157 = vmatprep.subr.mxu0 0.0
      %1158 = vmatpush1.xpose.msra.mxu0 0.0
      %1159 = vmatprep.subr.mxu0 0.0
      %1160 = vmatpush1.xpose.msra.mxu0 0.0
      %1161 = vmatprep.subr.mxu0 0.0
      %1162 = vmatpush1.xpose.msra.mxu0 0.0
      %1163 = vmatprep.subr.mxu0 0.0
      %1164 = vmatpush1.xpose.msra.mxu0 0.0
      %1165 = vmatprep.subr.mxu0 0.0
      %1166 = vmatpush1.xpose.msra.mxu0 0.0
      %1167 = vmatprep.subr.mxu0 0.0
      %1168 = vmatpush1.xpose.msra.mxu0 0.0
      %1169 = vmatprep.subr.mxu0 0.0
      %1170 = vmatpush1.xpose.msra.mxu0 0.0
      %1171 = vmatprep.subr.mxu0 0.0
      %1172 = vmatpush1.xpose.msra.mxu0 0.0
      %1173 = vmatprep.mubr.f32.mxu0 0.0
      %1174 = vmatmul.mubr.f32.gmra.mrb[0].mxu0 %v1077
      %v1175 = vpop.f32.mrb[0].mxu0
      %v1176 = vadd.f32 %v1045, %v1175
      %v1177 = vpop.f32.mrb[0].mxu0
      %1178 = vmatprep.mubr.f32.mxu0 0.0
      %1179 = vmatmul.mubr.f32.gmra.mrb[0].mxu0 %v1079
      %v1180 = vpop.f32.mrb[0].mxu0
      %v1181 = vadd.f32 %v1046, %v1180
      %v1182 = vpop.f32.mrb[0].mxu0
      %1183 = vmatprep.mubr.f32.mxu0 0.0
      %1184 = vmatmul.mubr.f32.gmra.mrb[0].mxu0 %v1081
      %v1185 = vpop.f32.mrb[0].mxu0
      %v1186 = vadd.f32 %v1047, %v1185
      %v1187 = vpop.f32.mrb[0].mxu0
      %1188 = vmatprep.mubr.f32.mxu0 0.0
      %1189 = vmatmul.mubr.f32.gmra.mrb[0].mxu0 %v1083
      %v1190 = vpop.f32.mrb[0].mxu0
      %v1191 = vadd.f32 %v1048, %v1190
      %v1192 = vpop.f32.mrb[0].mxu0
      %1193 = vmatprep.mubr.f32.mxu0 0.0
      %1194 = vmatmul.mubr.f32.gmra.mrb[0].mxu0 %v1085
      %v1195 = vpop.f32.mrb[0].mxu0
      %v1196 = vadd.f32 %v1049, %v1195
      %v1197 = vpop.f32.mrb[0].mxu0
      %1198 = vmatprep.mubr.f32.mxu0 0.0
      %1199 = vmatmul.mubr.f32.gmra.mrb[0].mxu0 %v1087
      %v1200 = vpop.f32.mrb[0].mxu0
      %v1201 = vadd.f32 %v1050, %v1200
      %v1202 = vpop.f32.mrb[0].mxu0
      %1203 = vmatprep.mubr.f32.mxu0 0.0
      %1204 = vmatmul.mubr.f32.gmra.mrb[0].mxu0 %v1089
      %v1205 = vpop.f32.mrb[0].mxu0
      %v1206 = vadd.f32 %v1051, %v1205
      %v1207 = vpop.f32.mrb[0].mxu0
      %1208 = vmatprep.mubr.f32.mxu0 0.0
      %1209 = vmatmul.mubr.f32.gmra.mrb[0].mxu0 %v1091
      %v1210 = vpop.f32.mrb[0].mxu0
      %v1211 = vadd.f32 %v1052, %v1210
      %v1212 = vpop.f32.mrb[0].mxu0
      %1213 = vdwg.mxu0
      %v1214 = vsel %vm795, %v1176, -inf
      %1215 = vmax.xlane.f32.xlu0 %v1214
      %v1216 = vpop.xlane.xlu0 %1215
      %v1217 = vsel %vm795, %v1181, -inf
      %1218 = vmax.xlane.f32.xlu0 %v1217
      %v1219 = vpop.xlane.xlu0 %1218
      %v1220 = vsel %vm795, %v1186, -inf
      %1221 = vmax.xlane.f32.xlu0 %v1220
      %v1222 = vpop.xlane.xlu0 %1221
      %v1223 = vsel %vm795, %v1191, -inf
      %1224 = vmax.xlane.f32.xlu0 %v1223
      %v1225 = vpop.xlane.xlu0 %1224
      %v1226 = vsel %vm795, %v1196, -inf
      %1227 = vmax.xlane.f32.xlu0 %v1226
      %v1228 = vpop.xlane.xlu0 %1227
      %v1229 = vsel %vm795, %v1201, -inf
      %1230 = vmax.xlane.f32.xlu0 %v1229
      %v1231 = vpop.xlane.xlu0 %1230
      %v1232 = vsel %vm795, %v1206, -inf
      %1233 = vmax.xlane.f32.xlu0 %v1232
      %v1234 = vpop.xlane.xlu0 %1233
      %v1235 = vsel %vm795, %v1211, -inf
      %1236 = vmax.xlane.f32.xlu0 %v1235
      %v1237 = vpop.xlane.xlu0 %1236
      %v1238 = vsub.f32 %v1176, %v1216
      %v1239 = vsub.f32 %v1181, %v1219
      %v1240 = vsub.f32 %v1186, %v1222
      %v1241 = vsub.f32 %v1191, %v1225
      %v1242 = vsub.f32 %v1196, %v1228
      %v1243 = vsub.f32 %v1201, %v1231
      %v1244 = vsub.f32 %v1206, %v1234
      %v1245 = vsub.f32 %v1211, %v1237
      %v1246 = vmul.f32 %v1238, 1.442695
      %v1247 = vpow.pop %v1246
      %v1248 = vmul.f32 %v1239, 1.442695
      %v1249 = vpow.pop %v1248
      %v1250 = vmul.f32 %v1240, 1.442695
      %v1251 = vpow.pop %v1250
      %v1252 = vmul.f32 %v1241, 1.442695
      %v1253 = vpow.pop %v1252
      %v1254 = vmul.f32 %v1242, 1.442695
      %v1255 = vpow.pop %v1254
      %v1256 = vmul.f32 %v1243, 1.442695
      %v1257 = vpow.pop %v1256
      %v1258 = vmul.f32 %v1244, 1.442695
      %v1259 = vpow.pop %v1258
      %v1260 = vmul.f32 %v1245, 1.442695
      %v1261 = vpow.pop %v1260
      %v1262 = vsel %vm795, %v1247, 0.0
      %1263 = vadd.xlane.f32.xlu0 %v1262
      %v1264 = vpop.xlane.xlu0 %1263
      %v1265 = vsel %vm795, %v1249, 0.0
      %1266 = vadd.xlane.f32.xlu0 %v1265
      %v1267 = vpop.xlane.xlu0 %1266
      %v1268 = vsel %vm795, %v1251, 0.0
      %1269 = vadd.xlane.f32.xlu0 %v1268
      %v1270 = vpop.xlane.xlu0 %1269
      %v1271 = vsel %vm795, %v1253, 0.0
      %1272 = vadd.xlane.f32.xlu0 %v1271
      %v1273 = vpop.xlane.xlu0 %1272
      %v1274 = vsel %vm795, %v1255, 0.0
      %1275 = vadd.xlane.f32.xlu0 %v1274
      %v1276 = vpop.xlane.xlu0 %1275
      %v1277 = vsel %vm795, %v1257, 0.0
      %1278 = vadd.xlane.f32.xlu0 %v1277
      %v1279 = vpop.xlane.xlu0 %1278
      %v1280 = vsel %vm795, %v1259, 0.0
      %1281 = vadd.xlane.f32.xlu0 %v1280
      %v1282 = vpop.xlane.xlu0 %1281
      %v1283 = vsel %vm795, %v1261, 0.0
      %1284 = vadd.xlane.f32.xlu0 %v1283
      %v1285 = vpop.xlane.xlu0 %1284
      %1286 = vrot.lane.b32.xlu0 %v507, 64
      %v1287 = vpop.permute.xlu0 %1286
      %1288 = vrot.lane.b32.xlu0 %v512, 64
      %v1289 = vpop.permute.xlu0 %1288
      %1290 = vrot.lane.b32.xlu0 %v517, 64
      %v1291 = vpop.permute.xlu0 %1290
      %1292 = vrot.lane.b32.xlu0 %v522, 64
      %v1293 = vpop.permute.xlu0 %1292
      %1294 = vrot.lane.b32.xlu0 %v527, 64
      %v1295 = vpop.permute.xlu0 %1294
      %1296 = vrot.lane.b32.xlu0 %v532, 64
      %v1297 = vpop.permute.xlu0 %1296
      %1298 = vrot.lane.b32.xlu0 %v537, 64
      %v1299 = vpop.permute.xlu0 %1298
      %1300 = vrot.lane.b32.xlu0 %v542, 64
      %v1301 = vpop.permute.xlu0 %1300
      %v1311 = vsel %vm795, %v1247, 0
      %v1314 = vsel %vm795, %v1249, 0
      %v1317 = vsel %vm795, %v1251, 0
      %v1320 = vsel %vm795, %v1253, 0
      %v1323 = vsel %vm795, %v1255, 0
      %v1326 = vsel %vm795, %v1257, 0
      %v1329 = vsel %vm795, %v1259, 0
      %v1332 = vsel %vm795, %v1261, 0
      %1334 = vmatprep.subr.mxu0 0.0
      %1335 = vmatpush1.msra.mxu0 %v1287
      %1336 = vmatprep.subr.mxu0 0.0
      %1337 = vmatpush1.msra.mxu0 %v1289
      %1338 = vmatprep.subr.mxu0 0.0
      %1339 = vmatpush1.msra.mxu0 %v1291
      %1340 = vmatprep.subr.mxu0 0.0
      %1341 = vmatpush1.msra.mxu0 %v1293
      %1342 = vmatprep.subr.mxu0 0.0
      %1343 = vmatpush1.msra.mxu0 %v1295
      %1344 = vmatprep.subr.mxu0 0.0
      %1345 = vmatpush1.msra.mxu0 %v1297
      %1346 = vmatprep.subr.mxu0 0.0
      %1347 = vmatpush1.msra.mxu0 %v1299
      %1348 = vmatprep.subr.mxu0 0.0
      %1349 = vmatpush1.msra.mxu0 %v1301
      %1350 = vmatprep.subr.mxu0 0.0
      %1351 = vmatpush1.msra.mxu0 0.0
      %1352 = vmatprep.subr.mxu0 0.0
      %1353 = vmatpush1.msra.mxu0 0.0
      %1354 = vmatprep.subr.mxu0 0.0
      %1355 = vmatpush1.msra.mxu0 0.0
      %1356 = vmatprep.subr.mxu0 0.0
      %1357 = vmatpush1.msra.mxu0 0.0
      %1358 = vmatprep.subr.mxu0 0.0
      %1359 = vmatpush1.msra.mxu0 0.0
      %1360 = vmatprep.subr.mxu0 0.0
      %1361 = vmatpush1.msra.mxu0 0.0
      %1362 = vmatprep.subr.mxu0 0.0
      %1363 = vmatpush1.msra.mxu0 0.0
      %1364 = vmatprep.subr.mxu0 0.0
      %1365 = vmatpush1.msra.mxu0 0.0
      %1366 = vmatprep.subr.mxu0 0.0
      %1367 = vmatpush1.msra.mxu0 0.0
      %1368 = vmatprep.subr.mxu0 0.0
      %1369 = vmatpush1.msra.mxu0 0.0
      %1370 = vmatprep.subr.mxu0 0.0
      %1371 = vmatpush1.msra.mxu0 0.0
      %1372 = vmatprep.subr.mxu0 0.0
      %1373 = vmatpush1.msra.mxu0 0.0
      %1374 = vmatprep.subr.mxu0 0.0
      %1375 = vmatpush1.msra.mxu0 0.0
      %1376 = vmatprep.subr.mxu0 0.0
      %1377 = vmatpush1.msra.mxu0 0.0
      %1378 = vmatprep.subr.mxu0 0.0
      %1379 = vmatpush1.msra.mxu0 0.0
      %1380 = vmatprep.subr.mxu0 0.0
      %1381 = vmatpush1.msra.mxu0 0.0
      %1382 = vmatprep.subr.mxu0 0.0
      %1383 = vmatpush1.msra.mxu0 0.0
      %1384 = vmatprep.subr.mxu0 0.0
      %1385 = vmatpush1.msra.mxu0 0.0
      %1386 = vmatprep.subr.mxu0 0.0
      %1387 = vmatpush1.msra.mxu0 0.0
      %1388 = vmatprep.subr.mxu0 0.0
      %1389 = vmatpush1.msra.mxu0 0.0
      %1390 = vmatprep.subr.mxu0 0.0
      %1391 = vmatpush1.msra.mxu0 0.0
      %1392 = vmatprep.subr.mxu0 0.0
      %1393 = vmatpush1.msra.mxu0 0.0
      %1394 = vmatprep.subr.mxu0 0.0
      %1395 = vmatpush1.msra.mxu0 0.0
      %1396 = vmatprep.subr.mxu0 0.0
      %1397 = vmatpush1.msra.mxu0 0.0
      %1398 = vmatprep.mubr.f32.mxu0 0.0
      %1399 = vmatmul.mubr.f32.gmra.mrb[0].mxu0 %v1311
      %v1400 = vpop.f32.mrb[0].mxu0
      %v1401 = vadd.f32 0.0, %v1400
      %v1402 = vpop.f32.mrb[0].mxu0
      %1403 = vmatprep.mubr.f32.mxu0 0.0
      %1404 = vmatmul.mubr.f32.gmra.mrb[0].mxu0 %v1314
      %v1405 = vpop.f32.mrb[0].mxu0
      %v1406 = vadd.f32 0.0, %v1405
      %v1407 = vpop.f32.mrb[0].mxu0
      %1408 = vmatprep.mubr.f32.mxu0 0.0
      %1409 = vmatmul.mubr.f32.gmra.mrb[0].mxu0 %v1317
      %v1410 = vpop.f32.mrb[0].mxu0
      %v1411 = vadd.f32 0.0, %v1410
      %v1412 = vpop.f32.mrb[0].mxu0
      %1413 = vmatprep.mubr.f32.mxu0 0.0
      %1414 = vmatmul.mubr.f32.gmra.mrb[0].mxu0 %v1320
      %v1415 = vpop.f32.mrb[0].mxu0
      %v1416 = vadd.f32 0.0, %v1415
      %v1417 = vpop.f32.mrb[0].mxu0
      %1418 = vmatprep.mubr.f32.mxu0 0.0
      %1419 = vmatmul.mubr.f32.gmra.mrb[0].mxu0 %v1323
      %v1420 = vpop.f32.mrb[0].mxu0
      %v1421 = vadd.f32 0.0, %v1420
      %v1422 = vpop.f32.mrb[0].mxu0
      %1423 = vmatprep.mubr.f32.mxu0 0.0
      %1424 = vmatmul.mubr.f32.gmra.mrb[0].mxu0 %v1326
      %v1425 = vpop.f32.mrb[0].mxu0
      %v1426 = vadd.f32 0.0, %v1425
      %v1427 = vpop.f32.mrb[0].mxu0
      %1428 = vmatprep.mubr.f32.mxu0 0.0
      %1429 = vmatmul.mubr.f32.gmra.mrb[0].mxu0 %v1329
      %v1430 = vpop.f32.mrb[0].mxu0
      %v1431 = vadd.f32 0.0, %v1430
      %v1432 = vpop.f32.mrb[0].mxu0
      %1433 = vmatprep.mubr.f32.mxu0 0.0
      %1434 = vmatmul.mubr.f32.gmra.mrb[0].mxu0 %v1332
      %v1435 = vpop.f32.mrb[0].mxu0
      %v1436 = vadd.f32 0.0, %v1435
      %v1437 = vpop.f32.mrb[0].mxu0
      %1438 = vdwg.mxu0
      %v1439 = vrcp.pop %v1264
      %v1440 = vrcp.pop %v1267
      %v1441 = vrcp.pop %v1270
      %v1442 = vrcp.pop %v1273
      %v1443 = vrcp.pop %v1276
      %v1444 = vrcp.pop %v1279
      %v1445 = vrcp.pop %v1282
      %v1446 = vrcp.pop %v1285
      %v1447 = vmul.f32 %v1401, %v1439
      %v1448 = vmul.f32 %v1406, %v1440
      %v1449 = vmul.f32 %v1411, %v1441
      %v1450 = vmul.f32 %v1416, %v1442
      %v1451 = vmul.f32 %v1421, %v1443
      %v1452 = vmul.f32 %v1426, %v1444
      %v1453 = vmul.f32 %v1431, %v1445
      %v1454 = vmul.f32 %v1436, %v1446
      %1455 = vst.msk [vmem:[#allocation2 + $0x40] sm:$0xff] %vm657, %v1447
      %1456 = vst.msk [vmem:[#allocation2 + $0x48] sm:$0xff] %vm657, %v1448
      %1457 = vst.msk [vmem:[#allocation2 + $0x50] sm:$0xff] %vm657, %v1449
      %1458 = vst.msk [vmem:[#allocation2 + $0x58] sm:$0xff] %vm657, %v1450
      %1459 = vst.msk [vmem:[#allocation2 + $0x60] sm:$0xff] %vm657, %v1451
      %1460 = vst.msk [vmem:[#allocation2 + $0x68] sm:$0xff] %vm657, %v1452
      %1461 = vst.msk [vmem:[#allocation2 + $0x70] sm:$0xff] %vm657, %v1453
      %1462 = vst.msk [vmem:[#allocation2 + $0x78] sm:$0xff] %vm657, %v1454
      %v1463 = vld [vmem:[%s1] sm:$0xff]
      %v1464 = vld [vmem:[%s1 + $0x8] sm:$0xff]
      %v1465 = vld [vmem:[%s1 + $0x10] sm:$0xff]
      %v1466 = vld [vmem:[%s1 + $0x18] sm:$0xff]
      %v1467 = vld [vmem:[%s1 + $0x20] sm:$0xff]
      %v1468 = vld [vmem:[%s1 + $0x28] sm:$0xff]
      %v1469 = vld [vmem:[%s1 + $0x30] sm:$0xff]
      %v1470 = vld [vmem:[%s1 + $0x38] sm:$0xff]
      %1479 = vrot.lane.b32.xlu0 %v547, 96
      %v1480 = vpop.permute.xlu0 %1479
      %1481 = vrot.lane.b32.xlu0 %v552, 96
      %v1482 = vpop.permute.xlu0 %1481
      %1483 = vrot.lane.b32.xlu0 %v557, 96
      %v1484 = vpop.permute.xlu0 %1483
      %1485 = vrot.lane.b32.xlu0 %v562, 96
      %v1486 = vpop.permute.xlu0 %1485
      %1487 = vrot.lane.b32.xlu0 %v567, 96
      %v1488 = vpop.permute.xlu0 %1487
      %1489 = vrot.lane.b32.xlu0 %v572, 96
      %v1490 = vpop.permute.xlu0 %1489
      %1491 = vrot.lane.b32.xlu0 %v577, 96
      %v1492 = vpop.permute.xlu0 %1491
      %1493 = vrot.lane.b32.xlu0 %v582, 96
      %v1494 = vpop.permute.xlu0 %1493
      %v1495 = vsel %vm657, %v547, 0
      %v1497 = vsel %vm657, %v552, 0
      %v1499 = vsel %vm657, %v557, 0
      %v1501 = vsel %vm657, %v562, 0
      %v1503 = vsel %vm657, %v567, 0
      %v1505 = vsel %vm657, %v572, 0
      %v1507 = vsel %vm657, %v577, 0
      %v1509 = vsel %vm657, %v582, 0
      %v1511 = vsel %vm657, %v1480, 0
      %v1513 = vsel %vm657, %v1482, 0
      %v1515 = vsel %vm657, %v1484, 0
      %v1517 = vsel %vm657, %v1486, 0
      %v1519 = vsel %vm657, %v1488, 0
      %v1521 = vsel %vm657, %v1490, 0
      %v1523 = vsel %vm657, %v1492, 0
      %v1525 = vsel %vm657, %v1494, 0
      %1527 = vmatprep.subr.mxu0 0.0
      %1528 = vmatpush1.xpose.msra.mxu0 %v1511
      %1529 = vmatprep.subr.mxu0 0.0
      %1530 = vmatpush1.xpose.msra.mxu0 %v1513
      %1531 = vmatprep.subr.mxu0 0.0
      %1532 = vmatpush1.xpose.msra.mxu0 %v1515
      %1533 = vmatprep.subr.mxu0 0.0
      %1534 = vmatpush1.xpose.msra.mxu0 %v1517
      %1535 = vmatprep.subr.mxu0 0.0
      %1536 = vmatpush1.xpose.msra.mxu0 %v1519
      %1537 = vmatprep.subr.mxu0 0.0
      %1538 = vmatpush1.xpose.msra.mxu0 %v1521
      %1539 = vmatprep.subr.mxu0 0.0
      %1540 = vmatpush1.xpose.msra.mxu0 %v1523
      %1541 = vmatprep.subr.mxu0 0.0
      %1542 = vmatpush1.xpose.msra.mxu0 %v1525
      %1543 = vmatprep.subr.mxu0 0.0
      %1544 = vmatpush1.xpose.msra.mxu0 0.0
      %1545 = vmatprep.subr.mxu0 0.0
      %1546 = vmatpush1.xpose.msra.mxu0 0.0
      %1547 = vmatprep.subr.mxu0 0.0
      %1548 = vmatpush1.xpose.msra.mxu0 0.0
      %1549 = vmatprep.subr.mxu0 0.0
      %1550 = vmatpush1.xpose.msra.mxu0 0.0
      %1551 = vmatprep.subr.mxu0 0.0
      %1552 = vmatpush1.xpose.msra.mxu0 0.0
      %1553 = vmatprep.subr.mxu0 0.0
      %1554 = vmatpush1.xpose.msra.mxu0 0.0
      %1555 = vmatprep.subr.mxu0 0.0
      %1556 = vmatpush1.xpose.msra.mxu0 0.0
      %1557 = vmatprep.subr.mxu0 0.0
      %1558 = vmatpush1.xpose.msra.mxu0 0.0
      %1559 = vmatprep.subr.mxu0 0.0
      %1560 = vmatpush1.xpose.msra.mxu0 0.0
      %1561 = vmatprep.subr.mxu0 0.0
      %1562 = vmatpush1.xpose.msra.mxu0 0.0
      %1563 = vmatprep.subr.mxu0 0.0
      %1564 = vmatpush1.xpose.msra.mxu0 0.0
      %1565 = vmatprep.subr.mxu0 0.0
      %1566 = vmatpush1.xpose.msra.mxu0 0.0
      %1567 = vmatprep.subr.mxu0 0.0
      %1568 = vmatpush1.xpose.msra.mxu0 0.0
      %1569 = vmatprep.subr.mxu0 0.0
      %1570 = vmatpush1.xpose.msra.mxu0 0.0
      %1571 = vmatprep.subr.mxu0 0.0
      %1572 = vmatpush1.xpose.msra.mxu0 0.0
      %1573 = vmatprep.subr.mxu0 0.0
      %1574 = vmatpush1.xpose.msra.mxu0 0.0
      %1575 = vmatprep.subr.mxu0 0.0
      %1576 = vmatpush1.xpose.msra.mxu0 0.0
      %1577 = vmatprep.subr.mxu0 0.0
      %1578 = vmatpush1.xpose.msra.mxu0 0.0
      %1579 = vmatprep.subr.mxu0 0.0
      %1580 = vmatpush1.xpose.msra.mxu0 0.0
      %1581 = vmatprep.subr.mxu0 0.0
      %1582 = vmatpush1.xpose.msra.mxu0 0.0
      %1583 = vmatprep.subr.mxu0 0.0
      %1584 = vmatpush1.xpose.msra.mxu0 0.0
      %1585 = vmatprep.subr.mxu0 0.0
      %1586 = vmatpush1.xpose.msra.mxu0 0.0
      %1587 = vmatprep.subr.mxu0 0.0
      %1588 = vmatpush1.xpose.msra.mxu0 0.0
      %1589 = vmatprep.subr.mxu0 0.0
      %1590 = vmatpush1.xpose.msra.mxu0 0.0
      %1591 = vmatprep.mubr.f32.mxu0 0.0
      %1592 = vmatmul.mubr.f32.gmra.mrb[0].mxu0 %v1495
      %v1593 = vpop.f32.mrb[0].mxu0
      %v1594 = vadd.f32 %v1463, %v1593
      %v1595 = vpop.f32.mrb[0].mxu0
      %1596 = vmatprep.mubr.f32.mxu0 0.0
      %1597 = vmatmul.mubr.f32.gmra.mrb[0].mxu0 %v1497
      %v1598 = vpop.f32.mrb[0].mxu0
      %v1599 = vadd.f32 %v1464, %v1598
      %v1600 = vpop.f32.mrb[0].mxu0
      %1601 = vmatprep.mubr.f32.mxu0 0.0
      %1602 = vmatmul.mubr.f32.gmra.mrb[0].mxu0 %v1499
      %v1603 = vpop.f32.mrb[0].mxu0
      %v1604 = vadd.f32 %v1465, %v1603
      %v1605 = vpop.f32.mrb[0].mxu0
      %1606 = vmatprep.mubr.f32.mxu0 0.0
      %1607 = vmatmul.mubr.f32.gmra.mrb[0].mxu0 %v1501
      %v1608 = vpop.f32.mrb[0].mxu0
      %v1609 = vadd.f32 %v1466, %v1608
      %v1610 = vpop.f32.mrb[0].mxu0
      %1611 = vmatprep.mubr.f32.mxu0 0.0
      %1612 = vmatmul.mubr.f32.gmra.mrb[0].mxu0 %v1503
      %v1613 = vpop.f32.mrb[0].mxu0
      %v1614 = vadd.f32 %v1467, %v1613
      %v1615 = vpop.f32.mrb[0].mxu0
      %1616 = vmatprep.mubr.f32.mxu0 0.0
      %1617 = vmatmul.mubr.f32.gmra.mrb[0].mxu0 %v1505
      %v1618 = vpop.f32.mrb[0].mxu0
      %v1619 = vadd.f32 %v1468, %v1618
      %v1620 = vpop.f32.mrb[0].mxu0
      %1621 = vmatprep.mubr.f32.mxu0 0.0
      %1622 = vmatmul.mubr.f32.gmra.mrb[0].mxu0 %v1507
      %v1623 = vpop.f32.mrb[0].mxu0
      %v1624 = vadd.f32 %v1469, %v1623
      %v1625 = vpop.f32.mrb[0].mxu0
      %1626 = vmatprep.mubr.f32.mxu0 0.0
      %1627 = vmatmul.mubr.f32.gmra.mrb[0].mxu0 %v1509
      %v1628 = vpop.f32.mrb[0].mxu0
      %v1629 = vadd.f32 %v1470, %v1628
      %v1630 = vpop.f32.mrb[0].mxu0
      %1631 = vdwg.mxu0
      %v1632 = vsel %vm795, %v1594, -inf
      %1633 = vmax.xlane.f32.xlu0 %v1632
      %v1634 = vpop.xlane.xlu0 %1633
      %v1635 = vsel %vm795, %v1599, -inf
      %1636 = vmax.xlane.f32.xlu0 %v1635
      %v1637 = vpop.xlane.xlu0 %1636
      %v1638 = vsel %vm795, %v1604, -inf
      %1639 = vmax.xlane.f32.xlu0 %v1638
      %v1640 = vpop.xlane.xlu0 %1639
      %v1641 = vsel %vm795, %v1609, -inf
      %1642 = vmax.xlane.f32.xlu0 %v1641
      %v1643 = vpop.xlane.xlu0 %1642
      %v1644 = vsel %vm795, %v1614, -inf
      %1645 = vmax.xlane.f32.xlu0 %v1644
      %v1646 = vpop.xlane.xlu0 %1645
      %v1647 = vsel %vm795, %v1619, -inf
      %1648 = vmax.xlane.f32.xlu0 %v1647
      %v1649 = vpop.xlane.xlu0 %1648
      %v1650 = vsel %vm795, %v1624, -inf
      %1651 = vmax.xlane.f32.xlu0 %v1650
      %v1652 = vpop.xlane.xlu0 %1651
      %v1653 = vsel %vm795, %v1629, -inf
      %1654 = vmax.xlane.f32.xlu0 %v1653
      %v1655 = vpop.xlane.xlu0 %1654
      %v1656 = vsub.f32 %v1594, %v1634
      %v1657 = vsub.f32 %v1599, %v1637
      %v1658 = vsub.f32 %v1604, %v1640
      %v1659 = vsub.f32 %v1609, %v1643
      %v1660 = vsub.f32 %v1614, %v1646
      %v1661 = vsub.f32 %v1619, %v1649
      %v1662 = vsub.f32 %v1624, %v1652
      %v1663 = vsub.f32 %v1629, %v1655
      %v1664 = vmul.f32 %v1656, 1.442695
      %v1665 = vpow.pop %v1664
      %v1666 = vmul.f32 %v1657, 1.442695
      %v1667 = vpow.pop %v1666
      %v1668 = vmul.f32 %v1658, 1.442695
      %v1669 = vpow.pop %v1668
      %v1670 = vmul.f32 %v1659, 1.442695
      %v1671 = vpow.pop %v1670
      %v1672 = vmul.f32 %v1660, 1.442695
      %v1673 = vpow.pop %v1672
      %v1674 = vmul.f32 %v1661, 1.442695
      %v1675 = vpow.pop %v1674
      %v1676 = vmul.f32 %v1662, 1.442695
      %v1677 = vpow.pop %v1676
      %v1678 = vmul.f32 %v1663, 1.442695
      %v1679 = vpow.pop %v1678
      %v1680 = vsel %vm795, %v1665, 0.0
      %1681 = vadd.xlane.f32.xlu0 %v1680
      %v1682 = vpop.xlane.xlu0 %1681
      %v1683 = vsel %vm795, %v1667, 0.0
      %1684 = vadd.xlane.f32.xlu0 %v1683
      %v1685 = vpop.xlane.xlu0 %1684
      %v1686 = vsel %vm795, %v1669, 0.0
      %1687 = vadd.xlane.f32.xlu0 %v1686
      %v1688 = vpop.xlane.xlu0 %1687
      %v1689 = vsel %vm795, %v1671, 0.0
      %1690 = vadd.xlane.f32.xlu0 %v1689
      %v1691 = vpop.xlane.xlu0 %1690
      %v1692 = vsel %vm795, %v1673, 0.0
      %1693 = vadd.xlane.f32.xlu0 %v1692
      %v1694 = vpop.xlane.xlu0 %1693
      %v1695 = vsel %vm795, %v1675, 0.0
      %1696 = vadd.xlane.f32.xlu0 %v1695
      %v1697 = vpop.xlane.xlu0 %1696
      %v1698 = vsel %vm795, %v1677, 0.0
      %1699 = vadd.xlane.f32.xlu0 %v1698
      %v1700 = vpop.xlane.xlu0 %1699
      %v1701 = vsel %vm795, %v1679, 0.0
      %1702 = vadd.xlane.f32.xlu0 %v1701
      %v1703 = vpop.xlane.xlu0 %1702
      %1704 = vrot.lane.b32.xlu0 %v547, 64
      %v1705 = vpop.permute.xlu0 %1704
      %1706 = vrot.lane.b32.xlu0 %v552, 64
      %v1707 = vpop.permute.xlu0 %1706
      %1708 = vrot.lane.b32.xlu0 %v557, 64
      %v1709 = vpop.permute.xlu0 %1708
      %1710 = vrot.lane.b32.xlu0 %v562, 64
      %v1711 = vpop.permute.xlu0 %1710
      %1712 = vrot.lane.b32.xlu0 %v567, 64
      %v1713 = vpop.permute.xlu0 %1712
      %1714 = vrot.lane.b32.xlu0 %v572, 64
      %v1715 = vpop.permute.xlu0 %1714
      %1716 = vrot.lane.b32.xlu0 %v577, 64
      %v1717 = vpop.permute.xlu0 %1716
      %1718 = vrot.lane.b32.xlu0 %v582, 64
      %v1719 = vpop.permute.xlu0 %1718
      %v1729 = vsel %vm795, %v1665, 0
      %v1732 = vsel %vm795, %v1667, 0
      %v1735 = vsel %vm795, %v1669, 0
      %v1738 = vsel %vm795, %v1671, 0
      %v1741 = vsel %vm795, %v1673, 0
      %v1744 = vsel %vm795, %v1675, 0
      %v1747 = vsel %vm795, %v1677, 0
      %v1750 = vsel %vm795, %v1679, 0
      %1752 = vmatprep.subr.mxu0 0.0
      %1753 = vmatpush1.msra.mxu0 %v1705
      %1754 = vmatprep.subr.mxu0 0.0
      %1755 = vmatpush1.msra.mxu0 %v1707
      %1756 = vmatprep.subr.mxu0 0.0
      %1757 = vmatpush1.msra.mxu0 %v1709
      %1758 = vmatprep.subr.mxu0 0.0
      %1759 = vmatpush1.msra.mxu0 %v1711
      %1760 = vmatprep.subr.mxu0 0.0
      %1761 = vmatpush1.msra.mxu0 %v1713
      %1762 = vmatprep.subr.mxu0 0.0
      %1763 = vmatpush1.msra.mxu0 %v1715
      %1764 = vmatprep.subr.mxu0 0.0
      %1765 = vmatpush1.msra.mxu0 %v1717
      %1766 = vmatprep.subr.mxu0 0.0
      %1767 = vmatpush1.msra.mxu0 %v1719
      %1768 = vmatprep.subr.mxu0 0.0
      %1769 = vmatpush1.msra.mxu0 0.0
      %1770 = vmatprep.subr.mxu0 0.0
      %1771 = vmatpush1.msra.mxu0 0.0
      %1772 = vmatprep.subr.mxu0 0.0
      %1773 = vmatpush1.msra.mxu0 0.0
      %1774 = vmatprep.subr.mxu0 0.0
      %1775 = vmatpush1.msra.mxu0 0.0
      %1776 = vmatprep.subr.mxu0 0.0
      %1777 = vmatpush1.msra.mxu0 0.0
      %1778 = vmatprep.subr.mxu0 0.0
      %1779 = vmatpush1.msra.mxu0 0.0
      %1780 = vmatprep.subr.mxu0 0.0
      %1781 = vmatpush1.msra.mxu0 0.0
      %1782 = vmatprep.subr.mxu0 0.0
      %1783 = vmatpush1.msra.mxu0 0.0
      %1784 = vmatprep.subr.mxu0 0.0
      %1785 = vmatpush1.msra.mxu0 0.0
      %1786 = vmatprep.subr.mxu0 0.0
      %1787 = vmatpush1.msra.mxu0 0.0
      %1788 = vmatprep.subr.mxu0 0.0
      %1789 = vmatpush1.msra.mxu0 0.0
      %1790 = vmatprep.subr.mxu0 0.0
      %1791 = vmatpush1.msra.mxu0 0.0
      %1792 = vmatprep.subr.mxu0 0.0
      %1793 = vmatpush1.msra.mxu0 0.0
      %1794 = vmatprep.subr.mxu0 0.0
      %1795 = vmatpush1.msra.mxu0 0.0
      %1796 = vmatprep.subr.mxu0 0.0
      %1797 = vmatpush1.msra.mxu0 0.0
      %1798 = vmatprep.subr.mxu0 0.0
      %1799 = vmatpush1.msra.mxu0 0.0
      %1800 = vmatprep.subr.mxu0 0.0
      %1801 = vmatpush1.msra.mxu0 0.0
      %1802 = vmatprep.subr.mxu0 0.0
      %1803 = vmatpush1.msra.mxu0 0.0
      %1804 = vmatprep.subr.mxu0 0.0
      %1805 = vmatpush1.msra.mxu0 0.0
      %1806 = vmatprep.subr.mxu0 0.0
      %1807 = vmatpush1.msra.mxu0 0.0
      %1808 = vmatprep.subr.mxu0 0.0
      %1809 = vmatpush1.msra.mxu0 0.0
      %1810 = vmatprep.subr.mxu0 0.0
      %1811 = vmatpush1.msra.mxu0 0.0
      %1812 = vmatprep.subr.mxu0 0.0
      %1813 = vmatpush1.msra.mxu0 0.0
      %1814 = vmatprep.subr.mxu0 0.0
      %1815 = vmatpush1.msra.mxu0 0.0
      %1816 = vmatprep.mubr.f32.mxu0 0.0
      %1817 = vmatmul.mubr.f32.gmra.mrb[0].mxu0 %v1729
      %v1818 = vpop.f32.mrb[0].mxu0
      %v1819 = vadd.f32 0.0, %v1818
      %v1820 = vpop.f32.mrb[0].mxu0
      %1821 = vmatprep.mubr.f32.mxu0 0.0
      %1822 = vmatmul.mubr.f32.gmra.mrb[0].mxu0 %v1732
      %v1823 = vpop.f32.mrb[0].mxu0
      %v1824 = vadd.f32 0.0, %v1823
      %v1825 = vpop.f32.mrb[0].mxu0
      %1826 = vmatprep.mubr.f32.mxu0 0.0
      %1827 = vmatmul.mubr.f32.gmra.mrb[0].mxu0 %v1735
      %v1828 = vpop.f32.mrb[0].mxu0
      %v1829 = vadd.f32 0.0, %v1828
      %v1830 = vpop.f32.mrb[0].mxu0
      %1831 = vmatprep.mubr.f32.mxu0 0.0
      %1832 = vmatmul.mubr.f32.gmra.mrb[0].mxu0 %v1738
      %v1833 = vpop.f32.mrb[0].mxu0
      %v1834 = vadd.f32 0.0, %v1833
      %v1835 = vpop.f32.mrb[0].mxu0
      %1836 = vmatprep.mubr.f32.mxu0 0.0
      %1837 = vmatmul.mubr.f32.gmra.mrb[0].mxu0 %v1741
      %v1838 = vpop.f32.mrb[0].mxu0
      %v1839 = vadd.f32 0.0, %v1838
      %v1840 = vpop.f32.mrb[0].mxu0
      %1841 = vmatprep.mubr.f32.mxu0 0.0
      %1842 = vmatmul.mubr.f32.gmra.mrb[0].mxu0 %v1744
      %v1843 = vpop.f32.mrb[0].mxu0
      %v1844 = vadd.f32 0.0, %v1843
      %v1845 = vpop.f32.mrb[0].mxu0
      %1846 = vmatprep.mubr.f32.mxu0 0.0
      %1847 = vmatmul.mubr.f32.gmra.mrb[0].mxu0 %v1747
      %v1848 = vpop.f32.mrb[0].mxu0
      %v1849 = vadd.f32 0.0, %v1848
      %v1850 = vpop.f32.mrb[0].mxu0
      %1851 = vmatprep.mubr.f32.mxu0 0.0
      %1852 = vmatmul.mubr.f32.gmra.mrb[0].mxu0 %v1750
      %v1853 = vpop.f32.mrb[0].mxu0
      %v1854 = vadd.f32 0.0, %v1853
      %v1855 = vpop.f32.mrb[0].mxu0
      %1856 = vdwg.mxu0
      %v1857 = vrcp.pop %v1682
      %v1858 = vrcp.pop %v1685
      %v1859 = vrcp.pop %v1688
      %v1860 = vrcp.pop %v1691
      %v1861 = vrcp.pop %v1694
      %v1862 = vrcp.pop %v1697
      %v1863 = vrcp.pop %v1700
      %v1864 = vrcp.pop %v1703
      %v1865 = vmul.f32 %v1819, %v1857
      %v1866 = vmul.f32 %v1824, %v1858
      %v1867 = vmul.f32 %v1829, %v1859
      %v1868 = vmul.f32 %v1834, %v1860
      %v1869 = vmul.f32 %v1839, %v1861
      %v1870 = vmul.f32 %v1844, %v1862
      %v1871 = vmul.f32 %v1849, %v1863
      %v1872 = vmul.f32 %v1854, %v1864
      %1873 = vst.msk [vmem:[#allocation2 + $0x80] sm:$0xff] %vm657, %v1865
      %1874 = vst.msk [vmem:[#allocation2 + $0x88] sm:$0xff] %vm657, %v1866
      %1875 = vst.msk [vmem:[#allocation2 + $0x90] sm:$0xff] %vm657, %v1867
      %1876 = vst.msk [vmem:[#allocation2 + $0x98] sm:$0xff] %vm657, %v1868
      %1877 = vst.msk [vmem:[#allocation2 + $0xa0] sm:$0xff] %vm657, %v1869
      %1878 = vst.msk [vmem:[#allocation2 + $0xa8] sm:$0xff] %vm657, %v1870
      %1879 = vst.msk [vmem:[#allocation2 + $0xb0] sm:$0xff] %vm657, %v1871
      %1880 = vst.msk [vmem:[#allocation2 + $0xb8] sm:$0xff] %vm657, %v1872
      %v1881 = vld [vmem:[%s1] sm:$0xff]
      %v1882 = vld [vmem:[%s1 + $0x8] sm:$0xff]
      %v1883 = vld [vmem:[%s1 + $0x10] sm:$0xff]
      %v1884 = vld [vmem:[%s1 + $0x18] sm:$0xff]
      %v1885 = vld [vmem:[%s1 + $0x20] sm:$0xff]
      %v1886 = vld [vmem:[%s1 + $0x28] sm:$0xff]
      %v1887 = vld [vmem:[%s1 + $0x30] sm:$0xff]
      %v1888 = vld [vmem:[%s1 + $0x38] sm:$0xff]
      %1897 = vrot.lane.b32.xlu0 %v587, 96
      %v1898 = vpop.permute.xlu0 %1897
      %1899 = vrot.lane.b32.xlu0 %v592, 96
      %v1900 = vpop.permute.xlu0 %1899
      %1901 = vrot.lane.b32.xlu0 %v597, 96
      %v1902 = vpop.permute.xlu0 %1901
      %1903 = vrot.lane.b32.xlu0 %v602, 96
      %v1904 = vpop.permute.xlu0 %1903
      %1905 = vrot.lane.b32.xlu0 %v607, 96
      %v1906 = vpop.permute.xlu0 %1905
      %1907 = vrot.lane.b32.xlu0 %v612, 96
      %v1908 = vpop.permute.xlu0 %1907
      %1909 = vrot.lane.b32.xlu0 %v617, 96
      %v1910 = vpop.permute.xlu0 %1909
      %1911 = vrot.lane.b32.xlu0 %v622, 96
      %v1912 = vpop.permute.xlu0 %1911
      %v1913 = vsel %vm657, %v587, 0
      %v1915 = vsel %vm657, %v592, 0
      %v1917 = vsel %vm657, %v597, 0
      %v1919 = vsel %vm657, %v602, 0
      %v1921 = vsel %vm657, %v607, 0
      %v1923 = vsel %vm657, %v612, 0
      %v1925 = vsel %vm657, %v617, 0
      %v1927 = vsel %vm657, %v622, 0
      %v1929 = vsel %vm657, %v1898, 0
      %v1931 = vsel %vm657, %v1900, 0
      %v1933 = vsel %vm657, %v1902, 0
      %v1935 = vsel %vm657, %v1904, 0
      %v1937 = vsel %vm657, %v1906, 0
      %v1939 = vsel %vm657, %v1908, 0
      %v1941 = vsel %vm657, %v1910, 0
      %v1943 = vsel %vm657, %v1912, 0
      %1945 = vmatprep.subr.mxu0 0.0
      %1946 = vmatpush1.xpose.msra.mxu0 %v1929
      %1947 = vmatprep.subr.mxu0 0.0
      %1948 = vmatpush1.xpose.msra.mxu0 %v1931
      %1949 = vmatprep.subr.mxu0 0.0
      %1950 = vmatpush1.xpose.msra.mxu0 %v1933
      %1951 = vmatprep.subr.mxu0 0.0
      %1952 = vmatpush1.xpose.msra.mxu0 %v1935
      %1953 = vmatprep.subr.mxu0 0.0
      %1954 = vmatpush1.xpose.msra.mxu0 %v1937
      %1955 = vmatprep.subr.mxu0 0.0
      %1956 = vmatpush1.xpose.msra.mxu0 %v1939
      %1957 = vmatprep.subr.mxu0 0.0
      %1958 = vmatpush1.xpose.msra.mxu0 %v1941
      %1959 = vmatprep.subr.mxu0 0.0
      %1960 = vmatpush1.xpose.msra.mxu0 %v1943
      %1961 = vmatprep.subr.mxu0 0.0
      %1962 = vmatpush1.xpose.msra.mxu0 0.0
      %1963 = vmatprep.subr.mxu0 0.0
      %1964 = vmatpush1.xpose.msra.mxu0 0.0
      %1965 = vmatprep.subr.mxu0 0.0
      %1966 = vmatpush1.xpose.msra.mxu0 0.0
      %1967 = vmatprep.subr.mxu0 0.0
      %1968 = vmatpush1.xpose.msra.mxu0 0.0
      %1969 = vmatprep.subr.mxu0 0.0
      %1970 = vmatpush1.xpose.msra.mxu0 0.0
      %1971 = vmatprep.subr.mxu0 0.0
      %1972 = vmatpush1.xpose.msra.mxu0 0.0
      %1973 = vmatprep.subr.mxu0 0.0
      %1974 = vmatpush1.xpose.msra.mxu0 0.0
      %1975 = vmatprep.subr.mxu0 0.0
      %1976 = vmatpush1.xpose.msra.mxu0 0.0
      %1977 = vmatprep.subr.mxu0 0.0
      %1978 = vmatpush1.xpose.msra.mxu0 0.0
      %1979 = vmatprep.subr.mxu0 0.0
      %1980 = vmatpush1.xpose.msra.mxu0 0.0
      %1981 = vmatprep.subr.mxu0 0.0
      %1982 = vmatpush1.xpose.msra.mxu0 0.0
      %1983 = vmatprep.subr.mxu0 0.0
      %1984 = vmatpush1.xpose.msra.mxu0 0.0
      %1985 = vmatprep.subr.mxu0 0.0
      %1986 = vmatpush1.xpose.msra.mxu0 0.0
      %1987 = vmatprep.subr.mxu0 0.0
      %1988 = vmatpush1.xpose.msra.mxu0 0.0
      %1989 = vmatprep.subr.mxu0 0.0
      %1990 = vmatpush1.xpose.msra.mxu0 0.0
      %1991 = vmatprep.subr.mxu0 0.0
      %1992 = vmatpush1.xpose.msra.mxu0 0.0
      %1993 = vmatprep.subr.mxu0 0.0
      %1994 = vmatpush1.xpose.msra.mxu0 0.0
      %1995 = vmatprep.subr.mxu0 0.0
      %1996 = vmatpush1.xpose.msra.mxu0 0.0
      %1997 = vmatprep.subr.mxu0 0.0
      %1998 = vmatpush1.xpose.msra.mxu0 0.0
      %1999 = vmatprep.subr.mxu0 0.0
      %2000 = vmatpush1.xpose.msra.mxu0 0.0
      %2001 = vmatprep.subr.mxu0 0.0
      %2002 = vmatpush1.xpose.msra.mxu0 0.0
      %2003 = vmatprep.subr.mxu0 0.0
      %2004 = vmatpush1.xpose.msra.mxu0 0.0
      %2005 = vmatprep.subr.mxu0 0.0
      %2006 = vmatpush1.xpose.msra.mxu0 0.0
      %2007 = vmatprep.subr.mxu0 0.0
      %2008 = vmatpush1.xpose.msra.mxu0 0.0
      %2009 = vmatprep.mubr.f32.mxu0 0.0
      %2010 = vmatmul.mubr.f32.gmra.mrb[0].mxu0 %v1913
      %v2011 = vpop.f32.mrb[0].mxu0
      %v2012 = vadd.f32 %v1881, %v2011
      %v2013 = vpop.f32.mrb[0].mxu0
      %2014 = vmatprep.mubr.f32.mxu0 0.0
      %2015 = vmatmul.mubr.f32.gmra.mrb[0].mxu0 %v1915
      %v2016 = vpop.f32.mrb[0].mxu0
      %v2017 = vadd.f32 %v1882, %v2016
      %v2018 = vpop.f32.mrb[0].mxu0
      %2019 = vmatprep.mubr.f32.mxu0 0.0
      %2020 = vmatmul.mubr.f32.gmra.mrb[0].mxu0 %v1917
      %v2021 = vpop.f32.mrb[0].mxu0
      %v2022 = vadd.f32 %v1883, %v2021
      %v2023 = vpop.f32.mrb[0].mxu0
      %2024 = vmatprep.mubr.f32.mxu0 0.0
      %2025 = vmatmul.mubr.f32.gmra.mrb[0].mxu0 %v1919
      %v2026 = vpop.f32.mrb[0].mxu0
      %v2027 = vadd.f32 %v1884, %v2026
      %v2028 = vpop.f32.mrb[0].mxu0
      %2029 = vmatprep.mubr.f32.mxu0 0.0
      %2030 = vmatmul.mubr.f32.gmra.mrb[0].mxu0 %v1921
      %v2031 = vpop.f32.mrb[0].mxu0
      %v2032 = vadd.f32 %v1885, %v2031
      %v2033 = vpop.f32.mrb[0].mxu0
      %2034 = vmatprep.mubr.f32.mxu0 0.0
      %2035 = vmatmul.mubr.f32.gmra.mrb[0].mxu0 %v1923
      %v2036 = vpop.f32.mrb[0].mxu0
      %v2037 = vadd.f32 %v1886, %v2036
      %v2038 = vpop.f32.mrb[0].mxu0
      %2039 = vmatprep.mubr.f32.mxu0 0.0
      %2040 = vmatmul.mubr.f32.gmra.mrb[0].mxu0 %v1925
      %v2041 = vpop.f32.mrb[0].mxu0
      %v2042 = vadd.f32 %v1887, %v2041
      %v2043 = vpop.f32.mrb[0].mxu0
      %2044 = vmatprep.mubr.f32.mxu0 0.0
      %2045 = vmatmul.mubr.f32.gmra.mrb[0].mxu0 %v1927
      %v2046 = vpop.f32.mrb[0].mxu0
      %v2047 = vadd.f32 %v1888, %v2046
      %v2048 = vpop.f32.mrb[0].mxu0
      %2049 = vdwg.mxu0
      %v2050 = vsel %vm795, %v2012, -inf
      %2051 = vmax.xlane.f32.xlu0 %v2050
      %v2052 = vpop.xlane.xlu0 %2051
      %v2053 = vsel %vm795, %v2017, -inf
      %2054 = vmax.xlane.f32.xlu0 %v2053
      %v2055 = vpop.xlane.xlu0 %2054
      %v2056 = vsel %vm795, %v2022, -inf
      %2057 = vmax.xlane.f32.xlu0 %v2056
      %v2058 = vpop.xlane.xlu0 %2057
      %v2059 = vsel %vm795, %v2027, -inf
      %2060 = vmax.xlane.f32.xlu0 %v2059
      %v2061 = vpop.xlane.xlu0 %2060
      %v2062 = vsel %vm795, %v2032, -inf
      %2063 = vmax.xlane.f32.xlu0 %v2062
      %v2064 = vpop.xlane.xlu0 %2063
      %v2065 = vsel %vm795, %v2037, -inf
      %2066 = vmax.xlane.f32.xlu0 %v2065
      %v2067 = vpop.xlane.xlu0 %2066
      %v2068 = vsel %vm795, %v2042, -inf
      %2069 = vmax.xlane.f32.xlu0 %v2068
      %v2070 = vpop.xlane.xlu0 %2069
      %v2071 = vsel %vm795, %v2047, -inf
      %2072 = vmax.xlane.f32.xlu0 %v2071
      %v2073 = vpop.xlane.xlu0 %2072
      %v2074 = vsub.f32 %v2012, %v2052
      %v2075 = vsub.f32 %v2017, %v2055
      %v2076 = vsub.f32 %v2022, %v2058
      %v2077 = vsub.f32 %v2027, %v2061
      %v2078 = vsub.f32 %v2032, %v2064
      %v2079 = vsub.f32 %v2037, %v2067
      %v2080 = vsub.f32 %v2042, %v2070
      %v2081 = vsub.f32 %v2047, %v2073
      %v2082 = vmul.f32 %v2074, 1.442695
      %v2083 = vpow.pop %v2082
      %v2084 = vmul.f32 %v2075, 1.442695
      %v2085 = vpow.pop %v2084
      %v2086 = vmul.f32 %v2076, 1.442695
      %v2087 = vpow.pop %v2086
      %v2088 = vmul.f32 %v2077, 1.442695
      %v2089 = vpow.pop %v2088
      %v2090 = vmul.f32 %v2078, 1.442695
      %v2091 = vpow.pop %v2090
      %v2092 = vmul.f32 %v2079, 1.442695
      %v2093 = vpow.pop %v2092
      %v2094 = vmul.f32 %v2080, 1.442695
      %v2095 = vpow.pop %v2094
      %v2096 = vmul.f32 %v2081, 1.442695
      %v2097 = vpow.pop %v2096
      %v2098 = vsel %vm795, %v2083, 0.0
      %2099 = vadd.xlane.f32.xlu0 %v2098
      %v2100 = vpop.xlane.xlu0 %2099
      %v2101 = vsel %vm795, %v2085, 0.0
      %2102 = vadd.xlane.f32.xlu0 %v2101
      %v2103 = vpop.xlane.xlu0 %2102
      %v2104 = vsel %vm795, %v2087, 0.0
      %2105 = vadd.xlane.f32.xlu0 %v2104
      %v2106 = vpop.xlane.xlu0 %2105
      %v2107 = vsel %vm795, %v2089, 0.0
      %2108 = vadd.xlane.f32.xlu0 %v2107
      %v2109 = vpop.xlane.xlu0 %2108
      %v2110 = vsel %vm795, %v2091, 0.0
      %2111 = vadd.xlane.f32.xlu0 %v2110
      %v2112 = vpop.xlane.xlu0 %2111
      %v2113 = vsel %vm795, %v2093, 0.0
      %2114 = vadd.xlane.f32.xlu0 %v2113
      %v2115 = vpop.xlane.xlu0 %2114
      %v2116 = vsel %vm795, %v2095, 0.0
      %2117 = vadd.xlane.f32.xlu0 %v2116
      %v2118 = vpop.xlane.xlu0 %2117
      %v2119 = vsel %vm795, %v2097, 0.0
      %2120 = vadd.xlane.f32.xlu0 %v2119
      %v2121 = vpop.xlane.xlu0 %2120
      %2122 = vrot.lane.b32.xlu0 %v587, 64
      %v2123 = vpop.permute.xlu0 %2122
      %2124 = vrot.lane.b32.xlu0 %v592, 64
      %v2125 = vpop.permute.xlu0 %2124
      %2126 = vrot.lane.b32.xlu0 %v597, 64
      %v2127 = vpop.permute.xlu0 %2126
      %2128 = vrot.lane.b32.xlu0 %v602, 64
      %v2129 = vpop.permute.xlu0 %2128
      %2130 = vrot.lane.b32.xlu0 %v607, 64
      %v2131 = vpop.permute.xlu0 %2130
      %2132 = vrot.lane.b32.xlu0 %v612, 64
      %v2133 = vpop.permute.xlu0 %2132
      %2134 = vrot.lane.b32.xlu0 %v617, 64
      %v2135 = vpop.permute.xlu0 %2134
      %2136 = vrot.lane.b32.xlu0 %v622, 64
      %v2137 = vpop.permute.xlu0 %2136
      %v2147 = vsel %vm795, %v2083, 0
      %v2150 = vsel %vm795, %v2085, 0
      %v2153 = vsel %vm795, %v2087, 0
      %v2156 = vsel %vm795, %v2089, 0
      %v2159 = vsel %vm795, %v2091, 0
      %v2162 = vsel %vm795, %v2093, 0
      %v2165 = vsel %vm795, %v2095, 0
      %v2168 = vsel %vm795, %v2097, 0
      %2170 = vmatprep.subr.mxu0 0.0
      %2171 = vmatpush1.msra.mxu0 %v2123
      %2172 = vmatprep.subr.mxu0 0.0
      %2173 = vmatpush1.msra.mxu0 %v2125
      %2174 = vmatprep.subr.mxu0 0.0
      %2175 = vmatpush1.msra.mxu0 %v2127
      %2176 = vmatprep.subr.mxu0 0.0
      %2177 = vmatpush1.msra.mxu0 %v2129
      %2178 = vmatprep.subr.mxu0 0.0
      %2179 = vmatpush1.msra.mxu0 %v2131
      %2180 = vmatprep.subr.mxu0 0.0
      %2181 = vmatpush1.msra.mxu0 %v2133
      %2182 = vmatprep.subr.mxu0 0.0
      %2183 = vmatpush1.msra.mxu0 %v2135
      %2184 = vmatprep.subr.mxu0 0.0
      %2185 = vmatpush1.msra.mxu0 %v2137
      %2186 = vmatprep.subr.mxu0 0.0
      %2187 = vmatpush1.msra.mxu0 0.0
      %2188 = vmatprep.subr.mxu0 0.0
      %2189 = vmatpush1.msra.mxu0 0.0
      %2190 = vmatprep.subr.mxu0 0.0
      %2191 = vmatpush1.msra.mxu0 0.0
      %2192 = vmatprep.subr.mxu0 0.0
      %2193 = vmatpush1.msra.mxu0 0.0
      %2194 = vmatprep.subr.mxu0 0.0
      %2195 = vmatpush1.msra.mxu0 0.0
      %2196 = vmatprep.subr.mxu0 0.0
      %2197 = vmatpush1.msra.mxu0 0.0
      %2198 = vmatprep.subr.mxu0 0.0
      %2199 = vmatpush1.msra.mxu0 0.0
      %2200 = vmatprep.subr.mxu0 0.0
      %2201 = vmatpush1.msra.mxu0 0.0
      %2202 = vmatprep.subr.mxu0 0.0
      %2203 = vmatpush1.msra.mxu0 0.0
      %2204 = vmatprep.subr.mxu0 0.0
      %2205 = vmatpush1.msra.mxu0 0.0
      %2206 = vmatprep.subr.mxu0 0.0
      %2207 = vmatpush1.msra.mxu0 0.0
      %2208 = vmatprep.subr.mxu0 0.0
      %2209 = vmatpush1.msra.mxu0 0.0
      %2210 = vmatprep.subr.mxu0 0.0
      %2211 = vmatpush1.msra.mxu0 0.0
      %2212 = vmatprep.subr.mxu0 0.0
      %2213 = vmatpush1.msra.mxu0 0.0
      %2214 = vmatprep.subr.mxu0 0.0
      %2215 = vmatpush1.msra.mxu0 0.0
      %2216 = vmatprep.subr.mxu0 0.0
      %2217 = vmatpush1.msra.mxu0 0.0
      %2218 = vmatprep.subr.mxu0 0.0
      %2219 = vmatpush1.msra.mxu0 0.0
      %2220 = vmatprep.subr.mxu0 0.0
      %2221 = vmatpush1.msra.mxu0 0.0
      %2222 = vmatprep.subr.mxu0 0.0
      %2223 = vmatpush1.msra.mxu0 0.0
      %2224 = vmatprep.subr.mxu0 0.0
      %2225 = vmatpush1.msra.mxu0 0.0
      %2226 = vmatprep.subr.mxu0 0.0
      %2227 = vmatpush1.msra.mxu0 0.0
      %2228 = vmatprep.subr.mxu0 0.0
      %2229 = vmatpush1.msra.mxu0 0.0
      %2230 = vmatprep.subr.mxu0 0.0
      %2231 = vmatpush1.msra.mxu0 0.0
      %2232 = vmatprep.subr.mxu0 0.0
      %2233 = vmatpush1.msra.mxu0 0.0
      %2234 = vmatprep.mubr.f32.mxu0 0.0
      %2235 = vmatmul.mubr.f32.gmra.mrb[0].mxu0 %v2147
      %v2236 = vpop.f32.mrb[0].mxu0
      %v2237 = vadd.f32 0.0, %v2236
      %v2238 = vpop.f32.mrb[0].mxu0
      %2239 = vmatprep.mubr.f32.mxu0 0.0
      %2240 = vmatmul.mubr.f32.gmra.mrb[0].mxu0 %v2150
      %v2241 = vpop.f32.mrb[0].mxu0
      %v2242 = vadd.f32 0.0, %v2241
      %v2243 = vpop.f32.mrb[0].mxu0
      %2244 = vmatprep.mubr.f32.mxu0 0.0
      %2245 = vmatmul.mubr.f32.gmra.mrb[0].mxu0 %v2153
      %v2246 = vpop.f32.mrb[0].mxu0
      %v2247 = vadd.f32 0.0, %v2246
      %v2248 = vpop.f32.mrb[0].mxu0
      %2249 = vmatprep.mubr.f32.mxu0 0.0
      %2250 = vmatmul.mubr.f32.gmra.mrb[0].mxu0 %v2156
      %v2251 = vpop.f32.mrb[0].mxu0
      %v2252 = vadd.f32 0.0, %v2251
      %v2253 = vpop.f32.mrb[0].mxu0
      %2254 = vmatprep.mubr.f32.mxu0 0.0
      %2255 = vmatmul.mubr.f32.gmra.mrb[0].mxu0 %v2159
      %v2256 = vpop.f32.mrb[0].mxu0
      %v2257 = vadd.f32 0.0, %v2256
      %v2258 = vpop.f32.mrb[0].mxu0
      %2259 = vmatprep.mubr.f32.mxu0 0.0
      %2260 = vmatmul.mubr.f32.gmra.mrb[0].mxu0 %v2162
      %v2261 = vpop.f32.mrb[0].mxu0
      %v2262 = vadd.f32 0.0, %v2261
      %v2263 = vpop.f32.mrb[0].mxu0
      %2264 = vmatprep.mubr.f32.mxu0 0.0
      %2265 = vmatmul.mubr.f32.gmra.mrb[0].mxu0 %v2165
      %v2266 = vpop.f32.mrb[0].mxu0
      %v2267 = vadd.f32 0.0, %v2266
      %v2268 = vpop.f32.mrb[0].mxu0
      %2269 = vmatprep.mubr.f32.mxu0 0.0
      %2270 = vmatmul.mubr.f32.gmra.mrb[0].mxu0 %v2168
      %v2271 = vpop.f32.mrb[0].mxu0
      %v2272 = vadd.f32 0.0, %v2271
      %v2273 = vpop.f32.mrb[0].mxu0
      %2274 = vdwg.mxu0
      %v2275 = vrcp.pop %v2100
      %v2276 = vrcp.pop %v2103
      %v2277 = vrcp.pop %v2106
      %v2278 = vrcp.pop %v2109
      %v2279 = vrcp.pop %v2112
      %v2280 = vrcp.pop %v2115
      %v2281 = vrcp.pop %v2118
      %v2282 = vrcp.pop %v2121
      %v2283 = vmul.f32 %v2237, %v2275
      %v2284 = vmul.f32 %v2242, %v2276
      %v2285 = vmul.f32 %v2247, %v2277
      %v2286 = vmul.f32 %v2252, %v2278
      %v2287 = vmul.f32 %v2257, %v2279
      %v2288 = vmul.f32 %v2262, %v2280
      %v2289 = vmul.f32 %v2267, %v2281
      %v2290 = vmul.f32 %v2272, %v2282
      %2291 = vst.msk [vmem:[#allocation2 + $0xc0] sm:$0xff] %vm657, %v2283
      %2292 = vst.msk [vmem:[#allocation2 + $0xc8] sm:$0xff] %vm657, %v2284
      %2293 = vst.msk [vmem:[#allocation2 + $0xd0] sm:$0xff] %vm657, %v2285
      %2294 = vst.msk [vmem:[#allocation2 + $0xd8] sm:$0xff] %vm657, %v2286
      %2295 = vst.msk [vmem:[#allocation2 + $0xe0] sm:$0xff] %vm657, %v2287
      %2296 = vst.msk [vmem:[#allocation2 + $0xe8] sm:$0xff] %vm657, %v2288
      %2297 = vst.msk [vmem:[#allocation2 + $0xf0] sm:$0xff] %vm657, %v2289
      %2298 = vst.msk [vmem:[#allocation2 + $0xf8] sm:$0xff] %vm657, %v2290
      %s2299 = scalar_lea.vmem %s1, 64
      %v2300 = vld [vmem:[%s2299] sm:$0xff]
      %v2301 = vld [vmem:[%s2299 + $0x8] sm:$0xff]
      %v2302 = vld [vmem:[%s2299 + $0x10] sm:$0xff]
      %v2303 = vld [vmem:[%s2299 + $0x18] sm:$0xff]
      %v2304 = vld [vmem:[%s2299 + $0x20] sm:$0xff]
      %v2305 = vld [vmem:[%s2299 + $0x28] sm:$0xff]
      %v2306 = vld [vmem:[%s2299 + $0x30] sm:$0xff]
      %v2307 = vld [vmem:[%s2299 + $0x38] sm:$0xff]
      %2308 = vrot.lane.b32.xlu0 %v467, 120
      %v2309 = vpop.permute.xlu0 %2308
      %2310 = vrot.lane.b32.xlu0 %v472, 120
      %v2311 = vpop.permute.xlu0 %2310
      %2312 = vrot.lane.b32.xlu0 %v477, 120
      %v2313 = vpop.permute.xlu0 %2312
      %2314 = vrot.lane.b32.xlu0 %v482, 120
      %v2315 = vpop.permute.xlu0 %2314
      %2316 = vrot.lane.b32.xlu0 %v487, 120
      %v2317 = vpop.permute.xlu0 %2316
      %2318 = vrot.lane.b32.xlu0 %v492, 120
      %v2319 = vpop.permute.xlu0 %2318
      %2320 = vrot.lane.b32.xlu0 %v497, 120
      %v2321 = vpop.permute.xlu0 %2320
      %2322 = vrot.lane.b32.xlu0 %v502, 120
      %v2323 = vpop.permute.xlu0 %2322
      %2324 = vrot.lane.b32.xlu0 %v467, 88
      %v2325 = vpop.permute.xlu0 %2324
      %2326 = vrot.lane.b32.xlu0 %v472, 88
      %v2327 = vpop.permute.xlu0 %2326
      %2328 = vrot.lane.b32.xlu0 %v477, 88
      %v2329 = vpop.permute.xlu0 %2328
      %2330 = vrot.lane.b32.xlu0 %v482, 88
      %v2331 = vpop.permute.xlu0 %2330
      %2332 = vrot.lane.b32.xlu0 %v487, 88
      %v2333 = vpop.permute.xlu0 %2332
      %2334 = vrot.lane.b32.xlu0 %v492, 88
      %v2335 = vpop.permute.xlu0 %2334
      %2336 = vrot.lane.b32.xlu0 %v497, 88
      %v2337 = vpop.permute.xlu0 %2336
      %2338 = vrot.lane.b32.xlu0 %v502, 88
      %v2339 = vpop.permute.xlu0 %2338
      %v2340 = vsel %vm657, %v2309, 0
      %v2342 = vsel %vm657, %v2311, 0
      %v2344 = vsel %vm657, %v2313, 0
      %v2346 = vsel %vm657, %v2315, 0
      %v2348 = vsel %vm657, %v2317, 0
      %v2350 = vsel %vm657, %v2319, 0
      %v2352 = vsel %vm657, %v2321, 0
      %v2354 = vsel %vm657, %v2323, 0
      %v2356 = vsel %vm657, %v2325, 0
      %v2358 = vsel %vm657, %v2327, 0
      %v2360 = vsel %vm657, %v2329, 0
      %v2362 = vsel %vm657, %v2331, 0
      %v2364 = vsel %vm657, %v2333, 0
      %v2366 = vsel %vm657, %v2335, 0
      %v2368 = vsel %vm657, %v2337, 0
      %v2370 = vsel %vm657, %v2339, 0
      %2372 = vmatprep.subr.mxu0 0.0
      %2373 = vmatpush1.xpose.msra.mxu0 %v2356
      %2374 = vmatprep.subr.mxu0 0.0
      %2375 = vmatpush1.xpose.msra.mxu0 %v2358
      %2376 = vmatprep.subr.mxu0 0.0
      %2377 = vmatpush1.xpose.msra.mxu0 %v2360
      %2378 = vmatprep.subr.mxu0 0.0
      %2379 = vmatpush1.xpose.msra.mxu0 %v2362
      %2380 = vmatprep.subr.mxu0 0.0
      %2381 = vmatpush1.xpose.msra.mxu0 %v2364
      %2382 = vmatprep.subr.mxu0 0.0
      %2383 = vmatpush1.xpose.msra.mxu0 %v2366
      %2384 = vmatprep.subr.mxu0 0.0
      %2385 = vmatpush1.xpose.msra.mxu0 %v2368
      %2386 = vmatprep.subr.mxu0 0.0
      %2387 = vmatpush1.xpose.msra.mxu0 %v2370
      %2388 = vmatprep.subr.mxu0 0.0
      %2389 = vmatpush1.xpose.msra.mxu0 0.0
      %2390 = vmatprep.subr.mxu0 0.0
      %2391 = vmatpush1.xpose.msra.mxu0 0.0
      %2392 = vmatprep.subr.mxu0 0.0
      %2393 = vmatpush1.xpose.msra.mxu0 0.0
      %2394 = vmatprep.subr.mxu0 0.0
      %2395 = vmatpush1.xpose.msra.mxu0 0.0
      %2396 = vmatprep.subr.mxu0 0.0
      %2397 = vmatpush1.xpose.msra.mxu0 0.0
      %2398 = vmatprep.subr.mxu0 0.0
      %2399 = vmatpush1.xpose.msra.mxu0 0.0
      %2400 = vmatprep.subr.mxu0 0.0
      %2401 = vmatpush1.xpose.msra.mxu0 0.0
      %2402 = vmatprep.subr.mxu0 0.0
      %2403 = vmatpush1.xpose.msra.mxu0 0.0
      %2404 = vmatprep.subr.mxu0 0.0
      %2405 = vmatpush1.xpose.msra.mxu0 0.0
      %2406 = vmatprep.subr.mxu0 0.0
      %2407 = vmatpush1.xpose.msra.mxu0 0.0
      %2408 = vmatprep.subr.mxu0 0.0
      %2409 = vmatpush1.xpose.msra.mxu0 0.0
      %2410 = vmatprep.subr.mxu0 0.0
      %2411 = vmatpush1.xpose.msra.mxu0 0.0
      %2412 = vmatprep.subr.mxu0 0.0
      %2413 = vmatpush1.xpose.msra.mxu0 0.0
      %2414 = vmatprep.subr.mxu0 0.0
      %2415 = vmatpush1.xpose.msra.mxu0 0.0
      %2416 = vmatprep.subr.mxu0 0.0
      %2417 = vmatpush1.xpose.msra.mxu0 0.0
      %2418 = vmatprep.subr.mxu0 0.0
      %2419 = vmatpush1.xpose.msra.mxu0 0.0
      %2420 = vmatprep.subr.mxu0 0.0
      %2421 = vmatpush1.xpose.msra.mxu0 0.0
      %2422 = vmatprep.subr.mxu0 0.0
      %2423 = vmatpush1.xpose.msra.mxu0 0.0
      %2424 = vmatprep.subr.mxu0 0.0
      %2425 = vmatpush1.xpose.msra.mxu0 0.0
      %2426 = vmatprep.subr.mxu0 0.0
      %2427 = vmatpush1.xpose.msra.mxu0 0.0
      %2428 = vmatprep.subr.mxu0 0.0
      %2429 = vmatpush1.xpose.msra.mxu0 0.0
      %2430 = vmatprep.subr.mxu0 0.0
      %2431 = vmatpush1.xpose.msra.mxu0 0.0
      %2432 = vmatprep.subr.mxu0 0.0
      %2433 = vmatpush1.xpose.msra.mxu0 0.0
      %2434 = vmatprep.subr.mxu0 0.0
      %2435 = vmatpush1.xpose.msra.mxu0 0.0
      %2436 = vmatprep.mubr.f32.mxu0 0.0
      %2437 = vmatmul.mubr.f32.gmra.mrb[0].mxu0 %v2340
      %v2438 = vpop.f32.mrb[0].mxu0
      %v2439 = vadd.f32 %v2300, %v2438
      %v2440 = vpop.f32.mrb[0].mxu0
      %2441 = vmatprep.mubr.f32.mxu0 0.0
      %2442 = vmatmul.mubr.f32.gmra.mrb[0].mxu0 %v2342
      %v2443 = vpop.f32.mrb[0].mxu0
      %v2444 = vadd.f32 %v2301, %v2443
      %v2445 = vpop.f32.mrb[0].mxu0
      %2446 = vmatprep.mubr.f32.mxu0 0.0
      %2447 = vmatmul.mubr.f32.gmra.mrb[0].mxu0 %v2344
      %v2448 = vpop.f32.mrb[0].mxu0
      %v2449 = vadd.f32 %v2302, %v2448
      %v2450 = vpop.f32.mrb[0].mxu0
      %2451 = vmatprep.mubr.f32.mxu0 0.0
      %2452 = vmatmul.mubr.f32.gmra.mrb[0].mxu0 %v2346
      %v2453 = vpop.f32.mrb[0].mxu0
      %v2454 = vadd.f32 %v2303, %v2453
      %v2455 = vpop.f32.mrb[0].mxu0
      %2456 = vmatprep.mubr.f32.mxu0 0.0
      %2457 = vmatmul.mubr.f32.gmra.mrb[0].mxu0 %v2348
      %v2458 = vpop.f32.mrb[0].mxu0
      %v2459 = vadd.f32 %v2304, %v2458
      %v2460 = vpop.f32.mrb[0].mxu0
      %2461 = vmatprep.mubr.f32.mxu0 0.0
      %2462 = vmatmul.mubr.f32.gmra.mrb[0].mxu0 %v2350
      %v2463 = vpop.f32.mrb[0].mxu0
      %v2464 = vadd.f32 %v2305, %v2463
      %v2465 = vpop.f32.mrb[0].mxu0
      %2466 = vmatprep.mubr.f32.mxu0 0.0
      %2467 = vmatmul.mubr.f32.gmra.mrb[0].mxu0 %v2352
      %v2468 = vpop.f32.mrb[0].mxu0
      %v2469 = vadd.f32 %v2306, %v2468
      %v2470 = vpop.f32.mrb[0].mxu0
      %2471 = vmatprep.mubr.f32.mxu0 0.0
      %2472 = vmatmul.mubr.f32.gmra.mrb[0].mxu0 %v2354
      %v2473 = vpop.f32.mrb[0].mxu0
      %v2474 = vadd.f32 %v2307, %v2473
      %v2475 = vpop.f32.mrb[0].mxu0
      %2476 = vdwg.mxu0
      %v2477 = vsel %vm795, %v2439, -inf
      %2478 = vmax.xlane.f32.xlu0 %v2477
      %v2479 = vpop.xlane.xlu0 %2478
      %v2480 = vsel %vm795, %v2444, -inf
      %2481 = vmax.xlane.f32.xlu0 %v2480
      %v2482 = vpop.xlane.xlu0 %2481
      %v2483 = vsel %vm795, %v2449, -inf
      %2484 = vmax.xlane.f32.xlu0 %v2483
      %v2485 = vpop.xlane.xlu0 %2484
      %v2486 = vsel %vm795, %v2454, -inf
      %2487 = vmax.xlane.f32.xlu0 %v2486
      %v2488 = vpop.xlane.xlu0 %2487
      %v2489 = vsel %vm795, %v2459, -inf
      %2490 = vmax.xlane.f32.xlu0 %v2489
      %v2491 = vpop.xlane.xlu0 %2490
      %v2492 = vsel %vm795, %v2464, -inf
      %2493 = vmax.xlane.f32.xlu0 %v2492
      %v2494 = vpop.xlane.xlu0 %2493
      %v2495 = vsel %vm795, %v2469, -inf
      %2496 = vmax.xlane.f32.xlu0 %v2495
      %v2497 = vpop.xlane.xlu0 %2496
      %v2498 = vsel %vm795, %v2474, -inf
      %2499 = vmax.xlane.f32.xlu0 %v2498
      %v2500 = vpop.xlane.xlu0 %2499
      %v2501 = vsub.f32 %v2439, %v2479
      %v2502 = vsub.f32 %v2444, %v2482
      %v2503 = vsub.f32 %v2449, %v2485
      %v2504 = vsub.f32 %v2454, %v2488
      %v2505 = vsub.f32 %v2459, %v2491
      %v2506 = vsub.f32 %v2464, %v2494
      %v2507 = vsub.f32 %v2469, %v2497
      %v2508 = vsub.f32 %v2474, %v2500
      %v2509 = vmul.f32 %v2501, 1.442695
      %v2510 = vpow.pop %v2509
      %v2511 = vmul.f32 %v2502, 1.442695
      %v2512 = vpow.pop %v2511
      %v2513 = vmul.f32 %v2503, 1.442695
      %v2514 = vpow.pop %v2513
      %v2515 = vmul.f32 %v2504, 1.442695
      %v2516 = vpow.pop %v2515
      %v2517 = vmul.f32 %v2505, 1.442695
      %v2518 = vpow.pop %v2517
      %v2519 = vmul.f32 %v2506, 1.442695
      %v2520 = vpow.pop %v2519
      %v2521 = vmul.f32 %v2507, 1.442695
      %v2522 = vpow.pop %v2521
      %v2523 = vmul.f32 %v2508, 1.442695
      %v2524 = vpow.pop %v2523
      %v2525 = vsel %vm795, %v2510, 0.0
      %2526 = vadd.xlane.f32.xlu0 %v2525
      %v2527 = vpop.xlane.xlu0 %2526
      %v2528 = vsel %vm795, %v2512, 0.0
      %2529 = vadd.xlane.f32.xlu0 %v2528
      %v2530 = vpop.xlane.xlu0 %2529
      %v2531 = vsel %vm795, %v2514, 0.0
      %2532 = vadd.xlane.f32.xlu0 %v2531
      %v2533 = vpop.xlane.xlu0 %2532
      %v2534 = vsel %vm795, %v2516, 0.0
      %2535 = vadd.xlane.f32.xlu0 %v2534
      %v2536 = vpop.xlane.xlu0 %2535
      %v2537 = vsel %vm795, %v2518, 0.0
      %2538 = vadd.xlane.f32.xlu0 %v2537
      %v2539 = vpop.xlane.xlu0 %2538
      %v2540 = vsel %vm795, %v2520, 0.0
      %2541 = vadd.xlane.f32.xlu0 %v2540
      %v2542 = vpop.xlane.xlu0 %2541
      %v2543 = vsel %vm795, %v2522, 0.0
      %2544 = vadd.xlane.f32.xlu0 %v2543
      %v2545 = vpop.xlane.xlu0 %2544
      %v2546 = vsel %vm795, %v2524, 0.0
      %2547 = vadd.xlane.f32.xlu0 %v2546
      %v2548 = vpop.xlane.xlu0 %2547
      %2549 = vrot.lane.b32.xlu0 %v467, 56
      %v2550 = vpop.permute.xlu0 %2549
      %2551 = vrot.lane.b32.xlu0 %v472, 56
      %v2552 = vpop.permute.xlu0 %2551
      %2553 = vrot.lane.b32.xlu0 %v477, 56
      %v2554 = vpop.permute.xlu0 %2553
      %2555 = vrot.lane.b32.xlu0 %v482, 56
      %v2556 = vpop.permute.xlu0 %2555
      %2557 = vrot.lane.b32.xlu0 %v487, 56
      %v2558 = vpop.permute.xlu0 %2557
      %2559 = vrot.lane.b32.xlu0 %v492, 56
      %v2560 = vpop.permute.xlu0 %2559
      %2561 = vrot.lane.b32.xlu0 %v497, 56
      %v2562 = vpop.permute.xlu0 %2561
      %2563 = vrot.lane.b32.xlu0 %v502, 56
      %v2564 = vpop.permute.xlu0 %2563
      %v2574 = vsel %vm795, %v2510, 0
      %v2577 = vsel %vm795, %v2512, 0
      %v2580 = vsel %vm795, %v2514, 0
      %v2583 = vsel %vm795, %v2516, 0
      %v2586 = vsel %vm795, %v2518, 0
      %v2589 = vsel %vm795, %v2520, 0
      %v2592 = vsel %vm795, %v2522, 0
      %v2595 = vsel %vm795, %v2524, 0
      %2597 = vmatprep.subr.mxu0 0.0
      %2598 = vmatpush1.msra.mxu0 %v2550
      %2599 = vmatprep.subr.mxu0 0.0
      %2600 = vmatpush1.msra.mxu0 %v2552
      %2601 = vmatprep.subr.mxu0 0.0
      %2602 = vmatpush1.msra.mxu0 %v2554
      %2603 = vmatprep.subr.mxu0 0.0
      %2604 = vmatpush1.msra.mxu0 %v2556
      %2605 = vmatprep.subr.mxu0 0.0
      %2606 = vmatpush1.msra.mxu0 %v2558
      %2607 = vmatprep.subr.mxu0 0.0
      %2608 = vmatpush1.msra.mxu0 %v2560
      %2609 = vmatprep.subr.mxu0 0.0
      %2610 = vmatpush1.msra.mxu0 %v2562
      %2611 = vmatprep.subr.mxu0 0.0
      %2612 = vmatpush1.msra.mxu0 %v2564
      %2613 = vmatprep.subr.mxu0 0.0
      %2614 = vmatpush1.msra.mxu0 0.0
      %2615 = vmatprep.subr.mxu0 0.0
      %2616 = vmatpush1.msra.mxu0 0.0
      %2617 = vmatprep.subr.mxu0 0.0
      %2618 = vmatpush1.msra.mxu0 0.0
      %2619 = vmatprep.subr.mxu0 0.0
      %2620 = vmatpush1.msra.mxu0 0.0
      %2621 = vmatprep.subr.mxu0 0.0
      %2622 = vmatpush1.msra.mxu0 0.0
      %2623 = vmatprep.subr.mxu0 0.0
      %2624 = vmatpush1.msra.mxu0 0.0
      %2625 = vmatprep.subr.mxu0 0.0
      %2626 = vmatpush1.msra.mxu0 0.0
      %2627 = vmatprep.subr.mxu0 0.0
      %2628 = vmatpush1.msra.mxu0 0.0
      %2629 = vmatprep.subr.mxu0 0.0
      %2630 = vmatpush1.msra.mxu0 0.0
      %2631 = vmatprep.subr.mxu0 0.0
      %2632 = vmatpush1.msra.mxu0 0.0
      %2633 = vmatprep.subr.mxu0 0.0
      %2634 = vmatpush1.msra.mxu0 0.0
      %2635 = vmatprep.subr.mxu0 0.0
      %2636 = vmatpush1.msra.mxu0 0.0
      %2637 = vmatprep.subr.mxu0 0.0
      %2638 = vmatpush1.msra.mxu0 0.0
      %2639 = vmatprep.subr.mxu0 0.0
      %2640 = vmatpush1.msra.mxu0 0.0
      %2641 = vmatprep.subr.mxu0 0.0
      %2642 = vmatpush1.msra.mxu0 0.0
      %2643 = vmatprep.subr.mxu0 0.0
      %2644 = vmatpush1.msra.mxu0 0.0
      %2645 = vmatprep.subr.mxu0 0.0
      %2646 = vmatpush1.msra.mxu0 0.0
      %2647 = vmatprep.subr.mxu0 0.0
      %2648 = vmatpush1.msra.mxu0 0.0
      %2649 = vmatprep.subr.mxu0 0.0
      %2650 = vmatpush1.msra.mxu0 0.0
      %2651 = vmatprep.subr.mxu0 0.0
      %2652 = vmatpush1.msra.mxu0 0.0
      %2653 = vmatprep.subr.mxu0 0.0
      %2654 = vmatpush1.msra.mxu0 0.0
      %2655 = vmatprep.subr.mxu0 0.0
      %2656 = vmatpush1.msra.mxu0 0.0
      %2657 = vmatprep.subr.mxu0 0.0
      %2658 = vmatpush1.msra.mxu0 0.0
      %2659 = vmatprep.subr.mxu0 0.0
      %2660 = vmatpush1.msra.mxu0 0.0
      %2661 = vmatprep.mubr.f32.mxu0 0.0
      %2662 = vmatmul.mubr.f32.gmra.mrb[0].mxu0 %v2574
      %v2663 = vpop.f32.mrb[0].mxu0
      %v2664 = vadd.f32 0.0, %v2663
      %v2665 = vpop.f32.mrb[0].mxu0
      %2666 = vmatprep.mubr.f32.mxu0 0.0
      %2667 = vmatmul.mubr.f32.gmra.mrb[0].mxu0 %v2577
      %v2668 = vpop.f32.mrb[0].mxu0
      %v2669 = vadd.f32 0.0, %v2668
      %v2670 = vpop.f32.mrb[0].mxu0
      %2671 = vmatprep.mubr.f32.mxu0 0.0
      %2672 = vmatmul.mubr.f32.gmra.mrb[0].mxu0 %v2580
      %v2673 = vpop.f32.mrb[0].mxu0
      %v2674 = vadd.f32 0.0, %v2673
      %v2675 = vpop.f32.mrb[0].mxu0
      %2676 = vmatprep.mubr.f32.mxu0 0.0
      %2677 = vmatmul.mubr.f32.gmra.mrb[0].mxu0 %v2583
      %v2678 = vpop.f32.mrb[0].mxu0
      %v2679 = vadd.f32 0.0, %v2678
      %v2680 = vpop.f32.mrb[0].mxu0
      %2681 = vmatprep.mubr.f32.mxu0 0.0
      %2682 = vmatmul.mubr.f32.gmra.mrb[0].mxu0 %v2586
      %v2683 = vpop.f32.mrb[0].mxu0
      %v2684 = vadd.f32 0.0, %v2683
      %v2685 = vpop.f32.mrb[0].mxu0
      %2686 = vmatprep.mubr.f32.mxu0 0.0
      %2687 = vmatmul.mubr.f32.gmra.mrb[0].mxu0 %v2589
      %v2688 = vpop.f32.mrb[0].mxu0
      %v2689 = vadd.f32 0.0, %v2688
      %v2690 = vpop.f32.mrb[0].mxu0
      %2691 = vmatprep.mubr.f32.mxu0 0.0
      %2692 = vmatmul.mubr.f32.gmra.mrb[0].mxu0 %v2592
      %v2693 = vpop.f32.mrb[0].mxu0
      %v2694 = vadd.f32 0.0, %v2693
      %v2695 = vpop.f32.mrb[0].mxu0
      %2696 = vmatprep.mubr.f32.mxu0 0.0
      %2697 = vmatmul.mubr.f32.gmra.mrb[0].mxu0 %v2595
      %v2698 = vpop.f32.mrb[0].mxu0
      %v2699 = vadd.f32 0.0, %v2698
      %v2700 = vpop.f32.mrb[0].mxu0
      %2701 = vdwg.mxu0
      %v2702 = vrcp.pop %v2527
      %v2703 = vrcp.pop %v2530
      %v2704 = vrcp.pop %v2533
      %v2705 = vrcp.pop %v2536
      %v2706 = vrcp.pop %v2539
      %v2707 = vrcp.pop %v2542
      %v2708 = vrcp.pop %v2545
      %v2709 = vrcp.pop %v2548
      %v2710 = vmul.f32 %v2664, %v2702
      %v2711 = vmul.f32 %v2669, %v2703
      %v2712 = vmul.f32 %v2674, %v2704
      %v2713 = vmul.f32 %v2679, %v2705
      %v2714 = vmul.f32 %v2684, %v2706
      %v2715 = vmul.f32 %v2689, %v2707
      %v2716 = vmul.f32 %v2694, %v2708
      %v2717 = vmul.f32 %v2699, %v2709
      %2726 = vrot.lane.b32.xlu0 %v2710, 8
      %v2727 = vpop.permute.xlu0 %2726
      %2728 = vrot.lane.b32.xlu0 %v2711, 8
      %v2729 = vpop.permute.xlu0 %2728
      %2730 = vrot.lane.b32.xlu0 %v2712, 8
      %v2731 = vpop.permute.xlu0 %2730
      %2732 = vrot.lane.b32.xlu0 %v2713, 8
      %v2733 = vpop.permute.xlu0 %2732
      %2734 = vrot.lane.b32.xlu0 %v2714, 8
      %v2735 = vpop.permute.xlu0 %2734
      %2736 = vrot.lane.b32.xlu0 %v2715, 8
      %v2737 = vpop.permute.xlu0 %2736
      %2738 = vrot.lane.b32.xlu0 %v2716, 8
      %v2739 = vpop.permute.xlu0 %2738
      %2740 = vrot.lane.b32.xlu0 %v2717, 8
      %v2741 = vpop.permute.xlu0 %2740
      %vm2750 = vcmask 130112
      %2751 = vst.msk [vmem:[#allocation2] sm:$0xff] %vm2750, %v2727
      %2752 = vst.msk [vmem:[#allocation2 + $0x8] sm:$0xff] %vm2750, %v2729
      %2753 = vst.msk [vmem:[#allocation2 + $0x10] sm:$0xff] %vm2750, %v2731
      %2754 = vst.msk [vmem:[#allocation2 + $0x18] sm:$0xff] %vm2750, %v2733
      %2755 = vst.msk [vmem:[#allocation2 + $0x20] sm:$0xff] %vm2750, %v2735
      %2756 = vst.msk [vmem:[#allocation2 + $0x28] sm:$0xff] %vm2750, %v2737
      %2757 = vst.msk [vmem:[#allocation2 + $0x30] sm:$0xff] %vm2750, %v2739
      %2758 = vst.msk [vmem:[#allocation2 + $0x38] sm:$0xff] %vm2750, %v2741
      %v2759 = vld [vmem:[%s2299] sm:$0xff]
      %v2760 = vld [vmem:[%s2299 + $0x8] sm:$0xff]
      %v2761 = vld [vmem:[%s2299 + $0x10] sm:$0xff]
      %v2762 = vld [vmem:[%s2299 + $0x18] sm:$0xff]
      %v2763 = vld [vmem:[%s2299 + $0x20] sm:$0xff]
      %v2764 = vld [vmem:[%s2299 + $0x28] sm:$0xff]
      %v2765 = vld [vmem:[%s2299 + $0x30] sm:$0xff]
      %v2766 = vld [vmem:[%s2299 + $0x38] sm:$0xff]
      %2767 = vrot.lane.b32.xlu0 %v507, 120
      %v2768 = vpop.permute.xlu0 %2767
      %2769 = vrot.lane.b32.xlu0 %v512, 120
      %v2770 = vpop.permute.xlu0 %2769
      %2771 = vrot.lane.b32.xlu0 %v517, 120
      %v2772 = vpop.permute.xlu0 %2771
      %2773 = vrot.lane.b32.xlu0 %v522, 120
      %v2774 = vpop.permute.xlu0 %2773
      %2775 = vrot.lane.b32.xlu0 %v527, 120
      %v2776 = vpop.permute.xlu0 %2775
      %2777 = vrot.lane.b32.xlu0 %v532, 120
      %v2778 = vpop.permute.xlu0 %2777
      %2779 = vrot.lane.b32.xlu0 %v537, 120
      %v2780 = vpop.permute.xlu0 %2779
      %2781 = vrot.lane.b32.xlu0 %v542, 120
      %v2782 = vpop.permute.xlu0 %2781
      %2783 = vrot.lane.b32.xlu0 %v507, 88
      %v2784 = vpop.permute.xlu0 %2783
      %2785 = vrot.lane.b32.xlu0 %v512, 88
      %v2786 = vpop.permute.xlu0 %2785
      %2787 = vrot.lane.b32.xlu0 %v517, 88
      %v2788 = vpop.permute.xlu0 %2787
      %2789 = vrot.lane.b32.xlu0 %v522, 88
      %v2790 = vpop.permute.xlu0 %2789
      %2791 = vrot.lane.b32.xlu0 %v527, 88
      %v2792 = vpop.permute.xlu0 %2791
      %2793 = vrot.lane.b32.xlu0 %v532, 88
      %v2794 = vpop.permute.xlu0 %2793
      %2795 = vrot.lane.b32.xlu0 %v537, 88
      %v2796 = vpop.permute.xlu0 %2795
      %2797 = vrot.lane.b32.xlu0 %v542, 88
      %v2798 = vpop.permute.xlu0 %2797
      %v2799 = vsel %vm657, %v2768, 0
      %v2801 = vsel %vm657, %v2770, 0
      %v2803 = vsel %vm657, %v2772, 0
      %v2805 = vsel %vm657, %v2774, 0
      %v2807 = vsel %vm657, %v2776, 0
      %v2809 = vsel %vm657, %v2778, 0
      %v2811 = vsel %vm657, %v2780, 0
      %v2813 = vsel %vm657, %v2782, 0
      %v2815 = vsel %vm657, %v2784, 0
      %v2817 = vsel %vm657, %v2786, 0
      %v2819 = vsel %vm657, %v2788, 0
      %v2821 = vsel %vm657, %v2790, 0
      %v2823 = vsel %vm657, %v2792, 0
      %v2825 = vsel %vm657, %v2794, 0
      %v2827 = vsel %vm657, %v2796, 0
      %v2829 = vsel %vm657, %v2798, 0
      %2831 = vmatprep.subr.mxu0 0.0
      %2832 = vmatpush1.xpose.msra.mxu0 %v2815
      %2833 = vmatprep.subr.mxu0 0.0
      %2834 = vmatpush1.xpose.msra.mxu0 %v2817
      %2835 = vmatprep.subr.mxu0 0.0
      %2836 = vmatpush1.xpose.msra.mxu0 %v2819
      %2837 = vmatprep.subr.mxu0 0.0
      %2838 = vmatpush1.xpose.msra.mxu0 %v2821
      %2839 = vmatprep.subr.mxu0 0.0
      %2840 = vmatpush1.xpose.msra.mxu0 %v2823
      %2841 = vmatprep.subr.mxu0 0.0
      %2842 = vmatpush1.xpose.msra.mxu0 %v2825
      %2843 = vmatprep.subr.mxu0 0.0
      %2844 = vmatpush1.xpose.msra.mxu0 %v2827
      %2845 = vmatprep.subr.mxu0 0.0
      %2846 = vmatpush1.xpose.msra.mxu0 %v2829
      %2847 = vmatprep.subr.mxu0 0.0
      %2848 = vmatpush1.xpose.msra.mxu0 0.0
      %2849 = vmatprep.subr.mxu0 0.0
      %2850 = vmatpush1.xpose.msra.mxu0 0.0
      %2851 = vmatprep.subr.mxu0 0.0
      %2852 = vmatpush1.xpose.msra.mxu0 0.0
      %2853 = vmatprep.subr.mxu0 0.0
      %2854 = vmatpush1.xpose.msra.mxu0 0.0
      %2855 = vmatprep.subr.mxu0 0.0
      %2856 = vmatpush1.xpose.msra.mxu0 0.0
      %2857 = vmatprep.subr.mxu0 0.0
      %2858 = vmatpush1.xpose.msra.mxu0 0.0
      %2859 = vmatprep.subr.mxu0 0.0
      %2860 = vmatpush1.xpose.msra.mxu0 0.0
      %2861 = vmatprep.subr.mxu0 0.0
      %2862 = vmatpush1.xpose.msra.mxu0 0.0
      %2863 = vmatprep.subr.mxu0 0.0
      %2864 = vmatpush1.xpose.msra.mxu0 0.0
      %2865 = vmatprep.subr.mxu0 0.0
      %2866 = vmatpush1.xpose.msra.mxu0 0.0
      %2867 = vmatprep.subr.mxu0 0.0
      %2868 = vmatpush1.xpose.msra.mxu0 0.0
      %2869 = vmatprep.subr.mxu0 0.0
      %2870 = vmatpush1.xpose.msra.mxu0 0.0
      %2871 = vmatprep.subr.mxu0 0.0
      %2872 = vmatpush1.xpose.msra.mxu0 0.0
      %2873 = vmatprep.subr.mxu0 0.0
      %2874 = vmatpush1.xpose.msra.mxu0 0.0
      %2875 = vmatprep.subr.mxu0 0.0
      %2876 = vmatpush1.xpose.msra.mxu0 0.0
      %2877 = vmatprep.subr.mxu0 0.0
      %2878 = vmatpush1.xpose.msra.mxu0 0.0
      %2879 = vmatprep.subr.mxu0 0.0
      %2880 = vmatpush1.xpose.msra.mxu0 0.0
      %2881 = vmatprep.subr.mxu0 0.0
      %2882 = vmatpush1.xpose.msra.mxu0 0.0
      %2883 = vmatprep.subr.mxu0 0.0
      %2884 = vmatpush1.xpose.msra.mxu0 0.0
      %2885 = vmatprep.subr.mxu0 0.0
      %2886 = vmatpush1.xpose.msra.mxu0 0.0
      %2887 = vmatprep.subr.mxu0 0.0
      %2888 = vmatpush1.xpose.msra.mxu0 0.0
      %2889 = vmatprep.subr.mxu0 0.0
      %2890 = vmatpush1.xpose.msra.mxu0 0.0
      %2891 = vmatprep.subr.mxu0 0.0
      %2892 = vmatpush1.xpose.msra.mxu0 0.0
      %2893 = vmatprep.subr.mxu0 0.0
      %2894 = vmatpush1.xpose.msra.mxu0 0.0
      %2895 = vmatprep.mubr.f32.mxu0 0.0
      %2896 = vmatmul.mubr.f32.gmra.mrb[0].mxu0 %v2799
      %v2897 = vpop.f32.mrb[0].mxu0
      %v2898 = vadd.f32 %v2759, %v2897
      %v2899 = vpop.f32.mrb[0].mxu0
      %2900 = vmatprep.mubr.f32.mxu0 0.0
      %2901 = vmatmul.mubr.f32.gmra.mrb[0].mxu0 %v2801
      %v2902 = vpop.f32.mrb[0].mxu0
      %v2903 = vadd.f32 %v2760, %v2902
      %v2904 = vpop.f32.mrb[0].mxu0
      %2905 = vmatprep.mubr.f32.mxu0 0.0
      %2906 = vmatmul.mubr.f32.gmra.mrb[0].mxu0 %v2803
      %v2907 = vpop.f32.mrb[0].mxu0
      %v2908 = vadd.f32 %v2761, %v2907
      %v2909 = vpop.f32.mrb[0].mxu0
      %2910 = vmatprep.mubr.f32.mxu0 0.0
      %2911 = vmatmul.mubr.f32.gmra.mrb[0].mxu0 %v2805
      %v2912 = vpop.f32.mrb[0].mxu0
      %v2913 = vadd.f32 %v2762, %v2912
      %v2914 = vpop.f32.mrb[0].mxu0
      %2915 = vmatprep.mubr.f32.mxu0 0.0
      %2916 = vmatmul.mubr.f32.gmra.mrb[0].mxu0 %v2807
      %v2917 = vpop.f32.mrb[0].mxu0
      %v2918 = vadd.f32 %v2763, %v2917
      %v2919 = vpop.f32.mrb[0].mxu0
      %2920 = vmatprep.mubr.f32.mxu0 0.0
      %2921 = vmatmul.mubr.f32.gmra.mrb[0].mxu0 %v2809
      %v2922 = vpop.f32.mrb[0].mxu0
      %v2923 = vadd.f32 %v2764, %v2922
      %v2924 = vpop.f32.mrb[0].mxu0
      %2925 = vmatprep.mubr.f32.mxu0 0.0
      %2926 = vmatmul.mubr.f32.gmra.mrb[0].mxu0 %v2811
      %v2927 = vpop.f32.mrb[0].mxu0
      %v2928 = vadd.f32 %v2765, %v2927
      %v2929 = vpop.f32.mrb[0].mxu0
      %2930 = vmatprep.mubr.f32.mxu0 0.0
      %2931 = vmatmul.mubr.f32.gmra.mrb[0].mxu0 %v2813
      %v2932 = vpop.f32.mrb[0].mxu0
      %v2933 = vadd.f32 %v2766, %v2932
      %v2934 = vpop.f32.mrb[0].mxu0
      %2935 = vdwg.mxu0
      %v2936 = vsel %vm795, %v2898, -inf
      %2937 = vmax.xlane.f32.xlu0 %v2936
      %v2938 = vpop.xlane.xlu0 %2937
      %v2939 = vsel %vm795, %v2903, -inf
      %2940 = vmax.xlane.f32.xlu0 %v2939
      %v2941 = vpop.xlane.xlu0 %2940
      %v2942 = vsel %vm795, %v2908, -inf
      %2943 = vmax.xlane.f32.xlu0 %v2942
      %v2944 = vpop.xlane.xlu0 %2943
      %v2945 = vsel %vm795, %v2913, -inf
      %2946 = vmax.xlane.f32.xlu0 %v2945
      %v2947 = vpop.xlane.xlu0 %2946
      %v2948 = vsel %vm795, %v2918, -inf
      %2949 = vmax.xlane.f32.xlu0 %v2948
      %v2950 = vpop.xlane.xlu0 %2949
      %v2951 = vsel %vm795, %v2923, -inf
      %2952 = vmax.xlane.f32.xlu0 %v2951
      %v2953 = vpop.xlane.xlu0 %2952
      %v2954 = vsel %vm795, %v2928, -inf
      %2955 = vmax.xlane.f32.xlu0 %v2954
      %v2956 = vpop.xlane.xlu0 %2955
      %v2957 = vsel %vm795, %v2933, -inf
      %2958 = vmax.xlane.f32.xlu0 %v2957
      %v2959 = vpop.xlane.xlu0 %2958
      %v2960 = vsub.f32 %v2898, %v2938
      %v2961 = vsub.f32 %v2903, %v2941
      %v2962 = vsub.f32 %v2908, %v2944
      %v2963 = vsub.f32 %v2913, %v2947
      %v2964 = vsub.f32 %v2918, %v2950
      %v2965 = vsub.f32 %v2923, %v2953
      %v2966 = vsub.f32 %v2928, %v2956
      %v2967 = vsub.f32 %v2933, %v2959
      %v2968 = vmul.f32 %v2960, 1.442695
      %v2969 = vpow.pop %v2968
      %v2970 = vmul.f32 %v2961, 1.442695
      %v2971 = vpow.pop %v2970
      %v2972 = vmul.f32 %v2962, 1.442695
      %v2973 = vpow.pop %v2972
      %v2974 = vmul.f32 %v2963, 1.442695
      %v2975 = vpow.pop %v2974
      %v2976 = vmul.f32 %v2964, 1.442695
      %v2977 = vpow.pop %v2976
      %v2978 = vmul.f32 %v2965, 1.442695
      %v2979 = vpow.pop %v2978
      %v2980 = vmul.f32 %v2966, 1.442695
      %v2981 = vpow.pop %v2980
      %v2982 = vmul.f32 %v2967, 1.442695
      %v2983 = vpow.pop %v2982
      %v2984 = vsel %vm795, %v2969, 0.0
      %2985 = vadd.xlane.f32.xlu0 %v2984
      %v2986 = vpop.xlane.xlu0 %2985
      %v2987 = vsel %vm795, %v2971, 0.0
      %2988 = vadd.xlane.f32.xlu0 %v2987
      %v2989 = vpop.xlane.xlu0 %2988
      %v2990 = vsel %vm795, %v2973, 0.0
      %2991 = vadd.xlane.f32.xlu0 %v2990
      %v2992 = vpop.xlane.xlu0 %2991
      %v2993 = vsel %vm795, %v2975, 0.0
      %2994 = vadd.xlane.f32.xlu0 %v2993
      %v2995 = vpop.xlane.xlu0 %2994
      %v2996 = vsel %vm795, %v2977, 0.0
      %2997 = vadd.xlane.f32.xlu0 %v2996
      %v2998 = vpop.xlane.xlu0 %2997
      %v2999 = vsel %vm795, %v2979, 0.0
      %3000 = vadd.xlane.f32.xlu0 %v2999
      %v3001 = vpop.xlane.xlu0 %3000
      %v3002 = vsel %vm795, %v2981, 0.0
      %3003 = vadd.xlane.f32.xlu0 %v3002
      %v3004 = vpop.xlane.xlu0 %3003
      %v3005 = vsel %vm795, %v2983, 0.0
      %3006 = vadd.xlane.f32.xlu0 %v3005
      %v3007 = vpop.xlane.xlu0 %3006
      %3008 = vrot.lane.b32.xlu0 %v507, 56
      %v3009 = vpop.permute.xlu0 %3008
      %3010 = vrot.lane.b32.xlu0 %v512, 56
      %v3011 = vpop.permute.xlu0 %3010
      %3012 = vrot.lane.b32.xlu0 %v517, 56
      %v3013 = vpop.permute.xlu0 %3012
      %3014 = vrot.lane.b32.xlu0 %v522, 56
      %v3015 = vpop.permute.xlu0 %3014
      %3016 = vrot.lane.b32.xlu0 %v527, 56
      %v3017 = vpop.permute.xlu0 %3016
      %3018 = vrot.lane.b32.xlu0 %v532, 56
      %v3019 = vpop.permute.xlu0 %3018
      %3020 = vrot.lane.b32.xlu0 %v537, 56
      %v3021 = vpop.permute.xlu0 %3020
      %3022 = vrot.lane.b32.xlu0 %v542, 56
      %v3023 = vpop.permute.xlu0 %3022
      %v3033 = vsel %vm795, %v2969, 0
      %v3036 = vsel %vm795, %v2971, 0
      %v3039 = vsel %vm795, %v2973, 0
      %v3042 = vsel %vm795, %v2975, 0
      %v3045 = vsel %vm795, %v2977, 0
      %v3048 = vsel %vm795, %v2979, 0
      %v3051 = vsel %vm795, %v2981, 0
      %v3054 = vsel %vm795, %v2983, 0
      %3056 = vmatprep.subr.mxu0 0.0
      %3057 = vmatpush1.msra.mxu0 %v3009
      %3058 = vmatprep.subr.mxu0 0.0
      %3059 = vmatpush1.msra.mxu0 %v3011
      %3060 = vmatprep.subr.mxu0 0.0
      %3061 = vmatpush1.msra.mxu0 %v3013
      %3062 = vmatprep.subr.mxu0 0.0
      %3063 = vmatpush1.msra.mxu0 %v3015
      %3064 = vmatprep.subr.mxu0 0.0
      %3065 = vmatpush1.msra.mxu0 %v3017
      %3066 = vmatprep.subr.mxu0 0.0
      %3067 = vmatpush1.msra.mxu0 %v3019
      %3068 = vmatprep.subr.mxu0 0.0
      %3069 = vmatpush1.msra.mxu0 %v3021
      %3070 = vmatprep.subr.mxu0 0.0
      %3071 = vmatpush1.msra.mxu0 %v3023
      %3072 = vmatprep.subr.mxu0 0.0
      %3073 = vmatpush1.msra.mxu0 0.0
      %3074 = vmatprep.subr.mxu0 0.0
      %3075 = vmatpush1.msra.mxu0 0.0
      %3076 = vmatprep.subr.mxu0 0.0
      %3077 = vmatpush1.msra.mxu0 0.0
      %3078 = vmatprep.subr.mxu0 0.0
      %3079 = vmatpush1.msra.mxu0 0.0
      %3080 = vmatprep.subr.mxu0 0.0
      %3081 = vmatpush1.msra.mxu0 0.0
      %3082 = vmatprep.subr.mxu0 0.0
      %3083 = vmatpush1.msra.mxu0 0.0
      %3084 = vmatprep.subr.mxu0 0.0
      %3085 = vmatpush1.msra.mxu0 0.0
      %3086 = vmatprep.subr.mxu0 0.0
      %3087 = vmatpush1.msra.mxu0 0.0
      %3088 = vmatprep.subr.mxu0 0.0
      %3089 = vmatpush1.msra.mxu0 0.0
      %3090 = vmatprep.subr.mxu0 0.0
      %3091 = vmatpush1.msra.mxu0 0.0
      %3092 = vmatprep.subr.mxu0 0.0
      %3093 = vmatpush1.msra.mxu0 0.0
      %3094 = vmatprep.subr.mxu0 0.0
      %3095 = vmatpush1.msra.mxu0 0.0
      %3096 = vmatprep.subr.mxu0 0.0
      %3097 = vmatpush1.msra.mxu0 0.0
      %3098 = vmatprep.subr.mxu0 0.0
      %3099 = vmatpush1.msra.mxu0 0.0
      %3100 = vmatprep.subr.mxu0 0.0
      %3101 = vmatpush1.msra.mxu0 0.0
      %3102 = vmatprep.subr.mxu0 0.0
      %3103 = vmatpush1.msra.mxu0 0.0
      %3104 = vmatprep.subr.mxu0 0.0
      %3105 = vmatpush1.msra.mxu0 0.0
      %3106 = vmatprep.subr.mxu0 0.0
      %3107 = vmatpush1.msra.mxu0 0.0
      %3108 = vmatprep.subr.mxu0 0.0
      %3109 = vmatpush1.msra.mxu0 0.0
      %3110 = vmatprep.subr.mxu0 0.0
      %3111 = vmatpush1.msra.mxu0 0.0
      %3112 = vmatprep.subr.mxu0 0.0
      %3113 = vmatpush1.msra.mxu0 0.0
      %3114 = vmatprep.subr.mxu0 0.0
      %3115 = vmatpush1.msra.mxu0 0.0
      %3116 = vmatprep.subr.mxu0 0.0
      %3117 = vmatpush1.msra.mxu0 0.0
      %3118 = vmatprep.subr.mxu0 0.0
      %3119 = vmatpush1.msra.mxu0 0.0
      %3120 = vmatprep.mubr.f32.mxu0 0.0
      %3121 = vmatmul.mubr.f32.gmra.mrb[0].mxu0 %v3033
      %v3122 = vpop.f32.mrb[0].mxu0
      %v3123 = vadd.f32 0.0, %v3122
      %v3124 = vpop.f32.mrb[0].mxu0
      %3125 = vmatprep.mubr.f32.mxu0 0.0
      %3126 = vmatmul.mubr.f32.gmra.mrb[0].mxu0 %v3036
      %v3127 = vpop.f32.mrb[0].mxu0
      %v3128 = vadd.f32 0.0, %v3127
      %v3129 = vpop.f32.mrb[0].mxu0
      %3130 = vmatprep.mubr.f32.mxu0 0.0
      %3131 = vmatmul.mubr.f32.gmra.mrb[0].mxu0 %v3039
      %v3132 = vpop.f32.mrb[0].mxu0
      %v3133 = vadd.f32 0.0, %v3132
      %v3134 = vpop.f32.mrb[0].mxu0
      %3135 = vmatprep.mubr.f32.mxu0 0.0
      %3136 = vmatmul.mubr.f32.gmra.mrb[0].mxu0 %v3042
      %v3137 = vpop.f32.mrb[0].mxu0
      %v3138 = vadd.f32 0.0, %v3137
      %v3139 = vpop.f32.mrb[0].mxu0
      %3140 = vmatprep.mubr.f32.mxu0 0.0
      %3141 = vmatmul.mubr.f32.gmra.mrb[0].mxu0 %v3045
      %v3142 = vpop.f32.mrb[0].mxu0
      %v3143 = vadd.f32 0.0, %v3142
      %v3144 = vpop.f32.mrb[0].mxu0
      %3145 = vmatprep.mubr.f32.mxu0 0.0
      %3146 = vmatmul.mubr.f32.gmra.mrb[0].mxu0 %v3048
      %v3147 = vpop.f32.mrb[0].mxu0
      %v3148 = vadd.f32 0.0, %v3147
      %v3149 = vpop.f32.mrb[0].mxu0
      %3150 = vmatprep.mubr.f32.mxu0 0.0
      %3151 = vmatmul.mubr.f32.gmra.mrb[0].mxu0 %v3051
      %v3152 = vpop.f32.mrb[0].mxu0
      %v3153 = vadd.f32 0.0, %v3152
      %v3154 = vpop.f32.mrb[0].mxu0
      %3155 = vmatprep.mubr.f32.mxu0 0.0
      %3156 = vmatmul.mubr.f32.gmra.mrb[0].mxu0 %v3054
      %v3157 = vpop.f32.mrb[0].mxu0
      %v3158 = vadd.f32 0.0, %v3157
      %v3159 = vpop.f32.mrb[0].mxu0
      %3160 = vdwg.mxu0
      %v3161 = vrcp.pop %v2986
      %v3162 = vrcp.pop %v2989
      %v3163 = vrcp.pop %v2992
      %v3164 = vrcp.pop %v2995
      %v3165 = vrcp.pop %v2998
      %v3166 = vrcp.pop %v3001
      %v3167 = vrcp.pop %v3004
      %v3168 = vrcp.pop %v3007
      %v3169 = vmul.f32 %v3123, %v3161
      %v3170 = vmul.f32 %v3128, %v3162
      %v3171 = vmul.f32 %v3133, %v3163
      %v3172 = vmul.f32 %v3138, %v3164
      %v3173 = vmul.f32 %v3143, %v3165
      %v3174 = vmul.f32 %v3148, %v3166
      %v3175 = vmul.f32 %v3153, %v3167
      %v3176 = vmul.f32 %v3158, %v3168
      %3185 = vrot.lane.b32.xlu0 %v3169, 8
      %v3186 = vpop.permute.xlu0 %3185
      %3187 = vrot.lane.b32.xlu0 %v3170, 8
      %v3188 = vpop.permute.xlu0 %3187
      %3189 = vrot.lane.b32.xlu0 %v3171, 8
      %v3190 = vpop.permute.xlu0 %3189
      %3191 = vrot.lane.b32.xlu0 %v3172, 8
      %v3192 = vpop.permute.xlu0 %3191
      %3193 = vrot.lane.b32.xlu0 %v3173, 8
      %v3194 = vpop.permute.xlu0 %3193
      %3195 = vrot.lane.b32.xlu0 %v3174, 8
      %v3196 = vpop.permute.xlu0 %3195
      %3197 = vrot.lane.b32.xlu0 %v3175, 8
      %v3198 = vpop.permute.xlu0 %3197
      %3199 = vrot.lane.b32.xlu0 %v3176, 8
      %v3200 = vpop.permute.xlu0 %3199
      %3209 = vst.msk [vmem:[#allocation2 + $0x40] sm:$0xff] %vm2750, %v3186
      %3210 = vst.msk [vmem:[#allocation2 + $0x48] sm:$0xff] %vm2750, %v3188
      %3211 = vst.msk [vmem:[#allocation2 + $0x50] sm:$0xff] %vm2750, %v3190
      %3212 = vst.msk [vmem:[#allocation2 + $0x58] sm:$0xff] %vm2750, %v3192
      %3213 = vst.msk [vmem:[#allocation2 + $0x60] sm:$0xff] %vm2750, %v3194
      %3214 = vst.msk [vmem:[#allocation2 + $0x68] sm:$0xff] %vm2750, %v3196
      %3215 = vst.msk [vmem:[#allocation2 + $0x70] sm:$0xff] %vm2750, %v3198
      %3216 = vst.msk [vmem:[#allocation2 + $0x78] sm:$0xff] %vm2750, %v3200
      %v3217 = vld [vmem:[%s2299] sm:$0xff]
      %v3218 = vld [vmem:[%s2299 + $0x8] sm:$0xff]
      %v3219 = vld [vmem:[%s2299 + $0x10] sm:$0xff]
      %v3220 = vld [vmem:[%s2299 + $0x18] sm:$0xff]
      %v3221 = vld [vmem:[%s2299 + $0x20] sm:$0xff]
      %v3222 = vld [vmem:[%s2299 + $0x28] sm:$0xff]
      %v3223 = vld [vmem:[%s2299 + $0x30] sm:$0xff]
      %v3224 = vld [vmem:[%s2299 + $0x38] sm:$0xff]
      %3225 = vrot.lane.b32.xlu0 %v547, 120
      %v3226 = vpop.permute.xlu0 %3225
      %3227 = vrot.lane.b32.xlu0 %v552, 120
      %v3228 = vpop.permute.xlu0 %3227
      %3229 = vrot.lane.b32.xlu0 %v557, 120
      %v3230 = vpop.permute.xlu0 %3229
      %3231 = vrot.lane.b32.xlu0 %v562, 120
      %v3232 = vpop.permute.xlu0 %3231
      %3233 = vrot.lane.b32.xlu0 %v567, 120
      %v3234 = vpop.permute.xlu0 %3233
      %3235 = vrot.lane.b32.xlu0 %v572, 120
      %v3236 = vpop.permute.xlu0 %3235
      %3237 = vrot.lane.b32.xlu0 %v577, 120
      %v3238 = vpop.permute.xlu0 %3237
      %3239 = vrot.lane.b32.xlu0 %v582, 120
      %v3240 = vpop.permute.xlu0 %3239
      %3241 = vrot.lane.b32.xlu0 %v547, 88
      %v3242 = vpop.permute.xlu0 %3241
      %3243 = vrot.lane.b32.xlu0 %v552, 88
      %v3244 = vpop.permute.xlu0 %3243
      %3245 = vrot.lane.b32.xlu0 %v557, 88
      %v3246 = vpop.permute.xlu0 %3245
      %3247 = vrot.lane.b32.xlu0 %v562, 88
      %v3248 = vpop.permute.xlu0 %3247
      %3249 = vrot.lane.b32.xlu0 %v567, 88
      %v3250 = vpop.permute.xlu0 %3249
      %3251 = vrot.lane.b32.xlu0 %v572, 88
      %v3252 = vpop.permute.xlu0 %3251
      %3253 = vrot.lane.b32.xlu0 %v577, 88
      %v3254 = vpop.permute.xlu0 %3253
      %3255 = vrot.lane.b32.xlu0 %v582, 88
      %v3256 = vpop.permute.xlu0 %3255
      %v3257 = vsel %vm657, %v3226, 0
      %v3259 = vsel %vm657, %v3228, 0
      %v3261 = vsel %vm657, %v3230, 0
      %v3263 = vsel %vm657, %v3232, 0
      %v3265 = vsel %vm657, %v3234, 0
      %v3267 = vsel %vm657, %v3236, 0
      %v3269 = vsel %vm657, %v3238, 0
      %v3271 = vsel %vm657, %v3240, 0
      %v3273 = vsel %vm657, %v3242, 0
      %v3275 = vsel %vm657, %v3244, 0
      %v3277 = vsel %vm657, %v3246, 0
      %v3279 = vsel %vm657, %v3248, 0
      %v3281 = vsel %vm657, %v3250, 0
      %v3283 = vsel %vm657, %v3252, 0
      %v3285 = vsel %vm657, %v3254, 0
      %v3287 = vsel %vm657, %v3256, 0
      %3289 = vmatprep.subr.mxu0 0.0
      %3290 = vmatpush1.xpose.msra.mxu0 %v3273
      %3291 = vmatprep.subr.mxu0 0.0
      %3292 = vmatpush1.xpose.msra.mxu0 %v3275
      %3293 = vmatprep.subr.mxu0 0.0
      %3294 = vmatpush1.xpose.msra.mxu0 %v3277
      %3295 = vmatprep.subr.mxu0 0.0
      %3296 = vmatpush1.xpose.msra.mxu0 %v3279
      %3297 = vmatprep.subr.mxu0 0.0
      %3298 = vmatpush1.xpose.msra.mxu0 %v3281
      %3299 = vmatprep.subr.mxu0 0.0
      %3300 = vmatpush1.xpose.msra.mxu0 %v3283
      %3301 = vmatprep.subr.mxu0 0.0
      %3302 = vmatpush1.xpose.msra.mxu0 %v3285
      %3303 = vmatprep.subr.mxu0 0.0
      %3304 = vmatpush1.xpose.msra.mxu0 %v3287
      %3305 = vmatprep.subr.mxu0 0.0
      %3306 = vmatpush1.xpose.msra.mxu0 0.0
      %3307 = vmatprep.subr.mxu0 0.0
      %3308 = vmatpush1.xpose.msra.mxu0 0.0
      %3309 = vmatprep.subr.mxu0 0.0
      %3310 = vmatpush1.xpose.msra.mxu0 0.0
      %3311 = vmatprep.subr.mxu0 0.0
      %3312 = vmatpush1.xpose.msra.mxu0 0.0
      %3313 = vmatprep.subr.mxu0 0.0
      %3314 = vmatpush1.xpose.msra.mxu0 0.0
      %3315 = vmatprep.subr.mxu0 0.0
      %3316 = vmatpush1.xpose.msra.mxu0 0.0
      %3317 = vmatprep.subr.mxu0 0.0
      %3318 = vmatpush1.xpose.msra.mxu0 0.0
      %3319 = vmatprep.subr.mxu0 0.0
      %3320 = vmatpush1.xpose.msra.mxu0 0.0
      %3321 = vmatprep.subr.mxu0 0.0
      %3322 = vmatpush1.xpose.msra.mxu0 0.0
      %3323 = vmatprep.subr.mxu0 0.0
      %3324 = vmatpush1.xpose.msra.mxu0 0.0
      %3325 = vmatprep.subr.mxu0 0.0
      %3326 = vmatpush1.xpose.msra.mxu0 0.0
      %3327 = vmatprep.subr.mxu0 0.0
      %3328 = vmatpush1.xpose.msra.mxu0 0.0
      %3329 = vmatprep.subr.mxu0 0.0
      %3330 = vmatpush1.xpose.msra.mxu0 0.0
      %3331 = vmatprep.subr.mxu0 0.0
      %3332 = vmatpush1.xpose.msra.mxu0 0.0
      %3333 = vmatprep.subr.mxu0 0.0
      %3334 = vmatpush1.xpose.msra.mxu0 0.0
      %3335 = vmatprep.subr.mxu0 0.0
      %3336 = vmatpush1.xpose.msra.mxu0 0.0
      %3337 = vmatprep.subr.mxu0 0.0
      %3338 = vmatpush1.xpose.msra.mxu0 0.0
      %3339 = vmatprep.subr.mxu0 0.0
      %3340 = vmatpush1.xpose.msra.mxu0 0.0
      %3341 = vmatprep.subr.mxu0 0.0
      %3342 = vmatpush1.xpose.msra.mxu0 0.0
      %3343 = vmatprep.subr.mxu0 0.0
      %3344 = vmatpush1.xpose.msra.mxu0 0.0
      %3345 = vmatprep.subr.mxu0 0.0
      %3346 = vmatpush1.xpose.msra.mxu0 0.0
      %3347 = vmatprep.subr.mxu0 0.0
      %3348 = vmatpush1.xpose.msra.mxu0 0.0
      %3349 = vmatprep.subr.mxu0 0.0
      %3350 = vmatpush1.xpose.msra.mxu0 0.0
      %3351 = vmatprep.subr.mxu0 0.0
      %3352 = vmatpush1.xpose.msra.mxu0 0.0
      %3353 = vmatprep.mubr.f32.mxu0 0.0
      %3354 = vmatmul.mubr.f32.gmra.mrb[0].mxu0 %v3257
      %v3355 = vpop.f32.mrb[0].mxu0
      %v3356 = vadd.f32 %v3217, %v3355
      %v3357 = vpop.f32.mrb[0].mxu0
      %3358 = vmatprep.mubr.f32.mxu0 0.0
      %3359 = vmatmul.mubr.f32.gmra.mrb[0].mxu0 %v3259
      %v3360 = vpop.f32.mrb[0].mxu0
      %v3361 = vadd.f32 %v3218, %v3360
      %v3362 = vpop.f32.mrb[0].mxu0
      %3363 = vmatprep.mubr.f32.mxu0 0.0
      %3364 = vmatmul.mubr.f32.gmra.mrb[0].mxu0 %v3261
      %v3365 = vpop.f32.mrb[0].mxu0
      %v3366 = vadd.f32 %v3219, %v3365
      %v3367 = vpop.f32.mrb[0].mxu0
      %3368 = vmatprep.mubr.f32.mxu0 0.0
      %3369 = vmatmul.mubr.f32.gmra.mrb[0].mxu0 %v3263
      %v3370 = vpop.f32.mrb[0].mxu0
      %v3371 = vadd.f32 %v3220, %v3370
      %v3372 = vpop.f32.mrb[0].mxu0
      %3373 = vmatprep.mubr.f32.mxu0 0.0
      %3374 = vmatmul.mubr.f32.gmra.mrb[0].mxu0 %v3265
      %v3375 = vpop.f32.mrb[0].mxu0
      %v3376 = vadd.f32 %v3221, %v3375
      %v3377 = vpop.f32.mrb[0].mxu0
      %3378 = vmatprep.mubr.f32.mxu0 0.0
      %3379 = vmatmul.mubr.f32.gmra.mrb[0].mxu0 %v3267
      %v3380 = vpop.f32.mrb[0].mxu0
      %v3381 = vadd.f32 %v3222, %v3380
      %v3382 = vpop.f32.mrb[0].mxu0
      %3383 = vmatprep.mubr.f32.mxu0 0.0
      %3384 = vmatmul.mubr.f32.gmra.mrb[0].mxu0 %v3269
      %v3385 = vpop.f32.mrb[0].mxu0
      %v3386 = vadd.f32 %v3223, %v3385
      %v3387 = vpop.f32.mrb[0].mxu0
      %3388 = vmatprep.mubr.f32.mxu0 0.0
      %3389 = vmatmul.mubr.f32.gmra.mrb[0].mxu0 %v3271
      %v3390 = vpop.f32.mrb[0].mxu0
      %v3391 = vadd.f32 %v3224, %v3390
      %v3392 = vpop.f32.mrb[0].mxu0
      %3393 = vdwg.mxu0
      %v3394 = vsel %vm795, %v3356, -inf
      %3395 = vmax.xlane.f32.xlu0 %v3394
      %v3396 = vpop.xlane.xlu0 %3395
      %v3397 = vsel %vm795, %v3361, -inf
      %3398 = vmax.xlane.f32.xlu0 %v3397
      %v3399 = vpop.xlane.xlu0 %3398
      %v3400 = vsel %vm795, %v3366, -inf
      %3401 = vmax.xlane.f32.xlu0 %v3400
      %v3402 = vpop.xlane.xlu0 %3401
      %v3403 = vsel %vm795, %v3371, -inf
      %3404 = vmax.xlane.f32.xlu0 %v3403
      %v3405 = vpop.xlane.xlu0 %3404
      %v3406 = vsel %vm795, %v3376, -inf
      %3407 = vmax.xlane.f32.xlu0 %v3406
      %v3408 = vpop.xlane.xlu0 %3407
      %v3409 = vsel %vm795, %v3381, -inf
      %3410 = vmax.xlane.f32.xlu0 %v3409
      %v3411 = vpop.xlane.xlu0 %3410
      %v3412 = vsel %vm795, %v3386, -inf
      %3413 = vmax.xlane.f32.xlu0 %v3412
      %v3414 = vpop.xlane.xlu0 %3413
      %v3415 = vsel %vm795, %v3391, -inf
      %3416 = vmax.xlane.f32.xlu0 %v3415
      %v3417 = vpop.xlane.xlu0 %3416
      %v3418 = vsub.f32 %v3356, %v3396
      %v3419 = vsub.f32 %v3361, %v3399
      %v3420 = vsub.f32 %v3366, %v3402
      %v3421 = vsub.f32 %v3371, %v3405
      %v3422 = vsub.f32 %v3376, %v3408
      %v3423 = vsub.f32 %v3381, %v3411
      %v3424 = vsub.f32 %v3386, %v3414
      %v3425 = vsub.f32 %v3391, %v3417
      %v3426 = vmul.f32 %v3418, 1.442695
      %v3427 = vpow.pop %v3426
      %v3428 = vmul.f32 %v3419, 1.442695
      %v3429 = vpow.pop %v3428
      %v3430 = vmul.f32 %v3420, 1.442695
      %v3431 = vpow.pop %v3430
      %v3432 = vmul.f32 %v3421, 1.442695
      %v3433 = vpow.pop %v3432
      %v3434 = vmul.f32 %v3422, 1.442695
      %v3435 = vpow.pop %v3434
      %v3436 = vmul.f32 %v3423, 1.442695
      %v3437 = vpow.pop %v3436
      %v3438 = vmul.f32 %v3424, 1.442695
      %v3439 = vpow.pop %v3438
      %v3440 = vmul.f32 %v3425, 1.442695
      %v3441 = vpow.pop %v3440
      %v3442 = vsel %vm795, %v3427, 0.0
      %3443 = vadd.xlane.f32.xlu0 %v3442
      %v3444 = vpop.xlane.xlu0 %3443
      %v3445 = vsel %vm795, %v3429, 0.0
      %3446 = vadd.xlane.f32.xlu0 %v3445
      %v3447 = vpop.xlane.xlu0 %3446
      %v3448 = vsel %vm795, %v3431, 0.0
      %3449 = vadd.xlane.f32.xlu0 %v3448
      %v3450 = vpop.xlane.xlu0 %3449
      %v3451 = vsel %vm795, %v3433, 0.0
      %3452 = vadd.xlane.f32.xlu0 %v3451
      %v3453 = vpop.xlane.xlu0 %3452
      %v3454 = vsel %vm795, %v3435, 0.0
      %3455 = vadd.xlane.f32.xlu0 %v3454
      %v3456 = vpop.xlane.xlu0 %3455
      %v3457 = vsel %vm795, %v3437, 0.0
      %3458 = vadd.xlane.f32.xlu0 %v3457
      %v3459 = vpop.xlane.xlu0 %3458
      %v3460 = vsel %vm795, %v3439, 0.0
      %3461 = vadd.xlane.f32.xlu0 %v3460
      %v3462 = vpop.xlane.xlu0 %3461
      %v3463 = vsel %vm795, %v3441, 0.0
      %3464 = vadd.xlane.f32.xlu0 %v3463
      %v3465 = vpop.xlane.xlu0 %3464
      %3466 = vrot.lane.b32.xlu0 %v547, 56
      %v3467 = vpop.permute.xlu0 %3466
      %3468 = vrot.lane.b32.xlu0 %v552, 56
      %v3469 = vpop.permute.xlu0 %3468
      %3470 = vrot.lane.b32.xlu0 %v557, 56
      %v3471 = vpop.permute.xlu0 %3470
      %3472 = vrot.lane.b32.xlu0 %v562, 56
      %v3473 = vpop.permute.xlu0 %3472
      %3474 = vrot.lane.b32.xlu0 %v567, 56
      %v3475 = vpop.permute.xlu0 %3474
      %3476 = vrot.lane.b32.xlu0 %v572, 56
      %v3477 = vpop.permute.xlu0 %3476
      %3478 = vrot.lane.b32.xlu0 %v577, 56
      %v3479 = vpop.permute.xlu0 %3478
      %3480 = vrot.lane.b32.xlu0 %v582, 56
      %v3481 = vpop.permute.xlu0 %3480
      %v3491 = vsel %vm795, %v3427, 0
      %v3494 = vsel %vm795, %v3429, 0
      %v3497 = vsel %vm795, %v3431, 0
      %v3500 = vsel %vm795, %v3433, 0
      %v3503 = vsel %vm795, %v3435, 0
      %v3506 = vsel %vm795, %v3437, 0
      %v3509 = vsel %vm795, %v3439, 0
      %v3512 = vsel %vm795, %v3441, 0
      %3514 = vmatprep.subr.mxu0 0.0
      %3515 = vmatpush1.msra.mxu0 %v3467
      %3516 = vmatprep.subr.mxu0 0.0
      %3517 = vmatpush1.msra.mxu0 %v3469
      %3518 = vmatprep.subr.mxu0 0.0
      %3519 = vmatpush1.msra.mxu0 %v3471
      %3520 = vmatprep.subr.mxu0 0.0
      %3521 = vmatpush1.msra.mxu0 %v3473
      %3522 = vmatprep.subr.mxu0 0.0
      %3523 = vmatpush1.msra.mxu0 %v3475
      %3524 = vmatprep.subr.mxu0 0.0
      %3525 = vmatpush1.msra.mxu0 %v3477
      %3526 = vmatprep.subr.mxu0 0.0
      %3527 = vmatpush1.msra.mxu0 %v3479
      %3528 = vmatprep.subr.mxu0 0.0
      %3529 = vmatpush1.msra.mxu0 %v3481
      %3530 = vmatprep.subr.mxu0 0.0
      %3531 = vmatpush1.msra.mxu0 0.0
      %3532 = vmatprep.subr.mxu0 0.0
      %3533 = vmatpush1.msra.mxu0 0.0
      %3534 = vmatprep.subr.mxu0 0.0
      %3535 = vmatpush1.msra.mxu0 0.0
      %3536 = vmatprep.subr.mxu0 0.0
      %3537 = vmatpush1.msra.mxu0 0.0
      %3538 = vmatprep.subr.mxu0 0.0
      %3539 = vmatpush1.msra.mxu0 0.0
      %3540 = vmatprep.subr.mxu0 0.0
      %3541 = vmatpush1.msra.mxu0 0.0
      %3542 = vmatprep.subr.mxu0 0.0
      %3543 = vmatpush1.msra.mxu0 0.0
      %3544 = vmatprep.subr.mxu0 0.0
      %3545 = vmatpush1.msra.mxu0 0.0
      %3546 = vmatprep.subr.mxu0 0.0
      %3547 = vmatpush1.msra.mxu0 0.0
      %3548 = vmatprep.subr.mxu0 0.0
      %3549 = vmatpush1.msra.mxu0 0.0
      %3550 = vmatprep.subr.mxu0 0.0
      %3551 = vmatpush1.msra.mxu0 0.0
      %3552 = vmatprep.subr.mxu0 0.0
      %3553 = vmatpush1.msra.mxu0 0.0
      %3554 = vmatprep.subr.mxu0 0.0
      %3555 = vmatpush1.msra.mxu0 0.0
      %3556 = vmatprep.subr.mxu0 0.0
      %3557 = vmatpush1.msra.mxu0 0.0
      %3558 = vmatprep.subr.mxu0 0.0
      %3559 = vmatpush1.msra.mxu0 0.0
      %3560 = vmatprep.subr.mxu0 0.0
      %3561 = vmatpush1.msra.mxu0 0.0
      %3562 = vmatprep.subr.mxu0 0.0
      %3563 = vmatpush1.msra.mxu0 0.0
      %3564 = vmatprep.subr.mxu0 0.0
      %3565 = vmatpush1.msra.mxu0 0.0
      %3566 = vmatprep.subr.mxu0 0.0
      %3567 = vmatpush1.msra.mxu0 0.0
      %3568 = vmatprep.subr.mxu0 0.0
      %3569 = vmatpush1.msra.mxu0 0.0
      %3570 = vmatprep.subr.mxu0 0.0
      %3571 = vmatpush1.msra.mxu0 0.0
      %3572 = vmatprep.subr.mxu0 0.0
      %3573 = vmatpush1.msra.mxu0 0.0
      %3574 = vmatprep.subr.mxu0 0.0
      %3575 = vmatpush1.msra.mxu0 0.0
      %3576 = vmatprep.subr.mxu0 0.0
      %3577 = vmatpush1.msra.mxu0 0.0
      %3578 = vmatprep.mubr.f32.mxu0 0.0
      %3579 = vmatmul.mubr.f32.gmra.mrb[0].mxu0 %v3491
      %v3580 = vpop.f32.mrb[0].mxu0
      %v3581 = vadd.f32 0.0, %v3580
      %v3582 = vpop.f32.mrb[0].mxu0
      %3583 = vmatprep.mubr.f32.mxu0 0.0
      %3584 = vmatmul.mubr.f32.gmra.mrb[0].mxu0 %v3494
      %v3585 = vpop.f32.mrb[0].mxu0
      %v3586 = vadd.f32 0.0, %v3585
      %v3587 = vpop.f32.mrb[0].mxu0
      %3588 = vmatprep.mubr.f32.mxu0 0.0
      %3589 = vmatmul.mubr.f32.gmra.mrb[0].mxu0 %v3497
      %v3590 = vpop.f32.mrb[0].mxu0
      %v3591 = vadd.f32 0.0, %v3590
      %v3592 = vpop.f32.mrb[0].mxu0
      %3593 = vmatprep.mubr.f32.mxu0 0.0
      %3594 = vmatmul.mubr.f32.gmra.mrb[0].mxu0 %v3500
      %v3595 = vpop.f32.mrb[0].mxu0
      %v3596 = vadd.f32 0.0, %v3595
      %v3597 = vpop.f32.mrb[0].mxu0
      %3598 = vmatprep.mubr.f32.mxu0 0.0
      %3599 = vmatmul.mubr.f32.gmra.mrb[0].mxu0 %v3503
      %v3600 = vpop.f32.mrb[0].mxu0
      %v3601 = vadd.f32 0.0, %v3600
      %v3602 = vpop.f32.mrb[0].mxu0
      %3603 = vmatprep.mubr.f32.mxu0 0.0
      %3604 = vmatmul.mubr.f32.gmra.mrb[0].mxu0 %v3506
      %v3605 = vpop.f32.mrb[0].mxu0
      %v3606 = vadd.f32 0.0, %v3605
      %v3607 = vpop.f32.mrb[0].mxu0
      %3608 = vmatprep.mubr.f32.mxu0 0.0
      %3609 = vmatmul.mubr.f32.gmra.mrb[0].mxu0 %v3509
      %v3610 = vpop.f32.mrb[0].mxu0
      %v3611 = vadd.f32 0.0, %v3610
      %v3612 = vpop.f32.mrb[0].mxu0
      %3613 = vmatprep.mubr.f32.mxu0 0.0
      %3614 = vmatmul.mubr.f32.gmra.mrb[0].mxu0 %v3512
      %v3615 = vpop.f32.mrb[0].mxu0
      %v3616 = vadd.f32 0.0, %v3615
      %v3617 = vpop.f32.mrb[0].mxu0
      %3618 = vdwg.mxu0
      %v3619 = vrcp.pop %v3444
      %v3620 = vrcp.pop %v3447
      %v3621 = vrcp.pop %v3450
      %v3622 = vrcp.pop %v3453
      %v3623 = vrcp.pop %v3456
      %v3624 = vrcp.pop %v3459
      %v3625 = vrcp.pop %v3462
      %v3626 = vrcp.pop %v3465
      %v3627 = vmul.f32 %v3581, %v3619
      %v3628 = vmul.f32 %v3586, %v3620
      %v3629 = vmul.f32 %v3591, %v3621
      %v3630 = vmul.f32 %v3596, %v3622
      %v3631 = vmul.f32 %v3601, %v3623
      %v3632 = vmul.f32 %v3606, %v3624
      %v3633 = vmul.f32 %v3611, %v3625
      %v3634 = vmul.f32 %v3616, %v3626
      %3643 = vrot.lane.b32.xlu0 %v3627, 8
      %v3644 = vpop.permute.xlu0 %3643
      %3645 = vrot.lane.b32.xlu0 %v3628, 8
      %v3646 = vpop.permute.xlu0 %3645
      %3647 = vrot.lane.b32.xlu0 %v3629, 8
      %v3648 = vpop.permute.xlu0 %3647
      %3649 = vrot.lane.b32.xlu0 %v3630, 8
      %v3650 = vpop.permute.xlu0 %3649
      %3651 = vrot.lane.b32.xlu0 %v3631, 8
      %v3652 = vpop.permute.xlu0 %3651
      %3653 = vrot.lane.b32.xlu0 %v3632, 8
      %v3654 = vpop.permute.xlu0 %3653
      %3655 = vrot.lane.b32.xlu0 %v3633, 8
      %v3656 = vpop.permute.xlu0 %3655
      %3657 = vrot.lane.b32.xlu0 %v3634, 8
      %v3658 = vpop.permute.xlu0 %3657
      %3667 = vst.msk [vmem:[#allocation2 + $0x80] sm:$0xff] %vm2750, %v3644
      %3668 = vst.msk [vmem:[#allocation2 + $0x88] sm:$0xff] %vm2750, %v3646
      %3669 = vst.msk [vmem:[#allocation2 + $0x90] sm:$0xff] %vm2750, %v3648
      %3670 = vst.msk [vmem:[#allocation2 + $0x98] sm:$0xff] %vm2750, %v3650
      %3671 = vst.msk [vmem:[#allocation2 + $0xa0] sm:$0xff] %vm2750, %v3652
      %3672 = vst.msk [vmem:[#allocation2 + $0xa8] sm:$0xff] %vm2750, %v3654
      %3673 = vst.msk [vmem:[#allocation2 + $0xb0] sm:$0xff] %vm2750, %v3656
      %3674 = vst.msk [vmem:[#allocation2 + $0xb8] sm:$0xff] %vm2750, %v3658
      %v3675 = vld [vmem:[%s2299] sm:$0xff]
      %v3676 = vld [vmem:[%s2299 + $0x8] sm:$0xff]
      %v3677 = vld [vmem:[%s2299 + $0x10] sm:$0xff]
      %v3678 = vld [vmem:[%s2299 + $0x18] sm:$0xff]
      %v3679 = vld [vmem:[%s2299 + $0x20] sm:$0xff]
      %v3680 = vld [vmem:[%s2299 + $0x28] sm:$0xff]
      %v3681 = vld [vmem:[%s2299 + $0x30] sm:$0xff]
      %v3682 = vld [vmem:[%s2299 + $0x38] sm:$0xff]
      %3683 = vrot.lane.b32.xlu0 %v587, 120
      %v3684 = vpop.permute.xlu0 %3683
      %3685 = vrot.lane.b32.xlu0 %v592, 120
      %v3686 = vpop.permute.xlu0 %3685
      %3687 = vrot.lane.b32.xlu0 %v597, 120
      %v3688 = vpop.permute.xlu0 %3687
      %3689 = vrot.lane.b32.xlu0 %v602, 120
      %v3690 = vpop.permute.xlu0 %3689
      %3691 = vrot.lane.b32.xlu0 %v607, 120
      %v3692 = vpop.permute.xlu0 %3691
      %3693 = vrot.lane.b32.xlu0 %v612, 120
      %v3694 = vpop.permute.xlu0 %3693
      %3695 = vrot.lane.b32.xlu0 %v617, 120
      %v3696 = vpop.permute.xlu0 %3695
      %3697 = vrot.lane.b32.xlu0 %v622, 120
      %v3698 = vpop.permute.xlu0 %3697
      %3699 = vrot.lane.b32.xlu0 %v587, 88
      %v3700 = vpop.permute.xlu0 %3699
      %3701 = vrot.lane.b32.xlu0 %v592, 88
      %v3702 = vpop.permute.xlu0 %3701
      %3703 = vrot.lane.b32.xlu0 %v597, 88
      %v3704 = vpop.permute.xlu0 %3703
      %3705 = vrot.lane.b32.xlu0 %v602, 88
      %v3706 = vpop.permute.xlu0 %3705
      %3707 = vrot.lane.b32.xlu0 %v607, 88
      %v3708 = vpop.permute.xlu0 %3707
      %3709 = vrot.lane.b32.xlu0 %v612, 88
      %v3710 = vpop.permute.xlu0 %3709
      %3711 = vrot.lane.b32.xlu0 %v617, 88
      %v3712 = vpop.permute.xlu0 %3711
      %3713 = vrot.lane.b32.xlu0 %v622, 88
      %v3714 = vpop.permute.xlu0 %3713
      %v3715 = vsel %vm657, %v3684, 0
      %v3717 = vsel %vm657, %v3686, 0
      %v3719 = vsel %vm657, %v3688, 0
      %v3721 = vsel %vm657, %v3690, 0
      %v3723 = vsel %vm657, %v3692, 0
      %v3725 = vsel %vm657, %v3694, 0
      %v3727 = vsel %vm657, %v3696, 0
      %v3729 = vsel %vm657, %v3698, 0
      %v3731 = vsel %vm657, %v3700, 0
      %v3733 = vsel %vm657, %v3702, 0
      %v3735 = vsel %vm657, %v3704, 0
      %v3737 = vsel %vm657, %v3706, 0
      %v3739 = vsel %vm657, %v3708, 0
      %v3741 = vsel %vm657, %v3710, 0
      %v3743 = vsel %vm657, %v3712, 0
      %v3745 = vsel %vm657, %v3714, 0
      %3747 = vmatprep.subr.mxu0 0.0
      %3748 = vmatpush1.xpose.msra.mxu0 %v3731
      %3749 = vmatprep.subr.mxu0 0.0
      %3750 = vmatpush1.xpose.msra.mxu0 %v3733
      %3751 = vmatprep.subr.mxu0 0.0
      %3752 = vmatpush1.xpose.msra.mxu0 %v3735
      %3753 = vmatprep.subr.mxu0 0.0
      %3754 = vmatpush1.xpose.msra.mxu0 %v3737
      %3755 = vmatprep.subr.mxu0 0.0
      %3756 = vmatpush1.xpose.msra.mxu0 %v3739
      %3757 = vmatprep.subr.mxu0 0.0
      %3758 = vmatpush1.xpose.msra.mxu0 %v3741
      %3759 = vmatprep.subr.mxu0 0.0
      %3760 = vmatpush1.xpose.msra.mxu0 %v3743
      %3761 = vmatprep.subr.mxu0 0.0
      %3762 = vmatpush1.xpose.msra.mxu0 %v3745
      %3763 = vmatprep.subr.mxu0 0.0
      %3764 = vmatpush1.xpose.msra.mxu0 0.0
      %3765 = vmatprep.subr.mxu0 0.0
      %3766 = vmatpush1.xpose.msra.mxu0 0.0
      %3767 = vmatprep.subr.mxu0 0.0
      %3768 = vmatpush1.xpose.msra.mxu0 0.0
      %3769 = vmatprep.subr.mxu0 0.0
      %3770 = vmatpush1.xpose.msra.mxu0 0.0
      %3771 = vmatprep.subr.mxu0 0.0
      %3772 = vmatpush1.xpose.msra.mxu0 0.0
      %3773 = vmatprep.subr.mxu0 0.0
      %3774 = vmatpush1.xpose.msra.mxu0 0.0
      %3775 = vmatprep.subr.mxu0 0.0
      %3776 = vmatpush1.xpose.msra.mxu0 0.0
      %3777 = vmatprep.subr.mxu0 0.0
      %3778 = vmatpush1.xpose.msra.mxu0 0.0
      %3779 = vmatprep.subr.mxu0 0.0
      %3780 = vmatpush1.xpose.msra.mxu0 0.0
      %3781 = vmatprep.subr.mxu0 0.0
      %3782 = vmatpush1.xpose.msra.mxu0 0.0
      %3783 = vmatprep.subr.mxu0 0.0
      %3784 = vmatpush1.xpose.msra.mxu0 0.0
      %3785 = vmatprep.subr.mxu0 0.0
      %3786 = vmatpush1.xpose.msra.mxu0 0.0
      %3787 = vmatprep.subr.mxu0 0.0
      %3788 = vmatpush1.xpose.msra.mxu0 0.0
      %3789 = vmatprep.subr.mxu0 0.0
      %3790 = vmatpush1.xpose.msra.mxu0 0.0
      %3791 = vmatprep.subr.mxu0 0.0
      %3792 = vmatpush1.xpose.msra.mxu0 0.0
      %3793 = vmatprep.subr.mxu0 0.0
      %3794 = vmatpush1.xpose.msra.mxu0 0.0
      %3795 = vmatprep.subr.mxu0 0.0
      %3796 = vmatpush1.xpose.msra.mxu0 0.0
      %3797 = vmatprep.subr.mxu0 0.0
      %3798 = vmatpush1.xpose.msra.mxu0 0.0
      %3799 = vmatprep.subr.mxu0 0.0
      %3800 = vmatpush1.xpose.msra.mxu0 0.0
      %3801 = vmatprep.subr.mxu0 0.0
      %3802 = vmatpush1.xpose.msra.mxu0 0.0
      %3803 = vmatprep.subr.mxu0 0.0
      %3804 = vmatpush1.xpose.msra.mxu0 0.0
      %3805 = vmatprep.subr.mxu0 0.0
      %3806 = vmatpush1.xpose.msra.mxu0 0.0
      %3807 = vmatprep.subr.mxu0 0.0
      %3808 = vmatpush1.xpose.msra.mxu0 0.0
      %3809 = vmatprep.subr.mxu0 0.0
      %3810 = vmatpush1.xpose.msra.mxu0 0.0
      %3811 = vmatprep.mubr.f32.mxu0 0.0
      %3812 = vmatmul.mubr.f32.gmra.mrb[0].mxu0 %v3715
      %v3813 = vpop.f32.mrb[0].mxu0
      %v3814 = vadd.f32 %v3675, %v3813
      %v3815 = vpop.f32.mrb[0].mxu0
      %3816 = vmatprep.mubr.f32.mxu0 0.0
      %3817 = vmatmul.mubr.f32.gmra.mrb[0].mxu0 %v3717
      %v3818 = vpop.f32.mrb[0].mxu0
      %v3819 = vadd.f32 %v3676, %v3818
      %v3820 = vpop.f32.mrb[0].mxu0
      %3821 = vmatprep.mubr.f32.mxu0 0.0
      %3822 = vmatmul.mubr.f32.gmra.mrb[0].mxu0 %v3719
      %v3823 = vpop.f32.mrb[0].mxu0
      %v3824 = vadd.f32 %v3677, %v3823
      %v3825 = vpop.f32.mrb[0].mxu0
      %3826 = vmatprep.mubr.f32.mxu0 0.0
      %3827 = vmatmul.mubr.f32.gmra.mrb[0].mxu0 %v3721
      %v3828 = vpop.f32.mrb[0].mxu0
      %v3829 = vadd.f32 %v3678, %v3828
      %v3830 = vpop.f32.mrb[0].mxu0
      %3831 = vmatprep.mubr.f32.mxu0 0.0
      %3832 = vmatmul.mubr.f32.gmra.mrb[0].mxu0 %v3723
      %v3833 = vpop.f32.mrb[0].mxu0
      %v3834 = vadd.f32 %v3679, %v3833
      %v3835 = vpop.f32.mrb[0].mxu0
      %3836 = vmatprep.mubr.f32.mxu0 0.0
      %3837 = vmatmul.mubr.f32.gmra.mrb[0].mxu0 %v3725
      %v3838 = vpop.f32.mrb[0].mxu0
      %v3839 = vadd.f32 %v3680, %v3838
      %v3840 = vpop.f32.mrb[0].mxu0
      %3841 = vmatprep.mubr.f32.mxu0 0.0
      %3842 = vmatmul.mubr.f32.gmra.mrb[0].mxu0 %v3727
      %v3843 = vpop.f32.mrb[0].mxu0
      %v3844 = vadd.f32 %v3681, %v3843
      %v3845 = vpop.f32.mrb[0].mxu0
      %3846 = vmatprep.mubr.f32.mxu0 0.0
      %3847 = vmatmul.mubr.f32.gmra.mrb[0].mxu0 %v3729
      %v3848 = vpop.f32.mrb[0].mxu0
      %v3849 = vadd.f32 %v3682, %v3848
      %v3850 = vpop.f32.mrb[0].mxu0
      %3851 = vdwg.mxu0
      %v3852 = vsel %vm795, %v3814, -inf
      %3853 = vmax.xlane.f32.xlu0 %v3852
      %v3854 = vpop.xlane.xlu0 %3853
      %v3855 = vsel %vm795, %v3819, -inf
      %3856 = vmax.xlane.f32.xlu0 %v3855
      %v3857 = vpop.xlane.xlu0 %3856
      %v3858 = vsel %vm795, %v3824, -inf
      %3859 = vmax.xlane.f32.xlu0 %v3858
      %v3860 = vpop.xlane.xlu0 %3859
      %v3861 = vsel %vm795, %v3829, -inf
      %3862 = vmax.xlane.f32.xlu0 %v3861
      %v3863 = vpop.xlane.xlu0 %3862
      %v3864 = vsel %vm795, %v3834, -inf
      %3865 = vmax.xlane.f32.xlu0 %v3864
      %v3866 = vpop.xlane.xlu0 %3865
      %v3867 = vsel %vm795, %v3839, -inf
      %3868 = vmax.xlane.f32.xlu0 %v3867
      %v3869 = vpop.xlane.xlu0 %3868
      %v3870 = vsel %vm795, %v3844, -inf
      %3871 = vmax.xlane.f32.xlu0 %v3870
      %v3872 = vpop.xlane.xlu0 %3871
      %v3873 = vsel %vm795, %v3849, -inf
      %3874 = vmax.xlane.f32.xlu0 %v3873
      %v3875 = vpop.xlane.xlu0 %3874
      %v3876 = vsub.f32 %v3814, %v3854
      %v3877 = vsub.f32 %v3819, %v3857
      %v3878 = vsub.f32 %v3824, %v3860
      %v3879 = vsub.f32 %v3829, %v3863
      %v3880 = vsub.f32 %v3834, %v3866
      %v3881 = vsub.f32 %v3839, %v3869
      %v3882 = vsub.f32 %v3844, %v3872
      %v3883 = vsub.f32 %v3849, %v3875
      %v3884 = vmul.f32 %v3876, 1.442695
      %v3885 = vpow.pop %v3884
      %v3886 = vmul.f32 %v3877, 1.442695
      %v3887 = vpow.pop %v3886
      %v3888 = vmul.f32 %v3878, 1.442695
      %v3889 = vpow.pop %v3888
      %v3890 = vmul.f32 %v3879, 1.442695
      %v3891 = vpow.pop %v3890
      %v3892 = vmul.f32 %v3880, 1.442695
      %v3893 = vpow.pop %v3892
      %v3894 = vmul.f32 %v3881, 1.442695
      %v3895 = vpow.pop %v3894
      %v3896 = vmul.f32 %v3882, 1.442695
      %v3897 = vpow.pop %v3896
      %v3898 = vmul.f32 %v3883, 1.442695
      %v3899 = vpow.pop %v3898
      %v3900 = vsel %vm795, %v3885, 0.0
      %3901 = vadd.xlane.f32.xlu0 %v3900
      %v3902 = vpop.xlane.xlu0 %3901
      %v3903 = vsel %vm795, %v3887, 0.0
      %3904 = vadd.xlane.f32.xlu0 %v3903
      %v3905 = vpop.xlane.xlu0 %3904
      %v3906 = vsel %vm795, %v3889, 0.0
      %3907 = vadd.xlane.f32.xlu0 %v3906
      %v3908 = vpop.xlane.xlu0 %3907
      %v3909 = vsel %vm795, %v3891, 0.0
      %3910 = vadd.xlane.f32.xlu0 %v3909
      %v3911 = vpop.xlane.xlu0 %3910
      %v3912 = vsel %vm795, %v3893, 0.0
      %3913 = vadd.xlane.f32.xlu0 %v3912
      %v3914 = vpop.xlane.xlu0 %3913
      %v3915 = vsel %vm795, %v3895, 0.0
      %3916 = vadd.xlane.f32.xlu0 %v3915
      %v3917 = vpop.xlane.xlu0 %3916
      %v3918 = vsel %vm795, %v3897, 0.0
      %3919 = vadd.xlane.f32.xlu0 %v3918
      %v3920 = vpop.xlane.xlu0 %3919
      %v3921 = vsel %vm795, %v3899, 0.0
      %3922 = vadd.xlane.f32.xlu0 %v3921
      %v3923 = vpop.xlane.xlu0 %3922
      %3924 = vrot.lane.b32.xlu0 %v587, 56
      %v3925 = vpop.permute.xlu0 %3924
      %3926 = vrot.lane.b32.xlu0 %v592, 56
      %v3927 = vpop.permute.xlu0 %3926
      %3928 = vrot.lane.b32.xlu0 %v597, 56
      %v3929 = vpop.permute.xlu0 %3928
      %3930 = vrot.lane.b32.xlu0 %v602, 56
      %v3931 = vpop.permute.xlu0 %3930
      %3932 = vrot.lane.b32.xlu0 %v607, 56
      %v3933 = vpop.permute.xlu0 %3932
      %3934 = vrot.lane.b32.xlu0 %v612, 56
      %v3935 = vpop.permute.xlu0 %3934
      %3936 = vrot.lane.b32.xlu0 %v617, 56
      %v3937 = vpop.permute.xlu0 %3936
      %3938 = vrot.lane.b32.xlu0 %v622, 56
      %v3939 = vpop.permute.xlu0 %3938
      %v3949 = vsel %vm795, %v3885, 0
      %v3952 = vsel %vm795, %v3887, 0
      %v3955 = vsel %vm795, %v3889, 0
      %v3958 = vsel %vm795, %v3891, 0
      %v3961 = vsel %vm795, %v3893, 0
      %v3964 = vsel %vm795, %v3895, 0
      %v3967 = vsel %vm795, %v3897, 0
      %v3970 = vsel %vm795, %v3899, 0
      %3972 = vmatprep.subr.mxu0 0.0
      %3973 = vmatpush1.msra.mxu0 %v3925
      %3974 = vmatprep.subr.mxu0 0.0
      %3975 = vmatpush1.msra.mxu0 %v3927
      %3976 = vmatprep.subr.mxu0 0.0
      %3977 = vmatpush1.msra.mxu0 %v3929
      %3978 = vmatprep.subr.mxu0 0.0
      %3979 = vmatpush1.msra.mxu0 %v3931
      %3980 = vmatprep.subr.mxu0 0.0
      %3981 = vmatpush1.msra.mxu0 %v3933
      %3982 = vmatprep.subr.mxu0 0.0
      %3983 = vmatpush1.msra.mxu0 %v3935
      %3984 = vmatprep.subr.mxu0 0.0
      %3985 = vmatpush1.msra.mxu0 %v3937
      %3986 = vmatprep.subr.mxu0 0.0
      %3987 = vmatpush1.msra.mxu0 %v3939
      %3988 = vmatprep.subr.mxu0 0.0
      %3989 = vmatpush1.msra.mxu0 0.0
      %3990 = vmatprep.subr.mxu0 0.0
      %3991 = vmatpush1.msra.mxu0 0.0
      %3992 = vmatprep.subr.mxu0 0.0
      %3993 = vmatpush1.msra.mxu0 0.0
      %3994 = vmatprep.subr.mxu0 0.0
      %3995 = vmatpush1.msra.mxu0 0.0
      %3996 = vmatprep.subr.mxu0 0.0
      %3997 = vmatpush1.msra.mxu0 0.0
      %3998 = vmatprep.subr.mxu0 0.0
      %3999 = vmatpush1.msra.mxu0 0.0
      %4000 = vmatprep.subr.mxu0 0.0
      %4001 = vmatpush1.msra.mxu0 0.0
      %4002 = vmatprep.subr.mxu0 0.0
      %4003 = vmatpush1.msra.mxu0 0.0
      %4004 = vmatprep.subr.mxu0 0.0
      %4005 = vmatpush1.msra.mxu0 0.0
      %4006 = vmatprep.subr.mxu0 0.0
      %4007 = vmatpush1.msra.mxu0 0.0
      %4008 = vmatprep.subr.mxu0 0.0
      %4009 = vmatpush1.msra.mxu0 0.0
      %4010 = vmatprep.subr.mxu0 0.0
      %4011 = vmatpush1.msra.mxu0 0.0
      %4012 = vmatprep.subr.mxu0 0.0
      %4013 = vmatpush1.msra.mxu0 0.0
      %4014 = vmatprep.subr.mxu0 0.0
      %4015 = vmatpush1.msra.mxu0 0.0
      %4016 = vmatprep.subr.mxu0 0.0
      %4017 = vmatpush1.msra.mxu0 0.0
      %4018 = vmatprep.subr.mxu0 0.0
      %4019 = vmatpush1.msra.mxu0 0.0
      %4020 = vmatprep.subr.mxu0 0.0
      %4021 = vmatpush1.msra.mxu0 0.0
      %4022 = vmatprep.subr.mxu0 0.0
      %4023 = vmatpush1.msra.mxu0 0.0
      %4024 = vmatprep.subr.mxu0 0.0
      %4025 = vmatpush1.msra.mxu0 0.0
      %4026 = vmatprep.subr.mxu0 0.0
      %4027 = vmatpush1.msra.mxu0 0.0
      %4028 = vmatprep.subr.mxu0 0.0
      %4029 = vmatpush1.msra.mxu0 0.0
      %4030 = vmatprep.subr.mxu0 0.0
      %4031 = vmatpush1.msra.mxu0 0.0
      %4032 = vmatprep.subr.mxu0 0.0
      %4033 = vmatpush1.msra.mxu0 0.0
      %4034 = vmatprep.subr.mxu0 0.0
      %4035 = vmatpush1.msra.mxu0 0.0
      %4036 = vmatprep.mubr.f32.mxu0 0.0
      %4037 = vmatmul.mubr.f32.gmra.mrb[0].mxu0 %v3949
      %v4038 = vpop.f32.mrb[0].mxu0
      %v4039 = vadd.f32 0.0, %v4038
      %v4040 = vpop.f32.mrb[0].mxu0
      %4041 = vmatprep.mubr.f32.mxu0 0.0
      %4042 = vmatmul.mubr.f32.gmra.mrb[0].mxu0 %v3952
      %v4043 = vpop.f32.mrb[0].mxu0
      %v4044 = vadd.f32 0.0, %v4043
      %v4045 = vpop.f32.mrb[0].mxu0
      %4046 = vmatprep.mubr.f32.mxu0 0.0
      %4047 = vmatmul.mubr.f32.gmra.mrb[0].mxu0 %v3955
      %v4048 = vpop.f32.mrb[0].mxu0
      %v4049 = vadd.f32 0.0, %v4048
      %v4050 = vpop.f32.mrb[0].mxu0
      %4051 = vmatprep.mubr.f32.mxu0 0.0
      %4052 = vmatmul.mubr.f32.gmra.mrb[0].mxu0 %v3958
      %v4053 = vpop.f32.mrb[0].mxu0
      %v4054 = vadd.f32 0.0, %v4053
      %v4055 = vpop.f32.mrb[0].mxu0
      %4056 = vmatprep.mubr.f32.mxu0 0.0
      %4057 = vmatmul.mubr.f32.gmra.mrb[0].mxu0 %v3961
      %v4058 = vpop.f32.mrb[0].mxu0
      %v4059 = vadd.f32 0.0, %v4058
      %v4060 = vpop.f32.mrb[0].mxu0
      %4061 = vmatprep.mubr.f32.mxu0 0.0
      %4062 = vmatmul.mubr.f32.gmra.mrb[0].mxu0 %v3964
      %v4063 = vpop.f32.mrb[0].mxu0
      %v4064 = vadd.f32 0.0, %v4063
      %v4065 = vpop.f32.mrb[0].mxu0
      %4066 = vmatprep.mubr.f32.mxu0 0.0
      %4067 = vmatmul.mubr.f32.gmra.mrb[0].mxu0 %v3967
      %v4068 = vpop.f32.mrb[0].mxu0
      %v4069 = vadd.f32 0.0, %v4068
      %v4070 = vpop.f32.mrb[0].mxu0
      %4071 = vmatprep.mubr.f32.mxu0 0.0
      %4072 = vmatmul.mubr.f32.gmra.mrb[0].mxu0 %v3970
      %v4073 = vpop.f32.mrb[0].mxu0
      %v4074 = vadd.f32 0.0, %v4073
      %v4075 = vpop.f32.mrb[0].mxu0
      %4076 = vdwg.mxu0
      %v4077 = vrcp.pop %v3902
      %v4078 = vrcp.pop %v3905
      %v4079 = vrcp.pop %v3908
      %v4080 = vrcp.pop %v3911
      %v4081 = vrcp.pop %v3914
      %v4082 = vrcp.pop %v3917
      %v4083 = vrcp.pop %v3920
      %v4084 = vrcp.pop %v3923
      %v4085 = vmul.f32 %v4039, %v4077
      %v4086 = vmul.f32 %v4044, %v4078
      %v4087 = vmul.f32 %v4049, %v4079
      %v4088 = vmul.f32 %v4054, %v4080
      %v4089 = vmul.f32 %v4059, %v4081
      %v4090 = vmul.f32 %v4064, %v4082
      %v4091 = vmul.f32 %v4069, %v4083
      %v4092 = vmul.f32 %v4074, %v4084
      %4101 = vrot.lane.b32.xlu0 %v4085, 8
      %v4102 = vpop.permute.xlu0 %4101
      %4103 = vrot.lane.b32.xlu0 %v4086, 8
      %v4104 = vpop.permute.xlu0 %4103
      %4105 = vrot.lane.b32.xlu0 %v4087, 8
      %v4106 = vpop.permute.xlu0 %4105
      %4107 = vrot.lane.b32.xlu0 %v4088, 8
      %v4108 = vpop.permute.xlu0 %4107
      %4109 = vrot.lane.b32.xlu0 %v4089, 8
      %v4110 = vpop.permute.xlu0 %4109
      %4111 = vrot.lane.b32.xlu0 %v4090, 8
      %v4112 = vpop.permute.xlu0 %4111
      %4113 = vrot.lane.b32.xlu0 %v4091, 8
      %v4114 = vpop.permute.xlu0 %4113
      %4115 = vrot.lane.b32.xlu0 %v4092, 8
      %v4116 = vpop.permute.xlu0 %4115
      %4125 = vst.msk [vmem:[#allocation2 + $0xc0] sm:$0xff] %vm2750, %v4102
      %4126 = vst.msk [vmem:[#allocation2 + $0xc8] sm:$0xff] %vm2750, %v4104
      %4127 = vst.msk [vmem:[#allocation2 + $0xd0] sm:$0xff] %vm2750, %v4106
      %4128 = vst.msk [vmem:[#allocation2 + $0xd8] sm:$0xff] %vm2750, %v4108
      %4129 = vst.msk [vmem:[#allocation2 + $0xe0] sm:$0xff] %vm2750, %v4110
      %4130 = vst.msk [vmem:[#allocation2 + $0xe8] sm:$0xff] %vm2750, %v4112
      %4131 = vst.msk [vmem:[#allocation2 + $0xf0] sm:$0xff] %vm2750, %v4114
      %4132 = vst.msk [vmem:[#allocation2 + $0xf8] sm:$0xff] %vm2750, %v4116
      %s4133 = scalar_lea.vmem %s1, 128
      %v4134 = vld [vmem:[%s4133] sm:$0xff]
      %v4135 = vld [vmem:[%s4133 + $0x8] sm:$0xff]
      %v4136 = vld [vmem:[%s4133 + $0x10] sm:$0xff]
      %v4137 = vld [vmem:[%s4133 + $0x18] sm:$0xff]
      %v4138 = vld [vmem:[%s4133 + $0x20] sm:$0xff]
      %v4139 = vld [vmem:[%s4133 + $0x28] sm:$0xff]
      %v4140 = vld [vmem:[%s4133 + $0x30] sm:$0xff]
      %v4141 = vld [vmem:[%s4133 + $0x38] sm:$0xff]
      %4142 = vrot.lane.b32.xlu0 %v467, 112
      %v4143 = vpop.permute.xlu0 %4142
      %4144 = vrot.lane.b32.xlu0 %v472, 112
      %v4145 = vpop.permute.xlu0 %4144
      %4146 = vrot.lane.b32.xlu0 %v477, 112
      %v4147 = vpop.permute.xlu0 %4146
      %4148 = vrot.lane.b32.xlu0 %v482, 112
      %v4149 = vpop.permute.xlu0 %4148
      %4150 = vrot.lane.b32.xlu0 %v487, 112
      %v4151 = vpop.permute.xlu0 %4150
      %4152 = vrot.lane.b32.xlu0 %v492, 112
      %v4153 = vpop.permute.xlu0 %4152
      %4154 = vrot.lane.b32.xlu0 %v497, 112
      %v4155 = vpop.permute.xlu0 %4154
      %4156 = vrot.lane.b32.xlu0 %v502, 112
      %v4157 = vpop.permute.xlu0 %4156
      %4158 = vrot.lane.b32.xlu0 %v467, 80
      %v4159 = vpop.permute.xlu0 %4158
      %4160 = vrot.lane.b32.xlu0 %v472, 80
      %v4161 = vpop.permute.xlu0 %4160
      %4162 = vrot.lane.b32.xlu0 %v477, 80
      %v4163 = vpop.permute.xlu0 %4162
      %4164 = vrot.lane.b32.xlu0 %v482, 80
      %v4165 = vpop.permute.xlu0 %4164
      %4166 = vrot.lane.b32.xlu0 %v487, 80
      %v4167 = vpop.permute.xlu0 %4166
      %4168 = vrot.lane.b32.xlu0 %v492, 80
      %v4169 = vpop.permute.xlu0 %4168
      %4170 = vrot.lane.b32.xlu0 %v497, 80
      %v4171 = vpop.permute.xlu0 %4170
      %4172 = vrot.lane.b32.xlu0 %v502, 80
      %v4173 = vpop.permute.xlu0 %4172
      %v4174 = vsel %vm657, %v4143, 0
      %v4176 = vsel %vm657, %v4145, 0
      %v4178 = vsel %vm657, %v4147, 0
      %v4180 = vsel %vm657, %v4149, 0
      %v4182 = vsel %vm657, %v4151, 0
      %v4184 = vsel %vm657, %v4153, 0
      %v4186 = vsel %vm657, %v4155, 0
      %v4188 = vsel %vm657, %v4157, 0
      %v4190 = vsel %vm657, %v4159, 0
      %v4192 = vsel %vm657, %v4161, 0
      %v4194 = vsel %vm657, %v4163, 0
      %v4196 = vsel %vm657, %v4165, 0
      %v4198 = vsel %vm657, %v4167, 0
      %v4200 = vsel %vm657, %v4169, 0
      %v4202 = vsel %vm657, %v4171, 0
      %v4204 = vsel %vm657, %v4173, 0
      %4206 = vmatprep.subr.mxu0 0.0
      %4207 = vmatpush1.xpose.msra.mxu0 %v4190
      %4208 = vmatprep.subr.mxu0 0.0
      %4209 = vmatpush1.xpose.msra.mxu0 %v4192
      %4210 = vmatprep.subr.mxu0 0.0
      %4211 = vmatpush1.xpose.msra.mxu0 %v4194
      %4212 = vmatprep.subr.mxu0 0.0
      %4213 = vmatpush1.xpose.msra.mxu0 %v4196
      %4214 = vmatprep.subr.mxu0 0.0
      %4215 = vmatpush1.xpose.msra.mxu0 %v4198
      %4216 = vmatprep.subr.mxu0 0.0
      %4217 = vmatpush1.xpose.msra.mxu0 %v4200
      %4218 = vmatprep.subr.mxu0 0.0
      %4219 = vmatpush1.xpose.msra.mxu0 %v4202
      %4220 = vmatprep.subr.mxu0 0.0
      %4221 = vmatpush1.xpose.msra.mxu0 %v4204
      %4222 = vmatprep.subr.mxu0 0.0
      %4223 = vmatpush1.xpose.msra.mxu0 0.0
      %4224 = vmatprep.subr.mxu0 0.0
      %4225 = vmatpush1.xpose.msra.mxu0 0.0
      %4226 = vmatprep.subr.mxu0 0.0
      %4227 = vmatpush1.xpose.msra.mxu0 0.0
      %4228 = vmatprep.subr.mxu0 0.0
      %4229 = vmatpush1.xpose.msra.mxu0 0.0
      %4230 = vmatprep.subr.mxu0 0.0
      %4231 = vmatpush1.xpose.msra.mxu0 0.0
      %4232 = vmatprep.subr.mxu0 0.0
      %4233 = vmatpush1.xpose.msra.mxu0 0.0
      %4234 = vmatprep.subr.mxu0 0.0
      %4235 = vmatpush1.xpose.msra.mxu0 0.0
      %4236 = vmatprep.subr.mxu0 0.0
      %4237 = vmatpush1.xpose.msra.mxu0 0.0
      %4238 = vmatprep.subr.mxu0 0.0
      %4239 = vmatpush1.xpose.msra.mxu0 0.0
      %4240 = vmatprep.subr.mxu0 0.0
      %4241 = vmatpush1.xpose.msra.mxu0 0.0
      %4242 = vmatprep.subr.mxu0 0.0
      %4243 = vmatpush1.xpose.msra.mxu0 0.0
      %4244 = vmatprep.subr.mxu0 0.0
      %4245 = vmatpush1.xpose.msra.mxu0 0.0
      %4246 = vmatprep.subr.mxu0 0.0
      %4247 = vmatpush1.xpose.msra.mxu0 0.0
      %4248 = vmatprep.subr.mxu0 0.0
      %4249 = vmatpush1.xpose.msra.mxu0 0.0
      %4250 = vmatprep.subr.mxu0 0.0
      %4251 = vmatpush1.xpose.msra.mxu0 0.0
      %4252 = vmatprep.subr.mxu0 0.0
      %4253 = vmatpush1.xpose.msra.mxu0 0.0
      %4254 = vmatprep.subr.mxu0 0.0
      %4255 = vmatpush1.xpose.msra.mxu0 0.0
      %4256 = vmatprep.subr.mxu0 0.0
      %4257 = vmatpush1.xpose.msra.mxu0 0.0
      %4258 = vmatprep.subr.mxu0 0.0
      %4259 = vmatpush1.xpose.msra.mxu0 0.0
      %4260 = vmatprep.subr.mxu0 0.0
      %4261 = vmatpush1.xpose.msra.mxu0 0.0
      %4262 = vmatprep.subr.mxu0 0.0
      %4263 = vmatpush1.xpose.msra.mxu0 0.0
      %4264 = vmatprep.subr.mxu0 0.0
      %4265 = vmatpush1.xpose.msra.mxu0 0.0
      %4266 = vmatprep.subr.mxu0 0.0
      %4267 = vmatpush1.xpose.msra.mxu0 0.0
      %4268 = vmatprep.subr.mxu0 0.0
      %4269 = vmatpush1.xpose.msra.mxu0 0.0
      %4270 = vmatprep.mubr.f32.mxu0 0.0
      %4271 = vmatmul.mubr.f32.gmra.mrb[0].mxu0 %v4174
      %v4272 = vpop.f32.mrb[0].mxu0
      %v4273 = vadd.f32 %v4134, %v4272
      %v4274 = vpop.f32.mrb[0].mxu0
      %4275 = vmatprep.mubr.f32.mxu0 0.0
      %4276 = vmatmul.mubr.f32.gmra.mrb[0].mxu0 %v4176
      %v4277 = vpop.f32.mrb[0].mxu0
      %v4278 = vadd.f32 %v4135, %v4277
      %v4279 = vpop.f32.mrb[0].mxu0
      %4280 = vmatprep.mubr.f32.mxu0 0.0
      %4281 = vmatmul.mubr.f32.gmra.mrb[0].mxu0 %v4178
      %v4282 = vpop.f32.mrb[0].mxu0
      %v4283 = vadd.f32 %v4136, %v4282
      %v4284 = vpop.f32.mrb[0].mxu0
      %4285 = vmatprep.mubr.f32.mxu0 0.0
      %4286 = vmatmul.mubr.f32.gmra.mrb[0].mxu0 %v4180
      %v4287 = vpop.f32.mrb[0].mxu0
      %v4288 = vadd.f32 %v4137, %v4287
      %v4289 = vpop.f32.mrb[0].mxu0
      %4290 = vmatprep.mubr.f32.mxu0 0.0
      %4291 = vmatmul.mubr.f32.gmra.mrb[0].mxu0 %v4182
      %v4292 = vpop.f32.mrb[0].mxu0
      %v4293 = vadd.f32 %v4138, %v4292
      %v4294 = vpop.f32.mrb[0].mxu0
      %4295 = vmatprep.mubr.f32.mxu0 0.0
      %4296 = vmatmul.mubr.f32.gmra.mrb[0].mxu0 %v4184
      %v4297 = vpop.f32.mrb[0].mxu0
      %v4298 = vadd.f32 %v4139, %v4297
      %v4299 = vpop.f32.mrb[0].mxu0
      %4300 = vmatprep.mubr.f32.mxu0 0.0
      %4301 = vmatmul.mubr.f32.gmra.mrb[0].mxu0 %v4186
      %v4302 = vpop.f32.mrb[0].mxu0
      %v4303 = vadd.f32 %v4140, %v4302
      %v4304 = vpop.f32.mrb[0].mxu0
      %4305 = vmatprep.mubr.f32.mxu0 0.0
      %4306 = vmatmul.mubr.f32.gmra.mrb[0].mxu0 %v4188
      %v4307 = vpop.f32.mrb[0].mxu0
      %v4308 = vadd.f32 %v4141, %v4307
      %v4309 = vpop.f32.mrb[0].mxu0
      %4310 = vdwg.mxu0
      %v4311 = vsel %vm795, %v4273, -inf
      %4312 = vmax.xlane.f32.xlu0 %v4311
      %v4313 = vpop.xlane.xlu0 %4312
      %v4314 = vsel %vm795, %v4278, -inf
      %4315 = vmax.xlane.f32.xlu0 %v4314
      %v4316 = vpop.xlane.xlu0 %4315
      %v4317 = vsel %vm795, %v4283, -inf
      %4318 = vmax.xlane.f32.xlu0 %v4317
      %v4319 = vpop.xlane.xlu0 %4318
      %v4320 = vsel %vm795, %v4288, -inf
      %4321 = vmax.xlane.f32.xlu0 %v4320
      %v4322 = vpop.xlane.xlu0 %4321
      %v4323 = vsel %vm795, %v4293, -inf
      %4324 = vmax.xlane.f32.xlu0 %v4323
      %v4325 = vpop.xlane.xlu0 %4324
      %v4326 = vsel %vm795, %v4298, -inf
      %4327 = vmax.xlane.f32.xlu0 %v4326
      %v4328 = vpop.xlane.xlu0 %4327
      %v4329 = vsel %vm795, %v4303, -inf
      %4330 = vmax.xlane.f32.xlu0 %v4329
      %v4331 = vpop.xlane.xlu0 %4330
      %v4332 = vsel %vm795, %v4308, -inf
      %4333 = vmax.xlane.f32.xlu0 %v4332
      %v4334 = vpop.xlane.xlu0 %4333
      %v4335 = vsub.f32 %v4273, %v4313
      %v4336 = vsub.f32 %v4278, %v4316
      %v4337 = vsub.f32 %v4283, %v4319
      %v4338 = vsub.f32 %v4288, %v4322
      %v4339 = vsub.f32 %v4293, %v4325
      %v4340 = vsub.f32 %v4298, %v4328
      %v4341 = vsub.f32 %v4303, %v4331
      %v4342 = vsub.f32 %v4308, %v4334
      %v4343 = vmul.f32 %v4335, 1.442695
      %v4344 = vpow.pop %v4343
      %v4345 = vmul.f32 %v4336, 1.442695
      %v4346 = vpow.pop %v4345
      %v4347 = vmul.f32 %v4337, 1.442695
      %v4348 = vpow.pop %v4347
      %v4349 = vmul.f32 %v4338, 1.442695
      %v4350 = vpow.pop %v4349
      %v4351 = vmul.f32 %v4339, 1.442695
      %v4352 = vpow.pop %v4351
      %v4353 = vmul.f32 %v4340, 1.442695
      %v4354 = vpow.pop %v4353
      %v4355 = vmul.f32 %v4341, 1.442695
      %v4356 = vpow.pop %v4355
      %v4357 = vmul.f32 %v4342, 1.442695
      %v4358 = vpow.pop %v4357
      %v4359 = vsel %vm795, %v4344, 0.0
      %4360 = vadd.xlane.f32.xlu0 %v4359
      %v4361 = vpop.xlane.xlu0 %4360
      %v4362 = vsel %vm795, %v4346, 0.0
      %4363 = vadd.xlane.f32.xlu0 %v4362
      %v4364 = vpop.xlane.xlu0 %4363
      %v4365 = vsel %vm795, %v4348, 0.0
      %4366 = vadd.xlane.f32.xlu0 %v4365
      %v4367 = vpop.xlane.xlu0 %4366
      %v4368 = vsel %vm795, %v4350, 0.0
      %4369 = vadd.xlane.f32.xlu0 %v4368
      %v4370 = vpop.xlane.xlu0 %4369
      %v4371 = vsel %vm795, %v4352, 0.0
      %4372 = vadd.xlane.f32.xlu0 %v4371
      %v4373 = vpop.xlane.xlu0 %4372
      %v4374 = vsel %vm795, %v4354, 0.0
      %4375 = vadd.xlane.f32.xlu0 %v4374
      %v4376 = vpop.xlane.xlu0 %4375
      %v4377 = vsel %vm795, %v4356, 0.0
      %4378 = vadd.xlane.f32.xlu0 %v4377
      %v4379 = vpop.xlane.xlu0 %4378
      %v4380 = vsel %vm795, %v4358, 0.0
      %4381 = vadd.xlane.f32.xlu0 %v4380
      %v4382 = vpop.xlane.xlu0 %4381
      %4383 = vrot.lane.b32.xlu0 %v467, 48
      %v4384 = vpop.permute.xlu0 %4383
      %4385 = vrot.lane.b32.xlu0 %v472, 48
      %v4386 = vpop.permute.xlu0 %4385
      %4387 = vrot.lane.b32.xlu0 %v477, 48
      %v4388 = vpop.permute.xlu0 %4387
      %4389 = vrot.lane.b32.xlu0 %v482, 48
      %v4390 = vpop.permute.xlu0 %4389
      %4391 = vrot.lane.b32.xlu0 %v487, 48
      %v4392 = vpop.permute.xlu0 %4391
      %4393 = vrot.lane.b32.xlu0 %v492, 48
      %v4394 = vpop.permute.xlu0 %4393
      %4395 = vrot.lane.b32.xlu0 %v497, 48
      %v4396 = vpop.permute.xlu0 %4395
      %4397 = vrot.lane.b32.xlu0 %v502, 48
      %v4398 = vpop.permute.xlu0 %4397
      %v4408 = vsel %vm795, %v4344, 0
      %v4411 = vsel %vm795, %v4346, 0
      %v4414 = vsel %vm795, %v4348, 0
      %v4417 = vsel %vm795, %v4350, 0
      %v4420 = vsel %vm795, %v4352, 0
      %v4423 = vsel %vm795, %v4354, 0
      %v4426 = vsel %vm795, %v4356, 0
      %v4429 = vsel %vm795, %v4358, 0
      %4431 = vmatprep.subr.mxu0 0.0
      %4432 = vmatpush1.msra.mxu0 %v4384
      %4433 = vmatprep.subr.mxu0 0.0
      %4434 = vmatpush1.msra.mxu0 %v4386
      %4435 = vmatprep.subr.mxu0 0.0
      %4436 = vmatpush1.msra.mxu0 %v4388
      %4437 = vmatprep.subr.mxu0 0.0
      %4438 = vmatpush1.msra.mxu0 %v4390
      %4439 = vmatprep.subr.mxu0 0.0
      %4440 = vmatpush1.msra.mxu0 %v4392
      %4441 = vmatprep.subr.mxu0 0.0
      %4442 = vmatpush1.msra.mxu0 %v4394
      %4443 = vmatprep.subr.mxu0 0.0
      %4444 = vmatpush1.msra.mxu0 %v4396
      %4445 = vmatprep.subr.mxu0 0.0
      %4446 = vmatpush1.msra.mxu0 %v4398
      %4447 = vmatprep.subr.mxu0 0.0
      %4448 = vmatpush1.msra.mxu0 0.0
      %4449 = vmatprep.subr.mxu0 0.0
      %4450 = vmatpush1.msra.mxu0 0.0
      %4451 = vmatprep.subr.mxu0 0.0
      %4452 = vmatpush1.msra.mxu0 0.0
      %4453 = vmatprep.subr.mxu0 0.0
      %4454 = vmatpush1.msra.mxu0 0.0
      %4455 = vmatprep.subr.mxu0 0.0
      %4456 = vmatpush1.msra.mxu0 0.0
      %4457 = vmatprep.subr.mxu0 0.0
      %4458 = vmatpush1.msra.mxu0 0.0
      %4459 = vmatprep.subr.mxu0 0.0
      %4460 = vmatpush1.msra.mxu0 0.0
      %4461 = vmatprep.subr.mxu0 0.0
      %4462 = vmatpush1.msra.mxu0 0.0
      %4463 = vmatprep.subr.mxu0 0.0
      %4464 = vmatpush1.msra.mxu0 0.0
      %4465 = vmatprep.subr.mxu0 0.0
      %4466 = vmatpush1.msra.mxu0 0.0
      %4467 = vmatprep.subr.mxu0 0.0
      %4468 = vmatpush1.msra.mxu0 0.0
      %4469 = vmatprep.subr.mxu0 0.0
      %4470 = vmatpush1.msra.mxu0 0.0
      %4471 = vmatprep.subr.mxu0 0.0
      %4472 = vmatpush1.msra.mxu0 0.0
      %4473 = vmatprep.subr.mxu0 0.0
      %4474 = vmatpush1.msra.mxu0 0.0
      %4475 = vmatprep.subr.mxu0 0.0
      %4476 = vmatpush1.msra.mxu0 0.0
      %4477 = vmatprep.subr.mxu0 0.0
      %4478 = vmatpush1.msra.mxu0 0.0
      %4479 = vmatprep.subr.mxu0 0.0
      %4480 = vmatpush1.msra.mxu0 0.0
      %4481 = vmatprep.subr.mxu0 0.0
      %4482 = vmatpush1.msra.mxu0 0.0
      %4483 = vmatprep.subr.mxu0 0.0
      %4484 = vmatpush1.msra.mxu0 0.0
      %4485 = vmatprep.subr.mxu0 0.0
      %4486 = vmatpush1.msra.mxu0 0.0
      %4487 = vmatprep.subr.mxu0 0.0
      %4488 = vmatpush1.msra.mxu0 0.0
      %4489 = vmatprep.subr.mxu0 0.0
      %4490 = vmatpush1.msra.mxu0 0.0
      %4491 = vmatprep.subr.mxu0 0.0
      %4492 = vmatpush1.msra.mxu0 0.0
      %4493 = vmatprep.subr.mxu0 0.0
      %4494 = vmatpush1.msra.mxu0 0.0
      %4495 = vmatprep.mubr.f32.mxu0 0.0
      %4496 = vmatmul.mubr.f32.gmra.mrb[0].mxu0 %v4408
      %v4497 = vpop.f32.mrb[0].mxu0
      %v4498 = vadd.f32 0.0, %v4497
      %v4499 = vpop.f32.mrb[0].mxu0
      %4500 = vmatprep.mubr.f32.mxu0 0.0
      %4501 = vmatmul.mubr.f32.gmra.mrb[0].mxu0 %v4411
      %v4502 = vpop.f32.mrb[0].mxu0
      %v4503 = vadd.f32 0.0, %v4502
      %v4504 = vpop.f32.mrb[0].mxu0
      %4505 = vmatprep.mubr.f32.mxu0 0.0
      %4506 = vmatmul.mubr.f32.gmra.mrb[0].mxu0 %v4414
      %v4507 = vpop.f32.mrb[0].mxu0
      %v4508 = vadd.f32 0.0, %v4507
      %v4509 = vpop.f32.mrb[0].mxu0
      %4510 = vmatprep.mubr.f32.mxu0 0.0
      %4511 = vmatmul.mubr.f32.gmra.mrb[0].mxu0 %v4417
      %v4512 = vpop.f32.mrb[0].mxu0
      %v4513 = vadd.f32 0.0, %v4512
      %v4514 = vpop.f32.mrb[0].mxu0
      %4515 = vmatprep.mubr.f32.mxu0 0.0
      %4516 = vmatmul.mubr.f32.gmra.mrb[0].mxu0 %v4420
      %v4517 = vpop.f32.mrb[0].mxu0
      %v4518 = vadd.f32 0.0, %v4517
      %v4519 = vpop.f32.mrb[0].mxu0
      %4520 = vmatprep.mubr.f32.mxu0 0.0
      %4521 = vmatmul.mubr.f32.gmra.mrb[0].mxu0 %v4423
      %v4522 = vpop.f32.mrb[0].mxu0
      %v4523 = vadd.f32 0.0, %v4522
      %v4524 = vpop.f32.mrb[0].mxu0
      %4525 = vmatprep.mubr.f32.mxu0 0.0
      %4526 = vmatmul.mubr.f32.gmra.mrb[0].mxu0 %v4426
      %v4527 = vpop.f32.mrb[0].mxu0
      %v4528 = vadd.f32 0.0, %v4527
      %v4529 = vpop.f32.mrb[0].mxu0
      %4530 = vmatprep.mubr.f32.mxu0 0.0
      %4531 = vmatmul.mubr.f32.gmra.mrb[0].mxu0 %v4429
      %v4532 = vpop.f32.mrb[0].mxu0
      %v4533 = vadd.f32 0.0, %v4532
      %v4534 = vpop.f32.mrb[0].mxu0
      %4535 = vdwg.mxu0
      %v4536 = vrcp.pop %v4361
      %v4537 = vrcp.pop %v4364
      %v4538 = vrcp.pop %v4367
      %v4539 = vrcp.pop %v4370
      %v4540 = vrcp.pop %v4373
      %v4541 = vrcp.pop %v4376
      %v4542 = vrcp.pop %v4379
      %v4543 = vrcp.pop %v4382
      %v4544 = vmul.f32 %v4498, %v4536
      %v4545 = vmul.f32 %v4503, %v4537
      %v4546 = vmul.f32 %v4508, %v4538
      %v4547 = vmul.f32 %v4513, %v4539
      %v4548 = vmul.f32 %v4518, %v4540
      %v4549 = vmul.f32 %v4523, %v4541
      %v4550 = vmul.f32 %v4528, %v4542
      %v4551 = vmul.f32 %v4533, %v4543
      %4560 = vrot.lane.b32.xlu0 %v4544, 16
      %v4561 = vpop.permute.xlu0 %4560
      %4562 = vrot.lane.b32.xlu0 %v4545, 16
      %v4563 = vpop.permute.xlu0 %4562
      %4564 = vrot.lane.b32.xlu0 %v4546, 16
      %v4565 = vpop.permute.xlu0 %4564
      %4566 = vrot.lane.b32.xlu0 %v4547, 16
      %v4567 = vpop.permute.xlu0 %4566
      %4568 = vrot.lane.b32.xlu0 %v4548, 16
      %v4569 = vpop.permute.xlu0 %4568
      %4570 = vrot.lane.b32.xlu0 %v4549, 16
      %v4571 = vpop.permute.xlu0 %4570
      %4572 = vrot.lane.b32.xlu0 %v4550, 16
      %v4573 = vpop.permute.xlu0 %4572
      %4574 = vrot.lane.b32.xlu0 %v4551, 16
      %v4575 = vpop.permute.xlu0 %4574
      %vm4584 = vcmask 195712
      %4585 = vst.msk [vmem:[#allocation2] sm:$0xff] %vm4584, %v4561
      %4586 = vst.msk [vmem:[#allocation2 + $0x8] sm:$0xff] %vm4584, %v4563
      %4587 = vst.msk [vmem:[#allocation2 + $0x10] sm:$0xff] %vm4584, %v4565
      %4588 = vst.msk [vmem:[#allocation2 + $0x18] sm:$0xff] %vm4584, %v4567
      %4589 = vst.msk [vmem:[#allocation2 + $0x20] sm:$0xff] %vm4584, %v4569
      %4590 = vst.msk [vmem:[#allocation2 + $0x28] sm:$0xff] %vm4584, %v4571
      %4591 = vst.msk [vmem:[#allocation2 + $0x30] sm:$0xff] %vm4584, %v4573
      %4592 = vst.msk [vmem:[#allocation2 + $0x38] sm:$0xff] %vm4584, %v4575
      %v4593 = vld [vmem:[%s4133] sm:$0xff]
      %v4594 = vld [vmem:[%s4133 + $0x8] sm:$0xff]
      %v4595 = vld [vmem:[%s4133 + $0x10] sm:$0xff]
      %v4596 = vld [vmem:[%s4133 + $0x18] sm:$0xff]
      %v4597 = vld [vmem:[%s4133 + $0x20] sm:$0xff]
      %v4598 = vld [vmem:[%s4133 + $0x28] sm:$0xff]
      %v4599 = vld [vmem:[%s4133 + $0x30] sm:$0xff]
      %v4600 = vld [vmem:[%s4133 + $0x38] sm:$0xff]
      %4601 = vrot.lane.b32.xlu0 %v507, 112
      %v4602 = vpop.permute.xlu0 %4601
      %4603 = vrot.lane.b32.xlu0 %v512, 112
      %v4604 = vpop.permute.xlu0 %4603
      %4605 = vrot.lane.b32.xlu0 %v517, 112
      %v4606 = vpop.permute.xlu0 %4605
      %4607 = vrot.lane.b32.xlu0 %v522, 112
      %v4608 = vpop.permute.xlu0 %4607
      %4609 = vrot.lane.b32.xlu0 %v527, 112
      %v4610 = vpop.permute.xlu0 %4609
      %4611 = vrot.lane.b32.xlu0 %v532, 112
      %v4612 = vpop.permute.xlu0 %4611
      %4613 = vrot.lane.b32.xlu0 %v537, 112
      %v4614 = vpop.permute.xlu0 %4613
      %4615 = vrot.lane.b32.xlu0 %v542, 112
      %v4616 = vpop.permute.xlu0 %4615
      %4617 = vrot.lane.b32.xlu0 %v507, 80
      %v4618 = vpop.permute.xlu0 %4617
      %4619 = vrot.lane.b32.xlu0 %v512, 80
      %v4620 = vpop.permute.xlu0 %4619
      %4621 = vrot.lane.b32.xlu0 %v517, 80
      %v4622 = vpop.permute.xlu0 %4621
      %4623 = vrot.lane.b32.xlu0 %v522, 80
      %v4624 = vpop.permute.xlu0 %4623
      %4625 = vrot.lane.b32.xlu0 %v527, 80
      %v4626 = vpop.permute.xlu0 %4625
      %4627 = vrot.lane.b32.xlu0 %v532, 80
      %v4628 = vpop.permute.xlu0 %4627
      %4629 = vrot.lane.b32.xlu0 %v537, 80
      %v4630 = vpop.permute.xlu0 %4629
      %4631 = vrot.lane.b32.xlu0 %v542, 80
      %v4632 = vpop.permute.xlu0 %4631
      %v4633 = vsel %vm657, %v4602, 0
      %v4635 = vsel %vm657, %v4604, 0
      %v4637 = vsel %vm657, %v4606, 0
      %v4639 = vsel %vm657, %v4608, 0
      %v4641 = vsel %vm657, %v4610, 0
      %v4643 = vsel %vm657, %v4612, 0
      %v4645 = vsel %vm657, %v4614, 0
      %v4647 = vsel %vm657, %v4616, 0
      %v4649 = vsel %vm657, %v4618, 0
      %v4651 = vsel %vm657, %v4620, 0
      %v4653 = vsel %vm657, %v4622, 0
      %v4655 = vsel %vm657, %v4624, 0
      %v4657 = vsel %vm657, %v4626, 0
      %v4659 = vsel %vm657, %v4628, 0
      %v4661 = vsel %vm657, %v4630, 0
      %v4663 = vsel %vm657, %v4632, 0
      %4665 = vmatprep.subr.mxu0 0.0
      %4666 = vmatpush1.xpose.msra.mxu0 %v4649
      %4667 = vmatprep.subr.mxu0 0.0
      %4668 = vmatpush1.xpose.msra.mxu0 %v4651
      %4669 = vmatprep.subr.mxu0 0.0
      %4670 = vmatpush1.xpose.msra.mxu0 %v4653
      %4671 = vmatprep.subr.mxu0 0.0
      %4672 = vmatpush1.xpose.msra.mxu0 %v4655
      %4673 = vmatprep.subr.mxu0 0.0
      %4674 = vmatpush1.xpose.msra.mxu0 %v4657
      %4675 = vmatprep.subr.mxu0 0.0
      %4676 = vmatpush1.xpose.msra.mxu0 %v4659
      %4677 = vmatprep.subr.mxu0 0.0
      %4678 = vmatpush1.xpose.msra.mxu0 %v4661
      %4679 = vmatprep.subr.mxu0 0.0
      %4680 = vmatpush1.xpose.msra.mxu0 %v4663
      %4681 = vmatprep.subr.mxu0 0.0
      %4682 = vmatpush1.xpose.msra.mxu0 0.0
      %4683 = vmatprep.subr.mxu0 0.0
      %4684 = vmatpush1.xpose.msra.mxu0 0.0
      %4685 = vmatprep.subr.mxu0 0.0
      %4686 = vmatpush1.xpose.msra.mxu0 0.0
      %4687 = vmatprep.subr.mxu0 0.0
      %4688 = vmatpush1.xpose.msra.mxu0 0.0
      %4689 = vmatprep.subr.mxu0 0.0
      %4690 = vmatpush1.xpose.msra.mxu0 0.0
      %4691 = vmatprep.subr.mxu0 0.0
      %4692 = vmatpush1.xpose.msra.mxu0 0.0
      %4693 = vmatprep.subr.mxu0 0.0
      %4694 = vmatpush1.xpose.msra.mxu0 0.0
      %4695 = vmatprep.subr.mxu0 0.0
      %4696 = vmatpush1.xpose.msra.mxu0 0.0
      %4697 = vmatprep.subr.mxu0 0.0
      %4698 = vmatpush1.xpose.msra.mxu0 0.0
      %4699 = vmatprep.subr.mxu0 0.0
      %4700 = vmatpush1.xpose.msra.mxu0 0.0
      %4701 = vmatprep.subr.mxu0 0.0
      %4702 = vmatpush1.xpose.msra.mxu0 0.0
      %4703 = vmatprep.subr.mxu0 0.0
      %4704 = vmatpush1.xpose.msra.mxu0 0.0
      %4705 = vmatprep.subr.mxu0 0.0
      %4706 = vmatpush1.xpose.msra.mxu0 0.0
      %4707 = vmatprep.subr.mxu0 0.0
      %4708 = vmatpush1.xpose.msra.mxu0 0.0
      %4709 = vmatprep.subr.mxu0 0.0
      %4710 = vmatpush1.xpose.msra.mxu0 0.0
      %4711 = vmatprep.subr.mxu0 0.0
      %4712 = vmatpush1.xpose.msra.mxu0 0.0
      %4713 = vmatprep.subr.mxu0 0.0
      %4714 = vmatpush1.xpose.msra.mxu0 0.0
      %4715 = vmatprep.subr.mxu0 0.0
      %4716 = vmatpush1.xpose.msra.mxu0 0.0
      %4717 = vmatprep.subr.mxu0 0.0
      %4718 = vmatpush1.xpose.msra.mxu0 0.0
      %4719 = vmatprep.subr.mxu0 0.0
      %4720 = vmatpush1.xpose.msra.mxu0 0.0
      %4721 = vmatprep.subr.mxu0 0.0
      %4722 = vmatpush1.xpose.msra.mxu0 0.0
      %4723 = vmatprep.subr.mxu0 0.0
      %4724 = vmatpush1.xpose.msra.mxu0 0.0
      %4725 = vmatprep.subr.mxu0 0.0
      %4726 = vmatpush1.xpose.msra.mxu0 0.0
      %4727 = vmatprep.subr.mxu0 0.0
      %4728 = vmatpush1.xpose.msra.mxu0 0.0
      %4729 = vmatprep.mubr.f32.mxu0 0.0
      %4730 = vmatmul.mubr.f32.gmra.mrb[0].mxu0 %v4633
      %v4731 = vpop.f32.mrb[0].mxu0
      %v4732 = vadd.f32 %v4593, %v4731
      %v4733 = vpop.f32.mrb[0].mxu0
      %4734 = vmatprep.mubr.f32.mxu0 0.0
      %4735 = vmatmul.mubr.f32.gmra.mrb[0].mxu0 %v4635
      %v4736 = vpop.f32.mrb[0].mxu0
      %v4737 = vadd.f32 %v4594, %v4736
      %v4738 = vpop.f32.mrb[0].mxu0
      %4739 = vmatprep.mubr.f32.mxu0 0.0
      %4740 = vmatmul.mubr.f32.gmra.mrb[0].mxu0 %v4637
      %v4741 = vpop.f32.mrb[0].mxu0
      %v4742 = vadd.f32 %v4595, %v4741
      %v4743 = vpop.f32.mrb[0].mxu0
      %4744 = vmatprep.mubr.f32.mxu0 0.0
      %4745 = vmatmul.mubr.f32.gmra.mrb[0].mxu0 %v4639
      %v4746 = vpop.f32.mrb[0].mxu0
      %v4747 = vadd.f32 %v4596, %v4746
      %v4748 = vpop.f32.mrb[0].mxu0
      %4749 = vmatprep.mubr.f32.mxu0 0.0
      %4750 = vmatmul.mubr.f32.gmra.mrb[0].mxu0 %v4641
      %v4751 = vpop.f32.mrb[0].mxu0
      %v4752 = vadd.f32 %v4597, %v4751
      %v4753 = vpop.f32.mrb[0].mxu0
      %4754 = vmatprep.mubr.f32.mxu0 0.0
      %4755 = vmatmul.mubr.f32.gmra.mrb[0].mxu0 %v4643
      %v4756 = vpop.f32.mrb[0].mxu0
      %v4757 = vadd.f32 %v4598, %v4756
      %v4758 = vpop.f32.mrb[0].mxu0
      %4759 = vmatprep.mubr.f32.mxu0 0.0
      %4760 = vmatmul.mubr.f32.gmra.mrb[0].mxu0 %v4645
      %v4761 = vpop.f32.mrb[0].mxu0
      %v4762 = vadd.f32 %v4599, %v4761
      %v4763 = vpop.f32.mrb[0].mxu0
      %4764 = vmatprep.mubr.f32.mxu0 0.0
      %4765 = vmatmul.mubr.f32.gmra.mrb[0].mxu0 %v4647
      %v4766 = vpop.f32.mrb[0].mxu0
      %v4767 = vadd.f32 %v4600, %v4766
      %v4768 = vpop.f32.mrb[0].mxu0
      %4769 = vdwg.mxu0
      %v4770 = vsel %vm795, %v4732, -inf
      %4771 = vmax.xlane.f32.xlu0 %v4770
      %v4772 = vpop.xlane.xlu0 %4771
      %v4773 = vsel %vm795, %v4737, -inf
      %4774 = vmax.xlane.f32.xlu0 %v4773
      %v4775 = vpop.xlane.xlu0 %4774
      %v4776 = vsel %vm795, %v4742, -inf
      %4777 = vmax.xlane.f32.xlu0 %v4776
      %v4778 = vpop.xlane.xlu0 %4777
      %v4779 = vsel %vm795, %v4747, -inf
      %4780 = vmax.xlane.f32.xlu0 %v4779
      %v4781 = vpop.xlane.xlu0 %4780
      %v4782 = vsel %vm795, %v4752, -inf
      %4783 = vmax.xlane.f32.xlu0 %v4782
      %v4784 = vpop.xlane.xlu0 %4783
      %v4785 = vsel %vm795, %v4757, -inf
      %4786 = vmax.xlane.f32.xlu0 %v4785
      %v4787 = vpop.xlane.xlu0 %4786
      %v4788 = vsel %vm795, %v4762, -inf
      %4789 = vmax.xlane.f32.xlu0 %v4788
      %v4790 = vpop.xlane.xlu0 %4789
      %v4791 = vsel %vm795, %v4767, -inf
      %4792 = vmax.xlane.f32.xlu0 %v4791
      %v4793 = vpop.xlane.xlu0 %4792
      %v4794 = vsub.f32 %v4732, %v4772
      %v4795 = vsub.f32 %v4737, %v4775
      %v4796 = vsub.f32 %v4742, %v4778
      %v4797 = vsub.f32 %v4747, %v4781
      %v4798 = vsub.f32 %v4752, %v4784
      %v4799 = vsub.f32 %v4757, %v4787
      %v4800 = vsub.f32 %v4762, %v4790
      %v4801 = vsub.f32 %v4767, %v4793
      %v4802 = vmul.f32 %v4794, 1.442695
      %v4803 = vpow.pop %v4802
      %v4804 = vmul.f32 %v4795, 1.442695
      %v4805 = vpow.pop %v4804
      %v4806 = vmul.f32 %v4796, 1.442695
      %v4807 = vpow.pop %v4806
      %v4808 = vmul.f32 %v4797, 1.442695
      %v4809 = vpow.pop %v4808
      %v4810 = vmul.f32 %v4798, 1.442695
      %v4811 = vpow.pop %v4810
      %v4812 = vmul.f32 %v4799, 1.442695
      %v4813 = vpow.pop %v4812
      %v4814 = vmul.f32 %v4800, 1.442695
      %v4815 = vpow.pop %v4814
      %v4816 = vmul.f32 %v4801, 1.442695
      %v4817 = vpow.pop %v4816
      %v4818 = vsel %vm795, %v4803, 0.0
      %4819 = vadd.xlane.f32.xlu0 %v4818
      %v4820 = vpop.xlane.xlu0 %4819
      %v4821 = vsel %vm795, %v4805, 0.0
      %4822 = vadd.xlane.f32.xlu0 %v4821
      %v4823 = vpop.xlane.xlu0 %4822
      %v4824 = vsel %vm795, %v4807, 0.0
      %4825 = vadd.xlane.f32.xlu0 %v4824
      %v4826 = vpop.xlane.xlu0 %4825
      %v4827 = vsel %vm795, %v4809, 0.0
      %4828 = vadd.xlane.f32.xlu0 %v4827
      %v4829 = vpop.xlane.xlu0 %4828
      %v4830 = vsel %vm795, %v4811, 0.0
      %4831 = vadd.xlane.f32.xlu0 %v4830
      %v4832 = vpop.xlane.xlu0 %4831
      %v4833 = vsel %vm795, %v4813, 0.0
      %4834 = vadd.xlane.f32.xlu0 %v4833
      %v4835 = vpop.xlane.xlu0 %4834
      %v4836 = vsel %vm795, %v4815, 0.0
      %4837 = vadd.xlane.f32.xlu0 %v4836
      %v4838 = vpop.xlane.xlu0 %4837
      %v4839 = vsel %vm795, %v4817, 0.0
      %4840 = vadd.xlane.f32.xlu0 %v4839
      %v4841 = vpop.xlane.xlu0 %4840
      %4842 = vrot.lane.b32.xlu0 %v507, 48
      %v4843 = vpop.permute.xlu0 %4842
      %4844 = vrot.lane.b32.xlu0 %v512, 48
      %v4845 = vpop.permute.xlu0 %4844
      %4846 = vrot.lane.b32.xlu0 %v517, 48
      %v4847 = vpop.permute.xlu0 %4846
      %4848 = vrot.lane.b32.xlu0 %v522, 48
      %v4849 = vpop.permute.xlu0 %4848
      %4850 = vrot.lane.b32.xlu0 %v527, 48
      %v4851 = vpop.permute.xlu0 %4850
      %4852 = vrot.lane.b32.xlu0 %v532, 48
      %v4853 = vpop.permute.xlu0 %4852
      %4854 = vrot.lane.b32.xlu0 %v537, 48
      %v4855 = vpop.permute.xlu0 %4854
      %4856 = vrot.lane.b32.xlu0 %v542, 48
      %v4857 = vpop.permute.xlu0 %4856
      %v4867 = vsel %vm795, %v4803, 0
      %v4870 = vsel %vm795, %v4805, 0
      %v4873 = vsel %vm795, %v4807, 0
      %v4876 = vsel %vm795, %v4809, 0
      %v4879 = vsel %vm795, %v4811, 0
      %v4882 = vsel %vm795, %v4813, 0
      %v4885 = vsel %vm795, %v4815, 0
      %v4888 = vsel %vm795, %v4817, 0
      %4890 = vmatprep.subr.mxu0 0.0
      %4891 = vmatpush1.msra.mxu0 %v4843
      %4892 = vmatprep.subr.mxu0 0.0
      %4893 = vmatpush1.msra.mxu0 %v4845
      %4894 = vmatprep.subr.mxu0 0.0
      %4895 = vmatpush1.msra.mxu0 %v4847
      %4896 = vmatprep.subr.mxu0 0.0
      %4897 = vmatpush1.msra.mxu0 %v4849
      %4898 = vmatprep.subr.mxu0 0.0
      %4899 = vmatpush1.msra.mxu0 %v4851
      %4900 = vmatprep.subr.mxu0 0.0
      %4901 = vmatpush1.msra.mxu0 %v4853
      %4902 = vmatprep.subr.mxu0 0.0
      %4903 = vmatpush1.msra.mxu0 %v4855
      %4904 = vmatprep.subr.mxu0 0.0
      %4905 = vmatpush1.msra.mxu0 %v4857
      %4906 = vmatprep.subr.mxu0 0.0
      %4907 = vmatpush1.msra.mxu0 0.0
      %4908 = vmatprep.subr.mxu0 0.0
      %4909 = vmatpush1.msra.mxu0 0.0
      %4910 = vmatprep.subr.mxu0 0.0
      %4911 = vmatpush1.msra.mxu0 0.0
      %4912 = vmatprep.subr.mxu0 0.0
      %4913 = vmatpush1.msra.mxu0 0.0
      %4914 = vmatprep.subr.mxu0 0.0
      %4915 = vmatpush1.msra.mxu0 0.0
      %4916 = vmatprep.subr.mxu0 0.0
      %4917 = vmatpush1.msra.mxu0 0.0
      %4918 = vmatprep.subr.mxu0 0.0
      %4919 = vmatpush1.msra.mxu0 0.0
      %4920 = vmatprep.subr.mxu0 0.0
      %4921 = vmatpush1.msra.mxu0 0.0
      %4922 = vmatprep.subr.mxu0 0.0
      %4923 = vmatpush1.msra.mxu0 0.0
      %4924 = vmatprep.subr.mxu0 0.0
      %4925 = vmatpush1.msra.mxu0 0.0
      %4926 = vmatprep.subr.mxu0 0.0
      %4927 = vmatpush1.msra.mxu0 0.0
      %4928 = vmatprep.subr.mxu0 0.0
      %4929 = vmatpush1.msra.mxu0 0.0
      %4930 = vmatprep.subr.mxu0 0.0
      %4931 = vmatpush1.msra.mxu0 0.0
      %4932 = vmatprep.subr.mxu0 0.0
      %4933 = vmatpush1.msra.mxu0 0.0
      %4934 = vmatprep.subr.mxu0 0.0
      %4935 = vmatpush1.msra.mxu0 0.0
      %4936 = vmatprep.subr.mxu0 0.0
      %4937 = vmatpush1.msra.mxu0 0.0
      %4938 = vmatprep.subr.mxu0 0.0
      %4939 = vmatpush1.msra.mxu0 0.0
      %4940 = vmatprep.subr.mxu0 0.0
      %4941 = vmatpush1.msra.mxu0 0.0
      %4942 = vmatprep.subr.mxu0 0.0
      %4943 = vmatpush1.msra.mxu0 0.0
      %4944 = vmatprep.subr.mxu0 0.0
      %4945 = vmatpush1.msra.mxu0 0.0
      %4946 = vmatprep.subr.mxu0 0.0
      %4947 = vmatpush1.msra.mxu0 0.0
      %4948 = vmatprep.subr.mxu0 0.0
      %4949 = vmatpush1.msra.mxu0 0.0
      %4950 = vmatprep.subr.mxu0 0.0
      %4951 = vmatpush1.msra.mxu0 0.0
      %4952 = vmatprep.subr.mxu0 0.0
      %4953 = vmatpush1.msra.mxu0 0.0
      %4954 = vmatprep.mubr.f32.mxu0 0.0
      %4955 = vmatmul.mubr.f32.gmra.mrb[0].mxu0 %v4867
      %v4956 = vpop.f32.mrb[0].mxu0
      %v4957 = vadd.f32 0.0, %v4956
      %v4958 = vpop.f32.mrb[0].mxu0
      %4959 = vmatprep.mubr.f32.mxu0 0.0
      %4960 = vmatmul.mubr.f32.gmra.mrb[0].mxu0 %v4870
      %v4961 = vpop.f32.mrb[0].mxu0
      %v4962 = vadd.f32 0.0, %v4961
      %v4963 = vpop.f32.mrb[0].mxu0
      %4964 = vmatprep.mubr.f32.mxu0 0.0
      %4965 = vmatmul.mubr.f32.gmra.mrb[0].mxu0 %v4873
      %v4966 = vpop.f32.mrb[0].mxu0
      %v4967 = vadd.f32 0.0, %v4966
      %v4968 = vpop.f32.mrb[0].mxu0
      %4969 = vmatprep.mubr.f32.mxu0 0.0
      %4970 = vmatmul.mubr.f32.gmra.mrb[0].mxu0 %v4876
      %v4971 = vpop.f32.mrb[0].mxu0
      %v4972 = vadd.f32 0.0, %v4971
      %v4973 = vpop.f32.mrb[0].mxu0
      %4974 = vmatprep.mubr.f32.mxu0 0.0
      %4975 = vmatmul.mubr.f32.gmra.mrb[0].mxu0 %v4879
      %v4976 = vpop.f32.mrb[0].mxu0
      %v4977 = vadd.f32 0.0, %v4976
      %v4978 = vpop.f32.mrb[0].mxu0
      %4979 = vmatprep.mubr.f32.mxu0 0.0
      %4980 = vmatmul.mubr.f32.gmra.mrb[0].mxu0 %v4882
      %v4981 = vpop.f32.mrb[0].mxu0
      %v4982 = vadd.f32 0.0, %v4981
      %v4983 = vpop.f32.mrb[0].mxu0
      %4984 = vmatprep.mubr.f32.mxu0 0.0
      %4985 = vmatmul.mubr.f32.gmra.mrb[0].mxu0 %v4885
      %v4986 = vpop.f32.mrb[0].mxu0
      %v4987 = vadd.f32 0.0, %v4986
      %v4988 = vpop.f32.mrb[0].mxu0
      %4989 = vmatprep.mubr.f32.mxu0 0.0
      %4990 = vmatmul.mubr.f32.gmra.mrb[0].mxu0 %v4888
      %v4991 = vpop.f32.mrb[0].mxu0
      %v4992 = vadd.f32 0.0, %v4991
      %v4993 = vpop.f32.mrb[0].mxu0
      %4994 = vdwg.mxu0
      %v4995 = vrcp.pop %v4820
      %v4996 = vrcp.pop %v4823
      %v4997 = vrcp.pop %v4826
      %v4998 = vrcp.pop %v4829
      %v4999 = vrcp.pop %v4832
      %v5000 = vrcp.pop %v4835
      %v5001 = vrcp.pop %v4838
      %v5002 = vrcp.pop %v4841
      %v5003 = vmul.f32 %v4957, %v4995
      %v5004 = vmul.f32 %v4962, %v4996
      %v5005 = vmul.f32 %v4967, %v4997
      %v5006 = vmul.f32 %v4972, %v4998
      %v5007 = vmul.f32 %v4977, %v4999
      %v5008 = vmul.f32 %v4982, %v5000
      %v5009 = vmul.f32 %v4987, %v5001
      %v5010 = vmul.f32 %v4992, %v5002
      %5019 = vrot.lane.b32.xlu0 %v5003, 16
      %v5020 = vpop.permute.xlu0 %5019
      %5021 = vrot.lane.b32.xlu0 %v5004, 16
      %v5022 = vpop.permute.xlu0 %5021
      %5023 = vrot.lane.b32.xlu0 %v5005, 16
      %v5024 = vpop.permute.xlu0 %5023
      %5025 = vrot.lane.b32.xlu0 %v5006, 16
      %v5026 = vpop.permute.xlu0 %5025
      %5027 = vrot.lane.b32.xlu0 %v5007, 16
      %v5028 = vpop.permute.xlu0 %5027
      %5029 = vrot.lane.b32.xlu0 %v5008, 16
      %v5030 = vpop.permute.xlu0 %5029
      %5031 = vrot.lane.b32.xlu0 %v5009, 16
      %v5032 = vpop.permute.xlu0 %5031
      %5033 = vrot.lane.b32.xlu0 %v5010, 16
      %v5034 = vpop.permute.xlu0 %5033
      %5043 = vst.msk [vmem:[#allocation2 + $0x40] sm:$0xff] %vm4584, %v5020
      %5044 = vst.msk [vmem:[#allocation2 + $0x48] sm:$0xff] %vm4584, %v5022
      %5045 = vst.msk [vmem:[#allocation2 + $0x50] sm:$0xff] %vm4584, %v5024
      %5046 = vst.msk [vmem:[#allocation2 + $0x58] sm:$0xff] %vm4584, %v5026
      %5047 = vst.msk [vmem:[#allocation2 + $0x60] sm:$0xff] %vm4584, %v5028
      %5048 = vst.msk [vmem:[#allocation2 + $0x68] sm:$0xff] %vm4584, %v5030
      %5049 = vst.msk [vmem:[#allocation2 + $0x70] sm:$0xff] %vm4584, %v5032
      %5050 = vst.msk [vmem:[#allocation2 + $0x78] sm:$0xff] %vm4584, %v5034
      %v5051 = vld [vmem:[%s4133] sm:$0xff]
      %v5052 = vld [vmem:[%s4133 + $0x8] sm:$0xff]
      %v5053 = vld [vmem:[%s4133 + $0x10] sm:$0xff]
      %v5054 = vld [vmem:[%s4133 + $0x18] sm:$0xff]
      %v5055 = vld [vmem:[%s4133 + $0x20] sm:$0xff]
      %v5056 = vld [vmem:[%s4133 + $0x28] sm:$0xff]
      %v5057 = vld [vmem:[%s4133 + $0x30] sm:$0xff]
      %v5058 = vld [vmem:[%s4133 + $0x38] sm:$0xff]
      %5059 = vrot.lane.b32.xlu0 %v547, 112
      %v5060 = vpop.permute.xlu0 %5059
      %5061 = vrot.lane.b32.xlu0 %v552, 112
      %v5062 = vpop.permute.xlu0 %5061
      %5063 = vrot.lane.b32.xlu0 %v557, 112
      %v5064 = vpop.permute.xlu0 %5063
      %5065 = vrot.lane.b32.xlu0 %v562, 112
      %v5066 = vpop.permute.xlu0 %5065
      %5067 = vrot.lane.b32.xlu0 %v567, 112
      %v5068 = vpop.permute.xlu0 %5067
      %5069 = vrot.lane.b32.xlu0 %v572, 112
      %v5070 = vpop.permute.xlu0 %5069
      %5071 = vrot.lane.b32.xlu0 %v577, 112
      %v5072 = vpop.permute.xlu0 %5071
      %5073 = vrot.lane.b32.xlu0 %v582, 112
      %v5074 = vpop.permute.xlu0 %5073
      %5075 = vrot.lane.b32.xlu0 %v547, 80
      %v5076 = vpop.permute.xlu0 %5075
      %5077 = vrot.lane.b32.xlu0 %v552, 80
      %v5078 = vpop.permute.xlu0 %5077
      %5079 = vrot.lane.b32.xlu0 %v557, 80
      %v5080 = vpop.permute.xlu0 %5079
      %5081 = vrot.lane.b32.xlu0 %v562, 80
      %v5082 = vpop.permute.xlu0 %5081
      %5083 = vrot.lane.b32.xlu0 %v567, 80
      %v5084 = vpop.permute.xlu0 %5083
      %5085 = vrot.lane.b32.xlu0 %v572, 80
      %v5086 = vpop.permute.xlu0 %5085
      %5087 = vrot.lane.b32.xlu0 %v577, 80
      %v5088 = vpop.permute.xlu0 %5087
      %5089 = vrot.lane.b32.xlu0 %v582, 80
      %v5090 = vpop.permute.xlu0 %5089
      %v5091 = vsel %vm657, %v5060, 0
      %v5093 = vsel %vm657, %v5062, 0
      %v5095 = vsel %vm657, %v5064, 0
      %v5097 = vsel %vm657, %v5066, 0
      %v5099 = vsel %vm657, %v5068, 0
      %v5101 = vsel %vm657, %v5070, 0
      %v5103 = vsel %vm657, %v5072, 0
      %v5105 = vsel %vm657, %v5074, 0
      %v5107 = vsel %vm657, %v5076, 0
      %v5109 = vsel %vm657, %v5078, 0
      %v5111 = vsel %vm657, %v5080, 0
      %v5113 = vsel %vm657, %v5082, 0
      %v5115 = vsel %vm657, %v5084, 0
      %v5117 = vsel %vm657, %v5086, 0
      %v5119 = vsel %vm657, %v5088, 0
      %v5121 = vsel %vm657, %v5090, 0
      %5123 = vmatprep.subr.mxu0 0.0
      %5124 = vmatpush1.xpose.msra.mxu0 %v5107
      %5125 = vmatprep.subr.mxu0 0.0
      %5126 = vmatpush1.xpose.msra.mxu0 %v5109
      %5127 = vmatprep.subr.mxu0 0.0
      %5128 = vmatpush1.xpose.msra.mxu0 %v5111
      %5129 = vmatprep.subr.mxu0 0.0
      %5130 = vmatpush1.xpose.msra.mxu0 %v5113
      %5131 = vmatprep.subr.mxu0 0.0
      %5132 = vmatpush1.xpose.msra.mxu0 %v5115
      %5133 = vmatprep.subr.mxu0 0.0
      %5134 = vmatpush1.xpose.msra.mxu0 %v5117
      %5135 = vmatprep.subr.mxu0 0.0
      %5136 = vmatpush1.xpose.msra.mxu0 %v5119
      %5137 = vmatprep.subr.mxu0 0.0
      %5138 = vmatpush1.xpose.msra.mxu0 %v5121
      %5139 = vmatprep.subr.mxu0 0.0
      %5140 = vmatpush1.xpose.msra.mxu0 0.0
      %5141 = vmatprep.subr.mxu0 0.0
      %5142 = vmatpush1.xpose.msra.mxu0 0.0
      %5143 = vmatprep.subr.mxu0 0.0
      %5144 = vmatpush1.xpose.msra.mxu0 0.0
      %5145 = vmatprep.subr.mxu0 0.0
      %5146 = vmatpush1.xpose.msra.mxu0 0.0
      %5147 = vmatprep.subr.mxu0 0.0
      %5148 = vmatpush1.xpose.msra.mxu0 0.0
      %5149 = vmatprep.subr.mxu0 0.0
      %5150 = vmatpush1.xpose.msra.mxu0 0.0
      %5151 = vmatprep.subr.mxu0 0.0
      %5152 = vmatpush1.xpose.msra.mxu0 0.0
      %5153 = vmatprep.subr.mxu0 0.0
      %5154 = vmatpush1.xpose.msra.mxu0 0.0
      %5155 = vmatprep.subr.mxu0 0.0
      %5156 = vmatpush1.xpose.msra.mxu0 0.0
      %5157 = vmatprep.subr.mxu0 0.0
      %5158 = vmatpush1.xpose.msra.mxu0 0.0
      %5159 = vmatprep.subr.mxu0 0.0
      %5160 = vmatpush1.xpose.msra.mxu0 0.0
      %5161 = vmatprep.subr.mxu0 0.0
      %5162 = vmatpush1.xpose.msra.mxu0 0.0
      %5163 = vmatprep.subr.mxu0 0.0
      %5164 = vmatpush1.xpose.msra.mxu0 0.0
      %5165 = vmatprep.subr.mxu0 0.0
      %5166 = vmatpush1.xpose.msra.mxu0 0.0
      %5167 = vmatprep.subr.mxu0 0.0
      %5168 = vmatpush1.xpose.msra.mxu0 0.0
      %5169 = vmatprep.subr.mxu0 0.0
      %5170 = vmatpush1.xpose.msra.mxu0 0.0
      %5171 = vmatprep.subr.mxu0 0.0
      %5172 = vmatpush1.xpose.msra.mxu0 0.0
      %5173 = vmatprep.subr.mxu0 0.0
      %5174 = vmatpush1.xpose.msra.mxu0 0.0
      %5175 = vmatprep.subr.mxu0 0.0
      %5176 = vmatpush1.xpose.msra.mxu0 0.0
      %5177 = vmatprep.subr.mxu0 0.0
      %5178 = vmatpush1.xpose.msra.mxu0 0.0
      %5179 = vmatprep.subr.mxu0 0.0
      %5180 = vmatpush1.xpose.msra.mxu0 0.0
      %5181 = vmatprep.subr.mxu0 0.0
      %5182 = vmatpush1.xpose.msra.mxu0 0.0
      %5183 = vmatprep.subr.mxu0 0.0
      %5184 = vmatpush1.xpose.msra.mxu0 0.0
      %5185 = vmatprep.subr.mxu0 0.0
      %5186 = vmatpush1.xpose.msra.mxu0 0.0
      %5187 = vmatprep.mubr.f32.mxu0 0.0
      %5188 = vmatmul.mubr.f32.gmra.mrb[0].mxu0 %v5091
      %v5189 = vpop.f32.mrb[0].mxu0
      %v5190 = vadd.f32 %v5051, %v5189
      %v5191 = vpop.f32.mrb[0].mxu0
      %5192 = vmatprep.mubr.f32.mxu0 0.0
      %5193 = vmatmul.mubr.f32.gmra.mrb[0].mxu0 %v5093
      %v5194 = vpop.f32.mrb[0].mxu0
      %v5195 = vadd.f32 %v5052, %v5194
      %v5196 = vpop.f32.mrb[0].mxu0
      %5197 = vmatprep.mubr.f32.mxu0 0.0
      %5198 = vmatmul.mubr.f32.gmra.mrb[0].mxu0 %v5095
      %v5199 = vpop.f32.mrb[0].mxu0
      %v5200 = vadd.f32 %v5053, %v5199
      %v5201 = vpop.f32.mrb[0].mxu0
      %5202 = vmatprep.mubr.f32.mxu0 0.0
      %5203 = vmatmul.mubr.f32.gmra.mrb[0].mxu0 %v5097
      %v5204 = vpop.f32.mrb[0].mxu0
      %v5205 = vadd.f32 %v5054, %v5204
      %v5206 = vpop.f32.mrb[0].mxu0
      %5207 = vmatprep.mubr.f32.mxu0 0.0
      %5208 = vmatmul.mubr.f32.gmra.mrb[0].mxu0 %v5099
      %v5209 = vpop.f32.mrb[0].mxu0
      %v5210 = vadd.f32 %v5055, %v5209
      %v5211 = vpop.f32.mrb[0].mxu0
      %5212 = vmatprep.mubr.f32.mxu0 0.0
      %5213 = vmatmul.mubr.f32.gmra.mrb[0].mxu0 %v5101
      %v5214 = vpop.f32.mrb[0].mxu0
      %v5215 = vadd.f32 %v5056, %v5214
      %v5216 = vpop.f32.mrb[0].mxu0
      %5217 = vmatprep.mubr.f32.mxu0 0.0
      %5218 = vmatmul.mubr.f32.gmra.mrb[0].mxu0 %v5103
      %v5219 = vpop.f32.mrb[0].mxu0
      %v5220 = vadd.f32 %v5057, %v5219
      %v5221 = vpop.f32.mrb[0].mxu0
      %5222 = vmatprep.mubr.f32.mxu0 0.0
      %5223 = vmatmul.mubr.f32.gmra.mrb[0].mxu0 %v5105
      %v5224 = vpop.f32.mrb[0].mxu0
      %v5225 = vadd.f32 %v5058, %v5224
      %v5226 = vpop.f32.mrb[0].mxu0
      %5227 = vdwg.mxu0
      %v5228 = vsel %vm795, %v5190, -inf
      %5229 = vmax.xlane.f32.xlu0 %v5228
      %v5230 = vpop.xlane.xlu0 %5229
      %v5231 = vsel %vm795, %v5195, -inf
      %5232 = vmax.xlane.f32.xlu0 %v5231
      %v5233 = vpop.xlane.xlu0 %5232
      %v5234 = vsel %vm795, %v5200, -inf
      %5235 = vmax.xlane.f32.xlu0 %v5234
      %v5236 = vpop.xlane.xlu0 %5235
      %v5237 = vsel %vm795, %v5205, -inf
      %5238 = vmax.xlane.f32.xlu0 %v5237
      %v5239 = vpop.xlane.xlu0 %5238
      %v5240 = vsel %vm795, %v5210, -inf
      %5241 = vmax.xlane.f32.xlu0 %v5240
      %v5242 = vpop.xlane.xlu0 %5241
      %v5243 = vsel %vm795, %v5215, -inf
      %5244 = vmax.xlane.f32.xlu0 %v5243
      %v5245 = vpop.xlane.xlu0 %5244
      %v5246 = vsel %vm795, %v5220, -inf
      %5247 = vmax.xlane.f32.xlu0 %v5246
      %v5248 = vpop.xlane.xlu0 %5247
      %v5249 = vsel %vm795, %v5225, -inf
      %5250 = vmax.xlane.f32.xlu0 %v5249
      %v5251 = vpop.xlane.xlu0 %5250
      %v5252 = vsub.f32 %v5190, %v5230
      %v5253 = vsub.f32 %v5195, %v5233
      %v5254 = vsub.f32 %v5200, %v5236
      %v5255 = vsub.f32 %v5205, %v5239
      %v5256 = vsub.f32 %v5210, %v5242
      %v5257 = vsub.f32 %v5215, %v5245
      %v5258 = vsub.f32 %v5220, %v5248
      %v5259 = vsub.f32 %v5225, %v5251
      %v5260 = vmul.f32 %v5252, 1.442695
      %v5261 = vpow.pop %v5260
      %v5262 = vmul.f32 %v5253, 1.442695
      %v5263 = vpow.pop %v5262
      %v5264 = vmul.f32 %v5254, 1.442695
      %v5265 = vpow.pop %v5264
      %v5266 = vmul.f32 %v5255, 1.442695
      %v5267 = vpow.pop %v5266
      %v5268 = vmul.f32 %v5256, 1.442695
      %v5269 = vpow.pop %v5268
      %v5270 = vmul.f32 %v5257, 1.442695
      %v5271 = vpow.pop %v5270
      %v5272 = vmul.f32 %v5258, 1.442695
      %v5273 = vpow.pop %v5272
      %v5274 = vmul.f32 %v5259, 1.442695
      %v5275 = vpow.pop %v5274
      %v5276 = vsel %vm795, %v5261, 0.0
      %5277 = vadd.xlane.f32.xlu0 %v5276
      %v5278 = vpop.xlane.xlu0 %5277
      %v5279 = vsel %vm795, %v5263, 0.0
      %5280 = vadd.xlane.f32.xlu0 %v5279
      %v5281 = vpop.xlane.xlu0 %5280
      %v5282 = vsel %vm795, %v5265, 0.0
      %5283 = vadd.xlane.f32.xlu0 %v5282
      %v5284 = vpop.xlane.xlu0 %5283
      %v5285 = vsel %vm795, %v5267, 0.0
      %5286 = vadd.xlane.f32.xlu0 %v5285
      %v5287 = vpop.xlane.xlu0 %5286
      %v5288 = vsel %vm795, %v5269, 0.0
      %5289 = vadd.xlane.f32.xlu0 %v5288
      %v5290 = vpop.xlane.xlu0 %5289
      %v5291 = vsel %vm795, %v5271, 0.0
      %5292 = vadd.xlane.f32.xlu0 %v5291
      %v5293 = vpop.xlane.xlu0 %5292
      %v5294 = vsel %vm795, %v5273, 0.0
      %5295 = vadd.xlane.f32.xlu0 %v5294
      %v5296 = vpop.xlane.xlu0 %5295
      %v5297 = vsel %vm795, %v5275, 0.0
      %5298 = vadd.xlane.f32.xlu0 %v5297
      %v5299 = vpop.xlane.xlu0 %5298
      %5300 = vrot.lane.b32.xlu0 %v547, 48
      %v5301 = vpop.permute.xlu0 %5300
      %5302 = vrot.lane.b32.xlu0 %v552, 48
      %v5303 = vpop.permute.xlu0 %5302
      %5304 = vrot.lane.b32.xlu0 %v557, 48
      %v5305 = vpop.permute.xlu0 %5304
      %5306 = vrot.lane.b32.xlu0 %v562, 48
      %v5307 = vpop.permute.xlu0 %5306
      %5308 = vrot.lane.b32.xlu0 %v567, 48
      %v5309 = vpop.permute.xlu0 %5308
      %5310 = vrot.lane.b32.xlu0 %v572, 48
      %v5311 = vpop.permute.xlu0 %5310
      %5312 = vrot.lane.b32.xlu0 %v577, 48
      %v5313 = vpop.permute.xlu0 %5312
      %5314 = vrot.lane.b32.xlu0 %v582, 48
      %v5315 = vpop.permute.xlu0 %5314
      %v5325 = vsel %vm795, %v5261, 0
      %v5328 = vsel %vm795, %v5263, 0
      %v5331 = vsel %vm795, %v5265, 0
      %v5334 = vsel %vm795, %v5267, 0
      %v5337 = vsel %vm795, %v5269, 0
      %v5340 = vsel %vm795, %v5271, 0
      %v5343 = vsel %vm795, %v5273, 0
      %v5346 = vsel %vm795, %v5275, 0
      %5348 = vmatprep.subr.mxu0 0.0
      %5349 = vmatpush1.msra.mxu0 %v5301
      %5350 = vmatprep.subr.mxu0 0.0
      %5351 = vmatpush1.msra.mxu0 %v5303
      %5352 = vmatprep.subr.mxu0 0.0
      %5353 = vmatpush1.msra.mxu0 %v5305
      %5354 = vmatprep.subr.mxu0 0.0
      %5355 = vmatpush1.msra.mxu0 %v5307
      %5356 = vmatprep.subr.mxu0 0.0
      %5357 = vmatpush1.msra.mxu0 %v5309
      %5358 = vmatprep.subr.mxu0 0.0
      %5359 = vmatpush1.msra.mxu0 %v5311
      %5360 = vmatprep.subr.mxu0 0.0
      %5361 = vmatpush1.msra.mxu0 %v5313
      %5362 = vmatprep.subr.mxu0 0.0
      %5363 = vmatpush1.msra.mxu0 %v5315
      %5364 = vmatprep.subr.mxu0 0.0
      %5365 = vmatpush1.msra.mxu0 0.0
      %5366 = vmatprep.subr.mxu0 0.0
      %5367 = vmatpush1.msra.mxu0 0.0
      %5368 = vmatprep.subr.mxu0 0.0
      %5369 = vmatpush1.msra.mxu0 0.0
      %5370 = vmatprep.subr.mxu0 0.0
      %5371 = vmatpush1.msra.mxu0 0.0
      %5372 = vmatprep.subr.mxu0 0.0
      %5373 = vmatpush1.msra.mxu0 0.0
      %5374 = vmatprep.subr.mxu0 0.0
      %5375 = vmatpush1.msra.mxu0 0.0
      %5376 = vmatprep.subr.mxu0 0.0
      %5377 = vmatpush1.msra.mxu0 0.0
      %5378 = vmatprep.subr.mxu0 0.0
      %5379 = vmatpush1.msra.mxu0 0.0
      %5380 = vmatprep.subr.mxu0 0.0
      %5381 = vmatpush1.msra.mxu0 0.0
      %5382 = vmatprep.subr.mxu0 0.0
      %5383 = vmatpush1.msra.mxu0 0.0
      %5384 = vmatprep.subr.mxu0 0.0
      %5385 = vmatpush1.msra.mxu0 0.0
      %5386 = vmatprep.subr.mxu0 0.0
      %5387 = vmatpush1.msra.mxu0 0.0
      %5388 = vmatprep.subr.mxu0 0.0
      %5389 = vmatpush1.msra.mxu0 0.0
      %5390 = vmatprep.subr.mxu0 0.0
      %5391 = vmatpush1.msra.mxu0 0.0
      %5392 = vmatprep.subr.mxu0 0.0
      %5393 = vmatpush1.msra.mxu0 0.0
      %5394 = vmatprep.subr.mxu0 0.0
      %5395 = vmatpush1.msra.mxu0 0.0
      %5396 = vmatprep.subr.mxu0 0.0
      %5397 = vmatpush1.msra.mxu0 0.0
      %5398 = vmatprep.subr.mxu0 0.0
      %5399 = vmatpush1.msra.mxu0 0.0
      %5400 = vmatprep.subr.mxu0 0.0
      %5401 = vmatpush1.msra.mxu0 0.0
      %5402 = vmatprep.subr.mxu0 0.0
      %5403 = vmatpush1.msra.mxu0 0.0
      %5404 = vmatprep.subr.mxu0 0.0
      %5405 = vmatpush1.msra.mxu0 0.0
      %5406 = vmatprep.subr.mxu0 0.0
      %5407 = vmatpush1.msra.mxu0 0.0
      %5408 = vmatprep.subr.mxu0 0.0
      %5409 = vmatpush1.msra.mxu0 0.0
      %5410 = vmatprep.subr.mxu0 0.0
      %5411 = vmatpush1.msra.mxu0 0.0
      %5412 = vmatprep.mubr.f32.mxu0 0.0
      %5413 = vmatmul.mubr.f32.gmra.mrb[0].mxu0 %v5325
      %v5414 = vpop.f32.mrb[0].mxu0
      %v5415 = vadd.f32 0.0, %v5414
      %v5416 = vpop.f32.mrb[0].mxu0
      %5417 = vmatprep.mubr.f32.mxu0 0.0
      %5418 = vmatmul.mubr.f32.gmra.mrb[0].mxu0 %v5328
      %v5419 = vpop.f32.mrb[0].mxu0
      %v5420 = vadd.f32 0.0, %v5419
      %v5421 = vpop.f32.mrb[0].mxu0
      %5422 = vmatprep.mubr.f32.mxu0 0.0
      %5423 = vmatmul.mubr.f32.gmra.mrb[0].mxu0 %v5331
      %v5424 = vpop.f32.mrb[0].mxu0
      %v5425 = vadd.f32 0.0, %v5424
      %v5426 = vpop.f32.mrb[0].mxu0
      %5427 = vmatprep.mubr.f32.mxu0 0.0
      %5428 = vmatmul.mubr.f32.gmra.mrb[0].mxu0 %v5334
      %v5429 = vpop.f32.mrb[0].mxu0
      %v5430 = vadd.f32 0.0, %v5429
      %v5431 = vpop.f32.mrb[0].mxu0
      %5432 = vmatprep.mubr.f32.mxu0 0.0
      %5433 = vmatmul.mubr.f32.gmra.mrb[0].mxu0 %v5337
      %v5434 = vpop.f32.mrb[0].mxu0
      %v5435 = vadd.f32 0.0, %v5434
      %v5436 = vpop.f32.mrb[0].mxu0
      %5437 = vmatprep.mubr.f32.mxu0 0.0
      %5438 = vmatmul.mubr.f32.gmra.mrb[0].mxu0 %v5340
      %v5439 = vpop.f32.mrb[0].mxu0
      %v5440 = vadd.f32 0.0, %v5439
      %v5441 = vpop.f32.mrb[0].mxu0
      %5442 = vmatprep.mubr.f32.mxu0 0.0
      %5443 = vmatmul.mubr.f32.gmra.mrb[0].mxu0 %v5343
      %v5444 = vpop.f32.mrb[0].mxu0
      %v5445 = vadd.f32 0.0, %v5444
      %v5446 = vpop.f32.mrb[0].mxu0
      %5447 = vmatprep.mubr.f32.mxu0 0.0
      %5448 = vmatmul.mubr.f32.gmra.mrb[0].mxu0 %v5346
      %v5449 = vpop.f32.mrb[0].mxu0
      %v5450 = vadd.f32 0.0, %v5449
      %v5451 = vpop.f32.mrb[0].mxu0
      %5452 = vdwg.mxu0
      %v5453 = vrcp.pop %v5278
      %v5454 = vrcp.pop %v5281
      %v5455 = vrcp.pop %v5284
      %v5456 = vrcp.pop %v5287
      %v5457 = vrcp.pop %v5290
      %v5458 = vrcp.pop %v5293
      %v5459 = vrcp.pop %v5296
      %v5460 = vrcp.pop %v5299
      %v5461 = vmul.f32 %v5415, %v5453
      %v5462 = vmul.f32 %v5420, %v5454
      %v5463 = vmul.f32 %v5425, %v5455
      %v5464 = vmul.f32 %v5430, %v5456
      %v5465 = vmul.f32 %v5435, %v5457
      %v5466 = vmul.f32 %v5440, %v5458
      %v5467 = vmul.f32 %v5445, %v5459
      %v5468 = vmul.f32 %v5450, %v5460
      %5477 = vrot.lane.b32.xlu0 %v5461, 16
      %v5478 = vpop.permute.xlu0 %5477
      %5479 = vrot.lane.b32.xlu0 %v5462, 16
      %v5480 = vpop.permute.xlu0 %5479
      %5481 = vrot.lane.b32.xlu0 %v5463, 16
      %v5482 = vpop.permute.xlu0 %5481
      %5483 = vrot.lane.b32.xlu0 %v5464, 16
      %v5484 = vpop.permute.xlu0 %5483
      %5485 = vrot.lane.b32.xlu0 %v5465, 16
      %v5486 = vpop.permute.xlu0 %5485
      %5487 = vrot.lane.b32.xlu0 %v5466, 16
      %v5488 = vpop.permute.xlu0 %5487
      %5489 = vrot.lane.b32.xlu0 %v5467, 16
      %v5490 = vpop.permute.xlu0 %5489
      %5491 = vrot.lane.b32.xlu0 %v5468, 16
      %v5492 = vpop.permute.xlu0 %5491
      %5501 = vst.msk [vmem:[#allocation2 + $0x80] sm:$0xff] %vm4584, %v5478
      %5502 = vst.msk [vmem:[#allocation2 + $0x88] sm:$0xff] %vm4584, %v5480
      %5503 = vst.msk [vmem:[#allocation2 + $0x90] sm:$0xff] %vm4584, %v5482
      %5504 = vst.msk [vmem:[#allocation2 + $0x98] sm:$0xff] %vm4584, %v5484
      %5505 = vst.msk [vmem:[#allocation2 + $0xa0] sm:$0xff] %vm4584, %v5486
      %5506 = vst.msk [vmem:[#allocation2 + $0xa8] sm:$0xff] %vm4584, %v5488
      %5507 = vst.msk [vmem:[#allocation2 + $0xb0] sm:$0xff] %vm4584, %v5490
      %5508 = vst.msk [vmem:[#allocation2 + $0xb8] sm:$0xff] %vm4584, %v5492
      %v5509 = vld [vmem:[%s4133] sm:$0xff]
      %v5510 = vld [vmem:[%s4133 + $0x8] sm:$0xff]
      %v5511 = vld [vmem:[%s4133 + $0x10] sm:$0xff]
      %v5512 = vld [vmem:[%s4133 + $0x18] sm:$0xff]
      %v5513 = vld [vmem:[%s4133 + $0x20] sm:$0xff]
      %v5514 = vld [vmem:[%s4133 + $0x28] sm:$0xff]
      %v5515 = vld [vmem:[%s4133 + $0x30] sm:$0xff]
      %v5516 = vld [vmem:[%s4133 + $0x38] sm:$0xff]
      %5517 = vrot.lane.b32.xlu0 %v587, 112
      %v5518 = vpop.permute.xlu0 %5517
      %5519 = vrot.lane.b32.xlu0 %v592, 112
      %v5520 = vpop.permute.xlu0 %5519
      %5521 = vrot.lane.b32.xlu0 %v597, 112
      %v5522 = vpop.permute.xlu0 %5521
      %5523 = vrot.lane.b32.xlu0 %v602, 112
      %v5524 = vpop.permute.xlu0 %5523
      %5525 = vrot.lane.b32.xlu0 %v607, 112
      %v5526 = vpop.permute.xlu0 %5525
      %5527 = vrot.lane.b32.xlu0 %v612, 112
      %v5528 = vpop.permute.xlu0 %5527
      %5529 = vrot.lane.b32.xlu0 %v617, 112
      %v5530 = vpop.permute.xlu0 %5529
      %5531 = vrot.lane.b32.xlu0 %v622, 112
      %v5532 = vpop.permute.xlu0 %5531
      %5533 = vrot.lane.b32.xlu0 %v587, 80
      %v5534 = vpop.permute.xlu0 %5533
      %5535 = vrot.lane.b32.xlu0 %v592, 80
      %v5536 = vpop.permute.xlu0 %5535
      %5537 = vrot.lane.b32.xlu0 %v597, 80
      %v5538 = vpop.permute.xlu0 %5537
      %5539 = vrot.lane.b32.xlu0 %v602, 80
      %v5540 = vpop.permute.xlu0 %5539
      %5541 = vrot.lane.b32.xlu0 %v607, 80
      %v5542 = vpop.permute.xlu0 %5541
      %5543 = vrot.lane.b32.xlu0 %v612, 80
      %v5544 = vpop.permute.xlu0 %5543
      %5545 = vrot.lane.b32.xlu0 %v617, 80
      %v5546 = vpop.permute.xlu0 %5545
      %5547 = vrot.lane.b32.xlu0 %v622, 80
      %v5548 = vpop.permute.xlu0 %5547
      %v5549 = vsel %vm657, %v5518, 0
      %v5551 = vsel %vm657, %v5520, 0
      %v5553 = vsel %vm657, %v5522, 0
      %v5555 = vsel %vm657, %v5524, 0
      %v5557 = vsel %vm657, %v5526, 0
      %v5559 = vsel %vm657, %v5528, 0
      %v5561 = vsel %vm657, %v5530, 0
      %v5563 = vsel %vm657, %v5532, 0
      %v5565 = vsel %vm657, %v5534, 0
      %v5567 = vsel %vm657, %v5536, 0
      %v5569 = vsel %vm657, %v5538, 0
      %v5571 = vsel %vm657, %v5540, 0
      %v5573 = vsel %vm657, %v5542, 0
      %v5575 = vsel %vm657, %v5544, 0
      %v5577 = vsel %vm657, %v5546, 0
      %v5579 = vsel %vm657, %v5548, 0
      %5581 = vmatprep.subr.mxu0 0.0
      %5582 = vmatpush1.xpose.msra.mxu0 %v5565
      %5583 = vmatprep.subr.mxu0 0.0
      %5584 = vmatpush1.xpose.msra.mxu0 %v5567
      %5585 = vmatprep.subr.mxu0 0.0
      %5586 = vmatpush1.xpose.msra.mxu0 %v5569
      %5587 = vmatprep.subr.mxu0 0.0
      %5588 = vmatpush1.xpose.msra.mxu0 %v5571
      %5589 = vmatprep.subr.mxu0 0.0
      %5590 = vmatpush1.xpose.msra.mxu0 %v5573
      %5591 = vmatprep.subr.mxu0 0.0
      %5592 = vmatpush1.xpose.msra.mxu0 %v5575
      %5593 = vmatprep.subr.mxu0 0.0
      %5594 = vmatpush1.xpose.msra.mxu0 %v5577
      %5595 = vmatprep.subr.mxu0 0.0
      %5596 = vmatpush1.xpose.msra.mxu0 %v5579
      %5597 = vmatprep.subr.mxu0 0.0
      %5598 = vmatpush1.xpose.msra.mxu0 0.0
      %5599 = vmatprep.subr.mxu0 0.0
      %5600 = vmatpush1.xpose.msra.mxu0 0.0
      %5601 = vmatprep.subr.mxu0 0.0
      %5602 = vmatpush1.xpose.msra.mxu0 0.0
      %5603 = vmatprep.subr.mxu0 0.0
      %5604 = vmatpush1.xpose.msra.mxu0 0.0
      %5605 = vmatprep.subr.mxu0 0.0
      %5606 = vmatpush1.xpose.msra.mxu0 0.0
      %5607 = vmatprep.subr.mxu0 0.0
      %5608 = vmatpush1.xpose.msra.mxu0 0.0
      %5609 = vmatprep.subr.mxu0 0.0
      %5610 = vmatpush1.xpose.msra.mxu0 0.0
      %5611 = vmatprep.subr.mxu0 0.0
      %5612 = vmatpush1.xpose.msra.mxu0 0.0
      %5613 = vmatprep.subr.mxu0 0.0
      %5614 = vmatpush1.xpose.msra.mxu0 0.0
      %5615 = vmatprep.subr.mxu0 0.0
      %5616 = vmatpush1.xpose.msra.mxu0 0.0
      %5617 = vmatprep.subr.mxu0 0.0
      %5618 = vmatpush1.xpose.msra.mxu0 0.0
      %5619 = vmatprep.subr.mxu0 0.0
      %5620 = vmatpush1.xpose.msra.mxu0 0.0
      %5621 = vmatprep.subr.mxu0 0.0
      %5622 = vmatpush1.xpose.msra.mxu0 0.0
      %5623 = vmatprep.subr.mxu0 0.0
      %5624 = vmatpush1.xpose.msra.mxu0 0.0
      %5625 = vmatprep.subr.mxu0 0.0
      %5626 = vmatpush1.xpose.msra.mxu0 0.0
      %5627 = vmatprep.subr.mxu0 0.0
      %5628 = vmatpush1.xpose.msra.mxu0 0.0
      %5629 = vmatprep.subr.mxu0 0.0
      %5630 = vmatpush1.xpose.msra.mxu0 0.0
      %5631 = vmatprep.subr.mxu0 0.0
      %5632 = vmatpush1.xpose.msra.mxu0 0.0
      %5633 = vmatprep.subr.mxu0 0.0
      %5634 = vmatpush1.xpose.msra.mxu0 0.0
      %5635 = vmatprep.subr.mxu0 0.0
      %5636 = vmatpush1.xpose.msra.mxu0 0.0
      %5637 = vmatprep.subr.mxu0 0.0
      %5638 = vmatpush1.xpose.msra.mxu0 0.0
      %5639 = vmatprep.subr.mxu0 0.0
      %5640 = vmatpush1.xpose.msra.mxu0 0.0
      %5641 = vmatprep.subr.mxu0 0.0
      %5642 = vmatpush1.xpose.msra.mxu0 0.0
      %5643 = vmatprep.subr.mxu0 0.0
      %5644 = vmatpush1.xpose.msra.mxu0 0.0
      %5645 = vmatprep.mubr.f32.mxu0 0.0
      %5646 = vmatmul.mubr.f32.gmra.mrb[0].mxu0 %v5549
      %v5647 = vpop.f32.mrb[0].mxu0
      %v5648 = vadd.f32 %v5509, %v5647
      %v5649 = vpop.f32.mrb[0].mxu0
      %5650 = vmatprep.mubr.f32.mxu0 0.0
      %5651 = vmatmul.mubr.f32.gmra.mrb[0].mxu0 %v5551
      %v5652 = vpop.f32.mrb[0].mxu0
      %v5653 = vadd.f32 %v5510, %v5652
      %v5654 = vpop.f32.mrb[0].mxu0
      %5655 = vmatprep.mubr.f32.mxu0 0.0
      %5656 = vmatmul.mubr.f32.gmra.mrb[0].mxu0 %v5553
      %v5657 = vpop.f32.mrb[0].mxu0
      %v5658 = vadd.f32 %v5511, %v5657
      %v5659 = vpop.f32.mrb[0].mxu0
      %5660 = vmatprep.mubr.f32.mxu0 0.0
      %5661 = vmatmul.mubr.f32.gmra.mrb[0].mxu0 %v5555
      %v5662 = vpop.f32.mrb[0].mxu0
      %v5663 = vadd.f32 %v5512, %v5662
      %v5664 = vpop.f32.mrb[0].mxu0
      %5665 = vmatprep.mubr.f32.mxu0 0.0
      %5666 = vmatmul.mubr.f32.gmra.mrb[0].mxu0 %v5557
      %v5667 = vpop.f32.mrb[0].mxu0
      %v5668 = vadd.f32 %v5513, %v5667
      %v5669 = vpop.f32.mrb[0].mxu0
      %5670 = vmatprep.mubr.f32.mxu0 0.0
      %5671 = vmatmul.mubr.f32.gmra.mrb[0].mxu0 %v5559
      %v5672 = vpop.f32.mrb[0].mxu0
      %v5673 = vadd.f32 %v5514, %v5672
      %v5674 = vpop.f32.mrb[0].mxu0
      %5675 = vmatprep.mubr.f32.mxu0 0.0
      %5676 = vmatmul.mubr.f32.gmra.mrb[0].mxu0 %v5561
      %v5677 = vpop.f32.mrb[0].mxu0
      %v5678 = vadd.f32 %v5515, %v5677
      %v5679 = vpop.f32.mrb[0].mxu0
      %5680 = vmatprep.mubr.f32.mxu0 0.0
      %5681 = vmatmul.mubr.f32.gmra.mrb[0].mxu0 %v5563
      %v5682 = vpop.f32.mrb[0].mxu0
      %v5683 = vadd.f32 %v5516, %v5682
      %v5684 = vpop.f32.mrb[0].mxu0
      %5685 = vdwg.mxu0
      %v5686 = vsel %vm795, %v5648, -inf
      %5687 = vmax.xlane.f32.xlu0 %v5686
      %v5688 = vpop.xlane.xlu0 %5687
      %v5689 = vsel %vm795, %v5653, -inf
      %5690 = vmax.xlane.f32.xlu0 %v5689
      %v5691 = vpop.xlane.xlu0 %5690
      %v5692 = vsel %vm795, %v5658, -inf
      %5693 = vmax.xlane.f32.xlu0 %v5692
      %v5694 = vpop.xlane.xlu0 %5693
      %v5695 = vsel %vm795, %v5663, -inf
      %5696 = vmax.xlane.f32.xlu0 %v5695
      %v5697 = vpop.xlane.xlu0 %5696
      %v5698 = vsel %vm795, %v5668, -inf
      %5699 = vmax.xlane.f32.xlu0 %v5698
      %v5700 = vpop.xlane.xlu0 %5699
      %v5701 = vsel %vm795, %v5673, -inf
      %5702 = vmax.xlane.f32.xlu0 %v5701
      %v5703 = vpop.xlane.xlu0 %5702
      %v5704 = vsel %vm795, %v5678, -inf
      %5705 = vmax.xlane.f32.xlu0 %v5704
      %v5706 = vpop.xlane.xlu0 %5705
      %v5707 = vsel %vm795, %v5683, -inf
      %5708 = vmax.xlane.f32.xlu0 %v5707
      %v5709 = vpop.xlane.xlu0 %5708
      %v5710 = vsub.f32 %v5648, %v5688
      %v5711 = vsub.f32 %v5653, %v5691
      %v5712 = vsub.f32 %v5658, %v5694
      %v5713 = vsub.f32 %v5663, %v5697
      %v5714 = vsub.f32 %v5668, %v5700
      %v5715 = vsub.f32 %v5673, %v5703
      %v5716 = vsub.f32 %v5678, %v5706
      %v5717 = vsub.f32 %v5683, %v5709
      %v5718 = vmul.f32 %v5710, 1.442695
      %v5719 = vpow.pop %v5718
      %v5720 = vmul.f32 %v5711, 1.442695
      %v5721 = vpow.pop %v5720
      %v5722 = vmul.f32 %v5712, 1.442695
      %v5723 = vpow.pop %v5722
      %v5724 = vmul.f32 %v5713, 1.442695
      %v5725 = vpow.pop %v5724
      %v5726 = vmul.f32 %v5714, 1.442695
      %v5727 = vpow.pop %v5726
      %v5728 = vmul.f32 %v5715, 1.442695
      %v5729 = vpow.pop %v5728
      %v5730 = vmul.f32 %v5716, 1.442695
      %v5731 = vpow.pop %v5730
      %v5732 = vmul.f32 %v5717, 1.442695
      %v5733 = vpow.pop %v5732
      %v5734 = vsel %vm795, %v5719, 0.0
      %5735 = vadd.xlane.f32.xlu0 %v5734
      %v5736 = vpop.xlane.xlu0 %5735
      %v5737 = vsel %vm795, %v5721, 0.0
      %5738 = vadd.xlane.f32.xlu0 %v5737
      %v5739 = vpop.xlane.xlu0 %5738
      %v5740 = vsel %vm795, %v5723, 0.0
      %5741 = vadd.xlane.f32.xlu0 %v5740
      %v5742 = vpop.xlane.xlu0 %5741
      %v5743 = vsel %vm795, %v5725, 0.0
      %5744 = vadd.xlane.f32.xlu0 %v5743
      %v5745 = vpop.xlane.xlu0 %5744
      %v5746 = vsel %vm795, %v5727, 0.0
      %5747 = vadd.xlane.f32.xlu0 %v5746
      %v5748 = vpop.xlane.xlu0 %5747
      %v5749 = vsel %vm795, %v5729, 0.0
      %5750 = vadd.xlane.f32.xlu0 %v5749
      %v5751 = vpop.xlane.xlu0 %5750
      %v5752 = vsel %vm795, %v5731, 0.0
      %5753 = vadd.xlane.f32.xlu0 %v5752
      %v5754 = vpop.xlane.xlu0 %5753
      %v5755 = vsel %vm795, %v5733, 0.0
      %5756 = vadd.xlane.f32.xlu0 %v5755
      %v5757 = vpop.xlane.xlu0 %5756
      %5758 = vrot.lane.b32.xlu0 %v587, 48
      %v5759 = vpop.permute.xlu0 %5758
      %5760 = vrot.lane.b32.xlu0 %v592, 48
      %v5761 = vpop.permute.xlu0 %5760
      %5762 = vrot.lane.b32.xlu0 %v597, 48
      %v5763 = vpop.permute.xlu0 %5762
      %5764 = vrot.lane.b32.xlu0 %v602, 48
      %v5765 = vpop.permute.xlu0 %5764
      %5766 = vrot.lane.b32.xlu0 %v607, 48
      %v5767 = vpop.permute.xlu0 %5766
      %5768 = vrot.lane.b32.xlu0 %v612, 48
      %v5769 = vpop.permute.xlu0 %5768
      %5770 = vrot.lane.b32.xlu0 %v617, 48
      %v5771 = vpop.permute.xlu0 %5770
      %5772 = vrot.lane.b32.xlu0 %v622, 48
      %v5773 = vpop.permute.xlu0 %5772
      %v5783 = vsel %vm795, %v5719, 0
      %v5786 = vsel %vm795, %v5721, 0
      %v5789 = vsel %vm795, %v5723, 0
      %v5792 = vsel %vm795, %v5725, 0
      %v5795 = vsel %vm795, %v5727, 0
      %v5798 = vsel %vm795, %v5729, 0
      %v5801 = vsel %vm795, %v5731, 0
      %v5804 = vsel %vm795, %v5733, 0
      %5806 = vmatprep.subr.mxu0 0.0
      %5807 = vmatpush1.msra.mxu0 %v5759
      %5808 = vmatprep.subr.mxu0 0.0
      %5809 = vmatpush1.msra.mxu0 %v5761
      %5810 = vmatprep.subr.mxu0 0.0
      %5811 = vmatpush1.msra.mxu0 %v5763
      %5812 = vmatprep.subr.mxu0 0.0
      %5813 = vmatpush1.msra.mxu0 %v5765
      %5814 = vmatprep.subr.mxu0 0.0
      %5815 = vmatpush1.msra.mxu0 %v5767
      %5816 = vmatprep.subr.mxu0 0.0
      %5817 = vmatpush1.msra.mxu0 %v5769
      %5818 = vmatprep.subr.mxu0 0.0
      %5819 = vmatpush1.msra.mxu0 %v5771
      %5820 = vmatprep.subr.mxu0 0.0
      %5821 = vmatpush1.msra.mxu0 %v5773
      %5822 = vmatprep.subr.mxu0 0.0
      %5823 = vmatpush1.msra.mxu0 0.0
      %5824 = vmatprep.subr.mxu0 0.0
      %5825 = vmatpush1.msra.mxu0 0.0
      %5826 = vmatprep.subr.mxu0 0.0
      %5827 = vmatpush1.msra.mxu0 0.0
      %5828 = vmatprep.subr.mxu0 0.0
      %5829 = vmatpush1.msra.mxu0 0.0
      %5830 = vmatprep.subr.mxu0 0.0
      %5831 = vmatpush1.msra.mxu0 0.0
      %5832 = vmatprep.subr.mxu0 0.0
      %5833 = vmatpush1.msra.mxu0 0.0
      %5834 = vmatprep.subr.mxu0 0.0
      %5835 = vmatpush1.msra.mxu0 0.0
      %5836 = vmatprep.subr.mxu0 0.0
      %5837 = vmatpush1.msra.mxu0 0.0
      %5838 = vmatprep.subr.mxu0 0.0
      %5839 = vmatpush1.msra.mxu0 0.0
      %5840 = vmatprep.subr.mxu0 0.0
      %5841 = vmatpush1.msra.mxu0 0.0
      %5842 = vmatprep.subr.mxu0 0.0
      %5843 = vmatpush1.msra.mxu0 0.0
      %5844 = vmatprep.subr.mxu0 0.0
      %5845 = vmatpush1.msra.mxu0 0.0
      %5846 = vmatprep.subr.mxu0 0.0
      %5847 = vmatpush1.msra.mxu0 0.0
      %5848 = vmatprep.subr.mxu0 0.0
      %5849 = vmatpush1.msra.mxu0 0.0
      %5850 = vmatprep.subr.mxu0 0.0
      %5851 = vmatpush1.msra.mxu0 0.0
      %5852 = vmatprep.subr.mxu0 0.0
      %5853 = vmatpush1.msra.mxu0 0.0
      %5854 = vmatprep.subr.mxu0 0.0
      %5855 = vmatpush1.msra.mxu0 0.0
      %5856 = vmatprep.subr.mxu0 0.0
      %5857 = vmatpush1.msra.mxu0 0.0
      %5858 = vmatprep.subr.mxu0 0.0
      %5859 = vmatpush1.msra.mxu0 0.0
      %5860 = vmatprep.subr.mxu0 0.0
      %5861 = vmatpush1.msra.mxu0 0.0
      %5862 = vmatprep.subr.mxu0 0.0
      %5863 = vmatpush1.msra.mxu0 0.0
      %5864 = vmatprep.subr.mxu0 0.0
      %5865 = vmatpush1.msra.mxu0 0.0
      %5866 = vmatprep.subr.mxu0 0.0
      %5867 = vmatpush1.msra.mxu0 0.0
      %5868 = vmatprep.subr.mxu0 0.0
      %5869 = vmatpush1.msra.mxu0 0.0
      %5870 = vmatprep.mubr.f32.mxu0 0.0
      %5871 = vmatmul.mubr.f32.gmra.mrb[0].mxu0 %v5783
      %v5872 = vpop.f32.mrb[0].mxu0
      %v5873 = vadd.f32 0.0, %v5872
      %v5874 = vpop.f32.mrb[0].mxu0
      %5875 = vmatprep.mubr.f32.mxu0 0.0
      %5876 = vmatmul.mubr.f32.gmra.mrb[0].mxu0 %v5786
      %v5877 = vpop.f32.mrb[0].mxu0
      %v5878 = vadd.f32 0.0, %v5877
      %v5879 = vpop.f32.mrb[0].mxu0
      %5880 = vmatprep.mubr.f32.mxu0 0.0
      %5881 = vmatmul.mubr.f32.gmra.mrb[0].mxu0 %v5789
      %v5882 = vpop.f32.mrb[0].mxu0
      %v5883 = vadd.f32 0.0, %v5882
      %v5884 = vpop.f32.mrb[0].mxu0
      %5885 = vmatprep.mubr.f32.mxu0 0.0
      %5886 = vmatmul.mubr.f32.gmra.mrb[0].mxu0 %v5792
      %v5887 = vpop.f32.mrb[0].mxu0
      %v5888 = vadd.f32 0.0, %v5887
      %v5889 = vpop.f32.mrb[0].mxu0
      %5890 = vmatprep.mubr.f32.mxu0 0.0
      %5891 = vmatmul.mubr.f32.gmra.mrb[0].mxu0 %v5795
      %v5892 = vpop.f32.mrb[0].mxu0
      %v5893 = vadd.f32 0.0, %v5892
      %v5894 = vpop.f32.mrb[0].mxu0
      %5895 = vmatprep.mubr.f32.mxu0 0.0
      %5896 = vmatmul.mubr.f32.gmra.mrb[0].mxu0 %v5798
      %v5897 = vpop.f32.mrb[0].mxu0
      %v5898 = vadd.f32 0.0, %v5897
      %v5899 = vpop.f32.mrb[0].mxu0
      %5900 = vmatprep.mubr.f32.mxu0 0.0
      %5901 = vmatmul.mubr.f32.gmra.mrb[0].mxu0 %v5801
      %v5902 = vpop.f32.mrb[0].mxu0
      %v5903 = vadd.f32 0.0, %v5902
      %v5904 = vpop.f32.mrb[0].mxu0
      %5905 = vmatprep.mubr.f32.mxu0 0.0
      %5906 = vmatmul.mubr.f32.gmra.mrb[0].mxu0 %v5804
      %v5907 = vpop.f32.mrb[0].mxu0
      %v5908 = vadd.f32 0.0, %v5907
      %v5909 = vpop.f32.mrb[0].mxu0
      %5910 = vdwg.mxu0
      %v5911 = vrcp.pop %v5736
      %v5912 = vrcp.pop %v5739
      %v5913 = vrcp.pop %v5742
      %v5914 = vrcp.pop %v5745
      %v5915 = vrcp.pop %v5748
      %v5916 = vrcp.pop %v5751
      %v5917 = vrcp.pop %v5754
      %v5918 = vrcp.pop %v5757
      %v5919 = vmul.f32 %v5873, %v5911
      %v5920 = vmul.f32 %v5878, %v5912
      %v5921 = vmul.f32 %v5883, %v5913
      %v5922 = vmul.f32 %v5888, %v5914
      %v5923 = vmul.f32 %v5893, %v5915
      %v5924 = vmul.f32 %v5898, %v5916
      %v5925 = vmul.f32 %v5903, %v5917
      %v5926 = vmul.f32 %v5908, %v5918
      %5935 = vrot.lane.b32.xlu0 %v5919, 16
      %v5936 = vpop.permute.xlu0 %5935
      %5937 = vrot.lane.b32.xlu0 %v5920, 16
      %v5938 = vpop.permute.xlu0 %5937
      %5939 = vrot.lane.b32.xlu0 %v5921, 16
      %v5940 = vpop.permute.xlu0 %5939
      %5941 = vrot.lane.b32.xlu0 %v5922, 16
      %v5942 = vpop.permute.xlu0 %5941
      %5943 = vrot.lane.b32.xlu0 %v5923, 16
      %v5944 = vpop.permute.xlu0 %5943
      %5945 = vrot.lane.b32.xlu0 %v5924, 16
      %v5946 = vpop.permute.xlu0 %5945
      %5947 = vrot.lane.b32.xlu0 %v5925, 16
      %v5948 = vpop.permute.xlu0 %5947
      %5949 = vrot.lane.b32.xlu0 %v5926, 16
      %v5950 = vpop.permute.xlu0 %5949
      %5959 = vst.msk [vmem:[#allocation2 + $0xc0] sm:$0xff] %vm4584, %v5936
      %5960 = vst.msk [vmem:[#allocation2 + $0xc8] sm:$0xff] %vm4584, %v5938
      %5961 = vst.msk [vmem:[#allocation2 + $0xd0] sm:$0xff] %vm4584, %v5940
      %5962 = vst.msk [vmem:[#allocation2 + $0xd8] sm:$0xff] %vm4584, %v5942
      %5963 = vst.msk [vmem:[#allocation2 + $0xe0] sm:$0xff] %vm4584, %v5944
      %5964 = vst.msk [vmem:[#allocation2 + $0xe8] sm:$0xff] %vm4584, %v5946
      %5965 = vst.msk [vmem:[#allocation2 + $0xf0] sm:$0xff] %vm4584, %v5948
      %5966 = vst.msk [vmem:[#allocation2 + $0xf8] sm:$0xff] %vm4584, %v5950
      %s5967 = scalar_lea.vmem %s1, 192
      %v5968 = vld [vmem:[%s5967] sm:$0xff]
      %v5969 = vld [vmem:[%s5967 + $0x8] sm:$0xff]
      %v5970 = vld [vmem:[%s5967 + $0x10] sm:$0xff]
      %v5971 = vld [vmem:[%s5967 + $0x18] sm:$0xff]
      %v5972 = vld [vmem:[%s5967 + $0x20] sm:$0xff]
      %v5973 = vld [vmem:[%s5967 + $0x28] sm:$0xff]
      %v5974 = vld [vmem:[%s5967 + $0x30] sm:$0xff]
      %v5975 = vld [vmem:[%s5967 + $0x38] sm:$0xff]
      %5976 = vrot.lane.b32.xlu0 %v467, 104
      %v5977 = vpop.permute.xlu0 %5976
      %5978 = vrot.lane.b32.xlu0 %v472, 104
      %v5979 = vpop.permute.xlu0 %5978
      %5980 = vrot.lane.b32.xlu0 %v477, 104
      %v5981 = vpop.permute.xlu0 %5980
      %5982 = vrot.lane.b32.xlu0 %v482, 104
      %v5983 = vpop.permute.xlu0 %5982
      %5984 = vrot.lane.b32.xlu0 %v487, 104
      %v5985 = vpop.permute.xlu0 %5984
      %5986 = vrot.lane.b32.xlu0 %v492, 104
      %v5987 = vpop.permute.xlu0 %5986
      %5988 = vrot.lane.b32.xlu0 %v497, 104
      %v5989 = vpop.permute.xlu0 %5988
      %5990 = vrot.lane.b32.xlu0 %v502, 104
      %v5991 = vpop.permute.xlu0 %5990
      %5992 = vrot.lane.b32.xlu0 %v467, 72
      %v5993 = vpop.permute.xlu0 %5992
      %5994 = vrot.lane.b32.xlu0 %v472, 72
      %v5995 = vpop.permute.xlu0 %5994
      %5996 = vrot.lane.b32.xlu0 %v477, 72
      %v5997 = vpop.permute.xlu0 %5996
      %5998 = vrot.lane.b32.xlu0 %v482, 72
      %v5999 = vpop.permute.xlu0 %5998
      %6000 = vrot.lane.b32.xlu0 %v487, 72
      %v6001 = vpop.permute.xlu0 %6000
      %6002 = vrot.lane.b32.xlu0 %v492, 72
      %v6003 = vpop.permute.xlu0 %6002
      %6004 = vrot.lane.b32.xlu0 %v497, 72
      %v6005 = vpop.permute.xlu0 %6004
      %6006 = vrot.lane.b32.xlu0 %v502, 72
      %v6007 = vpop.permute.xlu0 %6006
      %v6008 = vsel %vm657, %v5977, 0
      %v6010 = vsel %vm657, %v5979, 0
      %v6012 = vsel %vm657, %v5981, 0
      %v6014 = vsel %vm657, %v5983, 0
      %v6016 = vsel %vm657, %v5985, 0
      %v6018 = vsel %vm657, %v5987, 0
      %v6020 = vsel %vm657, %v5989, 0
      %v6022 = vsel %vm657, %v5991, 0
      %v6024 = vsel %vm657, %v5993, 0
      %v6026 = vsel %vm657, %v5995, 0
      %v6028 = vsel %vm657, %v5997, 0
      %v6030 = vsel %vm657, %v5999, 0
      %v6032 = vsel %vm657, %v6001, 0
      %v6034 = vsel %vm657, %v6003, 0
      %v6036 = vsel %vm657, %v6005, 0
      %v6038 = vsel %vm657, %v6007, 0
      %6040 = vmatprep.subr.mxu0 0.0
      %6041 = vmatpush1.xpose.msra.mxu0 %v6024
      %6042 = vmatprep.subr.mxu0 0.0
      %6043 = vmatpush1.xpose.msra.mxu0 %v6026
      %6044 = vmatprep.subr.mxu0 0.0
      %6045 = vmatpush1.xpose.msra.mxu0 %v6028
      %6046 = vmatprep.subr.mxu0 0.0
      %6047 = vmatpush1.xpose.msra.mxu0 %v6030
      %6048 = vmatprep.subr.mxu0 0.0
      %6049 = vmatpush1.xpose.msra.mxu0 %v6032
      %6050 = vmatprep.subr.mxu0 0.0
      %6051 = vmatpush1.xpose.msra.mxu0 %v6034
      %6052 = vmatprep.subr.mxu0 0.0
      %6053 = vmatpush1.xpose.msra.mxu0 %v6036
      %6054 = vmatprep.subr.mxu0 0.0
      %6055 = vmatpush1.xpose.msra.mxu0 %v6038
      %6056 = vmatprep.subr.mxu0 0.0
      %6057 = vmatpush1.xpose.msra.mxu0 0.0
      %6058 = vmatprep.subr.mxu0 0.0
      %6059 = vmatpush1.xpose.msra.mxu0 0.0
      %6060 = vmatprep.subr.mxu0 0.0
      %6061 = vmatpush1.xpose.msra.mxu0 0.0
      %6062 = vmatprep.subr.mxu0 0.0
      %6063 = vmatpush1.xpose.msra.mxu0 0.0
      %6064 = vmatprep.subr.mxu0 0.0
      %6065 = vmatpush1.xpose.msra.mxu0 0.0
      %6066 = vmatprep.subr.mxu0 0.0
      %6067 = vmatpush1.xpose.msra.mxu0 0.0
      %6068 = vmatprep.subr.mxu0 0.0
      %6069 = vmatpush1.xpose.msra.mxu0 0.0
      %6070 = vmatprep.subr.mxu0 0.0
      %6071 = vmatpush1.xpose.msra.mxu0 0.0
      %6072 = vmatprep.subr.mxu0 0.0
      %6073 = vmatpush1.xpose.msra.mxu0 0.0
      %6074 = vmatprep.subr.mxu0 0.0
      %6075 = vmatpush1.xpose.msra.mxu0 0.0
      %6076 = vmatprep.subr.mxu0 0.0
      %6077 = vmatpush1.xpose.msra.mxu0 0.0
      %6078 = vmatprep.subr.mxu0 0.0
      %6079 = vmatpush1.xpose.msra.mxu0 0.0
      %6080 = vmatprep.subr.mxu0 0.0
      %6081 = vmatpush1.xpose.msra.mxu0 0.0
      %6082 = vmatprep.subr.mxu0 0.0
      %6083 = vmatpush1.xpose.msra.mxu0 0.0
      %6084 = vmatprep.subr.mxu0 0.0
      %6085 = vmatpush1.xpose.msra.mxu0 0.0
      %6086 = vmatprep.subr.mxu0 0.0
      %6087 = vmatpush1.xpose.msra.mxu0 0.0
      %6088 = vmatprep.subr.mxu0 0.0
      %6089 = vmatpush1.xpose.msra.mxu0 0.0
      %6090 = vmatprep.subr.mxu0 0.0
      %6091 = vmatpush1.xpose.msra.mxu0 0.0
      %6092 = vmatprep.subr.mxu0 0.0
      %6093 = vmatpush1.xpose.msra.mxu0 0.0
      %6094 = vmatprep.subr.mxu0 0.0
      %6095 = vmatpush1.xpose.msra.mxu0 0.0
      %6096 = vmatprep.subr.mxu0 0.0
      %6097 = vmatpush1.xpose.msra.mxu0 0.0
      %6098 = vmatprep.subr.mxu0 0.0
      %6099 = vmatpush1.xpose.msra.mxu0 0.0
      %6100 = vmatprep.subr.mxu0 0.0
      %6101 = vmatpush1.xpose.msra.mxu0 0.0
      %6102 = vmatprep.subr.mxu0 0.0
      %6103 = vmatpush1.xpose.msra.mxu0 0.0
      %6104 = vmatprep.mubr.f32.mxu0 0.0
      %6105 = vmatmul.mubr.f32.gmra.mrb[0].mxu0 %v6008
      %v6106 = vpop.f32.mrb[0].mxu0
      %v6107 = vadd.f32 %v5968, %v6106
      %v6108 = vpop.f32.mrb[0].mxu0
      %6109 = vmatprep.mubr.f32.mxu0 0.0
      %6110 = vmatmul.mubr.f32.gmra.mrb[0].mxu0 %v6010
      %v6111 = vpop.f32.mrb[0].mxu0
      %v6112 = vadd.f32 %v5969, %v6111
      %v6113 = vpop.f32.mrb[0].mxu0
      %6114 = vmatprep.mubr.f32.mxu0 0.0
      %6115 = vmatmul.mubr.f32.gmra.mrb[0].mxu0 %v6012
      %v6116 = vpop.f32.mrb[0].mxu0
      %v6117 = vadd.f32 %v5970, %v6116
      %v6118 = vpop.f32.mrb[0].mxu0
      %6119 = vmatprep.mubr.f32.mxu0 0.0
      %6120 = vmatmul.mubr.f32.gmra.mrb[0].mxu0 %v6014
      %v6121 = vpop.f32.mrb[0].mxu0
      %v6122 = vadd.f32 %v5971, %v6121
      %v6123 = vpop.f32.mrb[0].mxu0
      %6124 = vmatprep.mubr.f32.mxu0 0.0
      %6125 = vmatmul.mubr.f32.gmra.mrb[0].mxu0 %v6016
      %v6126 = vpop.f32.mrb[0].mxu0
      %v6127 = vadd.f32 %v5972, %v6126
      %v6128 = vpop.f32.mrb[0].mxu0
      %6129 = vmatprep.mubr.f32.mxu0 0.0
      %6130 = vmatmul.mubr.f32.gmra.mrb[0].mxu0 %v6018
      %v6131 = vpop.f32.mrb[0].mxu0
      %v6132 = vadd.f32 %v5973, %v6131
      %v6133 = vpop.f32.mrb[0].mxu0
      %6134 = vmatprep.mubr.f32.mxu0 0.0
      %6135 = vmatmul.mubr.f32.gmra.mrb[0].mxu0 %v6020
      %v6136 = vpop.f32.mrb[0].mxu0
      %v6137 = vadd.f32 %v5974, %v6136
      %v6138 = vpop.f32.mrb[0].mxu0
      %6139 = vmatprep.mubr.f32.mxu0 0.0
      %6140 = vmatmul.mubr.f32.gmra.mrb[0].mxu0 %v6022
      %v6141 = vpop.f32.mrb[0].mxu0
      %v6142 = vadd.f32 %v5975, %v6141
      %v6143 = vpop.f32.mrb[0].mxu0
      %6144 = vdwg.mxu0
      %v6145 = vsel %vm795, %v6107, -inf
      %6146 = vmax.xlane.f32.xlu0 %v6145
      %v6147 = vpop.xlane.xlu0 %6146
      %v6148 = vsel %vm795, %v6112, -inf
      %6149 = vmax.xlane.f32.xlu0 %v6148
      %v6150 = vpop.xlane.xlu0 %6149
      %v6151 = vsel %vm795, %v6117, -inf
      %6152 = vmax.xlane.f32.xlu0 %v6151
      %v6153 = vpop.xlane.xlu0 %6152
      %v6154 = vsel %vm795, %v6122, -inf
      %6155 = vmax.xlane.f32.xlu0 %v6154
      %v6156 = vpop.xlane.xlu0 %6155
      %v6157 = vsel %vm795, %v6127, -inf
      %6158 = vmax.xlane.f32.xlu0 %v6157
      %v6159 = vpop.xlane.xlu0 %6158
      %v6160 = vsel %vm795, %v6132, -inf
      %6161 = vmax.xlane.f32.xlu0 %v6160
      %v6162 = vpop.xlane.xlu0 %6161
      %v6163 = vsel %vm795, %v6137, -inf
      %6164 = vmax.xlane.f32.xlu0 %v6163
      %v6165 = vpop.xlane.xlu0 %6164
      %v6166 = vsel %vm795, %v6142, -inf
      %6167 = vmax.xlane.f32.xlu0 %v6166
      %v6168 = vpop.xlane.xlu0 %6167
      %v6169 = vsub.f32 %v6107, %v6147
      %v6170 = vsub.f32 %v6112, %v6150
      %v6171 = vsub.f32 %v6117, %v6153
      %v6172 = vsub.f32 %v6122, %v6156
      %v6173 = vsub.f32 %v6127, %v6159
      %v6174 = vsub.f32 %v6132, %v6162
      %v6175 = vsub.f32 %v6137, %v6165
      %v6176 = vsub.f32 %v6142, %v6168
      %v6177 = vmul.f32 %v6169, 1.442695
      %v6178 = vpow.pop %v6177
      %v6179 = vmul.f32 %v6170, 1.442695
      %v6180 = vpow.pop %v6179
      %v6181 = vmul.f32 %v6171, 1.442695
      %v6182 = vpow.pop %v6181
      %v6183 = vmul.f32 %v6172, 1.442695
      %v6184 = vpow.pop %v6183
      %v6185 = vmul.f32 %v6173, 1.442695
      %v6186 = vpow.pop %v6185
      %v6187 = vmul.f32 %v6174, 1.442695
      %v6188 = vpow.pop %v6187
      %v6189 = vmul.f32 %v6175, 1.442695
      %v6190 = vpow.pop %v6189
      %v6191 = vmul.f32 %v6176, 1.442695
      %v6192 = vpow.pop %v6191
      %v6193 = vsel %vm795, %v6178, 0.0
      %6194 = vadd.xlane.f32.xlu0 %v6193
      %v6195 = vpop.xlane.xlu0 %6194
      %v6196 = vsel %vm795, %v6180, 0.0
      %6197 = vadd.xlane.f32.xlu0 %v6196
      %v6198 = vpop.xlane.xlu0 %6197
      %v6199 = vsel %vm795, %v6182, 0.0
      %6200 = vadd.xlane.f32.xlu0 %v6199
      %v6201 = vpop.xlane.xlu0 %6200
      %v6202 = vsel %vm795, %v6184, 0.0
      %6203 = vadd.xlane.f32.xlu0 %v6202
      %v6204 = vpop.xlane.xlu0 %6203
      %v6205 = vsel %vm795, %v6186, 0.0
      %6206 = vadd.xlane.f32.xlu0 %v6205
      %v6207 = vpop.xlane.xlu0 %6206
      %v6208 = vsel %vm795, %v6188, 0.0
      %6209 = vadd.xlane.f32.xlu0 %v6208
      %v6210 = vpop.xlane.xlu0 %6209
      %v6211 = vsel %vm795, %v6190, 0.0
      %6212 = vadd.xlane.f32.xlu0 %v6211
      %v6213 = vpop.xlane.xlu0 %6212
      %v6214 = vsel %vm795, %v6192, 0.0
      %6215 = vadd.xlane.f32.xlu0 %v6214
      %v6216 = vpop.xlane.xlu0 %6215
      %6217 = vrot.lane.b32.xlu0 %v467, 40
      %v6218 = vpop.permute.xlu0 %6217
      %6219 = vrot.lane.b32.xlu0 %v472, 40
      %v6220 = vpop.permute.xlu0 %6219
      %6221 = vrot.lane.b32.xlu0 %v477, 40
      %v6222 = vpop.permute.xlu0 %6221
      %6223 = vrot.lane.b32.xlu0 %v482, 40
      %v6224 = vpop.permute.xlu0 %6223
      %6225 = vrot.lane.b32.xlu0 %v487, 40
      %v6226 = vpop.permute.xlu0 %6225
      %6227 = vrot.lane.b32.xlu0 %v492, 40
      %v6228 = vpop.permute.xlu0 %6227
      %6229 = vrot.lane.b32.xlu0 %v497, 40
      %v6230 = vpop.permute.xlu0 %6229
      %6231 = vrot.lane.b32.xlu0 %v502, 40
      %v6232 = vpop.permute.xlu0 %6231
      %v6242 = vsel %vm795, %v6178, 0
      %v6245 = vsel %vm795, %v6180, 0
      %v6248 = vsel %vm795, %v6182, 0
      %v6251 = vsel %vm795, %v6184, 0
      %v6254 = vsel %vm795, %v6186, 0
      %v6257 = vsel %vm795, %v6188, 0
      %v6260 = vsel %vm795, %v6190, 0
      %v6263 = vsel %vm795, %v6192, 0
      %6265 = vmatprep.subr.mxu0 0.0
      %6266 = vmatpush1.msra.mxu0 %v6218
      %6267 = vmatprep.subr.mxu0 0.0
      %6268 = vmatpush1.msra.mxu0 %v6220
      %6269 = vmatprep.subr.mxu0 0.0
      %6270 = vmatpush1.msra.mxu0 %v6222
      %6271 = vmatprep.subr.mxu0 0.0
      %6272 = vmatpush1.msra.mxu0 %v6224
      %6273 = vmatprep.subr.mxu0 0.0
      %6274 = vmatpush1.msra.mxu0 %v6226
      %6275 = vmatprep.subr.mxu0 0.0
      %6276 = vmatpush1.msra.mxu0 %v6228
      %6277 = vmatprep.subr.mxu0 0.0
      %6278 = vmatpush1.msra.mxu0 %v6230
      %6279 = vmatprep.subr.mxu0 0.0
      %6280 = vmatpush1.msra.mxu0 %v6232
      %6281 = vmatprep.subr.mxu0 0.0
      %6282 = vmatpush1.msra.mxu0 0.0
      %6283 = vmatprep.subr.mxu0 0.0
      %6284 = vmatpush1.msra.mxu0 0.0
      %6285 = vmatprep.subr.mxu0 0.0
      %6286 = vmatpush1.msra.mxu0 0.0
      %6287 = vmatprep.subr.mxu0 0.0
      %6288 = vmatpush1.msra.mxu0 0.0
      %6289 = vmatprep.subr.mxu0 0.0
      %6290 = vmatpush1.msra.mxu0 0.0
      %6291 = vmatprep.subr.mxu0 0.0
      %6292 = vmatpush1.msra.mxu0 0.0
      %6293 = vmatprep.subr.mxu0 0.0
      %6294 = vmatpush1.msra.mxu0 0.0
      %6295 = vmatprep.subr.mxu0 0.0
      %6296 = vmatpush1.msra.mxu0 0.0
      %6297 = vmatprep.subr.mxu0 0.0
      %6298 = vmatpush1.msra.mxu0 0.0
      %6299 = vmatprep.subr.mxu0 0.0
      %6300 = vmatpush1.msra.mxu0 0.0
      %6301 = vmatprep.subr.mxu0 0.0
      %6302 = vmatpush1.msra.mxu0 0.0
      %6303 = vmatprep.subr.mxu0 0.0
      %6304 = vmatpush1.msra.mxu0 0.0
      %6305 = vmatprep.subr.mxu0 0.0
      %6306 = vmatpush1.msra.mxu0 0.0
      %6307 = vmatprep.subr.mxu0 0.0
      %6308 = vmatpush1.msra.mxu0 0.0
      %6309 = vmatprep.subr.mxu0 0.0
      %6310 = vmatpush1.msra.mxu0 0.0
      %6311 = vmatprep.subr.mxu0 0.0
      %6312 = vmatpush1.msra.mxu0 0.0
      %6313 = vmatprep.subr.mxu0 0.0
      %6314 = vmatpush1.msra.mxu0 0.0
      %6315 = vmatprep.subr.mxu0 0.0
      %6316 = vmatpush1.msra.mxu0 0.0
      %6317 = vmatprep.subr.mxu0 0.0
      %6318 = vmatpush1.msra.mxu0 0.0
      %6319 = vmatprep.subr.mxu0 0.0
      %6320 = vmatpush1.msra.mxu0 0.0
      %6321 = vmatprep.subr.mxu0 0.0
      %6322 = vmatpush1.msra.mxu0 0.0
      %6323 = vmatprep.subr.mxu0 0.0
      %6324 = vmatpush1.msra.mxu0 0.0
      %6325 = vmatprep.subr.mxu0 0.0
      %6326 = vmatpush1.msra.mxu0 0.0
      %6327 = vmatprep.subr.mxu0 0.0
      %6328 = vmatpush1.msra.mxu0 0.0
      %6329 = vmatprep.mubr.f32.mxu0 0.0
      %6330 = vmatmul.mubr.f32.gmra.mrb[0].mxu0 %v6242
      %v6331 = vpop.f32.mrb[0].mxu0
      %v6332 = vadd.f32 0.0, %v6331
      %v6333 = vpop.f32.mrb[0].mxu0
      %6334 = vmatprep.mubr.f32.mxu0 0.0
      %6335 = vmatmul.mubr.f32.gmra.mrb[0].mxu0 %v6245
      %v6336 = vpop.f32.mrb[0].mxu0
      %v6337 = vadd.f32 0.0, %v6336
      %v6338 = vpop.f32.mrb[0].mxu0
      %6339 = vmatprep.mubr.f32.mxu0 0.0
      %6340 = vmatmul.mubr.f32.gmra.mrb[0].mxu0 %v6248
      %v6341 = vpop.f32.mrb[0].mxu0
      %v6342 = vadd.f32 0.0, %v6341
      %v6343 = vpop.f32.mrb[0].mxu0
      %6344 = vmatprep.mubr.f32.mxu0 0.0
      %6345 = vmatmul.mubr.f32.gmra.mrb[0].mxu0 %v6251
      %v6346 = vpop.f32.mrb[0].mxu0
      %v6347 = vadd.f32 0.0, %v6346
      %v6348 = vpop.f32.mrb[0].mxu0
      %6349 = vmatprep.mubr.f32.mxu0 0.0
      %6350 = vmatmul.mubr.f32.gmra.mrb[0].mxu0 %v6254
      %v6351 = vpop.f32.mrb[0].mxu0
      %v6352 = vadd.f32 0.0, %v6351
      %v6353 = vpop.f32.mrb[0].mxu0
      %6354 = vmatprep.mubr.f32.mxu0 0.0
      %6355 = vmatmul.mubr.f32.gmra.mrb[0].mxu0 %v6257
      %v6356 = vpop.f32.mrb[0].mxu0
      %v6357 = vadd.f32 0.0, %v6356
      %v6358 = vpop.f32.mrb[0].mxu0
      %6359 = vmatprep.mubr.f32.mxu0 0.0
      %6360 = vmatmul.mubr.f32.gmra.mrb[0].mxu0 %v6260
      %v6361 = vpop.f32.mrb[0].mxu0
      %v6362 = vadd.f32 0.0, %v6361
      %v6363 = vpop.f32.mrb[0].mxu0
      %6364 = vmatprep.mubr.f32.mxu0 0.0
      %6365 = vmatmul.mubr.f32.gmra.mrb[0].mxu0 %v6263
      %v6366 = vpop.f32.mrb[0].mxu0
      %v6367 = vadd.f32 0.0, %v6366
      %v6368 = vpop.f32.mrb[0].mxu0
      %6369 = vdwg.mxu0
      %v6370 = vrcp.pop %v6195
      %v6371 = vrcp.pop %v6198
      %v6372 = vrcp.pop %v6201
      %v6373 = vrcp.pop %v6204
      %v6374 = vrcp.pop %v6207
      %v6375 = vrcp.pop %v6210
      %v6376 = vrcp.pop %v6213
      %v6377 = vrcp.pop %v6216
      %v6378 = vmul.f32 %v6332, %v6370
      %v6379 = vmul.f32 %v6337, %v6371
      %v6380 = vmul.f32 %v6342, %v6372
      %v6381 = vmul.f32 %v6347, %v6373
      %v6382 = vmul.f32 %v6352, %v6374
      %v6383 = vmul.f32 %v6357, %v6375
      %v6384 = vmul.f32 %v6362, %v6376
      %v6385 = vmul.f32 %v6367, %v6377
      %6394 = vrot.lane.b32.xlu0 %v6378, 24
      %v6395 = vpop.permute.xlu0 %6394
      %6396 = vrot.lane.b32.xlu0 %v6379, 24
      %v6397 = vpop.permute.xlu0 %6396
      %6398 = vrot.lane.b32.xlu0 %v6380, 24
      %v6399 = vpop.permute.xlu0 %6398
      %6400 = vrot.lane.b32.xlu0 %v6381, 24
      %v6401 = vpop.permute.xlu0 %6400
      %6402 = vrot.lane.b32.xlu0 %v6382, 24
      %v6403 = vpop.permute.xlu0 %6402
      %6404 = vrot.lane.b32.xlu0 %v6383, 24
      %v6405 = vpop.permute.xlu0 %6404
      %6406 = vrot.lane.b32.xlu0 %v6384, 24
      %v6407 = vpop.permute.xlu0 %6406
      %6408 = vrot.lane.b32.xlu0 %v6385, 24
      %v6409 = vpop.permute.xlu0 %6408
      %vm6418 = vcmask 261312
      %6419 = vst.msk [vmem:[#allocation2] sm:$0xff] %vm6418, %v6395
      %6420 = vst.msk [vmem:[#allocation2 + $0x8] sm:$0xff] %vm6418, %v6397
      %6421 = vst.msk [vmem:[#allocation2 + $0x10] sm:$0xff] %vm6418, %v6399
      %6422 = vst.msk [vmem:[#allocation2 + $0x18] sm:$0xff] %vm6418, %v6401
      %6423 = vst.msk [vmem:[#allocation2 + $0x20] sm:$0xff] %vm6418, %v6403
      %6424 = vst.msk [vmem:[#allocation2 + $0x28] sm:$0xff] %vm6418, %v6405
      %6425 = vst.msk [vmem:[#allocation2 + $0x30] sm:$0xff] %vm6418, %v6407
      %6426 = vst.msk [vmem:[#allocation2 + $0x38] sm:$0xff] %vm6418, %v6409
      %v6427 = vld [vmem:[%s5967] sm:$0xff]
      %v6428 = vld [vmem:[%s5967 + $0x8] sm:$0xff]
      %v6429 = vld [vmem:[%s5967 + $0x10] sm:$0xff]
      %v6430 = vld [vmem:[%s5967 + $0x18] sm:$0xff]
      %v6431 = vld [vmem:[%s5967 + $0x20] sm:$0xff]
      %v6432 = vld [vmem:[%s5967 + $0x28] sm:$0xff]
      %v6433 = vld [vmem:[%s5967 + $0x30] sm:$0xff]
      %v6434 = vld [vmem:[%s5967 + $0x38] sm:$0xff]
      %6435 = vrot.lane.b32.xlu0 %v507, 104
      %v6436 = vpop.permute.xlu0 %6435
      %6437 = vrot.lane.b32.xlu0 %v512, 104
      %v6438 = vpop.permute.xlu0 %6437
      %6439 = vrot.lane.b32.xlu0 %v517, 104
      %v6440 = vpop.permute.xlu0 %6439
      %6441 = vrot.lane.b32.xlu0 %v522, 104
      %v6442 = vpop.permute.xlu0 %6441
      %6443 = vrot.lane.b32.xlu0 %v527, 104
      %v6444 = vpop.permute.xlu0 %6443
      %6445 = vrot.lane.b32.xlu0 %v532, 104
      %v6446 = vpop.permute.xlu0 %6445
      %6447 = vrot.lane.b32.xlu0 %v537, 104
      %v6448 = vpop.permute.xlu0 %6447
      %6449 = vrot.lane.b32.xlu0 %v542, 104
      %v6450 = vpop.permute.xlu0 %6449
      %6451 = vrot.lane.b32.xlu0 %v507, 72
      %v6452 = vpop.permute.xlu0 %6451
      %6453 = vrot.lane.b32.xlu0 %v512, 72
      %v6454 = vpop.permute.xlu0 %6453
      %6455 = vrot.lane.b32.xlu0 %v517, 72
      %v6456 = vpop.permute.xlu0 %6455
      %6457 = vrot.lane.b32.xlu0 %v522, 72
      %v6458 = vpop.permute.xlu0 %6457
      %6459 = vrot.lane.b32.xlu0 %v527, 72
      %v6460 = vpop.permute.xlu0 %6459
      %6461 = vrot.lane.b32.xlu0 %v532, 72
      %v6462 = vpop.permute.xlu0 %6461
      %6463 = vrot.lane.b32.xlu0 %v537, 72
      %v6464 = vpop.permute.xlu0 %6463
      %6465 = vrot.lane.b32.xlu0 %v542, 72
      %v6466 = vpop.permute.xlu0 %6465
      %v6467 = vsel %vm657, %v6436, 0
      %v6469 = vsel %vm657, %v6438, 0
      %v6471 = vsel %vm657, %v6440, 0
      %v6473 = vsel %vm657, %v6442, 0
      %v6475 = vsel %vm657, %v6444, 0
      %v6477 = vsel %vm657, %v6446, 0
      %v6479 = vsel %vm657, %v6448, 0
      %v6481 = vsel %vm657, %v6450, 0
      %v6483 = vsel %vm657, %v6452, 0
      %v6485 = vsel %vm657, %v6454, 0
      %v6487 = vsel %vm657, %v6456, 0
      %v6489 = vsel %vm657, %v6458, 0
      %v6491 = vsel %vm657, %v6460, 0
      %v6493 = vsel %vm657, %v6462, 0
      %v6495 = vsel %vm657, %v6464, 0
      %v6497 = vsel %vm657, %v6466, 0
      %6499 = vmatprep.subr.mxu0 0.0
      %6500 = vmatpush1.xpose.msra.mxu0 %v6483
      %6501 = vmatprep.subr.mxu0 0.0
      %6502 = vmatpush1.xpose.msra.mxu0 %v6485
      %6503 = vmatprep.subr.mxu0 0.0
      %6504 = vmatpush1.xpose.msra.mxu0 %v6487
      %6505 = vmatprep.subr.mxu0 0.0
      %6506 = vmatpush1.xpose.msra.mxu0 %v6489
      %6507 = vmatprep.subr.mxu0 0.0
      %6508 = vmatpush1.xpose.msra.mxu0 %v6491
      %6509 = vmatprep.subr.mxu0 0.0
      %6510 = vmatpush1.xpose.msra.mxu0 %v6493
      %6511 = vmatprep.subr.mxu0 0.0
      %6512 = vmatpush1.xpose.msra.mxu0 %v6495
      %6513 = vmatprep.subr.mxu0 0.0
      %6514 = vmatpush1.xpose.msra.mxu0 %v6497
      %6515 = vmatprep.subr.mxu0 0.0
      %6516 = vmatpush1.xpose.msra.mxu0 0.0
      %6517 = vmatprep.subr.mxu0 0.0
      %6518 = vmatpush1.xpose.msra.mxu0 0.0
      %6519 = vmatprep.subr.mxu0 0.0
      %6520 = vmatpush1.xpose.msra.mxu0 0.0
      %6521 = vmatprep.subr.mxu0 0.0
      %6522 = vmatpush1.xpose.msra.mxu0 0.0
      %6523 = vmatprep.subr.mxu0 0.0
      %6524 = vmatpush1.xpose.msra.mxu0 0.0
      %6525 = vmatprep.subr.mxu0 0.0
      %6526 = vmatpush1.xpose.msra.mxu0 0.0
      %6527 = vmatprep.subr.mxu0 0.0
      %6528 = vmatpush1.xpose.msra.mxu0 0.0
      %6529 = vmatprep.subr.mxu0 0.0
      %6530 = vmatpush1.xpose.msra.mxu0 0.0
      %6531 = vmatprep.subr.mxu0 0.0
      %6532 = vmatpush1.xpose.msra.mxu0 0.0
      %6533 = vmatprep.subr.mxu0 0.0
      %6534 = vmatpush1.xpose.msra.mxu0 0.0
      %6535 = vmatprep.subr.mxu0 0.0
      %6536 = vmatpush1.xpose.msra.mxu0 0.0
      %6537 = vmatprep.subr.mxu0 0.0
      %6538 = vmatpush1.xpose.msra.mxu0 0.0
      %6539 = vmatprep.subr.mxu0 0.0
      %6540 = vmatpush1.xpose.msra.mxu0 0.0
      %6541 = vmatprep.subr.mxu0 0.0
      %6542 = vmatpush1.xpose.msra.mxu0 0.0
      %6543 = vmatprep.subr.mxu0 0.0
      %6544 = vmatpush1.xpose.msra.mxu0 0.0
      %6545 = vmatprep.subr.mxu0 0.0
      %6546 = vmatpush1.xpose.msra.mxu0 0.0
      %6547 = vmatprep.subr.mxu0 0.0
      %6548 = vmatpush1.xpose.msra.mxu0 0.0
      %6549 = vmatprep.subr.mxu0 0.0
      %6550 = vmatpush1.xpose.msra.mxu0 0.0
      %6551 = vmatprep.subr.mxu0 0.0
      %6552 = vmatpush1.xpose.msra.mxu0 0.0
      %6553 = vmatprep.subr.mxu0 0.0
      %6554 = vmatpush1.xpose.msra.mxu0 0.0
      %6555 = vmatprep.subr.mxu0 0.0
      %6556 = vmatpush1.xpose.msra.mxu0 0.0
      %6557 = vmatprep.subr.mxu0 0.0
      %6558 = vmatpush1.xpose.msra.mxu0 0.0
      %6559 = vmatprep.subr.mxu0 0.0
      %6560 = vmatpush1.xpose.msra.mxu0 0.0
      %6561 = vmatprep.subr.mxu0 0.0
      %6562 = vmatpush1.xpose.msra.mxu0 0.0
      %6563 = vmatprep.mubr.f32.mxu0 0.0
      %6564 = vmatmul.mubr.f32.gmra.mrb[0].mxu0 %v6467
      %v6565 = vpop.f32.mrb[0].mxu0
      %v6566 = vadd.f32 %v6427, %v6565
      %v6567 = vpop.f32.mrb[0].mxu0
      %6568 = vmatprep.mubr.f32.mxu0 0.0
      %6569 = vmatmul.mubr.f32.gmra.mrb[0].mxu0 %v6469
      %v6570 = vpop.f32.mrb[0].mxu0
      %v6571 = vadd.f32 %v6428, %v6570
      %v6572 = vpop.f32.mrb[0].mxu0
      %6573 = vmatprep.mubr.f32.mxu0 0.0
      %6574 = vmatmul.mubr.f32.gmra.mrb[0].mxu0 %v6471
      %v6575 = vpop.f32.mrb[0].mxu0
      %v6576 = vadd.f32 %v6429, %v6575
      %v6577 = vpop.f32.mrb[0].mxu0
      %6578 = vmatprep.mubr.f32.mxu0 0.0
      %6579 = vmatmul.mubr.f32.gmra.mrb[0].mxu0 %v6473
      %v6580 = vpop.f32.mrb[0].mxu0
      %v6581 = vadd.f32 %v6430, %v6580
      %v6582 = vpop.f32.mrb[0].mxu0
      %6583 = vmatprep.mubr.f32.mxu0 0.0
      %6584 = vmatmul.mubr.f32.gmra.mrb[0].mxu0 %v6475
      %v6585 = vpop.f32.mrb[0].mxu0
      %v6586 = vadd.f32 %v6431, %v6585
      %v6587 = vpop.f32.mrb[0].mxu0
      %6588 = vmatprep.mubr.f32.mxu0 0.0
      %6589 = vmatmul.mubr.f32.gmra.mrb[0].mxu0 %v6477
      %v6590 = vpop.f32.mrb[0].mxu0
      %v6591 = vadd.f32 %v6432, %v6590
      %v6592 = vpop.f32.mrb[0].mxu0
      %6593 = vmatprep.mubr.f32.mxu0 0.0
      %6594 = vmatmul.mubr.f32.gmra.mrb[0].mxu0 %v6479
      %v6595 = vpop.f32.mrb[0].mxu0
      %v6596 = vadd.f32 %v6433, %v6595
      %v6597 = vpop.f32.mrb[0].mxu0
      %6598 = vmatprep.mubr.f32.mxu0 0.0
      %6599 = vmatmul.mubr.f32.gmra.mrb[0].mxu0 %v6481
      %v6600 = vpop.f32.mrb[0].mxu0
      %v6601 = vadd.f32 %v6434, %v6600
      %v6602 = vpop.f32.mrb[0].mxu0
      %6603 = vdwg.mxu0
      %v6604 = vsel %vm795, %v6566, -inf
      %6605 = vmax.xlane.f32.xlu0 %v6604
      %v6606 = vpop.xlane.xlu0 %6605
      %v6607 = vsel %vm795, %v6571, -inf
      %6608 = vmax.xlane.f32.xlu0 %v6607
      %v6609 = vpop.xlane.xlu0 %6608
      %v6610 = vsel %vm795, %v6576, -inf
      %6611 = vmax.xlane.f32.xlu0 %v6610
      %v6612 = vpop.xlane.xlu0 %6611
      %v6613 = vsel %vm795, %v6581, -inf
      %6614 = vmax.xlane.f32.xlu0 %v6613
      %v6615 = vpop.xlane.xlu0 %6614
      %v6616 = vsel %vm795, %v6586, -inf
      %6617 = vmax.xlane.f32.xlu0 %v6616
      %v6618 = vpop.xlane.xlu0 %6617
      %v6619 = vsel %vm795, %v6591, -inf
      %6620 = vmax.xlane.f32.xlu0 %v6619
      %v6621 = vpop.xlane.xlu0 %6620
      %v6622 = vsel %vm795, %v6596, -inf
      %6623 = vmax.xlane.f32.xlu0 %v6622
      %v6624 = vpop.xlane.xlu0 %6623
      %v6625 = vsel %vm795, %v6601, -inf
      %6626 = vmax.xlane.f32.xlu0 %v6625
      %v6627 = vpop.xlane.xlu0 %6626
      %v6628 = vsub.f32 %v6566, %v6606
      %v6629 = vsub.f32 %v6571, %v6609
      %v6630 = vsub.f32 %v6576, %v6612
      %v6631 = vsub.f32 %v6581, %v6615
      %v6632 = vsub.f32 %v6586, %v6618
      %v6633 = vsub.f32 %v6591, %v6621
      %v6634 = vsub.f32 %v6596, %v6624
      %v6635 = vsub.f32 %v6601, %v6627
      %v6636 = vmul.f32 %v6628, 1.442695
      %v6637 = vpow.pop %v6636
      %v6638 = vmul.f32 %v6629, 1.442695
      %v6639 = vpow.pop %v6638
      %v6640 = vmul.f32 %v6630, 1.442695
      %v6641 = vpow.pop %v6640
      %v6642 = vmul.f32 %v6631, 1.442695
      %v6643 = vpow.pop %v6642
      %v6644 = vmul.f32 %v6632, 1.442695
      %v6645 = vpow.pop %v6644
      %v6646 = vmul.f32 %v6633, 1.442695
      %v6647 = vpow.pop %v6646
      %v6648 = vmul.f32 %v6634, 1.442695
      %v6649 = vpow.pop %v6648
      %v6650 = vmul.f32 %v6635, 1.442695
      %v6651 = vpow.pop %v6650
      %v6652 = vsel %vm795, %v6637, 0.0
      %6653 = vadd.xlane.f32.xlu0 %v6652
      %v6654 = vpop.xlane.xlu0 %6653
      %v6655 = vsel %vm795, %v6639, 0.0
      %6656 = vadd.xlane.f32.xlu0 %v6655
      %v6657 = vpop.xlane.xlu0 %6656
      %v6658 = vsel %vm795, %v6641, 0.0
      %6659 = vadd.xlane.f32.xlu0 %v6658
      %v6660 = vpop.xlane.xlu0 %6659
      %v6661 = vsel %vm795, %v6643, 0.0
      %6662 = vadd.xlane.f32.xlu0 %v6661
      %v6663 = vpop.xlane.xlu0 %6662
      %v6664 = vsel %vm795, %v6645, 0.0
      %6665 = vadd.xlane.f32.xlu0 %v6664
      %v6666 = vpop.xlane.xlu0 %6665
      %v6667 = vsel %vm795, %v6647, 0.0
      %6668 = vadd.xlane.f32.xlu0 %v6667
      %v6669 = vpop.xlane.xlu0 %6668
      %v6670 = vsel %vm795, %v6649, 0.0
      %6671 = vadd.xlane.f32.xlu0 %v6670
      %v6672 = vpop.xlane.xlu0 %6671
      %v6673 = vsel %vm795, %v6651, 0.0
      %6674 = vadd.xlane.f32.xlu0 %v6673
      %v6675 = vpop.xlane.xlu0 %6674
      %6676 = vrot.lane.b32.xlu0 %v507, 40
      %v6677 = vpop.permute.xlu0 %6676
      %6678 = vrot.lane.b32.xlu0 %v512, 40
      %v6679 = vpop.permute.xlu0 %6678
      %6680 = vrot.lane.b32.xlu0 %v517, 40
      %v6681 = vpop.permute.xlu0 %6680
      %6682 = vrot.lane.b32.xlu0 %v522, 40
      %v6683 = vpop.permute.xlu0 %6682
      %6684 = vrot.lane.b32.xlu0 %v527, 40
      %v6685 = vpop.permute.xlu0 %6684
      %6686 = vrot.lane.b32.xlu0 %v532, 40
      %v6687 = vpop.permute.xlu0 %6686
      %6688 = vrot.lane.b32.xlu0 %v537, 40
      %v6689 = vpop.permute.xlu0 %6688
      %6690 = vrot.lane.b32.xlu0 %v542, 40
      %v6691 = vpop.permute.xlu0 %6690
      %v6701 = vsel %vm795, %v6637, 0
      %v6704 = vsel %vm795, %v6639, 0
      %v6707 = vsel %vm795, %v6641, 0
      %v6710 = vsel %vm795, %v6643, 0
      %v6713 = vsel %vm795, %v6645, 0
      %v6716 = vsel %vm795, %v6647, 0
      %v6719 = vsel %vm795, %v6649, 0
      %v6722 = vsel %vm795, %v6651, 0
      %6724 = vmatprep.subr.mxu0 0.0
      %6725 = vmatpush1.msra.mxu0 %v6677
      %6726 = vmatprep.subr.mxu0 0.0
      %6727 = vmatpush1.msra.mxu0 %v6679
      %6728 = vmatprep.subr.mxu0 0.0
      %6729 = vmatpush1.msra.mxu0 %v6681
      %6730 = vmatprep.subr.mxu0 0.0
      %6731 = vmatpush1.msra.mxu0 %v6683
      %6732 = vmatprep.subr.mxu0 0.0
      %6733 = vmatpush1.msra.mxu0 %v6685
      %6734 = vmatprep.subr.mxu0 0.0
      %6735 = vmatpush1.msra.mxu0 %v6687
      %6736 = vmatprep.subr.mxu0 0.0
      %6737 = vmatpush1.msra.mxu0 %v6689
      %6738 = vmatprep.subr.mxu0 0.0
      %6739 = vmatpush1.msra.mxu0 %v6691
      %6740 = vmatprep.subr.mxu0 0.0
      %6741 = vmatpush1.msra.mxu0 0.0
      %6742 = vmatprep.subr.mxu0 0.0
      %6743 = vmatpush1.msra.mxu0 0.0
      %6744 = vmatprep.subr.mxu0 0.0
      %6745 = vmatpush1.msra.mxu0 0.0
      %6746 = vmatprep.subr.mxu0 0.0
      %6747 = vmatpush1.msra.mxu0 0.0
      %6748 = vmatprep.subr.mxu0 0.0
      %6749 = vmatpush1.msra.mxu0 0.0
      %6750 = vmatprep.subr.mxu0 0.0
      %6751 = vmatpush1.msra.mxu0 0.0
      %6752 = vmatprep.subr.mxu0 0.0
      %6753 = vmatpush1.msra.mxu0 0.0
      %6754 = vmatprep.subr.mxu0 0.0
      %6755 = vmatpush1.msra.mxu0 0.0
      %6756 = vmatprep.subr.mxu0 0.0
      %6757 = vmatpush1.msra.mxu0 0.0
      %6758 = vmatprep.subr.mxu0 0.0
      %6759 = vmatpush1.msra.mxu0 0.0
      %6760 = vmatprep.subr.mxu0 0.0
      %6761 = vmatpush1.msra.mxu0 0.0
      %6762 = vmatprep.subr.mxu0 0.0
      %6763 = vmatpush1.msra.mxu0 0.0
      %6764 = vmatprep.subr.mxu0 0.0
      %6765 = vmatpush1.msra.mxu0 0.0
      %6766 = vmatprep.subr.mxu0 0.0
      %6767 = vmatpush1.msra.mxu0 0.0
      %6768 = vmatprep.subr.mxu0 0.0
      %6769 = vmatpush1.msra.mxu0 0.0
      %6770 = vmatprep.subr.mxu0 0.0
      %6771 = vmatpush1.msra.mxu0 0.0
      %6772 = vmatprep.subr.mxu0 0.0
      %6773 = vmatpush1.msra.mxu0 0.0
      %6774 = vmatprep.subr.mxu0 0.0
      %6775 = vmatpush1.msra.mxu0 0.0
      %6776 = vmatprep.subr.mxu0 0.0
      %6777 = vmatpush1.msra.mxu0 0.0
      %6778 = vmatprep.subr.mxu0 0.0
      %6779 = vmatpush1.msra.mxu0 0.0
      %6780 = vmatprep.subr.mxu0 0.0
      %6781 = vmatpush1.msra.mxu0 0.0
      %6782 = vmatprep.subr.mxu0 0.0
      %6783 = vmatpush1.msra.mxu0 0.0
      %6784 = vmatprep.subr.mxu0 0.0
      %6785 = vmatpush1.msra.mxu0 0.0
      %6786 = vmatprep.subr.mxu0 0.0
      %6787 = vmatpush1.msra.mxu0 0.0
      %6788 = vmatprep.mubr.f32.mxu0 0.0
      %6789 = vmatmul.mubr.f32.gmra.mrb[0].mxu0 %v6701
      %v6790 = vpop.f32.mrb[0].mxu0
      %v6791 = vadd.f32 0.0, %v6790
      %v6792 = vpop.f32.mrb[0].mxu0
      %6793 = vmatprep.mubr.f32.mxu0 0.0
      %6794 = vmatmul.mubr.f32.gmra.mrb[0].mxu0 %v6704
      %v6795 = vpop.f32.mrb[0].mxu0
      %v6796 = vadd.f32 0.0, %v6795
      %v6797 = vpop.f32.mrb[0].mxu0
      %6798 = vmatprep.mubr.f32.mxu0 0.0
      %6799 = vmatmul.mubr.f32.gmra.mrb[0].mxu0 %v6707
      %v6800 = vpop.f32.mrb[0].mxu0
      %v6801 = vadd.f32 0.0, %v6800
      %v6802 = vpop.f32.mrb[0].mxu0
      %6803 = vmatprep.mubr.f32.mxu0 0.0
      %6804 = vmatmul.mubr.f32.gmra.mrb[0].mxu0 %v6710
      %v6805 = vpop.f32.mrb[0].mxu0
      %v6806 = vadd.f32 0.0, %v6805
      %v6807 = vpop.f32.mrb[0].mxu0
      %6808 = vmatprep.mubr.f32.mxu0 0.0
      %6809 = vmatmul.mubr.f32.gmra.mrb[0].mxu0 %v6713
      %v6810 = vpop.f32.mrb[0].mxu0
      %v6811 = vadd.f32 0.0, %v6810
      %v6812 = vpop.f32.mrb[0].mxu0
      %6813 = vmatprep.mubr.f32.mxu0 0.0
      %6814 = vmatmul.mubr.f32.gmra.mrb[0].mxu0 %v6716
      %v6815 = vpop.f32.mrb[0].mxu0
      %v6816 = vadd.f32 0.0, %v6815
      %v6817 = vpop.f32.mrb[0].mxu0
      %6818 = vmatprep.mubr.f32.mxu0 0.0
      %6819 = vmatmul.mubr.f32.gmra.mrb[0].mxu0 %v6719
      %v6820 = vpop.f32.mrb[0].mxu0
      %v6821 = vadd.f32 0.0, %v6820
      %v6822 = vpop.f32.mrb[0].mxu0
      %6823 = vmatprep.mubr.f32.mxu0 0.0
      %6824 = vmatmul.mubr.f32.gmra.mrb[0].mxu0 %v6722
      %v6825 = vpop.f32.mrb[0].mxu0
      %v6826 = vadd.f32 0.0, %v6825
      %v6827 = vpop.f32.mrb[0].mxu0
      %6828 = vdwg.mxu0
      %v6829 = vrcp.pop %v6654
      %v6830 = vrcp.pop %v6657
      %v6831 = vrcp.pop %v6660
      %v6832 = vrcp.pop %v6663
      %v6833 = vrcp.pop %v6666
      %v6834 = vrcp.pop %v6669
      %v6835 = vrcp.pop %v6672
      %v6836 = vrcp.pop %v6675
      %v6837 = vmul.f32 %v6791, %v6829
      %v6838 = vmul.f32 %v6796, %v6830
      %v6839 = vmul.f32 %v6801, %v6831
      %v6840 = vmul.f32 %v6806, %v6832
      %v6841 = vmul.f32 %v6811, %v6833
      %v6842 = vmul.f32 %v6816, %v6834
      %v6843 = vmul.f32 %v6821, %v6835
      %v6844 = vmul.f32 %v6826, %v6836
      %6853 = vrot.lane.b32.xlu0 %v6837, 24
      %v6854 = vpop.permute.xlu0 %6853
      %6855 = vrot.lane.b32.xlu0 %v6838, 24
      %v6856 = vpop.permute.xlu0 %6855
      %6857 = vrot.lane.b32.xlu0 %v6839, 24
      %v6858 = vpop.permute.xlu0 %6857
      %6859 = vrot.lane.b32.xlu0 %v6840, 24
      %v6860 = vpop.permute.xlu0 %6859
      %6861 = vrot.lane.b32.xlu0 %v6841, 24
      %v6862 = vpop.permute.xlu0 %6861
      %6863 = vrot.lane.b32.xlu0 %v6842, 24
      %v6864 = vpop.permute.xlu0 %6863
      %6865 = vrot.lane.b32.xlu0 %v6843, 24
      %v6866 = vpop.permute.xlu0 %6865
      %6867 = vrot.lane.b32.xlu0 %v6844, 24
      %v6868 = vpop.permute.xlu0 %6867
      %6877 = vst.msk [vmem:[#allocation2 + $0x40] sm:$0xff] %vm6418, %v6854
      %6878 = vst.msk [vmem:[#allocation2 + $0x48] sm:$0xff] %vm6418, %v6856
      %6879 = vst.msk [vmem:[#allocation2 + $0x50] sm:$0xff] %vm6418, %v6858
      %6880 = vst.msk [vmem:[#allocation2 + $0x58] sm:$0xff] %vm6418, %v6860
      %6881 = vst.msk [vmem:[#allocation2 + $0x60] sm:$0xff] %vm6418, %v6862
      %6882 = vst.msk [vmem:[#allocation2 + $0x68] sm:$0xff] %vm6418, %v6864
      %6883 = vst.msk [vmem:[#allocation2 + $0x70] sm:$0xff] %vm6418, %v6866
      %6884 = vst.msk [vmem:[#allocation2 + $0x78] sm:$0xff] %vm6418, %v6868
      %v6885 = vld [vmem:[%s5967] sm:$0xff]
      %v6886 = vld [vmem:[%s5967 + $0x8] sm:$0xff]
      %v6887 = vld [vmem:[%s5967 + $0x10] sm:$0xff]
      %v6888 = vld [vmem:[%s5967 + $0x18] sm:$0xff]
      %v6889 = vld [vmem:[%s5967 + $0x20] sm:$0xff]
      %v6890 = vld [vmem:[%s5967 + $0x28] sm:$0xff]
      %v6891 = vld [vmem:[%s5967 + $0x30] sm:$0xff]
      %v6892 = vld [vmem:[%s5967 + $0x38] sm:$0xff]
      %6893 = vrot.lane.b32.xlu0 %v547, 104
      %v6894 = vpop.permute.xlu0 %6893
      %6895 = vrot.lane.b32.xlu0 %v552, 104
      %v6896 = vpop.permute.xlu0 %6895
      %6897 = vrot.lane.b32.xlu0 %v557, 104
      %v6898 = vpop.permute.xlu0 %6897
      %6899 = vrot.lane.b32.xlu0 %v562, 104
      %v6900 = vpop.permute.xlu0 %6899
      %6901 = vrot.lane.b32.xlu0 %v567, 104
      %v6902 = vpop.permute.xlu0 %6901
      %6903 = vrot.lane.b32.xlu0 %v572, 104
      %v6904 = vpop.permute.xlu0 %6903
      %6905 = vrot.lane.b32.xlu0 %v577, 104
      %v6906 = vpop.permute.xlu0 %6905
      %6907 = vrot.lane.b32.xlu0 %v582, 104
      %v6908 = vpop.permute.xlu0 %6907
      %6909 = vrot.lane.b32.xlu0 %v547, 72
      %v6910 = vpop.permute.xlu0 %6909
      %6911 = vrot.lane.b32.xlu0 %v552, 72
      %v6912 = vpop.permute.xlu0 %6911
      %6913 = vrot.lane.b32.xlu0 %v557, 72
      %v6914 = vpop.permute.xlu0 %6913
      %6915 = vrot.lane.b32.xlu0 %v562, 72
      %v6916 = vpop.permute.xlu0 %6915
      %6917 = vrot.lane.b32.xlu0 %v567, 72
      %v6918 = vpop.permute.xlu0 %6917
      %6919 = vrot.lane.b32.xlu0 %v572, 72
      %v6920 = vpop.permute.xlu0 %6919
      %6921 = vrot.lane.b32.xlu0 %v577, 72
      %v6922 = vpop.permute.xlu0 %6921
      %6923 = vrot.lane.b32.xlu0 %v582, 72
      %v6924 = vpop.permute.xlu0 %6923
      %v6925 = vsel %vm657, %v6894, 0
      %v6927 = vsel %vm657, %v6896, 0
      %v6929 = vsel %vm657, %v6898, 0
      %v6931 = vsel %vm657, %v6900, 0
      %v6933 = vsel %vm657, %v6902, 0
      %v6935 = vsel %vm657, %v6904, 0
      %v6937 = vsel %vm657, %v6906, 0
      %v6939 = vsel %vm657, %v6908, 0
      %v6941 = vsel %vm657, %v6910, 0
      %v6943 = vsel %vm657, %v6912, 0
      %v6945 = vsel %vm657, %v6914, 0
      %v6947 = vsel %vm657, %v6916, 0
      %v6949 = vsel %vm657, %v6918, 0
      %v6951 = vsel %vm657, %v6920, 0
      %v6953 = vsel %vm657, %v6922, 0
      %v6955 = vsel %vm657, %v6924, 0
      %6957 = vmatprep.subr.mxu0 0.0
      %6958 = vmatpush1.xpose.msra.mxu0 %v6941
      %6959 = vmatprep.subr.mxu0 0.0
      %6960 = vmatpush1.xpose.msra.mxu0 %v6943
      %6961 = vmatprep.subr.mxu0 0.0
      %6962 = vmatpush1.xpose.msra.mxu0 %v6945
      %6963 = vmatprep.subr.mxu0 0.0
      %6964 = vmatpush1.xpose.msra.mxu0 %v6947
      %6965 = vmatprep.subr.mxu0 0.0
      %6966 = vmatpush1.xpose.msra.mxu0 %v6949
      %6967 = vmatprep.subr.mxu0 0.0
      %6968 = vmatpush1.xpose.msra.mxu0 %v6951
      %6969 = vmatprep.subr.mxu0 0.0
      %6970 = vmatpush1.xpose.msra.mxu0 %v6953
      %6971 = vmatprep.subr.mxu0 0.0
      %6972 = vmatpush1.xpose.msra.mxu0 %v6955
      %6973 = vmatprep.subr.mxu0 0.0
      %6974 = vmatpush1.xpose.msra.mxu0 0.0
      %6975 = vmatprep.subr.mxu0 0.0
      %6976 = vmatpush1.xpose.msra.mxu0 0.0
      %6977 = vmatprep.subr.mxu0 0.0
      %6978 = vmatpush1.xpose.msra.mxu0 0.0
      %6979 = vmatprep.subr.mxu0 0.0
      %6980 = vmatpush1.xpose.msra.mxu0 0.0
      %6981 = vmatprep.subr.mxu0 0.0
      %6982 = vmatpush1.xpose.msra.mxu0 0.0
      %6983 = vmatprep.subr.mxu0 0.0
      %6984 = vmatpush1.xpose.msra.mxu0 0.0
      %6985 = vmatprep.subr.mxu0 0.0
      %6986 = vmatpush1.xpose.msra.mxu0 0.0
      %6987 = vmatprep.subr.mxu0 0.0
      %6988 = vmatpush1.xpose.msra.mxu0 0.0
      %6989 = vmatprep.subr.mxu0 0.0
      %6990 = vmatpush1.xpose.msra.mxu0 0.0
      %6991 = vmatprep.subr.mxu0 0.0
      %6992 = vmatpush1.xpose.msra.mxu0 0.0
      %6993 = vmatprep.subr.mxu0 0.0
      %6994 = vmatpush1.xpose.msra.mxu0 0.0
      %6995 = vmatprep.subr.mxu0 0.0
      %6996 = vmatpush1.xpose.msra.mxu0 0.0
      %6997 = vmatprep.subr.mxu0 0.0
      %6998 = vmatpush1.xpose.msra.mxu0 0.0
      %6999 = vmatprep.subr.mxu0 0.0
      %7000 = vmatpush1.xpose.msra.mxu0 0.0
      %7001 = vmatprep.subr.mxu0 0.0
      %7002 = vmatpush1.xpose.msra.mxu0 0.0
      %7003 = vmatprep.subr.mxu0 0.0
      %7004 = vmatpush1.xpose.msra.mxu0 0.0
      %7005 = vmatprep.subr.mxu0 0.0
      %7006 = vmatpush1.xpose.msra.mxu0 0.0
      %7007 = vmatprep.subr.mxu0 0.0
      %7008 = vmatpush1.xpose.msra.mxu0 0.0
      %7009 = vmatprep.subr.mxu0 0.0
      %7010 = vmatpush1.xpose.msra.mxu0 0.0
      %7011 = vmatprep.subr.mxu0 0.0
      %7012 = vmatpush1.xpose.msra.mxu0 0.0
      %7013 = vmatprep.subr.mxu0 0.0
      %7014 = vmatpush1.xpose.msra.mxu0 0.0
      %7015 = vmatprep.subr.mxu0 0.0
      %7016 = vmatpush1.xpose.msra.mxu0 0.0
      %7017 = vmatprep.subr.mxu0 0.0
      %7018 = vmatpush1.xpose.msra.mxu0 0.0
      %7019 = vmatprep.subr.mxu0 0.0
      %7020 = vmatpush1.xpose.msra.mxu0 0.0
      %7021 = vmatprep.mubr.f32.mxu0 0.0
      %7022 = vmatmul.mubr.f32.gmra.mrb[0].mxu0 %v6925
      %v7023 = vpop.f32.mrb[0].mxu0
      %v7024 = vadd.f32 %v6885, %v7023
      %v7025 = vpop.f32.mrb[0].mxu0
      %7026 = vmatprep.mubr.f32.mxu0 0.0
      %7027 = vmatmul.mubr.f32.gmra.mrb[0].mxu0 %v6927
      %v7028 = vpop.f32.mrb[0].mxu0
      %v7029 = vadd.f32 %v6886, %v7028
      %v7030 = vpop.f32.mrb[0].mxu0
      %7031 = vmatprep.mubr.f32.mxu0 0.0
      %7032 = vmatmul.mubr.f32.gmra.mrb[0].mxu0 %v6929
      %v7033 = vpop.f32.mrb[0].mxu0
      %v7034 = vadd.f32 %v6887, %v7033
      %v7035 = vpop.f32.mrb[0].mxu0
      %7036 = vmatprep.mubr.f32.mxu0 0.0
      %7037 = vmatmul.mubr.f32.gmra.mrb[0].mxu0 %v6931
      %v7038 = vpop.f32.mrb[0].mxu0
      %v7039 = vadd.f32 %v6888, %v7038
      %v7040 = vpop.f32.mrb[0].mxu0
      %7041 = vmatprep.mubr.f32.mxu0 0.0
      %7042 = vmatmul.mubr.f32.gmra.mrb[0].mxu0 %v6933
      %v7043 = vpop.f32.mrb[0].mxu0
      %v7044 = vadd.f32 %v6889, %v7043
      %v7045 = vpop.f32.mrb[0].mxu0
      %7046 = vmatprep.mubr.f32.mxu0 0.0
      %7047 = vmatmul.mubr.f32.gmra.mrb[0].mxu0 %v6935
      %v7048 = vpop.f32.mrb[0].mxu0
      %v7049 = vadd.f32 %v6890, %v7048
      %v7050 = vpop.f32.mrb[0].mxu0
      %7051 = vmatprep.mubr.f32.mxu0 0.0
      %7052 = vmatmul.mubr.f32.gmra.mrb[0].mxu0 %v6937
      %v7053 = vpop.f32.mrb[0].mxu0
      %v7054 = vadd.f32 %v6891, %v7053
      %v7055 = vpop.f32.mrb[0].mxu0
      %7056 = vmatprep.mubr.f32.mxu0 0.0
      %7057 = vmatmul.mubr.f32.gmra.mrb[0].mxu0 %v6939
      %v7058 = vpop.f32.mrb[0].mxu0
      %v7059 = vadd.f32 %v6892, %v7058
      %v7060 = vpop.f32.mrb[0].mxu0
      %7061 = vdwg.mxu0
      %v7062 = vsel %vm795, %v7024, -inf
      %7063 = vmax.xlane.f32.xlu0 %v7062
      %v7064 = vpop.xlane.xlu0 %7063
      %v7065 = vsel %vm795, %v7029, -inf
      %7066 = vmax.xlane.f32.xlu0 %v7065
      %v7067 = vpop.xlane.xlu0 %7066
      %v7068 = vsel %vm795, %v7034, -inf
      %7069 = vmax.xlane.f32.xlu0 %v7068
      %v7070 = vpop.xlane.xlu0 %7069
      %v7071 = vsel %vm795, %v7039, -inf
      %7072 = vmax.xlane.f32.xlu0 %v7071
      %v7073 = vpop.xlane.xlu0 %7072
      %v7074 = vsel %vm795, %v7044, -inf
      %7075 = vmax.xlane.f32.xlu0 %v7074
      %v7076 = vpop.xlane.xlu0 %7075
      %v7077 = vsel %vm795, %v7049, -inf
      %7078 = vmax.xlane.f32.xlu0 %v7077
      %v7079 = vpop.xlane.xlu0 %7078
      %v7080 = vsel %vm795, %v7054, -inf
      %7081 = vmax.xlane.f32.xlu0 %v7080
      %v7082 = vpop.xlane.xlu0 %7081
      %v7083 = vsel %vm795, %v7059, -inf
      %7084 = vmax.xlane.f32.xlu0 %v7083
      %v7085 = vpop.xlane.xlu0 %7084
      %v7086 = vsub.f32 %v7024, %v7064
      %v7087 = vsub.f32 %v7029, %v7067
      %v7088 = vsub.f32 %v7034, %v7070
      %v7089 = vsub.f32 %v7039, %v7073
      %v7090 = vsub.f32 %v7044, %v7076
      %v7091 = vsub.f32 %v7049, %v7079
      %v7092 = vsub.f32 %v7054, %v7082
      %v7093 = vsub.f32 %v7059, %v7085
      %v7094 = vmul.f32 %v7086, 1.442695
      %v7095 = vpow.pop %v7094
      %v7096 = vmul.f32 %v7087, 1.442695
      %v7097 = vpow.pop %v7096
      %v7098 = vmul.f32 %v7088, 1.442695
      %v7099 = vpow.pop %v7098
      %v7100 = vmul.f32 %v7089, 1.442695
      %v7101 = vpow.pop %v7100
      %v7102 = vmul.f32 %v7090, 1.442695
      %v7103 = vpow.pop %v7102
      %v7104 = vmul.f32 %v7091, 1.442695
      %v7105 = vpow.pop %v7104
      %v7106 = vmul.f32 %v7092, 1.442695
      %v7107 = vpow.pop %v7106
      %v7108 = vmul.f32 %v7093, 1.442695
      %v7109 = vpow.pop %v7108
      %v7110 = vsel %vm795, %v7095, 0.0
      %7111 = vadd.xlane.f32.xlu0 %v7110
      %v7112 = vpop.xlane.xlu0 %7111
      %v7113 = vsel %vm795, %v7097, 0.0
      %7114 = vadd.xlane.f32.xlu0 %v7113
      %v7115 = vpop.xlane.xlu0 %7114
      %v7116 = vsel %vm795, %v7099, 0.0
      %7117 = vadd.xlane.f32.xlu0 %v7116
      %v7118 = vpop.xlane.xlu0 %7117
      %v7119 = vsel %vm795, %v7101, 0.0
      %7120 = vadd.xlane.f32.xlu0 %v7119
      %v7121 = vpop.xlane.xlu0 %7120
      %v7122 = vsel %vm795, %v7103, 0.0
      %7123 = vadd.xlane.f32.xlu0 %v7122
      %v7124 = vpop.xlane.xlu0 %7123
      %v7125 = vsel %vm795, %v7105, 0.0
      %7126 = vadd.xlane.f32.xlu0 %v7125
      %v7127 = vpop.xlane.xlu0 %7126
      %v7128 = vsel %vm795, %v7107, 0.0
      %7129 = vadd.xlane.f32.xlu0 %v7128
      %v7130 = vpop.xlane.xlu0 %7129
      %v7131 = vsel %vm795, %v7109, 0.0
      %7132 = vadd.xlane.f32.xlu0 %v7131
      %v7133 = vpop.xlane.xlu0 %7132
      %7134 = vrot.lane.b32.xlu0 %v547, 40
      %v7135 = vpop.permute.xlu0 %7134
      %7136 = vrot.lane.b32.xlu0 %v552, 40
      %v7137 = vpop.permute.xlu0 %7136
      %7138 = vrot.lane.b32.xlu0 %v557, 40
      %v7139 = vpop.permute.xlu0 %7138
      %7140 = vrot.lane.b32.xlu0 %v562, 40
      %v7141 = vpop.permute.xlu0 %7140
      %7142 = vrot.lane.b32.xlu0 %v567, 40
      %v7143 = vpop.permute.xlu0 %7142
      %7144 = vrot.lane.b32.xlu0 %v572, 40
      %v7145 = vpop.permute.xlu0 %7144
      %7146 = vrot.lane.b32.xlu0 %v577, 40
      %v7147 = vpop.permute.xlu0 %7146
      %7148 = vrot.lane.b32.xlu0 %v582, 40
      %v7149 = vpop.permute.xlu0 %7148
      %v7159 = vsel %vm795, %v7095, 0
      %v7162 = vsel %vm795, %v7097, 0
      %v7165 = vsel %vm795, %v7099, 0
      %v7168 = vsel %vm795, %v7101, 0
      %v7171 = vsel %vm795, %v7103, 0
      %v7174 = vsel %vm795, %v7105, 0
      %v7177 = vsel %vm795, %v7107, 0
      %v7180 = vsel %vm795, %v7109, 0
      %7182 = vmatprep.subr.mxu0 0.0
      %7183 = vmatpush1.msra.mxu0 %v7135
      %7184 = vmatprep.subr.mxu0 0.0
      %7185 = vmatpush1.msra.mxu0 %v7137
      %7186 = vmatprep.subr.mxu0 0.0
      %7187 = vmatpush1.msra.mxu0 %v7139
      %7188 = vmatprep.subr.mxu0 0.0
      %7189 = vmatpush1.msra.mxu0 %v7141
      %7190 = vmatprep.subr.mxu0 0.0
      %7191 = vmatpush1.msra.mxu0 %v7143
      %7192 = vmatprep.subr.mxu0 0.0
      %7193 = vmatpush1.msra.mxu0 %v7145
      %7194 = vmatprep.subr.mxu0 0.0
      %7195 = vmatpush1.msra.mxu0 %v7147
      %7196 = vmatprep.subr.mxu0 0.0
      %7197 = vmatpush1.msra.mxu0 %v7149
      %7198 = vmatprep.subr.mxu0 0.0
      %7199 = vmatpush1.msra.mxu0 0.0
      %7200 = vmatprep.subr.mxu0 0.0
      %7201 = vmatpush1.msra.mxu0 0.0
      %7202 = vmatprep.subr.mxu0 0.0
      %7203 = vmatpush1.msra.mxu0 0.0
      %7204 = vmatprep.subr.mxu0 0.0
      %7205 = vmatpush1.msra.mxu0 0.0
      %7206 = vmatprep.subr.mxu0 0.0
      %7207 = vmatpush1.msra.mxu0 0.0
      %7208 = vmatprep.subr.mxu0 0.0
      %7209 = vmatpush1.msra.mxu0 0.0
      %7210 = vmatprep.subr.mxu0 0.0
      %7211 = vmatpush1.msra.mxu0 0.0
      %7212 = vmatprep.subr.mxu0 0.0
      %7213 = vmatpush1.msra.mxu0 0.0
      %7214 = vmatprep.subr.mxu0 0.0
      %7215 = vmatpush1.msra.mxu0 0.0
      %7216 = vmatprep.subr.mxu0 0.0
      %7217 = vmatpush1.msra.mxu0 0.0
      %7218 = vmatprep.subr.mxu0 0.0
      %7219 = vmatpush1.msra.mxu0 0.0
      %7220 = vmatprep.subr.mxu0 0.0
      %7221 = vmatpush1.msra.mxu0 0.0
      %7222 = vmatprep.subr.mxu0 0.0
      %7223 = vmatpush1.msra.mxu0 0.0
      %7224 = vmatprep.subr.mxu0 0.0
      %7225 = vmatpush1.msra.mxu0 0.0
      %7226 = vmatprep.subr.mxu0 0.0
      %7227 = vmatpush1.msra.mxu0 0.0
      %7228 = vmatprep.subr.mxu0 0.0
      %7229 = vmatpush1.msra.mxu0 0.0
      %7230 = vmatprep.subr.mxu0 0.0
      %7231 = vmatpush1.msra.mxu0 0.0
      %7232 = vmatprep.subr.mxu0 0.0
      %7233 = vmatpush1.msra.mxu0 0.0
      %7234 = vmatprep.subr.mxu0 0.0
      %7235 = vmatpush1.msra.mxu0 0.0
      %7236 = vmatprep.subr.mxu0 0.0
      %7237 = vmatpush1.msra.mxu0 0.0
      %7238 = vmatprep.subr.mxu0 0.0
      %7239 = vmatpush1.msra.mxu0 0.0
      %7240 = vmatprep.subr.mxu0 0.0
      %7241 = vmatpush1.msra.mxu0 0.0
      %7242 = vmatprep.subr.mxu0 0.0
      %7243 = vmatpush1.msra.mxu0 0.0
      %7244 = vmatprep.subr.mxu0 0.0
      %7245 = vmatpush1.msra.mxu0 0.0
      %7246 = vmatprep.mubr.f32.mxu0 0.0
      %7247 = vmatmul.mubr.f32.gmra.mrb[0].mxu0 %v7159
      %v7248 = vpop.f32.mrb[0].mxu0
      %v7249 = vadd.f32 0.0, %v7248
      %v7250 = vpop.f32.mrb[0].mxu0
      %7251 = vmatprep.mubr.f32.mxu0 0.0
      %7252 = vmatmul.mubr.f32.gmra.mrb[0].mxu0 %v7162
      %v7253 = vpop.f32.mrb[0].mxu0
      %v7254 = vadd.f32 0.0, %v7253
      %v7255 = vpop.f32.mrb[0].mxu0
      %7256 = vmatprep.mubr.f32.mxu0 0.0
      %7257 = vmatmul.mubr.f32.gmra.mrb[0].mxu0 %v7165
      %v7258 = vpop.f32.mrb[0].mxu0
      %v7259 = vadd.f32 0.0, %v7258
      %v7260 = vpop.f32.mrb[0].mxu0
      %7261 = vmatprep.mubr.f32.mxu0 0.0
      %7262 = vmatmul.mubr.f32.gmra.mrb[0].mxu0 %v7168
      %v7263 = vpop.f32.mrb[0].mxu0
      %v7264 = vadd.f32 0.0, %v7263
      %v7265 = vpop.f32.mrb[0].mxu0
      %7266 = vmatprep.mubr.f32.mxu0 0.0
      %7267 = vmatmul.mubr.f32.gmra.mrb[0].mxu0 %v7171
      %v7268 = vpop.f32.mrb[0].mxu0
      %v7269 = vadd.f32 0.0, %v7268
      %v7270 = vpop.f32.mrb[0].mxu0
      %7271 = vmatprep.mubr.f32.mxu0 0.0
      %7272 = vmatmul.mubr.f32.gmra.mrb[0].mxu0 %v7174
      %v7273 = vpop.f32.mrb[0].mxu0
      %v7274 = vadd.f32 0.0, %v7273
      %v7275 = vpop.f32.mrb[0].mxu0
      %7276 = vmatprep.mubr.f32.mxu0 0.0
      %7277 = vmatmul.mubr.f32.gmra.mrb[0].mxu0 %v7177
      %v7278 = vpop.f32.mrb[0].mxu0
      %v7279 = vadd.f32 0.0, %v7278
      %v7280 = vpop.f32.mrb[0].mxu0
      %7281 = vmatprep.mubr.f32.mxu0 0.0
      %7282 = vmatmul.mubr.f32.gmra.mrb[0].mxu0 %v7180
      %v7283 = vpop.f32.mrb[0].mxu0
      %v7284 = vadd.f32 0.0, %v7283
      %v7285 = vpop.f32.mrb[0].mxu0
      %7286 = vdwg.mxu0
      %v7287 = vrcp.pop %v7112
      %v7288 = vrcp.pop %v7115
      %v7289 = vrcp.pop %v7118
      %v7290 = vrcp.pop %v7121
      %v7291 = vrcp.pop %v7124
      %v7292 = vrcp.pop %v7127
      %v7293 = vrcp.pop %v7130
      %v7294 = vrcp.pop %v7133
      %v7295 = vmul.f32 %v7249, %v7287
      %v7296 = vmul.f32 %v7254, %v7288
      %v7297 = vmul.f32 %v7259, %v7289
      %v7298 = vmul.f32 %v7264, %v7290
      %v7299 = vmul.f32 %v7269, %v7291
      %v7300 = vmul.f32 %v7274, %v7292
      %v7301 = vmul.f32 %v7279, %v7293
      %v7302 = vmul.f32 %v7284, %v7294
      %7311 = vrot.lane.b32.xlu0 %v7295, 24
      %v7312 = vpop.permute.xlu0 %7311
      %7313 = vrot.lane.b32.xlu0 %v7296, 24
      %v7314 = vpop.permute.xlu0 %7313
      %7315 = vrot.lane.b32.xlu0 %v7297, 24
      %v7316 = vpop.permute.xlu0 %7315
      %7317 = vrot.lane.b32.xlu0 %v7298, 24
      %v7318 = vpop.permute.xlu0 %7317
      %7319 = vrot.lane.b32.xlu0 %v7299, 24
      %v7320 = vpop.permute.xlu0 %7319
      %7321 = vrot.lane.b32.xlu0 %v7300, 24
      %v7322 = vpop.permute.xlu0 %7321
      %7323 = vrot.lane.b32.xlu0 %v7301, 24
      %v7324 = vpop.permute.xlu0 %7323
      %7325 = vrot.lane.b32.xlu0 %v7302, 24
      %v7326 = vpop.permute.xlu0 %7325
      %7335 = vst.msk [vmem:[#allocation2 + $0x80] sm:$0xff] %vm6418, %v7312
      %7336 = vst.msk [vmem:[#allocation2 + $0x88] sm:$0xff] %vm6418, %v7314
      %7337 = vst.msk [vmem:[#allocation2 + $0x90] sm:$0xff] %vm6418, %v7316
      %7338 = vst.msk [vmem:[#allocation2 + $0x98] sm:$0xff] %vm6418, %v7318
      %7339 = vst.msk [vmem:[#allocation2 + $0xa0] sm:$0xff] %vm6418, %v7320
      %7340 = vst.msk [vmem:[#allocation2 + $0xa8] sm:$0xff] %vm6418, %v7322
      %7341 = vst.msk [vmem:[#allocation2 + $0xb0] sm:$0xff] %vm6418, %v7324
      %7342 = vst.msk [vmem:[#allocation2 + $0xb8] sm:$0xff] %vm6418, %v7326
      %v7343 = vld [vmem:[%s5967] sm:$0xff]
      %v7344 = vld [vmem:[%s5967 + $0x8] sm:$0xff]
      %v7345 = vld [vmem:[%s5967 + $0x10] sm:$0xff]
      %v7346 = vld [vmem:[%s5967 + $0x18] sm:$0xff]
      %v7347 = vld [vmem:[%s5967 + $0x20] sm:$0xff]
      %v7348 = vld [vmem:[%s5967 + $0x28] sm:$0xff]
      %v7349 = vld [vmem:[%s5967 + $0x30] sm:$0xff]
      %v7350 = vld [vmem:[%s5967 + $0x38] sm:$0xff]
      %7351 = vrot.lane.b32.xlu0 %v587, 104
      %v7352 = vpop.permute.xlu0 %7351
      %7353 = vrot.lane.b32.xlu0 %v592, 104
      %v7354 = vpop.permute.xlu0 %7353
      %7355 = vrot.lane.b32.xlu0 %v597, 104
      %v7356 = vpop.permute.xlu0 %7355
      %7357 = vrot.lane.b32.xlu0 %v602, 104
      %v7358 = vpop.permute.xlu0 %7357
      %7359 = vrot.lane.b32.xlu0 %v607, 104
      %v7360 = vpop.permute.xlu0 %7359
      %7361 = vrot.lane.b32.xlu0 %v612, 104
      %v7362 = vpop.permute.xlu0 %7361
      %7363 = vrot.lane.b32.xlu0 %v617, 104
      %v7364 = vpop.permute.xlu0 %7363
      %7365 = vrot.lane.b32.xlu0 %v622, 104
      %v7366 = vpop.permute.xlu0 %7365
      %7367 = vrot.lane.b32.xlu0 %v587, 72
      %v7368 = vpop.permute.xlu0 %7367
      %7369 = vrot.lane.b32.xlu0 %v592, 72
      %v7370 = vpop.permute.xlu0 %7369
      %7371 = vrot.lane.b32.xlu0 %v597, 72
      %v7372 = vpop.permute.xlu0 %7371
      %7373 = vrot.lane.b32.xlu0 %v602, 72
      %v7374 = vpop.permute.xlu0 %7373
      %7375 = vrot.lane.b32.xlu0 %v607, 72
      %v7376 = vpop.permute.xlu0 %7375
      %7377 = vrot.lane.b32.xlu0 %v612, 72
      %v7378 = vpop.permute.xlu0 %7377
      %7379 = vrot.lane.b32.xlu0 %v617, 72
      %v7380 = vpop.permute.xlu0 %7379
      %7381 = vrot.lane.b32.xlu0 %v622, 72
      %v7382 = vpop.permute.xlu0 %7381
      %v7383 = vsel %vm657, %v7352, 0
      %v7385 = vsel %vm657, %v7354, 0
      %v7387 = vsel %vm657, %v7356, 0
      %v7389 = vsel %vm657, %v7358, 0
      %v7391 = vsel %vm657, %v7360, 0
      %v7393 = vsel %vm657, %v7362, 0
      %v7395 = vsel %vm657, %v7364, 0
      %v7397 = vsel %vm657, %v7366, 0
      %v7399 = vsel %vm657, %v7368, 0
      %v7401 = vsel %vm657, %v7370, 0
      %v7403 = vsel %vm657, %v7372, 0
      %v7405 = vsel %vm657, %v7374, 0
      %v7407 = vsel %vm657, %v7376, 0
      %v7409 = vsel %vm657, %v7378, 0
      %v7411 = vsel %vm657, %v7380, 0
      %v7413 = vsel %vm657, %v7382, 0
      %7415 = vmatprep.subr.mxu0 0.0
      %7416 = vmatpush1.xpose.msra.mxu0 %v7399
      %7417 = vmatprep.subr.mxu0 0.0
      %7418 = vmatpush1.xpose.msra.mxu0 %v7401
      %7419 = vmatprep.subr.mxu0 0.0
      %7420 = vmatpush1.xpose.msra.mxu0 %v7403
      %7421 = vmatprep.subr.mxu0 0.0
      %7422 = vmatpush1.xpose.msra.mxu0 %v7405
      %7423 = vmatprep.subr.mxu0 0.0
      %7424 = vmatpush1.xpose.msra.mxu0 %v7407
      %7425 = vmatprep.subr.mxu0 0.0
      %7426 = vmatpush1.xpose.msra.mxu0 %v7409
      %7427 = vmatprep.subr.mxu0 0.0
      %7428 = vmatpush1.xpose.msra.mxu0 %v7411
      %7429 = vmatprep.subr.mxu0 0.0
      %7430 = vmatpush1.xpose.msra.mxu0 %v7413
      %7431 = vmatprep.subr.mxu0 0.0
      %7432 = vmatpush1.xpose.msra.mxu0 0.0
      %7433 = vmatprep.subr.mxu0 0.0
      %7434 = vmatpush1.xpose.msra.mxu0 0.0
      %7435 = vmatprep.subr.mxu0 0.0
      %7436 = vmatpush1.xpose.msra.mxu0 0.0
      %7437 = vmatprep.subr.mxu0 0.0
      %7438 = vmatpush1.xpose.msra.mxu0 0.0
      %7439 = vmatprep.subr.mxu0 0.0
      %7440 = vmatpush1.xpose.msra.mxu0 0.0
      %7441 = vmatprep.subr.mxu0 0.0
      %7442 = vmatpush1.xpose.msra.mxu0 0.0
      %7443 = vmatprep.subr.mxu0 0.0
      %7444 = vmatpush1.xpose.msra.mxu0 0.0
      %7445 = vmatprep.subr.mxu0 0.0
      %7446 = vmatpush1.xpose.msra.mxu0 0.0
      %7447 = vmatprep.subr.mxu0 0.0
      %7448 = vmatpush1.xpose.msra.mxu0 0.0
      %7449 = vmatprep.subr.mxu0 0.0
      %7450 = vmatpush1.xpose.msra.mxu0 0.0
      %7451 = vmatprep.subr.mxu0 0.0
      %7452 = vmatpush1.xpose.msra.mxu0 0.0
      %7453 = vmatprep.subr.mxu0 0.0
      %7454 = vmatpush1.xpose.msra.mxu0 0.0
      %7455 = vmatprep.subr.mxu0 0.0
      %7456 = vmatpush1.xpose.msra.mxu0 0.0
      %7457 = vmatprep.subr.mxu0 0.0
      %7458 = vmatpush1.xpose.msra.mxu0 0.0
      %7459 = vmatprep.subr.mxu0 0.0
      %7460 = vmatpush1.xpose.msra.mxu0 0.0
      %7461 = vmatprep.subr.mxu0 0.0
      %7462 = vmatpush1.xpose.msra.mxu0 0.0
      %7463 = vmatprep.subr.mxu0 0.0
      %7464 = vmatpush1.xpose.msra.mxu0 0.0
      %7465 = vmatprep.subr.mxu0 0.0
      %7466 = vmatpush1.xpose.msra.mxu0 0.0
      %7467 = vmatprep.subr.mxu0 0.0
      %7468 = vmatpush1.xpose.msra.mxu0 0.0
      %7469 = vmatprep.subr.mxu0 0.0
      %7470 = vmatpush1.xpose.msra.mxu0 0.0
      %7471 = vmatprep.subr.mxu0 0.0
      %7472 = vmatpush1.xpose.msra.mxu0 0.0
      %7473 = vmatprep.subr.mxu0 0.0
      %7474 = vmatpush1.xpose.msra.mxu0 0.0
      %7475 = vmatprep.subr.mxu0 0.0
      %7476 = vmatpush1.xpose.msra.mxu0 0.0
      %7477 = vmatprep.subr.mxu0 0.0
      %7478 = vmatpush1.xpose.msra.mxu0 0.0
      %7479 = vmatprep.mubr.f32.mxu0 0.0
      %7480 = vmatmul.mubr.f32.gmra.mrb[0].mxu0 %v7383
      %v7481 = vpop.f32.mrb[0].mxu0
      %v7482 = vadd.f32 %v7343, %v7481
      %v7483 = vpop.f32.mrb[0].mxu0
      %7484 = vmatprep.mubr.f32.mxu0 0.0
      %7485 = vmatmul.mubr.f32.gmra.mrb[0].mxu0 %v7385
      %v7486 = vpop.f32.mrb[0].mxu0
      %v7487 = vadd.f32 %v7344, %v7486
      %v7488 = vpop.f32.mrb[0].mxu0
      %7489 = vmatprep.mubr.f32.mxu0 0.0
      %7490 = vmatmul.mubr.f32.gmra.mrb[0].mxu0 %v7387
      %v7491 = vpop.f32.mrb[0].mxu0
      %v7492 = vadd.f32 %v7345, %v7491
      %v7493 = vpop.f32.mrb[0].mxu0
      %7494 = vmatprep.mubr.f32.mxu0 0.0
      %7495 = vmatmul.mubr.f32.gmra.mrb[0].mxu0 %v7389
      %v7496 = vpop.f32.mrb[0].mxu0
      %v7497 = vadd.f32 %v7346, %v7496
      %v7498 = vpop.f32.mrb[0].mxu0
      %7499 = vmatprep.mubr.f32.mxu0 0.0
      %7500 = vmatmul.mubr.f32.gmra.mrb[0].mxu0 %v7391
      %v7501 = vpop.f32.mrb[0].mxu0
      %v7502 = vadd.f32 %v7347, %v7501
      %v7503 = vpop.f32.mrb[0].mxu0
      %7504 = vmatprep.mubr.f32.mxu0 0.0
      %7505 = vmatmul.mubr.f32.gmra.mrb[0].mxu0 %v7393
      %v7506 = vpop.f32.mrb[0].mxu0
      %v7507 = vadd.f32 %v7348, %v7506
      %v7508 = vpop.f32.mrb[0].mxu0
      %7509 = vmatprep.mubr.f32.mxu0 0.0
      %7510 = vmatmul.mubr.f32.gmra.mrb[0].mxu0 %v7395
      %v7511 = vpop.f32.mrb[0].mxu0
      %v7512 = vadd.f32 %v7349, %v7511
      %v7513 = vpop.f32.mrb[0].mxu0
      %7514 = vmatprep.mubr.f32.mxu0 0.0
      %7515 = vmatmul.mubr.f32.gmra.mrb[0].mxu0 %v7397
      %v7516 = vpop.f32.mrb[0].mxu0
      %v7517 = vadd.f32 %v7350, %v7516
      %v7518 = vpop.f32.mrb[0].mxu0
      %7519 = vdwg.mxu0
      %v7520 = vsel %vm795, %v7482, -inf
      %7521 = vmax.xlane.f32.xlu0 %v7520
      %v7522 = vpop.xlane.xlu0 %7521
      %v7523 = vsel %vm795, %v7487, -inf
      %7524 = vmax.xlane.f32.xlu0 %v7523
      %v7525 = vpop.xlane.xlu0 %7524
      %v7526 = vsel %vm795, %v7492, -inf
      %7527 = vmax.xlane.f32.xlu0 %v7526
      %v7528 = vpop.xlane.xlu0 %7527
      %v7529 = vsel %vm795, %v7497, -inf
      %7530 = vmax.xlane.f32.xlu0 %v7529
      %v7531 = vpop.xlane.xlu0 %7530
      %v7532 = vsel %vm795, %v7502, -inf
      %7533 = vmax.xlane.f32.xlu0 %v7532
      %v7534 = vpop.xlane.xlu0 %7533
      %v7535 = vsel %vm795, %v7507, -inf
      %7536 = vmax.xlane.f32.xlu0 %v7535
      %v7537 = vpop.xlane.xlu0 %7536
      %v7538 = vsel %vm795, %v7512, -inf
      %7539 = vmax.xlane.f32.xlu0 %v7538
      %v7540 = vpop.xlane.xlu0 %7539
      %v7541 = vsel %vm795, %v7517, -inf
      %7542 = vmax.xlane.f32.xlu0 %v7541
      %v7543 = vpop.xlane.xlu0 %7542
      %v7544 = vsub.f32 %v7482, %v7522
      %v7545 = vsub.f32 %v7487, %v7525
      %v7546 = vsub.f32 %v7492, %v7528
      %v7547 = vsub.f32 %v7497, %v7531
      %v7548 = vsub.f32 %v7502, %v7534
      %v7549 = vsub.f32 %v7507, %v7537
      %v7550 = vsub.f32 %v7512, %v7540
      %v7551 = vsub.f32 %v7517, %v7543
      %v7552 = vmul.f32 %v7544, 1.442695
      %v7553 = vpow.pop %v7552
      %v7554 = vmul.f32 %v7545, 1.442695
      %v7555 = vpow.pop %v7554
      %v7556 = vmul.f32 %v7546, 1.442695
      %v7557 = vpow.pop %v7556
      %v7558 = vmul.f32 %v7547, 1.442695
      %v7559 = vpow.pop %v7558
      %v7560 = vmul.f32 %v7548, 1.442695
      %v7561 = vpow.pop %v7560
      %v7562 = vmul.f32 %v7549, 1.442695
      %v7563 = vpow.pop %v7562
      %v7564 = vmul.f32 %v7550, 1.442695
      %v7565 = vpow.pop %v7564
      %v7566 = vmul.f32 %v7551, 1.442695
      %v7567 = vpow.pop %v7566
      %v7568 = vsel %vm795, %v7553, 0.0
      %7569 = vadd.xlane.f32.xlu0 %v7568
      %v7570 = vpop.xlane.xlu0 %7569
      %v7571 = vsel %vm795, %v7555, 0.0
      %7572 = vadd.xlane.f32.xlu0 %v7571
      %v7573 = vpop.xlane.xlu0 %7572
      %v7574 = vsel %vm795, %v7557, 0.0
      %7575 = vadd.xlane.f32.xlu0 %v7574
      %v7576 = vpop.xlane.xlu0 %7575
      %v7577 = vsel %vm795, %v7559, 0.0
      %7578 = vadd.xlane.f32.xlu0 %v7577
      %v7579 = vpop.xlane.xlu0 %7578
      %v7580 = vsel %vm795, %v7561, 0.0
      %7581 = vadd.xlane.f32.xlu0 %v7580
      %v7582 = vpop.xlane.xlu0 %7581
      %v7583 = vsel %vm795, %v7563, 0.0
      %7584 = vadd.xlane.f32.xlu0 %v7583
      %v7585 = vpop.xlane.xlu0 %7584
      %v7586 = vsel %vm795, %v7565, 0.0
      %7587 = vadd.xlane.f32.xlu0 %v7586
      %v7588 = vpop.xlane.xlu0 %7587
      %v7589 = vsel %vm795, %v7567, 0.0
      %7590 = vadd.xlane.f32.xlu0 %v7589
      %v7591 = vpop.xlane.xlu0 %7590
      %7592 = vrot.lane.b32.xlu0 %v587, 40
      %v7593 = vpop.permute.xlu0 %7592
      %7594 = vrot.lane.b32.xlu0 %v592, 40
      %v7595 = vpop.permute.xlu0 %7594
      %7596 = vrot.lane.b32.xlu0 %v597, 40
      %v7597 = vpop.permute.xlu0 %7596
      %7598 = vrot.lane.b32.xlu0 %v602, 40
      %v7599 = vpop.permute.xlu0 %7598
      %7600 = vrot.lane.b32.xlu0 %v607, 40
      %v7601 = vpop.permute.xlu0 %7600
      %7602 = vrot.lane.b32.xlu0 %v612, 40
      %v7603 = vpop.permute.xlu0 %7602
      %7604 = vrot.lane.b32.xlu0 %v617, 40
      %v7605 = vpop.permute.xlu0 %7604
      %7606 = vrot.lane.b32.xlu0 %v622, 40
      %v7607 = vpop.permute.xlu0 %7606
      %v7617 = vsel %vm795, %v7553, 0
      %v7620 = vsel %vm795, %v7555, 0
      %v7623 = vsel %vm795, %v7557, 0
      %v7626 = vsel %vm795, %v7559, 0
      %v7629 = vsel %vm795, %v7561, 0
      %v7632 = vsel %vm795, %v7563, 0
      %v7635 = vsel %vm795, %v7565, 0
      %v7638 = vsel %vm795, %v7567, 0
      %7640 = vmatprep.subr.mxu0 0.0
      %7641 = vmatpush1.msra.mxu0 %v7593
      %7642 = vmatprep.subr.mxu0 0.0
      %7643 = vmatpush1.msra.mxu0 %v7595
      %7644 = vmatprep.subr.mxu0 0.0
      %7645 = vmatpush1.msra.mxu0 %v7597
      %7646 = vmatprep.subr.mxu0 0.0
      %7647 = vmatpush1.msra.mxu0 %v7599
      %7648 = vmatprep.subr.mxu0 0.0
      %7649 = vmatpush1.msra.mxu0 %v7601
      %7650 = vmatprep.subr.mxu0 0.0
      %7651 = vmatpush1.msra.mxu0 %v7603
      %7652 = vmatprep.subr.mxu0 0.0
      %7653 = vmatpush1.msra.mxu0 %v7605
      %7654 = vmatprep.subr.mxu0 0.0
      %7655 = vmatpush1.msra.mxu0 %v7607
      %7656 = vmatprep.subr.mxu0 0.0
      %7657 = vmatpush1.msra.mxu0 0.0
      %7658 = vmatprep.subr.mxu0 0.0
      %7659 = vmatpush1.msra.mxu0 0.0
      %7660 = vmatprep.subr.mxu0 0.0
      %7661 = vmatpush1.msra.mxu0 0.0
      %7662 = vmatprep.subr.mxu0 0.0
      %7663 = vmatpush1.msra.mxu0 0.0
      %7664 = vmatprep.subr.mxu0 0.0
      %7665 = vmatpush1.msra.mxu0 0.0
      %7666 = vmatprep.subr.mxu0 0.0
      %7667 = vmatpush1.msra.mxu0 0.0
      %7668 = vmatprep.subr.mxu0 0.0
      %7669 = vmatpush1.msra.mxu0 0.0
      %7670 = vmatprep.subr.mxu0 0.0
      %7671 = vmatpush1.msra.mxu0 0.0
      %7672 = vmatprep.subr.mxu0 0.0
      %7673 = vmatpush1.msra.mxu0 0.0
      %7674 = vmatprep.subr.mxu0 0.0
      %7675 = vmatpush1.msra.mxu0 0.0
      %7676 = vmatprep.subr.mxu0 0.0
      %7677 = vmatpush1.msra.mxu0 0.0
      %7678 = vmatprep.subr.mxu0 0.0
      %7679 = vmatpush1.msra.mxu0 0.0
      %7680 = vmatprep.subr.mxu0 0.0
      %7681 = vmatpush1.msra.mxu0 0.0
      %7682 = vmatprep.subr.mxu0 0.0
      %7683 = vmatpush1.msra.mxu0 0.0
      %7684 = vmatprep.subr.mxu0 0.0
      %7685 = vmatpush1.msra.mxu0 0.0
      %7686 = vmatprep.subr.mxu0 0.0
      %7687 = vmatpush1.msra.mxu0 0.0
      %7688 = vmatprep.subr.mxu0 0.0
      %7689 = vmatpush1.msra.mxu0 0.0
      %7690 = vmatprep.subr.mxu0 0.0
      %7691 = vmatpush1.msra.mxu0 0.0
      %7692 = vmatprep.subr.mxu0 0.0
      %7693 = vmatpush1.msra.mxu0 0.0
      %7694 = vmatprep.subr.mxu0 0.0
      %7695 = vmatpush1.msra.mxu0 0.0
      %7696 = vmatprep.subr.mxu0 0.0
      %7697 = vmatpush1.msra.mxu0 0.0
      %7698 = vmatprep.subr.mxu0 0.0
      %7699 = vmatpush1.msra.mxu0 0.0
      %7700 = vmatprep.subr.mxu0 0.0
      %7701 = vmatpush1.msra.mxu0 0.0
      %7702 = vmatprep.subr.mxu0 0.0
      %7703 = vmatpush1.msra.mxu0 0.0
      %7704 = vmatprep.mubr.f32.mxu0 0.0
      %7705 = vmatmul.mubr.f32.gmra.mrb[0].mxu0 %v7617
      %v7706 = vpop.f32.mrb[0].mxu0
      %v7707 = vadd.f32 0.0, %v7706
      %v7708 = vpop.f32.mrb[0].mxu0
      %7709 = vmatprep.mubr.f32.mxu0 0.0
      %7710 = vmatmul.mubr.f32.gmra.mrb[0].mxu0 %v7620
      %v7711 = vpop.f32.mrb[0].mxu0
      %v7712 = vadd.f32 0.0, %v7711
      %v7713 = vpop.f32.mrb[0].mxu0
      %7714 = vmatprep.mubr.f32.mxu0 0.0
      %7715 = vmatmul.mubr.f32.gmra.mrb[0].mxu0 %v7623
      %v7716 = vpop.f32.mrb[0].mxu0
      %v7717 = vadd.f32 0.0, %v7716
      %v7718 = vpop.f32.mrb[0].mxu0
      %7719 = vmatprep.mubr.f32.mxu0 0.0
      %7720 = vmatmul.mubr.f32.gmra.mrb[0].mxu0 %v7626
      %v7721 = vpop.f32.mrb[0].mxu0
      %v7722 = vadd.f32 0.0, %v7721
      %v7723 = vpop.f32.mrb[0].mxu0
      %7724 = vmatprep.mubr.f32.mxu0 0.0
      %7725 = vmatmul.mubr.f32.gmra.mrb[0].mxu0 %v7629
      %v7726 = vpop.f32.mrb[0].mxu0
      %v7727 = vadd.f32 0.0, %v7726
      %v7728 = vpop.f32.mrb[0].mxu0
      %7729 = vmatprep.mubr.f32.mxu0 0.0
      %7730 = vmatmul.mubr.f32.gmra.mrb[0].mxu0 %v7632
      %v7731 = vpop.f32.mrb[0].mxu0
      %v7732 = vadd.f32 0.0, %v7731
      %v7733 = vpop.f32.mrb[0].mxu0
      %7734 = vmatprep.mubr.f32.mxu0 0.0
      %7735 = vmatmul.mubr.f32.gmra.mrb[0].mxu0 %v7635
      %v7736 = vpop.f32.mrb[0].mxu0
      %v7737 = vadd.f32 0.0, %v7736
      %v7738 = vpop.f32.mrb[0].mxu0
      %7739 = vmatprep.mubr.f32.mxu0 0.0
      %7740 = vmatmul.mubr.f32.gmra.mrb[0].mxu0 %v7638
      %v7741 = vpop.f32.mrb[0].mxu0
      %v7742 = vadd.f32 0.0, %v7741
      %v7743 = vpop.f32.mrb[0].mxu0
      %7744 = vdwg.mxu0
      %v7745 = vrcp.pop %v7570
      %v7746 = vrcp.pop %v7573
      %v7747 = vrcp.pop %v7576
      %v7748 = vrcp.pop %v7579
      %v7749 = vrcp.pop %v7582
      %v7750 = vrcp.pop %v7585
      %v7751 = vrcp.pop %v7588
      %v7752 = vrcp.pop %v7591
      %v7753 = vmul.f32 %v7707, %v7745
      %v7754 = vmul.f32 %v7712, %v7746
      %v7755 = vmul.f32 %v7717, %v7747
      %v7756 = vmul.f32 %v7722, %v7748
      %v7757 = vmul.f32 %v7727, %v7749
      %v7758 = vmul.f32 %v7732, %v7750
      %v7759 = vmul.f32 %v7737, %v7751
      %v7760 = vmul.f32 %v7742, %v7752
      %7769 = vrot.lane.b32.xlu0 %v7753, 24
      %v7770 = vpop.permute.xlu0 %7769
      %7771 = vrot.lane.b32.xlu0 %v7754, 24
      %v7772 = vpop.permute.xlu0 %7771
      %7773 = vrot.lane.b32.xlu0 %v7755, 24
      %v7774 = vpop.permute.xlu0 %7773
      %7775 = vrot.lane.b32.xlu0 %v7756, 24
      %v7776 = vpop.permute.xlu0 %7775
      %7777 = vrot.lane.b32.xlu0 %v7757, 24
      %v7778 = vpop.permute.xlu0 %7777
      %7779 = vrot.lane.b32.xlu0 %v7758, 24
      %v7780 = vpop.permute.xlu0 %7779
      %7781 = vrot.lane.b32.xlu0 %v7759, 24
      %v7782 = vpop.permute.xlu0 %7781
      %7783 = vrot.lane.b32.xlu0 %v7760, 24
      %v7784 = vpop.permute.xlu0 %7783
      %7793 = vst.msk [vmem:[#allocation2 + $0xc0] sm:$0xff] %vm6418, %v7770
      %7794 = vst.msk [vmem:[#allocation2 + $0xc8] sm:$0xff] %vm6418, %v7772
      %7795 = vst.msk [vmem:[#allocation2 + $0xd0] sm:$0xff] %vm6418, %v7774
      %7796 = vst.msk [vmem:[#allocation2 + $0xd8] sm:$0xff] %vm6418, %v7776
      %7797 = vst.msk [vmem:[#allocation2 + $0xe0] sm:$0xff] %vm6418, %v7778
      %7798 = vst.msk [vmem:[#allocation2 + $0xe8] sm:$0xff] %vm6418, %v7780
      %7799 = vst.msk [vmem:[#allocation2 + $0xf0] sm:$0xff] %vm6418, %v7782
      %7800 = vst.msk [vmem:[#allocation2 + $0xf8] sm:$0xff] %vm6418, %v7784
      %v7801 = vld [vmem:[#allocation2] sm:$0xff]
      %v7802 = vld [vmem:[#allocation2 + $0x8] sm:$0xff]
      %v7803 = vld [vmem:[#allocation2 + $0x10] sm:$0xff]
      %v7804 = vld [vmem:[#allocation2 + $0x18] sm:$0xff]
      %v7805 = vld [vmem:[#allocation2 + $0x20] sm:$0xff]
      %v7806 = vld [vmem:[#allocation2 + $0x28] sm:$0xff]
      %v7807 = vld [vmem:[#allocation2 + $0x30] sm:$0xff]
      %v7808 = vld [vmem:[#allocation2 + $0x38] sm:$0xff]
      %v7809 = vld [vmem:[#allocation2 + $0x40] sm:$0xff]
      %v7810 = vld [vmem:[#allocation2 + $0x48] sm:$0xff]
      %v7811 = vld [vmem:[#allocation2 + $0x50] sm:$0xff]
      %v7812 = vld [vmem:[#allocation2 + $0x58] sm:$0xff]
      %v7813 = vld [vmem:[#allocation2 + $0x60] sm:$0xff]
      %v7814 = vld [vmem:[#allocation2 + $0x68] sm:$0xff]
      %v7815 = vld [vmem:[#allocation2 + $0x70] sm:$0xff]
      %v7816 = vld [vmem:[#allocation2 + $0x78] sm:$0xff]
      %v7817 = vld [vmem:[#allocation2 + $0x80] sm:$0xff]
      %v7818 = vld [vmem:[#allocation2 + $0x88] sm:$0xff]
      %v7819 = vld [vmem:[#allocation2 + $0x90] sm:$0xff]
      %v7820 = vld [vmem:[#allocation2 + $0x98] sm:$0xff]
      %v7821 = vld [vmem:[#allocation2 + $0xa0] sm:$0xff]
      %v7822 = vld [vmem:[#allocation2 + $0xa8] sm:$0xff]
      %v7823 = vld [vmem:[#allocation2 + $0xb0] sm:$0xff]
      %v7824 = vld [vmem:[#allocation2 + $0xb8] sm:$0xff]
      %v7825 = vld [vmem:[#allocation2 + $0xc0] sm:$0xff]
      %v7826 = vld [vmem:[#allocation2 + $0xc8] sm:$0xff]
      %v7827 = vld [vmem:[#allocation2 + $0xd0] sm:$0xff]
      %v7828 = vld [vmem:[#allocation2 + $0xd8] sm:$0xff]
      %v7829 = vld [vmem:[#allocation2 + $0xe0] sm:$0xff]
      %v7830 = vld [vmem:[#allocation2 + $0xe8] sm:$0xff]
      %v7831 = vld [vmem:[#allocation2 + $0xf0] sm:$0xff]
      %v7832 = vld [vmem:[#allocation2 + $0xf8] sm:$0xff]
      %v7833 = vld [vmem:[%s4] sm:$0xff]
      %v7834 = vld [vmem:[%s4 + $0x8] sm:$0xff]
      %v7835 = vld [vmem:[%s4 + $0x10] sm:$0xff]
      %v7836 = vld [vmem:[%s4 + $0x18] sm:$0xff]
      %v7837 = vld [vmem:[%s5] sm:$0x1]
      %v7839 = vlaneseq
      %v7840 = vshrl.u32 %v7839, 7
      %v7841 = vsub.s32 0, %v7840
      %v7842 = vrot.slane %v7837, %v7841
      %v7845 = vsel %vm303, %v7801, 0
      %v7848 = vsel %vm303, %v7802, 0
      %v7851 = vsel %vm303, %v7803, 0
      %v7854 = vsel %vm303, %v7804, 0
      %v7857 = vsel %vm303, %v7805, 0
      %v7860 = vsel %vm303, %v7806, 0
      %v7863 = vsel %vm303, %v7807, 0
      %v7866 = vsel %vm303, %v7808, 0
      %v7869 = vsel %vm303, %v7809, 0
      %v7872 = vsel %vm303, %v7810, 0
      %v7875 = vsel %vm303, %v7811, 0
      %v7878 = vsel %vm303, %v7812, 0
      %v7881 = vsel %vm303, %v7813, 0
      %v7884 = vsel %vm303, %v7814, 0
      %v7887 = vsel %vm303, %v7815, 0
      %v7890 = vsel %vm303, %v7816, 0
      %v7893 = vsel %vm303, %v7817, 0
      %v7896 = vsel %vm303, %v7818, 0
      %v7899 = vsel %vm303, %v7819, 0
      %v7902 = vsel %vm303, %v7820, 0
      %v7905 = vsel %vm303, %v7821, 0
      %v7908 = vsel %vm303, %v7822, 0
      %v7911 = vsel %vm303, %v7823, 0
      %v7914 = vsel %vm303, %v7824, 0
      %v7917 = vsel %vm303, %v7825, 0
      %v7920 = vsel %vm303, %v7826, 0
      %v7923 = vsel %vm303, %v7827, 0
      %v7926 = vsel %vm303, %v7828, 0
      %v7929 = vsel %vm303, %v7829, 0
      %v7932 = vsel %vm303, %v7830, 0
      %v7935 = vsel %vm303, %v7831, 0
      %v7938 = vsel %vm303, %v7832, 0
      %7940 = vmatprep.subr.mxu0 0.0
      %7941 = vmatpush1.msra.mxu0 %v7833
      %7942 = vmatprep.subr.mxu0 0.0
      %7943 = vmatpush1.msra.mxu0 %v7834
      %7944 = vmatprep.subr.mxu0 0.0
      %7945 = vmatpush1.msra.mxu0 %v7835
      %7946 = vmatprep.subr.mxu0 0.0
      %7947 = vmatpush1.msra.mxu0 %v7836
      %7948 = vmatprep.subr.mxu0 0.0
      %7949 = vmatpush1.msra.mxu0 0.0
      %7950 = vmatprep.subr.mxu0 0.0
      %7951 = vmatpush1.msra.mxu0 0.0
      %7952 = vmatprep.subr.mxu0 0.0
      %7953 = vmatpush1.msra.mxu0 0.0
      %7954 = vmatprep.subr.mxu0 0.0
      %7955 = vmatpush1.msra.mxu0 0.0
      %7956 = vmatprep.subr.mxu0 0.0
      %7957 = vmatpush1.msra.mxu0 0.0
      %7958 = vmatprep.subr.mxu0 0.0
      %7959 = vmatpush1.msra.mxu0 0.0
      %7960 = vmatprep.subr.mxu0 0.0
      %7961 = vmatpush1.msra.mxu0 0.0
      %7962 = vmatprep.subr.mxu0 0.0
      %7963 = vmatpush1.msra.mxu0 0.0
      %7964 = vmatprep.subr.mxu0 0.0
      %7965 = vmatpush1.msra.mxu0 0.0
      %7966 = vmatprep.subr.mxu0 0.0
      %7967 = vmatpush1.msra.mxu0 0.0
      %7968 = vmatprep.subr.mxu0 0.0
      %7969 = vmatpush1.msra.mxu0 0.0
      %7970 = vmatprep.subr.mxu0 0.0
      %7971 = vmatpush1.msra.mxu0 0.0
      %7972 = vmatprep.subr.mxu0 0.0
      %7973 = vmatpush1.msra.mxu0 0.0
      %7974 = vmatprep.subr.mxu0 0.0
      %7975 = vmatpush1.msra.mxu0 0.0
      %7976 = vmatprep.subr.mxu0 0.0
      %7977 = vmatpush1.msra.mxu0 0.0
      %7978 = vmatprep.subr.mxu0 0.0
      %7979 = vmatpush1.msra.mxu0 0.0
      %7980 = vmatprep.subr.mxu0 0.0
      %7981 = vmatpush1.msra.mxu0 0.0
      %7982 = vmatprep.subr.mxu0 0.0
      %7983 = vmatpush1.msra.mxu0 0.0
      %7984 = vmatprep.subr.mxu0 0.0
      %7985 = vmatpush1.msra.mxu0 0.0
      %7986 = vmatprep.subr.mxu0 0.0
      %7987 = vmatpush1.msra.mxu0 0.0
      %7988 = vmatprep.subr.mxu0 0.0
      %7989 = vmatpush1.msra.mxu0 0.0
      %7990 = vmatprep.subr.mxu0 0.0
      %7991 = vmatpush1.msra.mxu0 0.0
      %7992 = vmatprep.subr.mxu0 0.0
      %7993 = vmatpush1.msra.mxu0 0.0
      %7994 = vmatprep.subr.mxu0 0.0
      %7995 = vmatpush1.msra.mxu0 0.0
      %7996 = vmatprep.subr.mxu0 0.0
      %7997 = vmatpush1.msra.mxu0 0.0
      %7998 = vmatprep.subr.mxu0 0.0
      %7999 = vmatpush1.msra.mxu0 0.0
      %8000 = vmatprep.subr.mxu0 0.0
      %8001 = vmatpush1.msra.mxu0 0.0
      %8002 = vmatprep.subr.mxu0 0.0
      %8003 = vmatpush1.msra.mxu0 0.0
      %8004 = vmatprep.mubr.f32.mxu0 0.0
      %8005 = vmatmul.mubr.f32.gmra.mrb[0].mxu0 %v7845
      %v8006 = vpop.f32.mrb[0].mxu0
      %v8007 = vadd.f32 %v7842, %v8006
      %v8008 = vpop.f32.mrb[0].mxu0
      %8009 = vmatprep.mubr.f32.mxu0 0.0
      %8010 = vmatmul.mubr.f32.gmra.mrb[0].mxu0 %v7848
      %v8011 = vpop.f32.mrb[0].mxu0
      %v8012 = vadd.f32 %v7842, %v8011
      %v8013 = vpop.f32.mrb[0].mxu0
      %8014 = vmatprep.mubr.f32.mxu0 0.0
      %8015 = vmatmul.mubr.f32.gmra.mrb[0].mxu0 %v7851
      %v8016 = vpop.f32.mrb[0].mxu0
      %v8017 = vadd.f32 %v7842, %v8016
      %v8018 = vpop.f32.mrb[0].mxu0
      %8019 = vmatprep.mubr.f32.mxu0 0.0
      %8020 = vmatmul.mubr.f32.gmra.mrb[0].mxu0 %v7854
      %v8021 = vpop.f32.mrb[0].mxu0
      %v8022 = vadd.f32 %v7842, %v8021
      %v8023 = vpop.f32.mrb[0].mxu0
      %8024 = vmatprep.mubr.f32.mxu0 0.0
      %8025 = vmatmul.mubr.f32.gmra.mrb[0].mxu0 %v7857
      %v8026 = vpop.f32.mrb[0].mxu0
      %v8027 = vadd.f32 %v7842, %v8026
      %v8028 = vpop.f32.mrb[0].mxu0
      %8029 = vmatprep.mubr.f32.mxu0 0.0
      %8030 = vmatmul.mubr.f32.gmra.mrb[0].mxu0 %v7860
      %v8031 = vpop.f32.mrb[0].mxu0
      %v8032 = vadd.f32 %v7842, %v8031
      %v8033 = vpop.f32.mrb[0].mxu0
      %8034 = vmatprep.mubr.f32.mxu0 0.0
      %8035 = vmatmul.mubr.f32.gmra.mrb[0].mxu0 %v7863
      %v8036 = vpop.f32.mrb[0].mxu0
      %v8037 = vadd.f32 %v7842, %v8036
      %v8038 = vpop.f32.mrb[0].mxu0
      %8039 = vmatprep.mubr.f32.mxu0 0.0
      %8040 = vmatmul.mubr.f32.gmra.mrb[0].mxu0 %v7866
      %v8041 = vpop.f32.mrb[0].mxu0
      %v8042 = vadd.f32 %v7842, %v8041
      %v8043 = vpop.f32.mrb[0].mxu0
      %8044 = vmatprep.mubr.f32.mxu0 0.0
      %8045 = vmatmul.mubr.f32.gmra.mrb[0].mxu0 %v7869
      %v8046 = vpop.f32.mrb[0].mxu0
      %v8047 = vadd.f32 %v7842, %v8046
      %v8048 = vpop.f32.mrb[0].mxu0
      %8049 = vmatprep.mubr.f32.mxu0 0.0
      %8050 = vmatmul.mubr.f32.gmra.mrb[0].mxu0 %v7872
      %v8051 = vpop.f32.mrb[0].mxu0
      %v8052 = vadd.f32 %v7842, %v8051
      %v8053 = vpop.f32.mrb[0].mxu0
      %8054 = vmatprep.mubr.f32.mxu0 0.0
      %8055 = vmatmul.mubr.f32.gmra.mrb[0].mxu0 %v7875
      %v8056 = vpop.f32.mrb[0].mxu0
      %v8057 = vadd.f32 %v7842, %v8056
      %v8058 = vpop.f32.mrb[0].mxu0
      %8059 = vmatprep.mubr.f32.mxu0 0.0
      %8060 = vmatmul.mubr.f32.gmra.mrb[0].mxu0 %v7878
      %v8061 = vpop.f32.mrb[0].mxu0
      %v8062 = vadd.f32 %v7842, %v8061
      %v8063 = vpop.f32.mrb[0].mxu0
      %8064 = vmatprep.mubr.f32.mxu0 0.0
      %8065 = vmatmul.mubr.f32.gmra.mrb[0].mxu0 %v7881
      %v8066 = vpop.f32.mrb[0].mxu0
      %v8067 = vadd.f32 %v7842, %v8066
      %v8068 = vpop.f32.mrb[0].mxu0
      %8069 = vmatprep.mubr.f32.mxu0 0.0
      %8070 = vmatmul.mubr.f32.gmra.mrb[0].mxu0 %v7884
      %v8071 = vpop.f32.mrb[0].mxu0
      %v8072 = vadd.f32 %v7842, %v8071
      %v8073 = vpop.f32.mrb[0].mxu0
      %8074 = vmatprep.mubr.f32.mxu0 0.0
      %8075 = vmatmul.mubr.f32.gmra.mrb[0].mxu0 %v7887
      %v8076 = vpop.f32.mrb[0].mxu0
      %v8077 = vadd.f32 %v7842, %v8076
      %v8078 = vpop.f32.mrb[0].mxu0
      %8079 = vmatprep.mubr.f32.mxu0 0.0
      %8080 = vmatmul.mubr.f32.gmra.mrb[0].mxu0 %v7890
      %v8081 = vpop.f32.mrb[0].mxu0
      %v8082 = vadd.f32 %v7842, %v8081
      %v8083 = vpop.f32.mrb[0].mxu0
      %8084 = vmatprep.mubr.f32.mxu0 0.0
      %8085 = vmatmul.mubr.f32.gmra.mrb[0].mxu0 %v7893
      %v8086 = vpop.f32.mrb[0].mxu0
      %v8087 = vadd.f32 %v7842, %v8086
      %v8088 = vpop.f32.mrb[0].mxu0
      %8089 = vmatprep.mubr.f32.mxu0 0.0
      %8090 = vmatmul.mubr.f32.gmra.mrb[0].mxu0 %v7896
      %v8091 = vpop.f32.mrb[0].mxu0
      %v8092 = vadd.f32 %v7842, %v8091
      %v8093 = vpop.f32.mrb[0].mxu0
      %8094 = vmatprep.mubr.f32.mxu0 0.0
      %8095 = vmatmul.mubr.f32.gmra.mrb[0].mxu0 %v7899
      %v8096 = vpop.f32.mrb[0].mxu0
      %v8097 = vadd.f32 %v7842, %v8096
      %v8098 = vpop.f32.mrb[0].mxu0
      %8099 = vmatprep.mubr.f32.mxu0 0.0
      %8100 = vmatmul.mubr.f32.gmra.mrb[0].mxu0 %v7902
      %v8101 = vpop.f32.mrb[0].mxu0
      %v8102 = vadd.f32 %v7842, %v8101
      %v8103 = vpop.f32.mrb[0].mxu0
      %8104 = vmatprep.mubr.f32.mxu0 0.0
      %8105 = vmatmul.mubr.f32.gmra.mrb[0].mxu0 %v7905
      %v8106 = vpop.f32.mrb[0].mxu0
      %v8107 = vadd.f32 %v7842, %v8106
      %v8108 = vpop.f32.mrb[0].mxu0
      %8109 = vmatprep.mubr.f32.mxu0 0.0
      %8110 = vmatmul.mubr.f32.gmra.mrb[0].mxu0 %v7908
      %v8111 = vpop.f32.mrb[0].mxu0
      %v8112 = vadd.f32 %v7842, %v8111
      %v8113 = vpop.f32.mrb[0].mxu0
      %8114 = vmatprep.mubr.f32.mxu0 0.0
      %8115 = vmatmul.mubr.f32.gmra.mrb[0].mxu0 %v7911
      %v8116 = vpop.f32.mrb[0].mxu0
      %v8117 = vadd.f32 %v7842, %v8116
      %v8118 = vpop.f32.mrb[0].mxu0
      %8119 = vmatprep.mubr.f32.mxu0 0.0
      %8120 = vmatmul.mubr.f32.gmra.mrb[0].mxu0 %v7914
      %v8121 = vpop.f32.mrb[0].mxu0
      %v8122 = vadd.f32 %v7842, %v8121
      %v8123 = vpop.f32.mrb[0].mxu0
      %8124 = vmatprep.mubr.f32.mxu0 0.0
      %8125 = vmatmul.mubr.f32.gmra.mrb[0].mxu0 %v7917
      %v8126 = vpop.f32.mrb[0].mxu0
      %v8127 = vadd.f32 %v7842, %v8126
      %v8128 = vpop.f32.mrb[0].mxu0
      %8129 = vmatprep.mubr.f32.mxu0 0.0
      %8130 = vmatmul.mubr.f32.gmra.mrb[0].mxu0 %v7920
      %v8131 = vpop.f32.mrb[0].mxu0
      %v8132 = vadd.f32 %v7842, %v8131
      %v8133 = vpop.f32.mrb[0].mxu0
      %8134 = vmatprep.mubr.f32.mxu0 0.0
      %8135 = vmatmul.mubr.f32.gmra.mrb[0].mxu0 %v7923
      %v8136 = vpop.f32.mrb[0].mxu0
      %v8137 = vadd.f32 %v7842, %v8136
      %v8138 = vpop.f32.mrb[0].mxu0
      %8139 = vmatprep.mubr.f32.mxu0 0.0
      %8140 = vmatmul.mubr.f32.gmra.mrb[0].mxu0 %v7926
      %v8141 = vpop.f32.mrb[0].mxu0
      %v8142 = vadd.f32 %v7842, %v8141
      %v8143 = vpop.f32.mrb[0].mxu0
      %8144 = vmatprep.mubr.f32.mxu0 0.0
      %8145 = vmatmul.mubr.f32.gmra.mrb[0].mxu0 %v7929
      %v8146 = vpop.f32.mrb[0].mxu0
      %v8147 = vadd.f32 %v7842, %v8146
      %v8148 = vpop.f32.mrb[0].mxu0
      %8149 = vmatprep.mubr.f32.mxu0 0.0
      %8150 = vmatmul.mubr.f32.gmra.mrb[0].mxu0 %v7932
      %v8151 = vpop.f32.mrb[0].mxu0
      %v8152 = vadd.f32 %v7842, %v8151
      %v8153 = vpop.f32.mrb[0].mxu0
      %8154 = vmatprep.mubr.f32.mxu0 0.0
      %8155 = vmatmul.mubr.f32.gmra.mrb[0].mxu0 %v7935
      %v8156 = vpop.f32.mrb[0].mxu0
      %v8157 = vadd.f32 %v7842, %v8156
      %v8158 = vpop.f32.mrb[0].mxu0
      %8159 = vmatprep.mubr.f32.mxu0 0.0
      %8160 = vmatmul.mubr.f32.gmra.mrb[0].mxu0 %v7938
      %v8161 = vpop.f32.mrb[0].mxu0
      %v8162 = vadd.f32 %v7842, %v8161
      %v8163 = vpop.f32.mrb[0].mxu0
      %8164 = vdwg.mxu0
      %8165 = vst.msk [vmem:[%s258] sm:$0xff] %vm303, %v8007
      %8166 = vst.msk [vmem:[%s258 + $0x8] sm:$0xff] %vm303, %v8012
      %8167 = vst.msk [vmem:[%s258 + $0x10] sm:$0xff] %vm303, %v8017
      %8168 = vst.msk [vmem:[%s258 + $0x18] sm:$0xff] %vm303, %v8022
      %8169 = vst.msk [vmem:[%s258 + $0x20] sm:$0xff] %vm303, %v8027
      %8170 = vst.msk [vmem:[%s258 + $0x28] sm:$0xff] %vm303, %v8032
      %8171 = vst.msk [vmem:[%s258 + $0x30] sm:$0xff] %vm303, %v8037
      %8172 = vst.msk [vmem:[%s258 + $0x38] sm:$0xff] %vm303, %v8042
      %8173 = vst.msk [vmem:[%s258 + $0x40] sm:$0xff] %vm303, %v8047
      %8174 = vst.msk [vmem:[%s258 + $0x48] sm:$0xff] %vm303, %v8052
      %8175 = vst.msk [vmem:[%s258 + $0x50] sm:$0xff] %vm303, %v8057
      %8176 = vst.msk [vmem:[%s258 + $0x58] sm:$0xff] %vm303, %v8062
      %8177 = vst.msk [vmem:[%s258 + $0x60] sm:$0xff] %vm303, %v8067
      %8178 = vst.msk [vmem:[%s258 + $0x68] sm:$0xff] %vm303, %v8072
      %8179 = vst.msk [vmem:[%s258 + $0x70] sm:$0xff] %vm303, %v8077
      %8180 = vst.msk [vmem:[%s258 + $0x78] sm:$0xff] %vm303, %v8082
      %8181 = vst.msk [vmem:[%s258 + $0x80] sm:$0xff] %vm303, %v8087
      %8182 = vst.msk [vmem:[%s258 + $0x88] sm:$0xff] %vm303, %v8092
      %8183 = vst.msk [vmem:[%s258 + $0x90] sm:$0xff] %vm303, %v8097
      %8184 = vst.msk [vmem:[%s258 + $0x98] sm:$0xff] %vm303, %v8102
      %8185 = vst.msk [vmem:[%s258 + $0xa0] sm:$0xff] %vm303, %v8107
      %8186 = vst.msk [vmem:[%s258 + $0xa8] sm:$0xff] %vm303, %v8112
      %8187 = vst.msk [vmem:[%s258 + $0xb0] sm:$0xff] %vm303, %v8117
      %8188 = vst.msk [vmem:[%s258 + $0xb8] sm:$0xff] %vm303, %v8122
      %8189 = vst.msk [vmem:[%s258 + $0xc0] sm:$0xff] %vm303, %v8127
      %8190 = vst.msk [vmem:[%s258 + $0xc8] sm:$0xff] %vm303, %v8132
      %8191 = vst.msk [vmem:[%s258 + $0xd0] sm:$0xff] %vm303, %v8137
      %8192 = vst.msk [vmem:[%s258 + $0xd8] sm:$0xff] %vm303, %v8142
      %8193 = vst.msk [vmem:[%s258 + $0xe0] sm:$0xff] %vm303, %v8147
      %8194 = vst.msk [vmem:[%s258 + $0xe8] sm:$0xff] %vm303, %v8152
      %8195 = vst.msk [vmem:[%s258 + $0xf0] sm:$0xff] %vm303, %v8157
      %8196 = vst.msk [vmem:[%s258 + $0xf8] sm:$0xff] %vm303, %v8162
      %s8197 = smul.u32 4, %s17
      %p8198 = scmp.lt.s32.totalorder %s8197, 7
      %s8199 = scalar_select %p8198, %s8197, 7
      %s8200 = smul.addr %s8199, 8
      %s8201 = smul.addr %s8200, 8
      %s8202 = scalar_lea.vmem %s6, %s8201
      // Predicated region
      $region45: #{tpu_custom_call.1} parent=43 // pred_check
        %p8203 = pneg %p166
      $region46: #{tpu_custom_call.1} parent=43 // pred_check_branch
        %8205 = sbr.rel (%p8203) target = $region48
      $region47: #{tpu_custom_call.1} parent=43 // pred_region
        %s8206 = smul.u32 4, %s17
      $region48: #{tpu_custom_call.1} parent=43 // pred_fallthru
        _
    $region44: #{tpu_custom_call.1} parent=5 // pred_fallthru
      _
    %p8207 = scmp.le.s32.totalorder 2, %s12
    // Predicated region
    $region49: #{tpu_custom_call.1} parent=5 // pred_check
      %p8208 = pneg %p8207
    $region50: #{tpu_custom_call.1} parent=5 // pred_check_branch
      %8210 = sbr.rel (%p8208) target = $region52
    $region51: #{tpu_custom_call.1} parent=5 // pred_region
      %s8211 = ssub.s32 %s12, 2
      // Predicated region
      $region53: #{tpu_custom_call.1} parent=51 // pred_check
        %p8212 = pneg %p172
      $region54: #{tpu_custom_call.1} parent=51 // pred_check_branch
        %8214 = sbr.rel (%p8212) target = $region56
      $region55: #{tpu_custom_call.1} parent=51 // pred_region
        %s8215 = smul.u32 4, %s18
        %p8216 = scmp.lt.s32.totalorder %s8215, 7
        %s8217 = scalar_select %p8216, %s8215, 7
        %s8218 = smul.addr %s8217, 8
        %s8219 = smul.addr %s8218, 8
        %s8220 = scalar_lea.vmem %s6, %s8219
      $region56: #{tpu_custom_call.1} parent=51 // pred_fallthru
        _
    $region52: #{tpu_custom_call.1} parent=5 // pred_fallthru
      _
  $region6: #{tpu_custom_call.1} parent=0 // loop_footer
    %s16 = sadd.s32 1, %s12
  $region7: #{tpu_custom_call.1} parent=0 // loop_footer_branch
    %11 = sbr.rel target = $region3
  $region8: #{tpu_custom_call.1} parent=0 // loop_exit
    _

</llo_original>
